<compile_context>
chip_gen: v7x
topology: tpu7x:2x2x1
jax: 0.10.0
libtpu: 0.0.40
codegen_flags: <defaults>
</compile_context>

<pallas_src>
import functools
import math

import jax
import jax.numpy as jnp
from jax.experimental import pallas as pl
from jax.experimental.pallas import tpu as pltpu


LANE = 128
SUB = 8


# ------------------------------ padding helpers ------------------------------

def _ceil_to(x, m):
    return ((x + m - 1) // m) * m


def _pad2(w, rows, cols):
    w = jnp.asarray(w, jnp.float32)
    return jnp.pad(w, ((0, rows - w.shape[0]), (0, cols - w.shape[1])))


def _pad1(v, n):
    v = jnp.asarray(v, jnp.float32)
    return jnp.pad(v, (0, n - v.shape[0]))


# ----------------------- in-kernel building blocks ---------------------------

def _ln(x, g, b, d_real, eps=1e-5):
    """fp32 LayerNorm over the (zero-padded) last axis, normalizing by the
    TRUE feature count.  Padded lanes of x are exactly zero, padded lanes of
    g/b are zero, so padded lanes of the output stay zero."""
    s1 = jnp.sum(x, axis=-1, keepdims=True)
    s2 = jnp.sum(x * x, axis=-1, keepdims=True)
    mu = s1 * (1.0 / d_real)
    var = jnp.maximum(s2 * (1.0 / d_real) - mu * mu, 0.0)
    return (x - mu) * jax.lax.rsqrt(var + eps) * g + b


def _sdpa(q, k, v):
    """Batched single-head attention.  q/k/v: [B, S, Dp] bf16; the 1/sqrt(D)
    scale is already folded into the q projection.  Softmax stays fp32, the
    divide goes to the EUP via pl.reciprocal."""
    s = jnp.einsum("bqd,bkd->bqk", q, k, preferred_element_type=jnp.float32)
    m = jnp.max(s, axis=-1, keepdims=True)
    p = jnp.exp(s - m)
    denom = jnp.sum(p, axis=-1, keepdims=True)
    o = jnp.einsum("bqk,bkd->bqd", p.astype(jnp.bfloat16), v,
                   preferred_element_type=jnp.float32)
    return o * pl.reciprocal(denom, approx=True)


def _proj(x_bf16, w_ref, bias):
    """bf16 MXU matmul against a layer-stacked weight, fp32 accumulate + bias."""
    return jnp.dot(x_bf16, w_ref[0], preferred_element_type=jnp.float32) + bias


# --------------------------- fused encoder stack -----------------------------
# vec rows: 0=bq 1=bk 2=bv 3=bo 4=ln1_g 5=ln1_b 6=b2 7=ln2_g 8=ln2_b

def _encoder_stack_kernel(src_ref, pos_ref, wqk_ref, wv_ref, wo_ref,
                          w1_ref, w2_ref, vec_ref, b1_ref, o_ref, *, d_real):
    layer = pl.program_id(1)

    @pl.when(layer == 0)
    def _():
        o_ref[...] = src_ref[...]          # seed the VMEM-resident activation

    x = o_ref[...]                         # [Bb, S, Dp] fp32, resident across layers
    pos = pos_ref[...]
    bb, s_len, dp = x.shape
    vec = vec_ref[0]                       # [16, Dp] packed biases / LN params

    xr = x.reshape(bb * s_len, dp)
    qk_in = (x + pos).reshape(bb * s_len, dp).astype(jnp.bfloat16)

    # fused q|k projection, split at a 128-lane boundary (scale folded in wq/bq)
    qk = jnp.dot(qk_in, wqk_ref[0], preferred_element_type=jnp.float32)
    q = (qk[:, :dp] + vec[0]).astype(jnp.bfloat16).reshape(bb, s_len, dp)
    k = (qk[:, dp:] + vec[1]).astype(jnp.bfloat16).reshape(bb, s_len, dp)
    v = (_proj(xr.astype(jnp.bfloat16), wv_ref, vec[2])
         ).astype(jnp.bfloat16).reshape(bb, s_len, dp)

    a = _sdpa(q, k, v).reshape(bb * s_len, dp)
    a = _proj(a.astype(jnp.bfloat16), wo_ref, vec[3])
    x1 = _ln(xr + a, vec[4], vec[5], d_real)

    h = _proj(x1.astype(jnp.bfloat16), w1_ref, b1_ref[0, 0])
    h = jnp.maximum(h, 0.0)
    h = _proj(h.astype(jnp.bfloat16), w2_ref, vec[6])
    x2 = _ln(x1 + h, vec[7], vec[8], d_real)

    o_ref[...] = x2.reshape(bb, s_len, dp)


# --------------------------- fused decoder stack -----------------------------
# vec rows: 0..3 sa bq/bk/bv/bo, 4/5 ln1 g/b, 6..9 ca bq/bk/bv/bo,
#           10/11 ln2 g/b, 12 b2, 13/14 ln3 g/b

def _decoder_stack_kernel(mem_ref, pos_ref, qpos_ref,
                          sa_wqk_ref, sa_wv_ref, sa_wo_ref,
                          ca_wq_ref, ca_wk_ref, ca_wv_ref, ca_wo_ref,
                          w1_ref, w2_ref, vec_ref, b1_ref, norm_ref,
                          o_ref, tgt_ref, *, d_real):
    layer = pl.program_id(1)
    n_layers = pl.num_programs(1)

    @pl.when(layer == 0)
    def _():
        tgt_ref[...] = jnp.zeros_like(tgt_ref)   # DETR decoder starts from zeros

    tgt = tgt_ref[...]                     # [Bb, Q, Dp] fp32 VMEM-resident carry
    bb, q_len, dp = tgt.shape
    mem = mem_ref[...]                     # [Bb, S, Dp]
    s_len = mem.shape[1]
    pos = pos_ref[...]
    qpos = qpos_ref[...]                   # [Q, Dp]
    vec = vec_ref[0]                       # [16, Dp]
    b1 = b1_ref[0, 0]                      # [Fp]

    tgt_r = tgt.reshape(bb * q_len, dp)

    # --- self attention over queries (fused q|k, scale folded in) ---
    qk_in = (tgt + qpos[None]).reshape(bb * q_len, dp).astype(jnp.bfloat16)
    qk = jnp.dot(qk_in, sa_wqk_ref[0], preferred_element_type=jnp.float32)
    q = (qk[:, :dp] + vec[0]).astype(jnp.bfloat16).reshape(bb, q_len, dp)
    k = (qk[:, dp:] + vec[1]).astype(jnp.bfloat16).reshape(bb, q_len, dp)
    v = (_proj(tgt_r.astype(jnp.bfloat16), sa_wv_ref, vec[2])
         ).astype(jnp.bfloat16).reshape(bb, q_len, dp)
    a = _sdpa(q, k, v).reshape(bb * q_len, dp)
    a = _proj(a.astype(jnp.bfloat16), sa_wo_ref, vec[3])
    t1 = _ln(tgt_r + a, vec[4], vec[5], d_real)

    # --- cross attention over encoder memory ---
    q_in = (t1.reshape(bb, q_len, dp) + qpos[None]
            ).reshape(bb * q_len, dp).astype(jnp.bfloat16)
    k_in = (mem + pos).reshape(bb * s_len, dp).astype(jnp.bfloat16)
    mem_r = mem.reshape(bb * s_len, dp).astype(jnp.bfloat16)
    q = (_proj(q_in, ca_wq_ref, vec[6])).astype(jnp.bfloat16).reshape(bb, q_len, dp)
    k = (_proj(k_in, ca_wk_ref, vec[7])).astype(jnp.bfloat16).reshape(bb, s_len, dp)
    v = (_proj(mem_r, ca_wv_ref, vec[8])).astype(jnp.bfloat16).reshape(bb, s_len, dp)
    a = _sdpa(q, k, v).reshape(bb * q_len, dp)
    a = _proj(a.astype(jnp.bfloat16), ca_wo_ref, vec[9])
    t2 = _ln(t1 + a, vec[10], vec[11], d_real)

    # --- FFN ---
    h = _proj(t2.astype(jnp.bfloat16), w1_ref, b1)
    h = jnp.maximum(h, 0.0)
    h = _proj(h.astype(jnp.bfloat16), w2_ref, vec[12])
    t3 = _ln(t2 + h, vec[13], vec[14], d_real)

    tgt_ref[...] = t3.reshape(bb, q_len, dp)

    # aux_loss=False: only the LAST layer is normalized and emitted.
    @pl.when(layer == n_layers - 1)
    def _():
        norm = norm_ref[...]               # [2, Dp]
        hs = _ln(t3, norm[0], norm[1], d_real)
        o_ref[...] = hs.reshape(bb, q_len, dp).astype(o_ref.dtype)


# --------------------- block-spec helpers for (bb, layer) grid ----------------

def _stacked(*dims):
    n = len(dims)
    return pl.BlockSpec((1,) + tuple(dims), lambda bb, l: (l,) + (0,) * n)


def _per_batch(bb_blk, *dims):
    n = len(dims)
    return pl.BlockSpec((bb_blk,) + tuple(dims), lambda bb, l: (bb,) + (0,) * n)


def _shared(*dims):
    n = len(dims)
    return pl.BlockSpec(tuple(dims), lambda bb, l: (0,) * n)


# --------------------------- weight packing ----------------------------------

def _pack_encoder(layers, dp, fp, scale):
    wqk, wv, wo, w1, w2, vec, b1 = [], [], [], [], [], [], []
    for p in layers:
        sa = p["sa"]
        wqk.append(jnp.concatenate(
            [_pad2(sa["wq"] * scale, dp, dp), _pad2(sa["wk"], dp, dp)], axis=1))
        wv.append(_pad2(sa["wv"], dp, dp))
        wo.append(_pad2(sa["wo"], dp, dp))
        w1.append(_pad2(p["w1"], dp, fp))
        w2.append(_pad2(p["w2"], fp, dp))
        rows = [sa["bq"] * scale, sa["bk"], sa["bv"], sa["bo"],
                p["ln1_g"], p["ln1_b"], p["b2"], p["ln2_g"], p["ln2_b"]]
        v = jnp.stack([_pad1(r, dp) for r in rows], axis=0)
        vec.append(jnp.pad(v, ((0, 16 - v.shape[0]), (0, 0))))
        b1.append(_pad1(p["b1"], fp)[None, :])
    bf, f32 = jnp.bfloat16, jnp.float32
    return (jnp.stack(wqk).astype(bf), jnp.stack(wv).astype(bf),
            jnp.stack(wo).astype(bf), jnp.stack(w1).astype(bf),
            jnp.stack(w2).astype(bf), jnp.stack(vec).astype(f32),
            jnp.stack(b1).astype(f32))


def _pack_decoder(layers, dp, fp, scale):
    sa_wqk, sa_wv, sa_wo = [], [], []
    ca_wq, ca_wk, ca_wv, ca_wo = [], [], [], []
    w1, w2, vec, b1 = [], [], [], []
    for p in layers:
        sa, ca = p["sa"], p["ca"]
        sa_wqk.append(jnp.concatenate(
            [_pad2(sa["wq"] * scale, dp, dp), _pad2(sa["wk"], dp, dp)], axis=1))
        sa_wv.append(_pad2(sa["wv"], dp, dp))
        sa_wo.append(_pad2(sa["wo"], dp, dp))
        ca_wq.append(_pad2(ca["wq"] * scale, dp, dp))
        ca_wk.append(_pad2(ca["wk"], dp, dp))
        ca_wv.append(_pad2(ca["wv"], dp, dp))
        ca_wo.append(_pad2(ca["wo"], dp, dp))
        w1.append(_pad2(p["w1"], dp, fp))
        w2.append(_pad2(p["w2"], fp, dp))
        rows = [sa["bq"] * scale, sa["bk"], sa["bv"], sa["bo"],
                p["ln1_g"], p["ln1_b"],
                ca["bq"] * scale, ca["bk"], ca["bv"], ca["bo"],
                p["ln2_g"], p["ln2_b"],
                p["b2"], p["ln3_g"], p["ln3_b"]]
        v = jnp.stack([_pad1(r, dp) for r in rows], axis=0)
        vec.append(jnp.pad(v, ((0, 16 - v.shape[0]), (0, 0))))
        b1.append(_pad1(p["b1"], fp)[None, :])
    bf, f32 = jnp.bfloat16, jnp.float32
    return (jnp.stack(sa_wqk).astype(bf), jnp.stack(sa_wv).astype(bf),
            jnp.stack(sa_wo).astype(bf),
            jnp.stack(ca_wq).astype(bf), jnp.stack(ca_wk).astype(bf),
            jnp.stack(ca_wv).astype(bf), jnp.stack(ca_wo).astype(bf),
            jnp.stack(w1).astype(bf), jnp.stack(w2).astype(bf),
            jnp.stack(vec).astype(f32), jnp.stack(b1).astype(f32))


# ------------------------------ transformer ----------------------------------

def transformer(src, mask, query_embed, pos, p, d_model):
    """src/pos: [B, S, Dp] fp32 (lane-padded, padded lanes are zero);
    query_embed: [Q, D] -> hs_last: [B, Q, Dp] bf16 (final layer, final norm)."""
    del mask  # TODO(synk): key_padding_mask ignored — all-valid in this setup.
    B, S, Dp = src.shape
    Q = query_embed.shape[0]
    enc_layers, dec_layers = p["enc"], p["dec"]
    L_enc, L_dec = len(enc_layers), len(dec_layers)
    F = enc_layers[0]["w1"].shape[1]
    Fp = max(_ceil_to(F, LANE), LANE)
    scale = 1.0 / math.sqrt(d_model)

    # Whole batch lives in one block so the stacked layer weights are DMA'd
    # once per layer; keep a 2-way parallel batch axis only when B is large.
    BB = 2 if (B % 2 == 0 and B >= 4) else 1
    Bb = B // BB

    qpos = jnp.pad(query_embed.astype(jnp.float32),
                   ((0, 0), (0, Dp - query_embed.shape[1])))

    cparams = pltpu.CompilerParams(
        dimension_semantics=("parallel", "arbitrary"),
        vmem_limit_bytes=48 * 1024 * 1024)   # headroom for real DETR dims (v7x)

    # ---- encoder stack: one pallas_call, activations VMEM-resident ----
    enc_packed = _pack_encoder(enc_layers, Dp, Fp, scale)
    memory = pl.pallas_call(
        functools.partial(_encoder_stack_kernel, d_real=d_model),
        out_shape=jax.ShapeDtypeStruct((B, S, Dp), jnp.float32),
        grid_spec=pltpu.PrefetchScalarGridSpec(
            num_scalar_prefetch=0,
            grid=(BB, L_enc),
            in_specs=[
                _per_batch(Bb, S, Dp),       # src
                _per_batch(Bb, S, Dp),       # pos
                _stacked(Dp, 2 * Dp),        # wq|wk (fused)
                _stacked(Dp, Dp),            # wv
                _stacked(Dp, Dp),            # wo
                _stacked(Dp, Fp),            # w1
                _stacked(Fp, Dp),            # w2
                _stacked(16, Dp),            # packed biases + LN params
                _stacked(1, Fp),             # b1
            ],
            out_specs=_per_batch(Bb, S, Dp),
        ),
        compiler_params=cparams,
    )(src, pos, *enc_packed)

    # ---- decoder stack: one pallas_call, tgt carried in VMEM scratch ----
    dec_packed = _pack_decoder(dec_layers, Dp, Fp, scale)
    norm_gb = jnp.stack([_pad1(p["dec_norm_g"], Dp), _pad1(p["dec_norm_b"], Dp)])
    hs_last = pl.pallas_call(
        functools.partial(_decoder_stack_kernel, d_real=d_model),
        out_shape=jax.ShapeDtypeStruct((B, Q, Dp), jnp.bfloat16),
        grid_spec=pltpu.PrefetchScalarGridSpec(
            num_scalar_prefetch=0,
            grid=(BB, L_dec),
            in_specs=[
                _per_batch(Bb, S, Dp),       # memory
                _per_batch(Bb, S, Dp),       # pos
                _shared(Q, Dp),              # query_pos
                _stacked(Dp, 2 * Dp),        # sa wq|wk (fused)
                _stacked(Dp, Dp),            # sa wv
                _stacked(Dp, Dp),            # sa wo
                _stacked(Dp, Dp),            # ca wq
                _stacked(Dp, Dp),            # ca wk
                _stacked(Dp, Dp),            # ca wv
                _stacked(Dp, Dp),            # ca wo
                _stacked(Dp, Fp),            # w1
                _stacked(Fp, Dp),            # w2
                _stacked(16, Dp),            # packed biases + LN params
                _stacked(1, Fp),             # b1
                _shared(2, Dp),              # final decoder norm (g, b)
            ],
            out_specs=_per_batch(Bb, Q, Dp),
            scratch_shapes=[pltpu.VMEM((Bb, Q, Dp), jnp.float32)],
        ),
        compiler_params=cparams,
    )(memory, pos, qpos, *dec_packed, norm_gb)
    return hs_last


# ---------------- fused backbone stem + pool + input_proj --------------------

def _backbone_proj_kernel(x_ref, ws_ref, bs_ref, wp_ref, bp_ref, o_ref):
    x = x_ref[...]                               # [4, tm, Cin] bf16 (2x2 window first)
    four, tm, cin = x.shape
    h = jnp.dot(x.reshape(four * tm, cin), ws_ref[...],
                preferred_element_type=jnp.float32) + bs_ref[...]
    h = jnp.maximum(h, 0.0).reshape(four, tm, -1)
    pooled = (jnp.sum(h, axis=0) * 0.25).astype(jnp.bfloat16)   # 2x2 avg pool
    o_ref[...] = jnp.dot(pooled, wp_ref[...],
                         preferred_element_type=jnp.float32) + bp_ref[...]


def backbone_and_proj(x_nchw, params, dp):
    """TODO(synk): the DETR ResNet backbone is replaced by a 1x1-conv + ReLU +
    2x2 avg-pool stand-in, fused with input_proj so the [B*H*W, Cb]
    intermediate never leaves VMEM.  Returns (src [B,S,Dp] fp32, mask)."""
    x = jnp.transpose(x_nchw, (0, 2, 3, 1)).astype(jnp.float32)  # NCHW -> NHWC
    B, H, W, Cin = x.shape
    Hf, Wf = H // 2, W // 2
    M = B * Hf * Wf
    # group the 2x2 pooling window into a leading axis (pure layout op)
    x4 = x.reshape(B, Hf, 2, Wf, 2, Cin).transpose(2, 4, 0, 1, 3, 5)
    x4 = x4.reshape(4, M, Cin).astype(jnp.bfloat16)

    Cb = params["backbone"]["w"].shape[1]
    Cbp = max(_ceil_to(Cb, LANE), LANE)
    ws = _pad2(params["backbone"]["w"], Cin, Cbp).astype(jnp.bfloat16)
    bs = _pad1(params["backbone"]["b"], Cbp)[None, :]
    wp = _pad2(params["input_proj_w"], Cbp, dp).astype(jnp.bfloat16)
    bp = _pad1(params["input_proj_b"], dp)[None, :]

    Mp = _ceil_to(M, SUB)
    tm = Mp if Mp <= 512 else 512
    Mp = _ceil_to(Mp, tm)
    if Mp != M:
        x4 = jnp.pad(x4, ((0, 0), (0, Mp - M), (0, 0)))

    src = pl.pallas_call(
        _backbone_proj_kernel,
        out_shape=jax.ShapeDtypeStruct((Mp, dp), jnp.float32),
        grid_spec=pltpu.PrefetchScalarGridSpec(
            num_scalar_prefetch=0,
            grid=(Mp // tm,),
            in_specs=[
                pl.BlockSpec((4, tm, Cin), lambda i: (0, i, 0)),
                pl.BlockSpec((Cin, Cbp), lambda i: (0, 0)),
                pl.BlockSpec((1, Cbp), lambda i: (0, 0)),
                pl.BlockSpec((Cbp, dp), lambda i: (0, 0)),
                pl.BlockSpec((1, dp), lambda i: (0, 0)),
            ],
            out_specs=pl.BlockSpec((tm, dp), lambda i: (i, 0)),
        ),
        compiler_params=pltpu.CompilerParams(dimension_semantics=("parallel",)),
    )(x4, ws, bs, wp, bp)

    src = src[:M].reshape(B, Hf * Wf, dp)
    mask = jnp.zeros((B, Hf, Wf), dtype=bool)    # no padded pixels
    return src, mask


# ---------------------- fused prediction heads --------------------------------

def _heads_kernel(x_ref, cw_ref, w1_ref, w2_ref, w3_ref, bo_ref, bh_ref, o_ref):
    x = x_ref[...]                               # [tm, Dp] bf16
    bh = bh_ref[...]                             # [2, Dp] f32 (b1, b2)
    # class head: non-zero only in lanes [0:C1]
    cls = jnp.dot(x, cw_ref[...], preferred_element_type=jnp.float32)
    # 3-layer bbox MLP: final output non-zero only in lanes [C1:C1+4]
    h = jnp.dot(x, w1_ref[...], preferred_element_type=jnp.float32) + bh[0]
    h = jnp.maximum(h, 0.0).astype(jnp.bfloat16)
    h = jnp.dot(h, w2_ref[...], preferred_element_type=jnp.float32) + bh[1]
    h = jnp.maximum(h, 0.0).astype(jnp.bfloat16)
    box = jnp.dot(h, w3_ref[...], preferred_element_type=jnp.float32)
    # one lane-dense (128-wide) sigmoid'd slab replaces two masked stores
    o_ref[...] = jax.nn.sigmoid(cls + box + bo_ref[...])


def heads(hs_bq, params, d_model):
    """hs_bq: [M, Dp] bf16 -> combined [M, 128] with sigmoid(class) in lanes
    [0:C1] and sigmoid(box) in lanes [C1:C1+4]."""
    M, Dp = hs_bq.shape
    C1 = params["class_w"].shape[1]
    OP = LANE
    D = d_model

    Mp = _ceil_to(M, SUB)
    tm = Mp if Mp <= 256 else 256
    Mp = _ceil_to(Mp, tm)
    x = hs_bq
    if Mp != M:
        x = jnp.pad(x, ((0, Mp - M), (0, 0)))

    cw = _pad2(params["class_w"], Dp, OP)                       # cols [0:C1]
    w3 = jnp.zeros((Dp, OP), jnp.float32).at[:D, C1:C1 + 4].set(
        jnp.asarray(params["bbox_w3"], jnp.float32))            # cols [C1:C1+4]
    bo = jnp.zeros((1, OP), jnp.float32)
    bo = bo.at[0, :C1].set(jnp.asarray(params["class_b"], jnp.float32))
    bo = bo.at[0, C1:C1 + 4].set(jnp.asarray(params["bbox_b3"], jnp.float32))
    w1 = _pad2(params["bbox_w1"], Dp, Dp)
    w2 = _pad2(params["bbox_w2"], Dp, Dp)
    bh = jnp.stack([_pad1(params["bbox_b1"], Dp), _pad1(params["bbox_b2"], Dp)])

    def shared(*dims):
        n = len(dims)
        return pl.BlockSpec(tuple(dims), lambda i: (0,) * n)

    out = pl.pallas_call(
        _heads_kernel,
        out_shape=jax.ShapeDtypeStruct((Mp, OP), jnp.float32),
        grid_spec=pltpu.PrefetchScalarGridSpec(
            num_scalar_prefetch=0,
            grid=(Mp // tm,),
            in_specs=[pl.BlockSpec((tm, Dp), lambda i: (i, 0)),
                      shared(Dp, OP), shared(Dp, Dp), shared(Dp, Dp),
                      shared(Dp, OP), shared(1, OP), shared(2, Dp)],
            out_specs=pl.BlockSpec((tm, OP), lambda i: (i, 0)),
        ),
        compiler_params=pltpu.CompilerParams(dimension_semantics=("parallel",)),
    )(x, cw.astype(jnp.bfloat16), w1.astype(jnp.bfloat16),
      w2.astype(jnp.bfloat16), w3.astype(jnp.bfloat16), bo, bh)
    return out[:M]


# --------------------------- positional encoding -----------------------------

def position_embedding_sine(mask, num_pos_feats, temperature=10000.0):
    """DETR PositionEmbeddingSine (normalize=True).  mask: [B, H, W] bool."""
    not_mask = (~mask).astype(jnp.float32)
    y_embed = jnp.cumsum(not_mask, axis=1)
    x_embed = jnp.cumsum(not_mask, axis=2)
    eps = 1e-6
    scale = 2.0 * math.pi
    y_embed = y_embed / (y_embed[:, -1:, :] + eps) * scale
    x_embed = x_embed / (x_embed[:, :, -1:] + eps) * scale
    dim_t = jnp.arange(num_pos_feats, dtype=jnp.float32)
    dim_t = temperature ** (2.0 * jnp.floor(dim_t / 2.0) / num_pos_feats)
    pos_x = x_embed[:, :, :, None] / dim_t
    pos_y = y_embed[:, :, :, None] / dim_t
    B, H, W = mask.shape
    pos_x = jnp.stack([jnp.sin(pos_x[..., 0::2]), jnp.cos(pos_x[..., 1::2])],
                      axis=4).reshape(B, H, W, -1)
    pos_y = jnp.stack([jnp.sin(pos_y[..., 0::2]), jnp.cos(pos_y[..., 1::2])],
                      axis=4).reshape(B, H, W, -1)
    return jnp.concatenate([pos_y, pos_x], axis=3)  # [B, H, W, 2*num_pos_feats]


# ------------------------------ DETR forward ---------------------------------

def detr_forward(x_nchw, params, hidden_dim):
    D = hidden_dim
    Dp = max(_ceil_to(D, LANE), LANE)

    src, mask = backbone_and_proj(x_nchw, params, Dp)          # [B, S, Dp] fp32
    B = src.shape[0]

    pos = position_embedding_sine(mask, D // 2)                # [B, Hf, Wf, D]
    pos = jnp.pad(pos, ((0, 0), (0, 0), (0, 0), (0, Dp - D)))
    pos = pos.reshape(B, -1, Dp).astype(jnp.float32)
    mask_flat = mask.reshape(B, -1)

    hs_last = transformer(src, mask_flat, params["query_embed"], pos,
                          params["transformer"], D)            # [B, Q, Dp] bf16
    Q = hs_last.shape[1]

    combined = heads(hs_last.reshape(B * Q, Dp), params, D)    # [B*Q, 128]
    C1 = params["class_w"].shape[1]
    pred_logits = combined[:, 0].reshape(B, Q)       # sigmoid(class)[..., 0]
    pred_boxes = combined[:, C1:C1 + 4].reshape(B, Q, 4)
    # TODO(synk): aux_loss branch omitted (aux_loss=False) — only the last
    # decoder layer is run through the final norm and the prediction heads.
    return {"pred_logits": pred_logits, "pred_boxes": pred_boxes}


# ------------------------------ parameter init -------------------------------

def _dense(key, fan_in, fan_out):
    w = jax.random.normal(key, (fan_in, fan_out), jnp.float32) / math.sqrt(fan_in)
    b = jnp.zeros((fan_out,), jnp.float32)
    return w, b


def _attn_params(keys, d):
    wq, bq = _dense(keys[0], d, d)
    wk, bk = _dense(keys[1], d, d)
    wv, bv = _dense(keys[2], d, d)
    wo, bo = _dense(keys[3], d, d)
    return dict(wq=wq, bq=bq, wk=wk, bk=bk, wv=wv, bv=bv, wo=wo, bo=bo)


def build_params(key, *, in_ch, backbone_ch, hidden_dim, ffn_dim,
                 num_classes, num_queries, num_enc, num_dec):
    keys = iter(jax.random.split(key, 128))
    D = hidden_dim
    ones = jnp.ones((D,), jnp.float32)
    zeros = jnp.zeros((D,), jnp.float32)

    bw, bb = _dense(next(keys), in_ch, backbone_ch)
    ipw, ipb = _dense(next(keys), backbone_ch, D)
    query_embed = jax.random.normal(next(keys), (num_queries, D), jnp.float32)

    enc = []
    for _ in range(num_enc):
        sa = _attn_params([next(keys) for _ in range(4)], D)
        w1, b1 = _dense(next(keys), D, ffn_dim)
        w2, b2 = _dense(next(keys), ffn_dim, D)
        enc.append(dict(sa=sa, w1=w1, b1=b1, w2=w2, b2=b2,
                        ln1_g=ones, ln1_b=zeros, ln2_g=ones, ln2_b=zeros))
    dec = []
    for _ in range(num_dec):
        sa = _attn_params([next(keys) for _ in range(4)], D)
        ca = _attn_params([next(keys) for _ in range(4)], D)
        w1, b1 = _dense(next(keys), D, ffn_dim)
        w2, b2 = _dense(next(keys), ffn_dim, D)
        dec.append(dict(sa=sa, ca=ca, w1=w1, b1=b1, w2=w2, b2=b2,
                        ln1_g=ones, ln1_b=zeros, ln2_g=ones, ln2_b=zeros,
                        ln3_g=ones, ln3_b=zeros))

    cw, cb = _dense(next(keys), D, num_classes + 1)
    bw1, bb1 = _dense(next(keys), D, D)
    bw2, bb2 = _dense(next(keys), D, D)
    bw3, bb3 = _dense(next(keys), D, 4)

    return dict(
        backbone=dict(w=bw, b=bb),
        input_proj_w=ipw, input_proj_b=ipb,
        query_embed=query_embed,
        transformer=dict(enc=enc, dec=dec, dec_norm_g=ones, dec_norm_b=zeros),
        class_w=cw, class_b=cb,
        bbox_w1=bw1, bbox_b1=bb1, bbox_w2=bw2, bbox_b2=bb2,
        bbox_w3=bw3, bbox_b3=bb3,
    )


# ---------------------------------- main -------------------------------------

if __name__ == "__main__":
    # Small synthetic config (DETR-like): hidden=32, queries=8, classes=5.
    B, C_IN, H, W = 2, 3, 16, 16
    HIDDEN = 32
    FFN = 64
    BACKBONE_CH = 64
    NUM_CLASSES = 5
    NUM_QUERIES = 8
    NUM_ENC, NUM_DEC = 1, 2

    root = jax.random.PRNGKey(0)
    k_params, k_x = jax.random.split(root)
    params = build_params(k_params, in_ch=C_IN, backbone_ch=BACKBONE_CH,
                          hidden_dim=HIDDEN, ffn_dim=FFN,
                          num_classes=NUM_CLASSES, num_queries=NUM_QUERIES,
                          num_enc=NUM_ENC, num_dec=NUM_DEC)

    x = jax.random.normal(k_x, (B, C_IN, H, W), jnp.float32)  # NCHW like PyTorch

    fwd = jax.jit(detr_forward, static_argnums=2)
    out = fwd(x, params, HIDDEN)
    jax.block_until_ready(out)

    assert out["pred_logits"].shape == (B, NUM_QUERIES)
    assert out["pred_boxes"].shape == (B, NUM_QUERIES, 4)
    assert bool(jnp.all(jnp.isfinite(out["pred_logits"])))
    assert bool(jnp.all(jnp.isfinite(out["pred_boxes"])))
    assert bool(jnp.all((out["pred_boxes"] >= 0.0) & (out["pred_boxes"] <= 1.0)))
    print("KERNEL_OK")
</pallas_src>

<mosaic_0001>
module attributes {stable_mosaic.version = 11 : i64} {
  func.func @_backbone_proj_kernel(%arg0: i32, %arg1: memref<4x128x3xbf16, #tpu.memory_space<vmem>>, %arg2: memref<3x128xbf16, #tpu.memory_space<vmem>>, %arg3: memref<1x128xf32, #tpu.memory_space<vmem>>, %arg4: memref<128x128xbf16, #tpu.memory_space<vmem>>, %arg5: memref<1x128xf32, #tpu.memory_space<vmem>>, %arg6: memref<128x128xf32, #tpu.memory_space<vmem>>) attributes {dimension_semantics = [#tpu.dimension_semantics<parallel>], iteration_bounds = array<i64: 1>, scalar_prefetch = 0 : i64, scratch_operands = 0 : i64, tpu.core_type = #tpu.core_type<tc>, window_params = [{transform_indices = @transform_0, window_bounds = array<i64: 4, 128, 3>}, {pipeline_mode = #tpu.pipeline_mode<synchronous>, transform_indices = @transform_1, window_bounds = array<i64: 3, 128>}, {pipeline_mode = #tpu.pipeline_mode<synchronous>, transform_indices = @transform_2, window_bounds = array<i64: 1, 128>}, {pipeline_mode = #tpu.pipeline_mode<synchronous>, transform_indices = @transform_3, window_bounds = array<i64: 128, 128>}, {pipeline_mode = #tpu.pipeline_mode<synchronous>, transform_indices = @transform_4, window_bounds = array<i64: 1, 128>}, {transform_indices = @transform_5, window_bounds = array<i64: 128, 128>}]} {
    %c0 = arith.constant 0 : index
    %c0_0 = arith.constant 0 : index
    %c0_1 = arith.constant 0 : index
    %0 = vector.load %arg1[%c0, %c0_0, %c0_1] : memref<4x128x3xbf16, #tpu.memory_space<vmem>>, vector<4x128x3xbf16>
    %1 = vector.shape_cast %0 : vector<4x128x3xbf16> to vector<512x3xbf16>
    %c0_2 = arith.constant 0 : index
    %c0_3 = arith.constant 0 : index
    %2 = vector.load %arg2[%c0_2, %c0_3] : memref<3x128xbf16, #tpu.memory_space<vmem>>, vector<3x128xbf16>
    %cst = arith.constant dense<0.000000e+00> : vector<512x128xf32>
    %3 = tpu.matmul %1, %2, %cst {dimension_numbers = #tpu.dot_dimension_numbers<[1], [0], [0], [1], [0, 0, 1, 1], [], []>} : vector<512x3xbf16>, vector<3x128xbf16>, vector<512x128xf32> -> vector<512x128xf32>
    %c0_4 = arith.constant 0 : index
    %c0_5 = arith.constant 0 : index
    %4 = vector.load %arg3[%c0_4, %c0_5] : memref<1x128xf32, #tpu.memory_space<vmem>>, vector<1x128xf32>
    %5 = vector.broadcast %4 : vector<1x128xf32> to vector<512x128xf32>
    %6 = arith.addf %3, %5 : vector<512x128xf32>
    %cst_6 = arith.constant 0.000000e+00 : f32
    %7 = vector.broadcast %cst_6 : f32 to vector<512x128xf32>
    %8 = arith.maximumf %6, %7 : vector<512x128xf32>
    %9 = vector.shape_cast %8 : vector<512x128xf32> to vector<4x128x128xf32>
    %cst_7 = arith.constant dense<0.000000e+00> : vector<128x128xf32>
    %10 = vector.multi_reduction <add>, %9, %cst_7 [0] : vector<4x128x128xf32> to vector<128x128xf32>
    %cst_8 = arith.constant 2.500000e-01 : f32
    %11 = vector.broadcast %cst_8 : f32 to vector<128x128xf32>
    %12 = arith.mulf %10, %11 : vector<128x128xf32>
    %13 = arith.truncf %12 : vector<128x128xf32> to vector<128x128xbf16>
    %c0_9 = arith.constant 0 : index
    %c0_10 = arith.constant 0 : index
    %14 = vector.load %arg4[%c0_9, %c0_10] : memref<128x128xbf16, #tpu.memory_space<vmem>>, vector<128x128xbf16>
    %cst_11 = arith.constant dense<0.000000e+00> : vector<128x128xf32>
    %15 = tpu.matmul %13, %14, %cst_11 {dimension_numbers = #tpu.dot_dimension_numbers<[1], [0], [0], [1], [0, 0, 1, 1], [], []>} : vector<128x128xbf16>, vector<128x128xbf16>, vector<128x128xf32> -> vector<128x128xf32>
    %c0_12 = arith.constant 0 : index
    %c0_13 = arith.constant 0 : index
    %16 = vector.load %arg5[%c0_12, %c0_13] : memref<1x128xf32, #tpu.memory_space<vmem>>, vector<1x128xf32>
    %17 = vector.broadcast %16 : vector<1x128xf32> to vector<128x128xf32>
    %18 = arith.addf %15, %17 : vector<128x128xf32>
    %c0_14 = arith.constant 0 : index
    %c0_15 = arith.constant 0 : index
    %19 = vector.load %arg6[%c0_14, %c0_15] : memref<128x128xf32, #tpu.memory_space<vmem>>, vector<128x128xf32>
    tpu.vector_store %arg6[%c0_14, %c0_15], %18 {strides = array<i32>} : memref<128x128xf32, #tpu.memory_space<vmem>>, vector<128x128xf32>,
    return
  }
  func.func @transform_0(%arg0: i32) -> (i32, i32, i32) {
    %c0_i32 = arith.constant 0 : i32
    %c0_i32_0 = arith.constant 0 : i32
    %c0_i32_1 = arith.constant 0 : i32
    return %c0_i32, %arg0, %c0_i32_0 : i32, i32, i32
  }
  func.func @transform_1(%arg0: i32) -> (i32, i32) {
    %c0_i32 = arith.constant 0 : i32
    %c0_i32_0 = arith.constant 0 : i32
    %c0_i32_1 = arith.constant 0 : i32
    return %c0_i32, %c0_i32_0 : i32, i32
  }
  func.func @transform_2(%arg0: i32) -> (i32, i32) {
    %c0_i32 = arith.constant 0 : i32
    %c0_i32_0 = arith.constant 0 : i32
    %c0_i32_1 = arith.constant 0 : i32
    return %c0_i32, %c0_i32_0 : i32, i32
  }
  func.func @transform_3(%arg0: i32) -> (i32, i32) {
    %c0_i32 = arith.constant 0 : i32
    %c0_i32_0 = arith.constant 0 : i32
    %c0_i32_1 = arith.constant 0 : i32
    return %c0_i32, %c0_i32_0 : i32, i32
  }
  func.func @transform_4(%arg0: i32) -> (i32, i32) {
    %c0_i32 = arith.constant 0 : i32
    %c0_i32_0 = arith.constant 0 : i32
    %c0_i32_1 = arith.constant 0 : i32
    return %c0_i32, %c0_i32_0 : i32, i32
  }
  func.func @transform_5(%arg0: i32) -> (i32, i32) {
    %c0_i32 = arith.constant 0 : i32
    %c0_i32_0 = arith.constant 0 : i32
    return %arg0, %c0_i32 : i32, i32
  }
}

module attributes {stable_mosaic.version = 11 : i64} {
  func.func @_encoder_stack_kernel(%arg0: i32, %arg1: i32, %arg2: memref<2x64x128xf32, #tpu.memory_space<vmem>>, %arg3: memref<2x64x128xf32, #tpu.memory_space<vmem>>, %arg4: memref<1x128x256xbf16, #tpu.memory_space<vmem>>, %arg5: memref<1x128x128xbf16, #tpu.memory_space<vmem>>, %arg6: memref<1x128x128xbf16, #tpu.memory_space<vmem>>, %arg7: memref<1x128x128xbf16, #tpu.memory_space<vmem>>, %arg8: memref<1x128x128xbf16, #tpu.memory_space<vmem>>, %arg9: memref<1x16x128xf32, #tpu.memory_space<vmem>>, %arg10: memref<1x1x128xf32, #tpu.memory_space<vmem>>, %arg11: memref<2x64x128xf32, #tpu.memory_space<vmem>>) attributes {dimension_semantics = [#tpu.dimension_semantics<parallel>, #tpu.dimension_semantics<arbitrary>], iteration_bounds = array<i64: 1, 1>, scalar_prefetch = 0 : i64, scratch_operands = 0 : i64, tpu.core_type = #tpu.core_type<tc>, window_params = [{transform_indices = @transform_0, window_bounds = array<i64: 2, 64, 128>}, {transform_indices = @transform_1, window_bounds = array<i64: 2, 64, 128>}, {transform_indices = @transform_2, window_bounds = array<i64: 1, 128, 256>}, {transform_indices = @transform_3, window_bounds = array<i64: 1, 128, 128>}, {transform_indices = @transform_4, window_bounds = array<i64: 1, 128, 128>}, {transform_indices = @transform_5, window_bounds = array<i64: 1, 128, 128>}, {transform_indices = @transform_6, window_bounds = array<i64: 1, 128, 128>}, {transform_indices = @transform_7, window_bounds = array<i64: 1, 16, 128>}, {transform_indices = @transform_8, window_bounds = array<i64: 1, 1, 128>}, {transform_indices = @transform_9, window_bounds = array<i64: 2, 64, 128>}]} {
    %c0_i32 = arith.constant 0 : i32
    %0 = arith.cmpi eq, %arg1, %c0_i32 : i32
    %1 = arith.extui %0 : i1 to i32
    %c0_i32_0 = arith.constant 0 : i32
    %2 = arith.cmpi ne, %1, %c0_i32_0 : i32
    scf.if %2 {
      %c0_51 = arith.constant 0 : index
      %c0_52 = arith.constant 0 : index
      %c0_53 = arith.constant 0 : index
      %148 = vector.load %arg2[%c0_51, %c0_52, %c0_53] : memref<2x64x128xf32, #tpu.memory_space<vmem>>, vector<2x64x128xf32>
      %c0_54 = arith.constant 0 : index
      %c0_55 = arith.constant 0 : index
      %c0_56 = arith.constant 0 : index
      %149 = vector.load %arg11[%c0_54, %c0_55, %c0_56] : memref<2x64x128xf32, #tpu.memory_space<vmem>>, vector<2x64x128xf32>
      tpu.vector_store %arg11[%c0_54, %c0_55, %c0_56], %148 {strides = array<i32>} : memref<2x64x128xf32, #tpu.memory_space<vmem>>, vector<2x64x128xf32>,
    } else {
    }
    %c0 = arith.constant 0 : index
    %c0_1 = arith.constant 0 : index
    %c0_2 = arith.constant 0 : index
    %3 = vector.load %arg11[%c0, %c0_1, %c0_2] : memref<2x64x128xf32, #tpu.memory_space<vmem>>, vector<2x64x128xf32>
    %c0_3 = arith.constant 0 : index
    %c0_4 = arith.constant 0 : index
    %c0_5 = arith.constant 0 : index
    %4 = vector.load %arg3[%c0_3, %c0_4, %c0_5] : memref<2x64x128xf32, #tpu.memory_space<vmem>>, vector<2x64x128xf32>
    %c0_6 = arith.constant 0 : index
    %c0_7 = arith.constant 0 : index
    %c0_8 = arith.constant 0 : index
    %5 = vector.load %arg9[%c0_6, %c0_7, %c0_8] : memref<1x16x128xf32, #tpu.memory_space<vmem>>, vector<1x16x128xf32>
    %6 = vector.shape_cast %5 : vector<1x16x128xf32> to vector<16x128xf32>
    %7 = vector.shape_cast %3 : vector<2x64x128xf32> to vector<128x128xf32>
    %8 = arith.addf %3, %4 : vector<2x64x128xf32>
    %9 = vector.shape_cast %8 : vector<2x64x128xf32> to vector<128x128xf32>
    %10 = arith.truncf %9 : vector<128x128xf32> to vector<128x128xbf16>
    %c0_9 = arith.constant 0 : index
    %c0_10 = arith.constant 0 : index
    %c0_11 = arith.constant 0 : index
    %11 = vector.load %arg4[%c0_9, %c0_10, %c0_11] : memref<1x128x256xbf16, #tpu.memory_space<vmem>>, vector<1x128x256xbf16>
    %12 = vector.shape_cast %11 : vector<1x128x256xbf16> to vector<128x256xbf16>
    %cst = arith.constant dense<0.000000e+00> : vector<128x256xf32>
    %13 = tpu.matmul %10, %12, %cst {dimension_numbers = #tpu.dot_dimension_numbers<[1], [0], [0], [1], [0, 0, 1, 1], [], []>} : vector<128x128xbf16>, vector<128x256xbf16>, vector<128x256xf32> -> vector<128x256xf32>
    %14 = vector.extract_strided_slice %13 {offsets = [0, 0], sizes = [128, 128], strides = [1, 1]} : vector<128x256xf32> to vector<128x128xf32>
    %15 = vector.extract_strided_slice %6 {offsets = [0, 0], sizes = [1, 128], strides = [1, 1]} : vector<16x128xf32> to vector<1x128xf32>
    %16 = vector.shape_cast %15 : vector<1x128xf32> to vector<128xf32>
    %17 = vector.shape_cast %16 : vector<128xf32> to vector<1x128xf32>
    %18 = vector.broadcast %17 : vector<1x128xf32> to vector<128x128xf32>
    %19 = arith.addf %14, %18 : vector<128x128xf32>
    %20 = arith.truncf %19 : vector<128x128xf32> to vector<128x128xbf16>
    %21 = vector.shape_cast %20 : vector<128x128xbf16> to vector<2x64x128xbf16>
    %22 = vector.extract_strided_slice %13 {offsets = [0, 128], sizes = [128, 128], strides = [1, 1]} : vector<128x256xf32> to vector<128x128xf32>
    %23 = vector.extract_strided_slice %6 {offsets = [1, 0], sizes = [1, 128], strides = [1, 1]} : vector<16x128xf32> to vector<1x128xf32>
    %24 = vector.shape_cast %23 : vector<1x128xf32> to vector<128xf32>
    %25 = vector.shape_cast %24 : vector<128xf32> to vector<1x128xf32>
    %26 = vector.broadcast %25 : vector<1x128xf32> to vector<128x128xf32>
    %27 = arith.addf %22, %26 : vector<128x128xf32>
    %28 = arith.truncf %27 : vector<128x128xf32> to vector<128x128xbf16>
    %29 = vector.shape_cast %28 : vector<128x128xbf16> to vector<2x64x128xbf16>
    %30 = arith.truncf %7 : vector<128x128xf32> to vector<128x128xbf16>
    %31 = vector.extract_strided_slice %6 {offsets = [2, 0], sizes = [1, 128], strides = [1, 1]} : vector<16x128xf32> to vector<1x128xf32>
    %32 = vector.shape_cast %31 : vector<1x128xf32> to vector<128xf32>
    %c0_12 = arith.constant 0 : index
    %c0_13 = arith.constant 0 : index
    %c0_14 = arith.constant 0 : index
    %33 = vector.load %arg5[%c0_12, %c0_13, %c0_14] : memref<1x128x128xbf16, #tpu.memory_space<vmem>>, vector<1x128x128xbf16>
    %34 = vector.shape_cast %33 : vector<1x128x128xbf16> to vector<128x128xbf16>
    %cst_15 = arith.constant dense<0.000000e+00> : vector<128x128xf32>
    %35 = tpu.matmul %30, %34, %cst_15 {dimension_numbers = #tpu.dot_dimension_numbers<[1], [0], [0], [1], [0, 0, 1, 1], [], []>} : vector<128x128xbf16>, vector<128x128xbf16>, vector<128x128xf32> -> vector<128x128xf32>
    %36 = vector.shape_cast %32 : vector<128xf32> to vector<1x128xf32>
    %37 = vector.broadcast %36 : vector<1x128xf32> to vector<128x128xf32>
    %38 = arith.addf %35, %37 : vector<128x128xf32>
    %39 = arith.truncf %38 : vector<128x128xf32> to vector<128x128xbf16>
    %40 = vector.shape_cast %39 : vector<128x128xbf16> to vector<2x64x128xbf16>
    "tpu.trace_start"() <{level = 10 : i32, message = "bqd,bkd->bqk"}> : () -> ()
    %cst_16 = arith.constant dense<0.000000e+00> : vector<2x64x64xf32>
    %41 = tpu.matmul %21, %29, %cst_16 {dimension_numbers = #tpu.dot_dimension_numbers<[2], [2], [1], [1], [0, 0, 0, 1, 1, 1], [0], [0]>} : vector<2x64x128xbf16>, vector<2x64x128xbf16>, vector<2x64x64xf32> -> vector<2x64x64xf32>
    "tpu.trace_stop"() : () -> ()
    %cst_17 = arith.constant dense<0xFF800000> : vector<2x64xf32>
    %42 = vector.multi_reduction <maximumf>, %41, %cst_17 [2] : vector<2x64x64xf32> to vector<2x64xf32>
    %43 = vector.shape_cast %42 : vector<2x64xf32> to vector<2x64x1xf32>
    %44 = vector.broadcast %43 : vector<2x64x1xf32> to vector<2x64x64xf32>
    %45 = arith.subf %41, %44 : vector<2x64x64xf32>
    %46 = math.exp %45 : vector<2x64x64xf32>
    %cst_18 = arith.constant dense<0.000000e+00> : vector<2x64xf32>
    %47 = vector.multi_reduction <add>, %46, %cst_18 [2] : vector<2x64x64xf32> to vector<2x64xf32>
    %48 = vector.shape_cast %47 : vector<2x64xf32> to vector<2x64x1xf32>
    %49 = arith.truncf %46 : vector<2x64x64xf32> to vector<2x64x64xbf16>
    "tpu.trace_start"() <{level = 10 : i32, message = "bqk,bkd->bqd"}> : () -> ()
    %cst_19 = arith.constant dense<0.000000e+00> : vector<2x64x128xf32>
    %50 = tpu.matmul %49, %40, %cst_19 {dimension_numbers = #tpu.dot_dimension_numbers<[2], [1], [1], [2], [0, 0, 0, 1, 1, 2], [0], [0]>} : vector<2x64x64xbf16>, vector<2x64x128xbf16>, vector<2x64x128xf32> -> vector<2x64x128xf32>
    "tpu.trace_stop"() : () -> ()
    %51 = tpu.reciprocal %48 {approx = true} : vector<2x64x1xf32> -> vector<2x64x1xf32>
    %52 = vector.broadcast %51 : vector<2x64x1xf32> to vector<2x64x128xf32>
    %53 = arith.mulf %50, %52 : vector<2x64x128xf32>
    %54 = vector.shape_cast %53 : vector<2x64x128xf32> to vector<128x128xf32>
    %55 = arith.truncf %54 : vector<128x128xf32> to vector<128x128xbf16>
    %56 = vector.extract_strided_slice %6 {offsets = [3, 0], sizes = [1, 128], strides = [1, 1]} : vector<16x128xf32> to vector<1x128xf32>
    %57 = vector.shape_cast %56 : vector<1x128xf32> to vector<128xf32>
    %c0_20 = arith.constant 0 : index
    %c0_21 = arith.constant 0 : index
    %c0_22 = arith.constant 0 : index
    %58 = vector.load %arg6[%c0_20, %c0_21, %c0_22] : memref<1x128x128xbf16, #tpu.memory_space<vmem>>, vector<1x128x128xbf16>
    %59 = vector.shape_cast %58 : vector<1x128x128xbf16> to vector<128x128xbf16>
    %cst_23 = arith.constant dense<0.000000e+00> : vector<128x128xf32>
    %60 = tpu.matmul %55, %59, %cst_23 {dimension_numbers = #tpu.dot_dimension_numbers<[1], [0], [0], [1], [0, 0, 1, 1], [], []>} : vector<128x128xbf16>, vector<128x128xbf16>, vector<128x128xf32> -> vector<128x128xf32>
    %61 = vector.shape_cast %57 : vector<128xf32> to vector<1x128xf32>
    %62 = vector.broadcast %61 : vector<1x128xf32> to vector<128x128xf32>
    %63 = arith.addf %60, %62 : vector<128x128xf32>
    %64 = arith.addf %7, %63 : vector<128x128xf32>
    %65 = vector.extract_strided_slice %6 {offsets = [4, 0], sizes = [1, 128], strides = [1, 1]} : vector<16x128xf32> to vector<1x128xf32>
    %66 = vector.shape_cast %65 : vector<1x128xf32> to vector<128xf32>
    %67 = vector.extract_strided_slice %6 {offsets = [5, 0], sizes = [1, 128], strides = [1, 1]} : vector<16x128xf32> to vector<1x128xf32>
    %68 = vector.shape_cast %67 : vector<1x128xf32> to vector<128xf32>
    %cst_24 = arith.constant dense<0.000000e+00> : vector<128xf32>
    %69 = vector.multi_reduction <add>, %64, %cst_24 [1] : vector<128x128xf32> to vector<128xf32>
    %70 = vector.shape_cast %69 : vector<128xf32> to vector<128x1xf32>
    %71 = arith.mulf %64, %64 : vector<128x128xf32>
    %cst_25 = arith.constant dense<0.000000e+00> : vector<128xf32>
    %72 = vector.multi_reduction <add>, %71, %cst_25 [1] : vector<128x128xf32> to vector<128xf32>
    %73 = vector.shape_cast %72 : vector<128xf32> to vector<128x1xf32>
    %cst_26 = arith.constant 3.125000e-02 : f32
    %74 = vector.broadcast %cst_26 : f32 to vector<128x1xf32>
    %75 = arith.mulf %70, %74 : vector<128x1xf32>
    %cst_27 = arith.constant 3.125000e-02 : f32
    %76 = vector.broadcast %cst_27 : f32 to vector<128x1xf32>
    %77 = arith.mulf %73, %76 : vector<128x1xf32>
    %78 = arith.mulf %75, %75 : vector<128x1xf32>
    %79 = arith.subf %77, %78 : vector<128x1xf32>
    %cst_28 = arith.constant 0.000000e+00 : f32
    %80 = vector.broadcast %cst_28 : f32 to vector<128x1xf32>
    %81 = arith.maximumf %79, %80 : vector<128x1xf32>
    %82 = vector.broadcast %75 : vector<128x1xf32> to vector<128x128xf32>
    %83 = arith.subf %64, %82 : vector<128x128xf32>
    %cst_29 = arith.constant 9.99999974E-6 : f32
    %84 = vector.broadcast %cst_29 : f32 to vector<128x1xf32>
    %85 = arith.addf %81, %84 : vector<128x1xf32>
    %86 = math.rsqrt %85 : vector<128x1xf32>
    %87 = vector.broadcast %86 : vector<128x1xf32> to vector<128x128xf32>
    %88 = arith.mulf %83, %87 : vector<128x128xf32>
    %89 = vector.shape_cast %66 : vector<128xf32> to vector<1x128xf32>
    %90 = vector.broadcast %89 : vector<1x128xf32> to vector<128x128xf32>
    %91 = arith.mulf %88, %90 : vector<128x128xf32>
    %92 = vector.shape_cast %68 : vector<128xf32> to vector<1x128xf32>
    %93 = vector.broadcast %92 : vector<1x128xf32> to vector<128x128xf32>
    %94 = arith.addf %91, %93 : vector<128x128xf32>
    %95 = arith.truncf %94 : vector<128x128xf32> to vector<128x128xbf16>
    %c0_30 = arith.constant 0 : index
    %c0_31 = arith.constant 0 : index
    %c0_32 = arith.constant 0 : index
    %96 = vector.load %arg10[%c0_30, %c0_31, %c0_32] : memref<1x1x128xf32, #tpu.memory_space<vmem>>, vector<1x1x128xf32>
    %97 = vector.shape_cast %96 : vector<1x1x128xf32> to vector<128xf32>
    %c0_33 = arith.constant 0 : index
    %c0_34 = arith.constant 0 : index
    %c0_35 = arith.constant 0 : index
    %98 = vector.load %arg7[%c0_33, %c0_34, %c0_35] : memref<1x128x128xbf16, #tpu.memory_space<vmem>>, vector<1x128x128xbf16>
    %99 = vector.shape_cast %98 : vector<1x128x128xbf16> to vector<128x128xbf16>
    %cst_36 = arith.constant dense<0.000000e+00> : vector<128x128xf32>
    %100 = tpu.matmul %95, %99, %cst_36 {dimension_numbers = #tpu.dot_dimension_numbers<[1], [0], [0], [1], [0, 0, 1, 1], [], []>} : vector<128x128xbf16>, vector<128x128xbf16>, vector<128x128xf32> -> vector<128x128xf32>
    %101 = vector.shape_cast %97 : vector<128xf32> to vector<1x128xf32>
    %102 = vector.broadcast %101 : vector<1x128xf32> to vector<128x128xf32>
    %103 = arith.addf %100, %102 : vector<128x128xf32>
    %cst_37 = arith.constant 0.000000e+00 : f32
    %104 = vector.broadcast %cst_37 : f32 to vector<128x128xf32>
    %105 = arith.maximumf %103, %104 : vector<128x128xf32>
    %106 = arith.truncf %105 : vector<128x128xf32> to vector<128x128xbf16>
    %107 = vector.extract_strided_slice %6 {offsets = [6, 0], sizes = [1, 128], strides = [1, 1]} : vector<16x128xf32> to vector<1x128xf32>
    %108 = vector.shape_cast %107 : vector<1x128xf32> to vector<128xf32>
    %c0_38 = arith.constant 0 : index
    %c0_39 = arith.constant 0 : index
    %c0_40 = arith.constant 0 : index
    %109 = vector.load %arg8[%c0_38, %c0_39, %c0_40] : memref<1x128x128xbf16, #tpu.memory_space<vmem>>, vector<1x128x128xbf16>
    %110 = vector.shape_cast %109 : vector<1x128x128xbf16> to vector<128x128xbf16>
    %cst_41 = arith.constant dense<0.000000e+00> : vector<128x128xf32>
    %111 = tpu.matmul %106, %110, %cst_41 {dimension_numbers = #tpu.dot_dimension_numbers<[1], [0], [0], [1], [0, 0, 1, 1], [], []>} : vector<128x128xbf16>, vector<128x128xbf16>, vector<128x128xf32> -> vector<128x128xf32>
    %112 = vector.shape_cast %108 : vector<128xf32> to vector<1x128xf32>
    %113 = vector.broadcast %112 : vector<1x128xf32> to vector<128x128xf32>
    %114 = arith.addf %111, %113 : vector<128x128xf32>
    %115 = arith.addf %94, %114 : vector<128x128xf32>
    %116 = vector.extract_strided_slice %6 {offsets = [7, 0], sizes = [1, 128], strides = [1, 1]} : vector<16x128xf32> to vector<1x128xf32>
    %117 = vector.shape_cast %116 : vector<1x128xf32> to vector<128xf32>
    %118 = vector.extract_strided_slice %6 {offsets = [8, 0], sizes = [1, 128], strides = [1, 1]} : vector<16x128xf32> to vector<1x128xf32>
    %119 = vector.shape_cast %118 : vector<1x128xf32> to vector<128xf32>
    %cst_42 = arith.constant dense<0.000000e+00> : vector<128xf32>
    %120 = vector.multi_reduction <add>, %115, %cst_42 [1] : vector<128x128xf32> to vector<128xf32>
    %121 = vector.shape_cast %120 : vector<128xf32> to vector<128x1xf32>
    %122 = arith.mulf %115, %115 : vector<128x128xf32>
    %cst_43 = arith.constant dense<0.000000e+00> : vector<128xf32>
    %123 = vector.multi_reduction <add>, %122, %cst_43 [1] : vector<128x128xf32> to vector<128xf32>
    %124 = vector.shape_cast %123 : vector<128xf32> to vector<128x1xf32>
    %cst_44 = arith.constant 3.125000e-02 : f32
    %125 = vector.broadcast %cst_44 : f32 to vector<128x1xf32>
    %126 = arith.mulf %121, %125 : vector<128x1xf32>
    %cst_45 = arith.constant 3.125000e-02 : f32
    %127 = vector.broadcast %cst_45 : f32 to vector<128x1xf32>
    %128 = arith.mulf %124, %127 : vector<128x1xf32>
    %129 = arith.mulf %126, %126 : vector<128x1xf32>
    %130 = arith.subf %128, %129 : vector<128x1xf32>
    %cst_46 = arith.constant 0.000000e+00 : f32
    %131 = vector.broadcast %cst_46 : f32 to vector<128x1xf32>
    %132 = arith.maximumf %130, %131 : vector<128x1xf32>
    %133 = vector.broadcast %126 : vector<128x1xf32> to vector<128x128xf32>
    %134 = arith.subf %115, %133 : vector<128x128xf32>
    %cst_47 = arith.constant 9.99999974E-6 : f32
    %135 = vector.broadcast %cst_47 : f32 to vector<128x1xf32>
    %136 = arith.addf %132, %135 : vector<128x1xf32>
    %137 = math.rsqrt %136 : vector<128x1xf32>
    %138 = vector.broadcast %137 : vector<128x1xf32> to vector<128x128xf32>
    %139 = arith.mulf %134, %138 : vector<128x128xf32>
    %140 = vector.shape_cast %117 : vector<128xf32> to vector<1x128xf32>
    %141 = vector.broadcast %140 : vector<1x128xf32> to vector<128x128xf32>
    %142 = arith.mulf %139, %141 : vector<128x128xf32>
    %143 = vector.shape_cast %119 : vector<128xf32> to vector<1x128xf32>
    %144 = vector.broadcast %143 : vector<1x128xf32> to vector<128x128xf32>
    %145 = arith.addf %142, %144 : vector<128x128xf32>
    %146 = vector.shape_cast %145 : vector<128x128xf32> to vector<2x64x128xf32>
    %c0_48 = arith.constant 0 : index
    %c0_49 = arith.constant 0 : index
    %c0_50 = arith.constant 0 : index
    %147 = vector.load %arg11[%c0_48, %c0_49, %c0_50] : memref<2x64x128xf32, #tpu.memory_space<vmem>>, vector<2x64x128xf32>
    tpu.vector_store %arg11[%c0_48, %c0_49, %c0_50], %146 {strides = array<i32>} : memref<2x64x128xf32, #tpu.memory_space<vmem>>, vector<2x64x128xf32>,
    return
  }
  func.func @transform_0(%arg0: i32, %arg1: i32) -> (i32, i32, i32) {
    %c0_i32 = arith.constant 0 : i32
    %c0_i32_0 = arith.constant 0 : i32
    %c0_i32_1 = arith.constant 0 : i32
    return %arg0, %c0_i32, %c0_i32_0 : i32, i32, i32
  }
  func.func @transform_1(%arg0: i32, %arg1: i32) -> (i32, i32, i32) {
    %c0_i32 = arith.constant 0 : i32
    %c0_i32_0 = arith.constant 0 : i32
    %c0_i32_1 = arith.constant 0 : i32
    return %arg0, %c0_i32, %c0_i32_0 : i32, i32, i32
  }
  func.func @transform_2(%arg0: i32, %arg1: i32) -> (i32, i32, i32) {
    %c0_i32 = arith.constant 0 : i32
    %c0_i32_0 = arith.constant 0 : i32
    %c0_i32_1 = arith.constant 0 : i32
    return %arg1, %c0_i32, %c0_i32_0 : i32, i32, i32
  }
  func.func @transform_3(%arg0: i32, %arg1: i32) -> (i32, i32, i32) {
    %c0_i32 = arith.constant 0 : i32
    %c0_i32_0 = arith.constant 0 : i32
    %c0_i32_1 = arith.constant 0 : i32
    return %arg1, %c0_i32, %c0_i32_0 : i32, i32, i32
  }
  func.func @transform_4(%arg0: i32, %arg1: i32) -> (i32, i32, i32) {
    %c0_i32 = arith.constant 0 : i32
    %c0_i32_0 = arith.constant 0 : i32
    %c0_i32_1 = arith.constant 0 : i32
    return %arg1, %c0_i32, %c0_i32_0 : i32, i32, i32
  }
  func.func @transform_5(%arg0: i32, %arg1: i32) -> (i32, i32, i32) {
    %c0_i32 = arith.constant 0 : i32
    %c0_i32_0 = arith.constant 0 : i32
    %c0_i32_1 = arith.constant 0 : i32
    return %arg1, %c0_i32, %c0_i32_0 : i32, i32, i32
  }
  func.func @transform_6(%arg0: i32, %arg1: i32) -> (i32, i32, i32) {
    %c0_i32 = arith.constant 0 : i32
    %c0_i32_0 = arith.constant 0 : i32
    %c0_i32_1 = arith.constant 0 : i32
    return %arg1, %c0_i32, %c0_i32_0 : i32, i32, i32
  }
  func.func @transform_7(%arg0: i32, %arg1: i32) -> (i32, i32, i32) {
    %c0_i32 = arith.constant 0 : i32
    %c0_i32_0 = arith.constant 0 : i32
    %c0_i32_1 = arith.constant 0 : i32
    return %arg1, %c0_i32, %c0_i32_0 : i32, i32, i32
  }
  func.func @transform_8(%arg0: i32, %arg1: i32) -> (i32, i32, i32) {
    %c0_i32 = arith.constant 0 : i32
    %c0_i32_0 = arith.constant 0 : i32
    %c0_i32_1 = arith.constant 0 : i32
    return %arg1, %c0_i32, %c0_i32_0 : i32, i32, i32
  }
  func.func @transform_9(%arg0: i32, %arg1: i32) -> (i32, i32, i32) {
    %c0_i32 = arith.constant 0 : i32
    %c0_i32_0 = arith.constant 0 : i32
    %c0_i32_1 = arith.constant 0 : i32
    return %arg0, %c0_i32, %c0_i32_0 : i32, i32, i32
  }
}

module attributes {stable_mosaic.version = 11 : i64} {
  func.func @_decoder_stack_kernel(%arg0: i32, %arg1: i32, %arg2: memref<2x64x128xf32, #tpu.memory_space<vmem>>, %arg3: memref<2x64x128xf32, #tpu.memory_space<vmem>>, %arg4: memref<8x128xf32, #tpu.memory_space<vmem>>, %arg5: memref<1x128x256xbf16, #tpu.memory_space<vmem>>, %arg6: memref<1x128x128xbf16, #tpu.memory_space<vmem>>, %arg7: memref<1x128x128xbf16, #tpu.memory_space<vmem>>, %arg8: memref<1x128x128xbf16, #tpu.memory_space<vmem>>, %arg9: memref<1x128x128xbf16, #tpu.memory_space<vmem>>, %arg10: memref<1x128x128xbf16, #tpu.memory_space<vmem>>, %arg11: memref<1x128x128xbf16, #tpu.memory_space<vmem>>, %arg12: memref<1x128x128xbf16, #tpu.memory_space<vmem>>, %arg13: memref<1x128x128xbf16, #tpu.memory_space<vmem>>, %arg14: memref<1x16x128xf32, #tpu.memory_space<vmem>>, %arg15: memref<1x1x128xf32, #tpu.memory_space<vmem>>, %arg16: memref<2x128xf32, #tpu.memory_space<vmem>>, %arg17: memref<2x8x128xbf16, #tpu.memory_space<vmem>>, %arg18: memref<2x8x128xf32, #tpu.memory_space<vmem>>) attributes {dimension_semantics = [#tpu.dimension_semantics<parallel>, #tpu.dimension_semantics<arbitrary>], iteration_bounds = array<i64: 1, 2>, scalar_prefetch = 0 : i64, scratch_operands = 1 : i64, tpu.core_type = #tpu.core_type<tc>, window_params = [{transform_indices = @transform_0, window_bounds = array<i64: 2, 64, 128>}, {transform_indices = @transform_1, window_bounds = array<i64: 2, 64, 128>}, {pipeline_mode = #tpu.pipeline_mode<synchronous>, transform_indices = @transform_2, window_bounds = array<i64: 8, 128>}, {transform_indices = @transform_3, window_bounds = array<i64: 1, 128, 256>}, {transform_indices = @transform_4, window_bounds = array<i64: 1, 128, 128>}, {transform_indices = @transform_5, window_bounds = array<i64: 1, 128, 128>}, {transform_indices = @transform_6, window_bounds = array<i64: 1, 128, 128>}, {transform_indices = @transform_7, window_bounds = array<i64: 1, 128, 128>}, {transform_indices = @transform_8, window_bounds = array<i64: 1, 128, 128>}, {transform_indices = @transform_9, window_bounds = array<i64: 1, 128, 128>}, {transform_indices = @transform_10, window_bounds = array<i64: 1, 128, 128>}, {transform_indices = @transform_11, window_bounds = array<i64: 1, 128, 128>}, {transform_indices = @transform_12, window_bounds = array<i64: 1, 16, 128>}, {transform_indices = @transform_13, window_bounds = array<i64: 1, 1, 128>}, {pipeline_mode = #tpu.pipeline_mode<synchronous>, transform_indices = @transform_14, window_bounds = array<i64: 2, 128>}, {transform_indices = @transform_15, window_bounds = array<i64: 2, 8, 128>}]} {
    %c0_i32 = arith.constant 0 : i32
    %0 = arith.cmpi eq, %arg1, %c0_i32 : i32
    %1 = arith.extui %0 : i1 to i32
    %c0_i32_0 = arith.constant 0 : i32
    %2 = arith.cmpi ne, %1, %c0_i32_0 : i32
    scf.if %2 {
      %cst_83 = arith.constant 0.000000e+00 : f32
      %250 = vector.broadcast %cst_83 : f32 to vector<2x8x128xf32>
      %c0_84 = arith.constant 0 : index
      %c0_85 = arith.constant 0 : index
      %c0_86 = arith.constant 0 : index
      %251 = vector.load %arg18[%c0_84, %c0_85, %c0_86] : memref<2x8x128xf32, #tpu.memory_space<vmem>>, vector<2x8x128xf32>
      tpu.vector_store %arg18[%c0_84, %c0_85, %c0_86], %250 {strides = array<i32>} : memref<2x8x128xf32, #tpu.memory_space<vmem>>, vector<2x8x128xf32>,
    } else {
    }
    %c0 = arith.constant 0 : index
    %c0_1 = arith.constant 0 : index
    %c0_2 = arith.constant 0 : index
    %3 = vector.load %arg18[%c0, %c0_1, %c0_2] : memref<2x8x128xf32, #tpu.memory_space<vmem>>, vector<2x8x128xf32>
    %c0_3 = arith.constant 0 : index
    %c0_4 = arith.constant 0 : index
    %c0_5 = arith.constant 0 : index
    %4 = vector.load %arg2[%c0_3, %c0_4, %c0_5] : memref<2x64x128xf32, #tpu.memory_space<vmem>>, vector<2x64x128xf32>
    %c0_6 = arith.constant 0 : index
    %c0_7 = arith.constant 0 : index
    %c0_8 = arith.constant 0 : index
    %5 = vector.load %arg3[%c0_6, %c0_7, %c0_8] : memref<2x64x128xf32, #tpu.memory_space<vmem>>, vector<2x64x128xf32>
    %c0_9 = arith.constant 0 : index
    %c0_10 = arith.constant 0 : index
    %6 = vector.load %arg4[%c0_9, %c0_10] : memref<8x128xf32, #tpu.memory_space<vmem>>, vector<8x128xf32>
    %c0_11 = arith.constant 0 : index
    %c0_12 = arith.constant 0 : index
    %c0_13 = arith.constant 0 : index
    %7 = vector.load %arg14[%c0_11, %c0_12, %c0_13] : memref<1x16x128xf32, #tpu.memory_space<vmem>>, vector<1x16x128xf32>
    %8 = vector.shape_cast %7 : vector<1x16x128xf32> to vector<16x128xf32>
    %c0_14 = arith.constant 0 : index
    %c0_15 = arith.constant 0 : index
    %c0_16 = arith.constant 0 : index
    %9 = vector.load %arg15[%c0_14, %c0_15, %c0_16] : memref<1x1x128xf32, #tpu.memory_space<vmem>>, vector<1x1x128xf32>
    %10 = vector.shape_cast %9 : vector<1x1x128xf32> to vector<128xf32>
    %11 = vector.shape_cast %3 : vector<2x8x128xf32> to vector<16x128xf32>
    %12 = vector.shape_cast %6 : vector<8x128xf32> to vector<1x8x128xf32>
    %13 = vector.broadcast %12 : vector<1x8x128xf32> to vector<2x8x128xf32>
    %14 = arith.addf %3, %13 : vector<2x8x128xf32>
    %15 = vector.shape_cast %14 : vector<2x8x128xf32> to vector<16x128xf32>
    %16 = arith.truncf %15 : vector<16x128xf32> to vector<16x128xbf16>
    %c0_17 = arith.constant 0 : index
    %c0_18 = arith.constant 0 : index
    %c0_19 = arith.constant 0 : index
    %17 = vector.load %arg5[%c0_17, %c0_18, %c0_19] : memref<1x128x256xbf16, #tpu.memory_space<vmem>>, vector<1x128x256xbf16>
    %18 = vector.shape_cast %17 : vector<1x128x256xbf16> to vector<128x256xbf16>
    %cst = arith.constant dense<0.000000e+00> : vector<16x256xf32>
    %19 = tpu.matmul %16, %18, %cst {dimension_numbers = #tpu.dot_dimension_numbers<[1], [0], [0], [1], [0, 0, 1, 1], [], []>} : vector<16x128xbf16>, vector<128x256xbf16>, vector<16x256xf32> -> vector<16x256xf32>
    %20 = vector.extract_strided_slice %19 {offsets = [0, 0], sizes = [16, 128], strides = [1, 1]} : vector<16x256xf32> to vector<16x128xf32>
    %21 = vector.extract_strided_slice %8 {offsets = [0, 0], sizes = [1, 128], strides = [1, 1]} : vector<16x128xf32> to vector<1x128xf32>
    %22 = vector.shape_cast %21 : vector<1x128xf32> to vector<128xf32>
    %23 = vector.shape_cast %22 : vector<128xf32> to vector<1x128xf32>
    %24 = vector.broadcast %23 : vector<1x128xf32> to vector<16x128xf32>
    %25 = arith.addf %20, %24 : vector<16x128xf32>
    %26 = arith.truncf %25 : vector<16x128xf32> to vector<16x128xbf16>
    %27 = vector.shape_cast %26 : vector<16x128xbf16> to vector<2x8x128xbf16>
    %28 = vector.extract_strided_slice %19 {offsets = [0, 128], sizes = [16, 128], strides = [1, 1]} : vector<16x256xf32> to vector<16x128xf32>
    %29 = vector.extract_strided_slice %8 {offsets = [1, 0], sizes = [1, 128], strides = [1, 1]} : vector<16x128xf32> to vector<1x128xf32>
    %30 = vector.shape_cast %29 : vector<1x128xf32> to vector<128xf32>
    %31 = vector.shape_cast %30 : vector<128xf32> to vector<1x128xf32>
    %32 = vector.broadcast %31 : vector<1x128xf32> to vector<16x128xf32>
    %33 = arith.addf %28, %32 : vector<16x128xf32>
    %34 = arith.truncf %33 : vector<16x128xf32> to vector<16x128xbf16>
    %35 = vector.shape_cast %34 : vector<16x128xbf16> to vector<2x8x128xbf16>
    %36 = arith.truncf %11 : vector<16x128xf32> to vector<16x128xbf16>
    %37 = vector.extract_strided_slice %8 {offsets = [2, 0], sizes = [1, 128], strides = [1, 1]} : vector<16x128xf32> to vector<1x128xf32>
    %38 = vector.shape_cast %37 : vector<1x128xf32> to vector<128xf32>
    %c0_20 = arith.constant 0 : index
    %c0_21 = arith.constant 0 : index
    %c0_22 = arith.constant 0 : index
    %39 = vector.load %arg6[%c0_20, %c0_21, %c0_22] : memref<1x128x128xbf16, #tpu.memory_space<vmem>>, vector<1x128x128xbf16>
    %40 = vector.shape_cast %39 : vector<1x128x128xbf16> to vector<128x128xbf16>
    %cst_23 = arith.constant dense<0.000000e+00> : vector<16x128xf32>
    %41 = tpu.matmul %36, %40, %cst_23 {dimension_numbers = #tpu.dot_dimension_numbers<[1], [0], [0], [1], [0, 0, 1, 1], [], []>} : vector<16x128xbf16>, vector<128x128xbf16>, vector<16x128xf32> -> vector<16x128xf32>
    %42 = vector.shape_cast %38 : vector<128xf32> to vector<1x128xf32>
    %43 = vector.broadcast %42 : vector<1x128xf32> to vector<16x128xf32>
    %44 = arith.addf %41, %43 : vector<16x128xf32>
    %45 = arith.truncf %44 : vector<16x128xf32> to vector<16x128xbf16>
    %46 = vector.shape_cast %45 : vector<16x128xbf16> to vector<2x8x128xbf16>
    "tpu.trace_start"() <{level = 10 : i32, message = "bqd,bkd->bqk"}> : () -> ()
    %cst_24 = arith.constant dense<0.000000e+00> : vector<2x8x8xf32>
    %47 = tpu.matmul %27, %35, %cst_24 {dimension_numbers = #tpu.dot_dimension_numbers<[2], [2], [1], [1], [0, 0, 0, 1, 1, 1], [0], [0]>} : vector<2x8x128xbf16>, vector<2x8x128xbf16>, vector<2x8x8xf32> -> vector<2x8x8xf32>
    "tpu.trace_stop"() : () -> ()
    %cst_25 = arith.constant dense<0xFF800000> : vector<2x8xf32>
    %48 = vector.multi_reduction <maximumf>, %47, %cst_25 [2] : vector<2x8x8xf32> to vector<2x8xf32>
    %49 = vector.shape_cast %48 : vector<2x8xf32> to vector<2x8x1xf32>
    %50 = vector.broadcast %49 : vector<2x8x1xf32> to vector<2x8x8xf32>
    %51 = arith.subf %47, %50 : vector<2x8x8xf32>
    %52 = math.exp %51 : vector<2x8x8xf32>
    %cst_26 = arith.constant dense<0.000000e+00> : vector<2x8xf32>
    %53 = vector.multi_reduction <add>, %52, %cst_26 [2] : vector<2x8x8xf32> to vector<2x8xf32>
    %54 = vector.shape_cast %53 : vector<2x8xf32> to vector<2x8x1xf32>
    %55 = arith.truncf %52 : vector<2x8x8xf32> to vector<2x8x8xbf16>
    "tpu.trace_start"() <{level = 10 : i32, message = "bqk,bkd->bqd"}> : () -> ()
    %cst_27 = arith.constant dense<0.000000e+00> : vector<2x8x128xf32>
    %56 = tpu.matmul %55, %46, %cst_27 {dimension_numbers = #tpu.dot_dimension_numbers<[2], [1], [1], [2], [0, 0, 0, 1, 1, 2], [0], [0]>} : vector<2x8x8xbf16>, vector<2x8x128xbf16>, vector<2x8x128xf32> -> vector<2x8x128xf32>
    "tpu.trace_stop"() : () -> ()
    %57 = tpu.reciprocal %54 {approx = true} : vector<2x8x1xf32> -> vector<2x8x1xf32>
    %58 = vector.broadcast %57 : vector<2x8x1xf32> to vector<2x8x128xf32>
    %59 = arith.mulf %56, %58 : vector<2x8x128xf32>
    %60 = vector.shape_cast %59 : vector<2x8x128xf32> to vector<16x128xf32>
    %61 = arith.truncf %60 : vector<16x128xf32> to vector<16x128xbf16>
    %62 = vector.extract_strided_slice %8 {offsets = [3, 0], sizes = [1, 128], strides = [1, 1]} : vector<16x128xf32> to vector<1x128xf32>
    %63 = vector.shape_cast %62 : vector<1x128xf32> to vector<128xf32>
    %c0_28 = arith.constant 0 : index
    %c0_29 = arith.constant 0 : index
    %c0_30 = arith.constant 0 : index
    %64 = vector.load %arg7[%c0_28, %c0_29, %c0_30] : memref<1x128x128xbf16, #tpu.memory_space<vmem>>, vector<1x128x128xbf16>
    %65 = vector.shape_cast %64 : vector<1x128x128xbf16> to vector<128x128xbf16>
    %cst_31 = arith.constant dense<0.000000e+00> : vector<16x128xf32>
    %66 = tpu.matmul %61, %65, %cst_31 {dimension_numbers = #tpu.dot_dimension_numbers<[1], [0], [0], [1], [0, 0, 1, 1], [], []>} : vector<16x128xbf16>, vector<128x128xbf16>, vector<16x128xf32> -> vector<16x128xf32>
    %67 = vector.shape_cast %63 : vector<128xf32> to vector<1x128xf32>
    %68 = vector.broadcast %67 : vector<1x128xf32> to vector<16x128xf32>
    %69 = arith.addf %66, %68 : vector<16x128xf32>
    %70 = arith.addf %11, %69 : vector<16x128xf32>
    %71 = vector.extract_strided_slice %8 {offsets = [4, 0], sizes = [1, 128], strides = [1, 1]} : vector<16x128xf32> to vector<1x128xf32>
    %72 = vector.shape_cast %71 : vector<1x128xf32> to vector<128xf32>
    %73 = vector.extract_strided_slice %8 {offsets = [5, 0], sizes = [1, 128], strides = [1, 1]} : vector<16x128xf32> to vector<1x128xf32>
    %74 = vector.shape_cast %73 : vector<1x128xf32> to vector<128xf32>
    %cst_32 = arith.constant dense<0.000000e+00> : vector<16xf32>
    %75 = vector.multi_reduction <add>, %70, %cst_32 [1] : vector<16x128xf32> to vector<16xf32>
    %76 = vector.shape_cast %75 : vector<16xf32> to vector<16x1xf32>
    %77 = arith.mulf %70, %70 : vector<16x128xf32>
    %cst_33 = arith.constant dense<0.000000e+00> : vector<16xf32>
    %78 = vector.multi_reduction <add>, %77, %cst_33 [1] : vector<16x128xf32> to vector<16xf32>
    %79 = vector.shape_cast %78 : vector<16xf32> to vector<16x1xf32>
    %cst_34 = arith.constant 3.125000e-02 : f32
    %80 = vector.broadcast %cst_34 : f32 to vector<16x1xf32>
    %81 = arith.mulf %76, %80 : vector<16x1xf32>
    %cst_35 = arith.constant 3.125000e-02 : f32
    %82 = vector.broadcast %cst_35 : f32 to vector<16x1xf32>
    %83 = arith.mulf %79, %82 : vector<16x1xf32>
    %84 = arith.mulf %81, %81 : vector<16x1xf32>
    %85 = arith.subf %83, %84 : vector<16x1xf32>
    %cst_36 = arith.constant 0.000000e+00 : f32
    %86 = vector.broadcast %cst_36 : f32 to vector<16x1xf32>
    %87 = arith.maximumf %85, %86 : vector<16x1xf32>
    %88 = vector.broadcast %81 : vector<16x1xf32> to vector<16x128xf32>
    %89 = arith.subf %70, %88 : vector<16x128xf32>
    %cst_37 = arith.constant 9.99999974E-6 : f32
    %90 = vector.broadcast %cst_37 : f32 to vector<16x1xf32>
    %91 = arith.addf %87, %90 : vector<16x1xf32>
    %92 = math.rsqrt %91 : vector<16x1xf32>
    %93 = vector.broadcast %92 : vector<16x1xf32> to vector<16x128xf32>
    %94 = arith.mulf %89, %93 : vector<16x128xf32>
    %95 = vector.shape_cast %72 : vector<128xf32> to vector<1x128xf32>
    %96 = vector.broadcast %95 : vector<1x128xf32> to vector<16x128xf32>
    %97 = arith.mulf %94, %96 : vector<16x128xf32>
    %98 = vector.shape_cast %74 : vector<128xf32> to vector<1x128xf32>
    %99 = vector.broadcast %98 : vector<1x128xf32> to vector<16x128xf32>
    %100 = arith.addf %97, %99 : vector<16x128xf32>
    %101 = vector.shape_cast %100 : vector<16x128xf32> to vector<2x8x128xf32>
    %102 = vector.shape_cast %6 : vector<8x128xf32> to vector<1x8x128xf32>
    %103 = vector.broadcast %102 : vector<1x8x128xf32> to vector<2x8x128xf32>
    %104 = arith.addf %101, %103 : vector<2x8x128xf32>
    %105 = vector.shape_cast %104 : vector<2x8x128xf32> to vector<16x128xf32>
    %106 = arith.truncf %105 : vector<16x128xf32> to vector<16x128xbf16>
    %107 = arith.addf %4, %5 : vector<2x64x128xf32>
    %108 = vector.shape_cast %107 : vector<2x64x128xf32> to vector<128x128xf32>
    %109 = arith.truncf %108 : vector<128x128xf32> to vector<128x128xbf16>
    %110 = vector.shape_cast %4 : vector<2x64x128xf32> to vector<128x128xf32>
    %111 = arith.truncf %110 : vector<128x128xf32> to vector<128x128xbf16>
    %112 = vector.extract_strided_slice %8 {offsets = [6, 0], sizes = [1, 128], strides = [1, 1]} : vector<16x128xf32> to vector<1x128xf32>
    %113 = vector.shape_cast %112 : vector<1x128xf32> to vector<128xf32>
    %c0_38 = arith.constant 0 : index
    %c0_39 = arith.constant 0 : index
    %c0_40 = arith.constant 0 : index
    %114 = vector.load %arg8[%c0_38, %c0_39, %c0_40] : memref<1x128x128xbf16, #tpu.memory_space<vmem>>, vector<1x128x128xbf16>
    %115 = vector.shape_cast %114 : vector<1x128x128xbf16> to vector<128x128xbf16>
    %cst_41 = arith.constant dense<0.000000e+00> : vector<16x128xf32>
    %116 = tpu.matmul %106, %115, %cst_41 {dimension_numbers = #tpu.dot_dimension_numbers<[1], [0], [0], [1], [0, 0, 1, 1], [], []>} : vector<16x128xbf16>, vector<128x128xbf16>, vector<16x128xf32> -> vector<16x128xf32>
    %117 = vector.shape_cast %113 : vector<128xf32> to vector<1x128xf32>
    %118 = vector.broadcast %117 : vector<1x128xf32> to vector<16x128xf32>
    %119 = arith.addf %116, %118 : vector<16x128xf32>
    %120 = arith.truncf %119 : vector<16x128xf32> to vector<16x128xbf16>
    %121 = vector.shape_cast %120 : vector<16x128xbf16> to vector<2x8x128xbf16>
    %122 = vector.extract_strided_slice %8 {offsets = [7, 0], sizes = [1, 128], strides = [1, 1]} : vector<16x128xf32> to vector<1x128xf32>
    %123 = vector.shape_cast %122 : vector<1x128xf32> to vector<128xf32>
    %c0_42 = arith.constant 0 : index
    %c0_43 = arith.constant 0 : index
    %c0_44 = arith.constant 0 : index
    %124 = vector.load %arg9[%c0_42, %c0_43, %c0_44] : memref<1x128x128xbf16, #tpu.memory_space<vmem>>, vector<1x128x128xbf16>
    %125 = vector.shape_cast %124 : vector<1x128x128xbf16> to vector<128x128xbf16>
    %cst_45 = arith.constant dense<0.000000e+00> : vector<128x128xf32>
    %126 = tpu.matmul %109, %125, %cst_45 {dimension_numbers = #tpu.dot_dimension_numbers<[1], [0], [0], [1], [0, 0, 1, 1], [], []>} : vector<128x128xbf16>, vector<128x128xbf16>, vector<128x128xf32> -> vector<128x128xf32>
    %127 = vector.shape_cast %123 : vector<128xf32> to vector<1x128xf32>
    %128 = vector.broadcast %127 : vector<1x128xf32> to vector<128x128xf32>
    %129 = arith.addf %126, %128 : vector<128x128xf32>
    %130 = arith.truncf %129 : vector<128x128xf32> to vector<128x128xbf16>
    %131 = vector.shape_cast %130 : vector<128x128xbf16> to vector<2x64x128xbf16>
    %132 = vector.extract_strided_slice %8 {offsets = [8, 0], sizes = [1, 128], strides = [1, 1]} : vector<16x128xf32> to vector<1x128xf32>
    %133 = vector.shape_cast %132 : vector<1x128xf32> to vector<128xf32>
    %c0_46 = arith.constant 0 : index
    %c0_47 = arith.constant 0 : index
    %c0_48 = arith.constant 0 : index
    %134 = vector.load %arg10[%c0_46, %c0_47, %c0_48] : memref<1x128x128xbf16, #tpu.memory_space<vmem>>, vector<1x128x128xbf16>
    %135 = vector.shape_cast %134 : vector<1x128x128xbf16> to vector<128x128xbf16>
    %cst_49 = arith.constant dense<0.000000e+00> : vector<128x128xf32>
    %136 = tpu.matmul %111, %135, %cst_49 {dimension_numbers = #tpu.dot_dimension_numbers<[1], [0], [0], [1], [0, 0, 1, 1], [], []>} : vector<128x128xbf16>, vector<128x128xbf16>, vector<128x128xf32> -> vector<128x128xf32>
    %137 = vector.shape_cast %133 : vector<128xf32> to vector<1x128xf32>
    %138 = vector.broadcast %137 : vector<1x128xf32> to vector<128x128xf32>
    %139 = arith.addf %136, %138 : vector<128x128xf32>
    %140 = arith.truncf %139 : vector<128x128xf32> to vector<128x128xbf16>
    %141 = vector.shape_cast %140 : vector<128x128xbf16> to vector<2x64x128xbf16>
    "tpu.trace_start"() <{level = 10 : i32, message = "bqd,bkd->bqk"}> : () -> ()
    %cst_50 = arith.constant dense<0.000000e+00> : vector<2x8x64xf32>
    %142 = tpu.matmul %121, %131, %cst_50 {dimension_numbers = #tpu.dot_dimension_numbers<[2], [2], [1], [1], [0, 0, 0, 1, 1, 1], [0], [0]>} : vector<2x8x128xbf16>, vector<2x64x128xbf16>, vector<2x8x64xf32> -> vector<2x8x64xf32>
    "tpu.trace_stop"() : () -> ()
    %cst_51 = arith.constant dense<0xFF800000> : vector<2x8xf32>
    %143 = vector.multi_reduction <maximumf>, %142, %cst_51 [2] : vector<2x8x64xf32> to vector<2x8xf32>
    %144 = vector.shape_cast %143 : vector<2x8xf32> to vector<2x8x1xf32>
    %145 = vector.broadcast %144 : vector<2x8x1xf32> to vector<2x8x64xf32>
    %146 = arith.subf %142, %145 : vector<2x8x64xf32>
    %147 = math.exp %146 : vector<2x8x64xf32>
    %cst_52 = arith.constant dense<0.000000e+00> : vector<2x8xf32>
    %148 = vector.multi_reduction <add>, %147, %cst_52 [2] : vector<2x8x64xf32> to vector<2x8xf32>
    %149 = vector.shape_cast %148 : vector<2x8xf32> to vector<2x8x1xf32>
    %150 = arith.truncf %147 : vector<2x8x64xf32> to vector<2x8x64xbf16>
    "tpu.trace_start"() <{level = 10 : i32, message = "bqk,bkd->bqd"}> : () -> ()
    %cst_53 = arith.constant dense<0.000000e+00> : vector<2x8x128xf32>
    %151 = tpu.matmul %150, %141, %cst_53 {dimension_numbers = #tpu.dot_dimension_numbers<[2], [1], [1], [2], [0, 0, 0, 1, 1, 2], [0], [0]>} : vector<2x8x64xbf16>, vector<2x64x128xbf16>, vector<2x8x128xf32> -> vector<2x8x128xf32>
    "tpu.trace_stop"() : () -> ()
    %152 = tpu.reciprocal %149 {approx = true} : vector<2x8x1xf32> -> vector<2x8x1xf32>
    %153 = vector.broadcast %152 : vector<2x8x1xf32> to vector<2x8x128xf32>
    %154 = arith.mulf %151, %153 : vector<2x8x128xf32>
    %155 = vector.shape_cast %154 : vector<2x8x128xf32> to vector<16x128xf32>
    %156 = arith.truncf %155 : vector<16x128xf32> to vector<16x128xbf16>
    %157 = vector.extract_strided_slice %8 {offsets = [9, 0], sizes = [1, 128], strides = [1, 1]} : vector<16x128xf32> to vector<1x128xf32>
    %158 = vector.shape_cast %157 : vector<1x128xf32> to vector<128xf32>
    %c0_54 = arith.constant 0 : index
    %c0_55 = arith.constant 0 : index
    %c0_56 = arith.constant 0 : index
    %159 = vector.load %arg11[%c0_54, %c0_55, %c0_56] : memref<1x128x128xbf16, #tpu.memory_space<vmem>>, vector<1x128x128xbf16>
    %160 = vector.shape_cast %159 : vector<1x128x128xbf16> to vector<128x128xbf16>
    %cst_57 = arith.constant dense<0.000000e+00> : vector<16x128xf32>
    %161 = tpu.matmul %156, %160, %cst_57 {dimension_numbers = #tpu.dot_dimension_numbers<[1], [0], [0], [1], [0, 0, 1, 1], [], []>} : vector<16x128xbf16>, vector<128x128xbf16>, vector<16x128xf32> -> vector<16x128xf32>
    %162 = vector.shape_cast %158 : vector<128xf32> to vector<1x128xf32>
    %163 = vector.broadcast %162 : vector<1x128xf32> to vector<16x128xf32>
    %164 = arith.addf %161, %163 : vector<16x128xf32>
    %165 = arith.addf %100, %164 : vector<16x128xf32>
    %166 = vector.extract_strided_slice %8 {offsets = [10, 0], sizes = [1, 128], strides = [1, 1]} : vector<16x128xf32> to vector<1x128xf32>
    %167 = vector.shape_cast %166 : vector<1x128xf32> to vector<128xf32>
    %168 = vector.extract_strided_slice %8 {offsets = [11, 0], sizes = [1, 128], strides = [1, 1]} : vector<16x128xf32> to vector<1x128xf32>
    %169 = vector.shape_cast %168 : vector<1x128xf32> to vector<128xf32>
    %cst_58 = arith.constant dense<0.000000e+00> : vector<16xf32>
    %170 = vector.multi_reduction <add>, %165, %cst_58 [1] : vector<16x128xf32> to vector<16xf32>
    %171 = vector.shape_cast %170 : vector<16xf32> to vector<16x1xf32>
    %172 = arith.mulf %165, %165 : vector<16x128xf32>
    %cst_59 = arith.constant dense<0.000000e+00> : vector<16xf32>
    %173 = vector.multi_reduction <add>, %172, %cst_59 [1] : vector<16x128xf32> to vector<16xf32>
    %174 = vector.shape_cast %173 : vector<16xf32> to vector<16x1xf32>
    %cst_60 = arith.constant 3.125000e-02 : f32
    %175 = vector.broadcast %cst_60 : f32 to vector<16x1xf32>
    %176 = arith.mulf %171, %175 : vector<16x1xf32>
    %cst_61 = arith.constant 3.125000e-02 : f32
    %177 = vector.broadcast %cst_61 : f32 to vector<16x1xf32>
    %178 = arith.mulf %174, %177 : vector<16x1xf32>
    %179 = arith.mulf %176, %176 : vector<16x1xf32>
    %180 = arith.subf %178, %179 : vector<16x1xf32>
    %cst_62 = arith.constant 0.000000e+00 : f32
    %181 = vector.broadcast %cst_62 : f32 to vector<16x1xf32>
    %182 = arith.maximumf %180, %181 : vector<16x1xf32>
    %183 = vector.broadcast %176 : vector<16x1xf32> to vector<16x128xf32>
    %184 = arith.subf %165, %183 : vector<16x128xf32>
    %cst_63 = arith.constant 9.99999974E-6 : f32
    %185 = vector.broadcast %cst_63 : f32 to vector<16x1xf32>
    %186 = arith.addf %182, %185 : vector<16x1xf32>
    %187 = math.rsqrt %186 : vector<16x1xf32>
    %188 = vector.broadcast %187 : vector<16x1xf32> to vector<16x128xf32>
    %189 = arith.mulf %184, %188 : vector<16x128xf32>
    %190 = vector.shape_cast %167 : vector<128xf32> to vector<1x128xf32>
    %191 = vector.broadcast %190 : vector<1x128xf32> to vector<16x128xf32>
    %192 = arith.mulf %189, %191 : vector<16x128xf32>
    %193 = vector.shape_cast %169 : vector<128xf32> to vector<1x128xf32>
    %194 = vector.broadcast %193 : vector<1x128xf32> to vector<16x128xf32>
    %195 = arith.addf %192, %194 : vector<16x128xf32>
    %196 = arith.truncf %195 : vector<16x128xf32> to vector<16x128xbf16>
    %c0_64 = arith.constant 0 : index
    %c0_65 = arith.constant 0 : index
    %c0_66 = arith.constant 0 : index
    %197 = vector.load %arg12[%c0_64, %c0_65, %c0_66] : memref<1x128x128xbf16, #tpu.memory_space<vmem>>, vector<1x128x128xbf16>
    %198 = vector.shape_cast %197 : vector<1x128x128xbf16> to vector<128x128xbf16>
    %cst_67 = arith.constant dense<0.000000e+00> : vector<16x128xf32>
    %199 = tpu.matmul %196, %198, %cst_67 {dimension_numbers = #tpu.dot_dimension_numbers<[1], [0], [0], [1], [0, 0, 1, 1], [], []>} : vector<16x128xbf16>, vector<128x128xbf16>, vector<16x128xf32> -> vector<16x128xf32>
    %200 = vector.shape_cast %10 : vector<128xf32> to vector<1x128xf32>
    %201 = vector.broadcast %200 : vector<1x128xf32> to vector<16x128xf32>
    %202 = arith.addf %199, %201 : vector<16x128xf32>
    %cst_68 = arith.constant 0.000000e+00 : f32
    %203 = vector.broadcast %cst_68 : f32 to vector<16x128xf32>
    %204 = arith.maximumf %202, %203 : vector<16x128xf32>
    %205 = arith.truncf %204 : vector<16x128xf32> to vector<16x128xbf16>
    %206 = vector.extract_strided_slice %8 {offsets = [12, 0], sizes = [1, 128], strides = [1, 1]} : vector<16x128xf32> to vector<1x128xf32>
    %207 = vector.shape_cast %206 : vector<1x128xf32> to vector<128xf32>
    %c0_69 = arith.constant 0 : index
    %c0_70 = arith.constant 0 : index
    %c0_71 = arith.constant 0 : index
    %208 = vector.load %arg13[%c0_69, %c0_70, %c0_71] : memref<1x128x128xbf16, #tpu.memory_space<vmem>>, vector<1x128x128xbf16>
    %209 = vector.shape_cast %208 : vector<1x128x128xbf16> to vector<128x128xbf16>
    %cst_72 = arith.constant dense<0.000000e+00> : vector<16x128xf32>
    %210 = tpu.matmul %205, %209, %cst_72 {dimension_numbers = #tpu.dot_dimension_numbers<[1], [0], [0], [1], [0, 0, 1, 1], [], []>} : vector<16x128xbf16>, vector<128x128xbf16>, vector<16x128xf32> -> vector<16x128xf32>
    %211 = vector.shape_cast %207 : vector<128xf32> to vector<1x128xf32>
    %212 = vector.broadcast %211 : vector<1x128xf32> to vector<16x128xf32>
    %213 = arith.addf %210, %212 : vector<16x128xf32>
    %214 = arith.addf %195, %213 : vector<16x128xf32>
    %215 = vector.extract_strided_slice %8 {offsets = [13, 0], sizes = [1, 128], strides = [1, 1]} : vector<16x128xf32> to vector<1x128xf32>
    %216 = vector.shape_cast %215 : vector<1x128xf32> to vector<128xf32>
    %217 = vector.extract_strided_slice %8 {offsets = [14, 0], sizes = [1, 128], strides = [1, 1]} : vector<16x128xf32> to vector<1x128xf32>
    %218 = vector.shape_cast %217 : vector<1x128xf32> to vector<128xf32>
    %cst_73 = arith.constant dense<0.000000e+00> : vector<16xf32>
    %219 = vector.multi_reduction <add>, %214, %cst_73 [1] : vector<16x128xf32> to vector<16xf32>
    %220 = vector.shape_cast %219 : vector<16xf32> to vector<16x1xf32>
    %221 = arith.mulf %214, %214 : vector<16x128xf32>
    %cst_74 = arith.constant dense<0.000000e+00> : vector<16xf32>
    %222 = vector.multi_reduction <add>, %221, %cst_74 [1] : vector<16x128xf32> to vector<16xf32>
    %223 = vector.shape_cast %222 : vector<16xf32> to vector<16x1xf32>
    %cst_75 = arith.constant 3.125000e-02 : f32
    %224 = vector.broadcast %cst_75 : f32 to vector<16x1xf32>
    %225 = arith.mulf %220, %224 : vector<16x1xf32>
    %cst_76 = arith.constant 3.125000e-02 : f32
    %226 = vector.broadcast %cst_76 : f32 to vector<16x1xf32>
    %227 = arith.mulf %223, %226 : vector<16x1xf32>
    %228 = arith.mulf %225, %225 : vector<16x1xf32>
    %229 = arith.subf %227, %228 : vector<16x1xf32>
    %cst_77 = arith.constant 0.000000e+00 : f32
    %230 = vector.broadcast %cst_77 : f32 to vector<16x1xf32>
    %231 = arith.maximumf %229, %230 : vector<16x1xf32>
    %232 = vector.broadcast %225 : vector<16x1xf32> to vector<16x128xf32>
    %233 = arith.subf %214, %232 : vector<16x128xf32>
    %cst_78 = arith.constant 9.99999974E-6 : f32
    %234 = vector.broadcast %cst_78 : f32 to vector<16x1xf32>
    %235 = arith.addf %231, %234 : vector<16x1xf32>
    %236 = math.rsqrt %235 : vector<16x1xf32>
    %237 = vector.broadcast %236 : vector<16x1xf32> to vector<16x128xf32>
    %238 = arith.mulf %233, %237 : vector<16x128xf32>
    %239 = vector.shape_cast %216 : vector<128xf32> to vector<1x128xf32>
    %240 = vector.broadcast %239 : vector<1x128xf32> to vector<16x128xf32>
    %241 = arith.mulf %238, %240 : vector<16x128xf32>
    %242 = vector.shape_cast %218 : vector<128xf32> to vector<1x128xf32>
    %243 = vector.broadcast %242 : vector<1x128xf32> to vector<16x128xf32>
    %244 = arith.addf %241, %243 : vector<16x128xf32>
    %245 = vector.shape_cast %244 : vector<16x128xf32> to vector<2x8x128xf32>
    %c0_79 = arith.constant 0 : index
    %c0_80 = arith.constant 0 : index
    %c0_81 = arith.constant 0 : index
    %246 = vector.load %arg18[%c0_79, %c0_80, %c0_81] : memref<2x8x128xf32, #tpu.memory_space<vmem>>, vector<2x8x128xf32>
    tpu.vector_store %arg18[%c0_79, %c0_80, %c0_81], %245 {strides = array<i32>} : memref<2x8x128xf32, #tpu.memory_space<vmem>>, vector<2x8x128xf32>,
    %c1_i32 = arith.constant 1 : i32
    %247 = arith.cmpi eq, %arg1, %c1_i32 : i32
    %248 = arith.extui %247 : i1 to i32
    %c0_i32_82 = arith.constant 0 : i32
    %249 = arith.cmpi ne, %248, %c0_i32_82 : i32
    scf.if %249 {
      %c0_83 = arith.constant 0 : index
      %c0_84 = arith.constant 0 : index
      %250 = vector.load %arg16[%c0_83, %c0_84] : memref<2x128xf32, #tpu.memory_space<vmem>>, vector<2x128xf32>
      %251 = vector.extract_strided_slice %250 {offsets = [0, 0], sizes = [1, 128], strides = [1, 1]} : vector<2x128xf32> to vector<1x128xf32>
      %252 = vector.shape_cast %251 : vector<1x128xf32> to vector<128xf32>
      %253 = vector.extract_strided_slice %250 {offsets = [1, 0], sizes = [1, 128], strides = [1, 1]} : vector<2x128xf32> to vector<1x128xf32>
      %254 = vector.shape_cast %253 : vector<1x128xf32> to vector<128xf32>
      %cst_85 = arith.constant dense<0.000000e+00> : vector<16xf32>
      %255 = vector.multi_reduction <add>, %244, %cst_85 [1] : vector<16x128xf32> to vector<16xf32>
      %256 = vector.shape_cast %255 : vector<16xf32> to vector<16x1xf32>
      %257 = arith.mulf %244, %244 : vector<16x128xf32>
      %cst_86 = arith.constant dense<0.000000e+00> : vector<16xf32>
      %258 = vector.multi_reduction <add>, %257, %cst_86 [1] : vector<16x128xf32> to vector<16xf32>
      %259 = vector.shape_cast %258 : vector<16xf32> to vector<16x1xf32>
      %cst_87 = arith.constant 3.125000e-02 : f32
      %260 = vector.broadcast %cst_87 : f32 to vector<16x1xf32>
      %261 = arith.mulf %256, %260 : vector<16x1xf32>
      %cst_88 = arith.constant 3.125000e-02 : f32
      %262 = vector.broadcast %cst_88 : f32 to vector<16x1xf32>
      %263 = arith.mulf %259, %262 : vector<16x1xf32>
      %264 = arith.mulf %261, %261 : vector<16x1xf32>
      %265 = arith.subf %263, %264 : vector<16x1xf32>
      %cst_89 = arith.constant 0.000000e+00 : f32
      %266 = vector.broadcast %cst_89 : f32 to vector<16x1xf32>
      %267 = arith.maximumf %265, %266 : vector<16x1xf32>
      %268 = vector.broadcast %261 : vector<16x1xf32> to vector<16x128xf32>
      %269 = arith.subf %244, %268 : vector<16x128xf32>
      %cst_90 = arith.constant 9.99999974E-6 : f32
      %270 = vector.broadcast %cst_90 : f32 to vector<16x1xf32>
      %271 = arith.addf %267, %270 : vector<16x1xf32>
      %272 = math.rsqrt %271 : vector<16x1xf32>
      %273 = vector.broadcast %272 : vector<16x1xf32> to vector<16x128xf32>
      %274 = arith.mulf %269, %273 : vector<16x128xf32>
      %275 = vector.shape_cast %252 : vector<128xf32> to vector<1x128xf32>
      %276 = vector.broadcast %275 : vector<1x128xf32> to vector<16x128xf32>
      %277 = arith.mulf %274, %276 : vector<16x128xf32>
      %278 = vector.shape_cast %254 : vector<128xf32> to vector<1x128xf32>
      %279 = vector.broadcast %278 : vector<1x128xf32> to vector<16x128xf32>
      %280 = arith.addf %277, %279 : vector<16x128xf32>
      %281 = vector.shape_cast %280 : vector<16x128xf32> to vector<2x8x128xf32>
      %282 = arith.truncf %281 : vector<2x8x128xf32> to vector<2x8x128xbf16>
      %c0_91 = arith.constant 0 : index
      %c0_92 = arith.constant 0 : index
      %c0_93 = arith.constant 0 : index
      %283 = vector.load %arg17[%c0_91, %c0_92, %c0_93] : memref<2x8x128xbf16, #tpu.memory_space<vmem>>, vector<2x8x128xbf16>
      tpu.vector_store %arg17[%c0_91, %c0_92, %c0_93], %282 {strides = array<i32>} : memref<2x8x128xbf16, #tpu.memory_space<vmem>>, vector<2x8x128xbf16>,
    } else {
    }
    return
  }
  func.func @transform_0(%arg0: i32, %arg1: i32) -> (i32, i32, i32) {
    %c0_i32 = arith.constant 0 : i32
    %c0_i32_0 = arith.constant 0 : i32
    %c0_i32_1 = arith.constant 0 : i32
    return %arg0, %c0_i32, %c0_i32_0 : i32, i32, i32
  }
  func.func @transform_1(%arg0: i32, %arg1: i32) -> (i32, i32, i32) {
    %c0_i32 = arith.constant 0 : i32
    %c0_i32_0 = arith.constant 0 : i32
    %c0_i32_1 = arith.constant 0 : i32
    return %arg0, %c0_i32, %c0_i32_0 : i32, i32, i32
  }
  func.func @transform_2(%arg0: i32, %arg1: i32) -> (i32, i32) {
    %c0_i32 = arith.constant 0 : i32
    %c0_i32_0 = arith.constant 0 : i32
    %c0_i32_1 = arith.constant 0 : i32
    return %c0_i32, %c0_i32_0 : i32, i32
  }
  func.func @transform_3(%arg0: i32, %arg1: i32) -> (i32, i32, i32) {
    %c0_i32 = arith.constant 0 : i32
    %c0_i32_0 = arith.constant 0 : i32
    %c0_i32_1 = arith.constant 0 : i32
    return %arg1, %c0_i32, %c0_i32_0 : i32, i32, i32
  }
  func.func @transform_4(%arg0: i32, %arg1: i32) -> (i32, i32, i32) {
    %c0_i32 = arith.constant 0 : i32
    %c0_i32_0 = arith.constant 0 : i32
    %c0_i32_1 = arith.constant 0 : i32
    return %arg1, %c0_i32, %c0_i32_0 : i32, i32, i32
  }
  func.func @transform_5(%arg0: i32, %arg1: i32) -> (i32, i32, i32) {
    %c0_i32 = arith.constant 0 : i32
    %c0_i32_0 = arith.constant 0 : i32
    %c0_i32_1 = arith.constant 0 : i32
    return %arg1, %c0_i32, %c0_i32_0 : i32, i32, i32
  }
  func.func @transform_6(%arg0: i32, %arg1: i32) -> (i32, i32, i32) {
    %c0_i32 = arith.constant 0 : i32
    %c0_i32_0 = arith.constant 0 : i32
    %c0_i32_1 = arith.constant 0 : i32
    return %arg1, %c0_i32, %c0_i32_0 : i32, i32, i32
  }
  func.func @transform_7(%arg0: i32, %arg1: i32) -> (i32, i32, i32) {
    %c0_i32 = arith.constant 0 : i32
    %c0_i32_0 = arith.constant 0 : i32
    %c0_i32_1 = arith.constant 0 : i32
    return %arg1, %c0_i32, %c0_i32_0 : i32, i32, i32
  }
  func.func @transform_8(%arg0: i32, %arg1: i32) -> (i32, i32, i32) {
    %c0_i32 = arith.constant 0 : i32
    %c0_i32_0 = arith.constant 0 : i32
    %c0_i32_1 = arith.constant 0 : i32
    return %arg1, %c0_i32, %c0_i32_0 : i32, i32, i32
  }
  func.func @transform_9(%arg0: i32, %arg1: i32) -> (i32, i32, i32) {
    %c0_i32 = arith.constant 0 : i32
    %c0_i32_0 = arith.constant 0 : i32
    %c0_i32_1 = arith.constant 0 : i32
    return %arg1, %c0_i32, %c0_i32_0 : i32, i32, i32
  }
  func.func @transform_10(%arg0: i32, %arg1: i32) -> (i32, i32, i32) {
    %c0_i32 = arith.constant 0 : i32
    %c0_i32_0 = arith.constant 0 : i32
    %c0_i32_1 = arith.constant 0 : i32
    return %arg1, %c0_i32, %c0_i32_0 : i32, i32, i32
  }
  func.func @transform_11(%arg0: i32, %arg1: i32) -> (i32, i32, i32) {
    %c0_i32 = arith.constant 0 : i32
    %c0_i32_0 = arith.constant 0 : i32
    %c0_i32_1 = arith.constant 0 : i32
    return %arg1, %c0_i32, %c0_i32_0 : i32, i32, i32
  }
  func.func @transform_12(%arg0: i32, %arg1: i32) -> (i32, i32, i32) {
    %c0_i32 = arith.constant 0 : i32
    %c0_i32_0 = arith.constant 0 : i32
    %c0_i32_1 = arith.constant 0 : i32
    return %arg1, %c0_i32, %c0_i32_0 : i32, i32, i32
  }
  func.func @transform_13(%arg0: i32, %arg1: i32) -> (i32, i32, i32) {
    %c0_i32 = arith.constant 0 : i32
    %c0_i32_0 = arith.constant 0 : i32
    %c0_i32_1 = arith.constant 0 : i32
    return %arg1, %c0_i32, %c0_i32_0 : i32, i32, i32
  }
  func.func @transform_14(%arg0: i32, %arg1: i32) -> (i32, i32) {
    %c0_i32 = arith.constant 0 : i32
    %c0_i32_0 = arith.constant 0 : i32
    %c0_i32_1 = arith.constant 0 : i32
    return %c0_i32, %c0_i32_0 : i32, i32
  }
  func.func @transform_15(%arg0: i32, %arg1: i32) -> (i32, i32, i32) {
    %c0_i32 = arith.constant 0 : i32
    %c0_i32_0 = arith.constant 0 : i32
    %c0_i32_1 = arith.constant 0 : i32
    return %arg0, %c0_i32, %c0_i32_0 : i32, i32, i32
  }
}

module attributes {stable_mosaic.version = 11 : i64} {
  func.func @_heads_kernel(%arg0: i32, %arg1: memref<16x128xbf16, #tpu.memory_space<vmem>>, %arg2: memref<128x128xbf16, #tpu.memory_space<vmem>>, %arg3: memref<128x128xbf16, #tpu.memory_space<vmem>>, %arg4: memref<128x128xbf16, #tpu.memory_space<vmem>>, %arg5: memref<128x128xbf16, #tpu.memory_space<vmem>>, %arg6: memref<1x128xf32, #tpu.memory_space<vmem>>, %arg7: memref<2x128xf32, #tpu.memory_space<vmem>>, %arg8: memref<16x128xf32, #tpu.memory_space<vmem>>) attributes {dimension_semantics = [#tpu.dimension_semantics<parallel>], iteration_bounds = array<i64: 1>, scalar_prefetch = 0 : i64, scratch_operands = 0 : i64, tpu.core_type = #tpu.core_type<tc>, window_params = [{transform_indices = @transform_0, window_bounds = array<i64: 16, 128>}, {pipeline_mode = #tpu.pipeline_mode<synchronous>, transform_indices = @transform_1, window_bounds = array<i64: 128, 128>}, {pipeline_mode = #tpu.pipeline_mode<synchronous>, transform_indices = @transform_2, window_bounds = array<i64: 128, 128>}, {pipeline_mode = #tpu.pipeline_mode<synchronous>, transform_indices = @transform_3, window_bounds = array<i64: 128, 128>}, {pipeline_mode = #tpu.pipeline_mode<synchronous>, transform_indices = @transform_4, window_bounds = array<i64: 128, 128>}, {pipeline_mode = #tpu.pipeline_mode<synchronous>, transform_indices = @transform_5, window_bounds = array<i64: 1, 128>}, {pipeline_mode = #tpu.pipeline_mode<synchronous>, transform_indices = @transform_6, window_bounds = array<i64: 2, 128>}, {transform_indices = @transform_7, window_bounds = array<i64: 16, 128>}]} {
    %c0 = arith.constant 0 : index
    %c0_0 = arith.constant 0 : index
    %0 = vector.load %arg1[%c0, %c0_0] : memref<16x128xbf16, #tpu.memory_space<vmem>>, vector<16x128xbf16>
    %c0_1 = arith.constant 0 : index
    %c0_2 = arith.constant 0 : index
    %1 = vector.load %arg7[%c0_1, %c0_2] : memref<2x128xf32, #tpu.memory_space<vmem>>, vector<2x128xf32>
    %c0_3 = arith.constant 0 : index
    %c0_4 = arith.constant 0 : index
    %2 = vector.load %arg2[%c0_3, %c0_4] : memref<128x128xbf16, #tpu.memory_space<vmem>>, vector<128x128xbf16>
    %cst = arith.constant dense<0.000000e+00> : vector<16x128xf32>
    %3 = tpu.matmul %0, %2, %cst {dimension_numbers = #tpu.dot_dimension_numbers<[1], [0], [0], [1], [0, 0, 1, 1], [], []>} : vector<16x128xbf16>, vector<128x128xbf16>, vector<16x128xf32> -> vector<16x128xf32>
    %c0_5 = arith.constant 0 : index
    %c0_6 = arith.constant 0 : index
    %4 = vector.load %arg3[%c0_5, %c0_6] : memref<128x128xbf16, #tpu.memory_space<vmem>>, vector<128x128xbf16>
    %cst_7 = arith.constant dense<0.000000e+00> : vector<16x128xf32>
    %5 = tpu.matmul %0, %4, %cst_7 {dimension_numbers = #tpu.dot_dimension_numbers<[1], [0], [0], [1], [0, 0, 1, 1], [], []>} : vector<16x128xbf16>, vector<128x128xbf16>, vector<16x128xf32> -> vector<16x128xf32>
    %6 = vector.extract_strided_slice %1 {offsets = [0, 0], sizes = [1, 128], strides = [1, 1]} : vector<2x128xf32> to vector<1x128xf32>
    %7 = vector.shape_cast %6 : vector<1x128xf32> to vector<128xf32>
    %8 = vector.shape_cast %7 : vector<128xf32> to vector<1x128xf32>
    %9 = vector.broadcast %8 : vector<1x128xf32> to vector<16x128xf32>
    %10 = arith.addf %5, %9 : vector<16x128xf32>
    %cst_8 = arith.constant 0.000000e+00 : f32
    %11 = vector.broadcast %cst_8 : f32 to vector<16x128xf32>
    %12 = arith.maximumf %10, %11 : vector<16x128xf32>
    %13 = arith.truncf %12 : vector<16x128xf32> to vector<16x128xbf16>
    %c0_9 = arith.constant 0 : index
    %c0_10 = arith.constant 0 : index
    %14 = vector.load %arg4[%c0_9, %c0_10] : memref<128x128xbf16, #tpu.memory_space<vmem>>, vector<128x128xbf16>
    %cst_11 = arith.constant dense<0.000000e+00> : vector<16x128xf32>
    %15 = tpu.matmul %13, %14, %cst_11 {dimension_numbers = #tpu.dot_dimension_numbers<[1], [0], [0], [1], [0, 0, 1, 1], [], []>} : vector<16x128xbf16>, vector<128x128xbf16>, vector<16x128xf32> -> vector<16x128xf32>
    %16 = vector.extract_strided_slice %1 {offsets = [1, 0], sizes = [1, 128], strides = [1, 1]} : vector<2x128xf32> to vector<1x128xf32>
    %17 = vector.shape_cast %16 : vector<1x128xf32> to vector<128xf32>
    %18 = vector.shape_cast %17 : vector<128xf32> to vector<1x128xf32>
    %19 = vector.broadcast %18 : vector<1x128xf32> to vector<16x128xf32>
    %20 = arith.addf %15, %19 : vector<16x128xf32>
    %cst_12 = arith.constant 0.000000e+00 : f32
    %21 = vector.broadcast %cst_12 : f32 to vector<16x128xf32>
    %22 = arith.maximumf %20, %21 : vector<16x128xf32>
    %23 = arith.truncf %22 : vector<16x128xf32> to vector<16x128xbf16>
    %c0_13 = arith.constant 0 : index
    %c0_14 = arith.constant 0 : index
    %24 = vector.load %arg5[%c0_13, %c0_14] : memref<128x128xbf16, #tpu.memory_space<vmem>>, vector<128x128xbf16>
    %cst_15 = arith.constant dense<0.000000e+00> : vector<16x128xf32>
    %25 = tpu.matmul %23, %24, %cst_15 {dimension_numbers = #tpu.dot_dimension_numbers<[1], [0], [0], [1], [0, 0, 1, 1], [], []>} : vector<16x128xbf16>, vector<128x128xbf16>, vector<16x128xf32> -> vector<16x128xf32>
    %26 = arith.addf %3, %25 : vector<16x128xf32>
    %c0_16 = arith.constant 0 : index
    %c0_17 = arith.constant 0 : index
    %27 = vector.load %arg6[%c0_16, %c0_17] : memref<1x128xf32, #tpu.memory_space<vmem>>, vector<1x128xf32>
    %28 = vector.broadcast %27 : vector<1x128xf32> to vector<16x128xf32>
    %29 = arith.addf %26, %28 : vector<16x128xf32>
    %30 = arith.negf %29 : vector<16x128xf32>
    %31 = math.exp %30 : vector<16x128xf32>
    %cst_18 = arith.constant 1.000000e+00 : f32
    %32 = vector.broadcast %cst_18 : f32 to vector<16x128xf32>
    %33 = arith.addf %32, %31 : vector<16x128xf32>
    %34 = arith.divf %32, %33 : vector<16x128xf32>
    %c0_19 = arith.constant 0 : index
    %c0_20 = arith.constant 0 : index
    %35 = vector.load %arg8[%c0_19, %c0_20] : memref<16x128xf32, #tpu.memory_space<vmem>>, vector<16x128xf32>
    tpu.vector_store %arg8[%c0_19, %c0_20], %34 {strides = array<i32>} : memref<16x128xf32, #tpu.memory_space<vmem>>, vector<16x128xf32>,
    return
  }
  func.func @transform_0(%arg0: i32) -> (i32, i32) {
    %c0_i32 = arith.constant 0 : i32
    %c0_i32_0 = arith.constant 0 : i32
    return %arg0, %c0_i32 : i32, i32
  }
  func.func @transform_1(%arg0: i32) -> (i32, i32) {
    %c0_i32 = arith.constant 0 : i32
    %c0_i32_0 = arith.constant 0 : i32
    %c0_i32_1 = arith.constant 0 : i32
    return %c0_i32, %c0_i32_0 : i32, i32
  }
  func.func @transform_2(%arg0: i32) -> (i32, i32) {
    %c0_i32 = arith.constant 0 : i32
    %c0_i32_0 = arith.constant 0 : i32
    %c0_i32_1 = arith.constant 0 : i32
    return %c0_i32, %c0_i32_0 : i32, i32
  }
  func.func @transform_3(%arg0: i32) -> (i32, i32) {
    %c0_i32 = arith.constant 0 : i32
    %c0_i32_0 = arith.constant 0 : i32
    %c0_i32_1 = arith.constant 0 : i32
    return %c0_i32, %c0_i32_0 : i32, i32
  }
  func.func @transform_4(%arg0: i32) -> (i32, i32) {
    %c0_i32 = arith.constant 0 : i32
    %c0_i32_0 = arith.constant 0 : i32
    %c0_i32_1 = arith.constant 0 : i32
    return %c0_i32, %c0_i32_0 : i32, i32
  }
  func.func @transform_5(%arg0: i32) -> (i32, i32) {
    %c0_i32 = arith.constant 0 : i32
    %c0_i32_0 = arith.constant 0 : i32
    %c0_i32_1 = arith.constant 0 : i32
    return %c0_i32, %c0_i32_0 : i32, i32
  }
  func.func @transform_6(%arg0: i32) -> (i32, i32) {
    %c0_i32 = arith.constant 0 : i32
    %c0_i32_0 = arith.constant 0 : i32
    %c0_i32_1 = arith.constant 0 : i32
    return %c0_i32, %c0_i32_0 : i32, i32
  }
  func.func @transform_7(%arg0: i32) -> (i32, i32) {
    %c0_i32 = arith.constant 0 : i32
    %c0_i32_0 = arith.constant 0 : i32
    return %arg0, %c0_i32 : i32, i32
  }
}

</mosaic_0001>

<llo_original>
// kernel: detr_forward.4
$region0: #{detr_forward.4}
  #allocation0 [shape = 'u32[]', space=smem, size = 0x4, offset = 0x4, fixed_abs, tag = 'smem constant byte address 0x4 - core index']
  #allocation1 [shape = 'u32[144,128]{1,0:T(1,128)}', space=vmem, size = 0x12000, scoped, tag = 'internal scratch']
  %s0 = inlined_call_operand.vmem [shape: bf16[4,128,3], index: 0, kind: input, shape index: {}]
  %s1 = inlined_call_operand.vmem [shape: bf16[3,128], index: 1, kind: input, shape index: {}]
  %s2 = inlined_call_operand.vmem [shape: f32[1,128], index: 2, kind: input, shape index: {}]
  %s3 = inlined_call_operand.vmem [shape: bf16[128,128], index: 3, kind: input, shape index: {}]
  %s4 = inlined_call_operand.vmem [shape: f32[1,128], index: 4, kind: input, shape index: {}]
  %s5 = inlined_call_operand.vmem [shape: f32[128,128], index: 5, kind: output, shape index: {}]
  %s6 = sld [smem:[#allocation0]]
  $region30: #{detr_forward.4} parent=0
    _
  %s8 = ssub.s32 1, %s6
  %s9 = scalar_select 0, %s8, %s6
  // Predicated region
  $region2: #{detr_forward.4} parent=0 // pred_check
    _
  $region3: #{detr_forward.4} parent=0 // pred_check_branch
    %11 = sbr.rel (0) target = $region5
  $region4: #{detr_forward.4} parent=0 // pred_region
    _
  $region5: #{detr_forward.4} parent=0 // pred_fallthru
    _
  // Predicated region
  $region6: #{detr_forward.4} parent=0 // pred_check
    _
  $region7: #{detr_forward.4} parent=0 // pred_check_branch
    %13 = sbr.rel (0) target = $region9
  $region8: #{detr_forward.4} parent=0 // pred_region
    _
  $region9: #{detr_forward.4} parent=0 // pred_fallthru
    _
  // Predicated region
  $region10: #{detr_forward.4} parent=0 // pred_check
    _
  $region11: #{detr_forward.4} parent=0 // pred_check_branch
    %15 = sbr.rel (0) target = $region13
  $region12: #{detr_forward.4} parent=0 // pred_region
    _
  $region13: #{detr_forward.4} parent=0 // pred_fallthru
    _
  // Predicated region
  $region14: #{detr_forward.4} parent=0 // pred_check
    _
  $region15: #{detr_forward.4} parent=0 // pred_check_branch
    %17 = sbr.rel (0) target = $region17
  $region16: #{detr_forward.4} parent=0 // pred_region
    _
  $region17: #{detr_forward.4} parent=0 // pred_fallthru
    _
  // Predicated region
  $region18: #{detr_forward.4} parent=0 // pred_check
    _
  $region19: #{detr_forward.4} parent=0 // pred_check_branch
    %19 = sbr.rel (0) target = $region21
  $region20: #{detr_forward.4} parent=0 // pred_region
    _
  $region21: #{detr_forward.4} parent=0 // pred_fallthru
    _
  %v21 = vld [vmem:[%s0] sm:$0xf]
  %v22 = vld [vmem:[%s0 + $0x4] sm:$0xf]
  %v23 = vld [vmem:[%s0 + $0x8] sm:$0xf]
  %v24 = vld [vmem:[%s0 + $0xc] sm:$0xf]
  %v25 = vld [vmem:[%s0 + $0x10] sm:$0xf]
  %v26 = vld [vmem:[%s0 + $0x14] sm:$0xf]
  %v27 = vld [vmem:[%s0 + $0x18] sm:$0xf]
  %v28 = vld [vmem:[%s0 + $0x1c] sm:$0xf]
  %v29 = vld [vmem:[%s0 + $0x20] sm:$0xf]
  %v30 = vld [vmem:[%s0 + $0x24] sm:$0xf]
  %v31 = vld [vmem:[%s0 + $0x28] sm:$0xf]
  %v32 = vld [vmem:[%s0 + $0x2c] sm:$0xf]
  %v33 = vld [vmem:[%s0 + $0x30] sm:$0xf]
  %v34 = vld [vmem:[%s0 + $0x34] sm:$0xf]
  %v35 = vld [vmem:[%s0 + $0x38] sm:$0xf]
  %v36 = vld [vmem:[%s0 + $0x3c] sm:$0xf]
  %v37 = vld [vmem:[%s0 + $0x40] sm:$0xf]
  %v38 = vld [vmem:[%s0 + $0x44] sm:$0xf]
  %v39 = vld [vmem:[%s0 + $0x48] sm:$0xf]
  %v40 = vld [vmem:[%s0 + $0x4c] sm:$0xf]
  %v41 = vld [vmem:[%s0 + $0x50] sm:$0xf]
  %v42 = vld [vmem:[%s0 + $0x54] sm:$0xf]
  %v43 = vld [vmem:[%s0 + $0x58] sm:$0xf]
  %v44 = vld [vmem:[%s0 + $0x5c] sm:$0xf]
  %v45 = vld [vmem:[%s0 + $0x60] sm:$0xf]
  %v46 = vld [vmem:[%s0 + $0x64] sm:$0xf]
  %v47 = vld [vmem:[%s0 + $0x68] sm:$0xf]
  %v48 = vld [vmem:[%s0 + $0x6c] sm:$0xf]
  %v49 = vld [vmem:[%s0 + $0x70] sm:$0xf]
  %v50 = vld [vmem:[%s0 + $0x74] sm:$0xf]
  %v51 = vld [vmem:[%s0 + $0x78] sm:$0xf]
  %v52 = vld [vmem:[%s0 + $0x7c] sm:$0xf]
  %v53 = vld [vmem:[%s0 + $0x80] sm:$0xf]
  %v54 = vld [vmem:[%s0 + $0x84] sm:$0xf]
  %v55 = vld [vmem:[%s0 + $0x88] sm:$0xf]
  %v56 = vld [vmem:[%s0 + $0x8c] sm:$0xf]
  %v57 = vld [vmem:[%s0 + $0x90] sm:$0xf]
  %v58 = vld [vmem:[%s0 + $0x94] sm:$0xf]
  %v59 = vld [vmem:[%s0 + $0x98] sm:$0xf]
  %v60 = vld [vmem:[%s0 + $0x9c] sm:$0xf]
  %v61 = vld [vmem:[%s0 + $0xa0] sm:$0xf]
  %v62 = vld [vmem:[%s0 + $0xa4] sm:$0xf]
  %v63 = vld [vmem:[%s0 + $0xa8] sm:$0xf]
  %v64 = vld [vmem:[%s0 + $0xac] sm:$0xf]
  %v65 = vld [vmem:[%s0 + $0xb0] sm:$0xf]
  %v66 = vld [vmem:[%s0 + $0xb4] sm:$0xf]
  %v67 = vld [vmem:[%s0 + $0xb8] sm:$0xf]
  %v68 = vld [vmem:[%s0 + $0xbc] sm:$0xf]
  %v69 = vld [vmem:[%s0 + $0xc0] sm:$0xf]
  %v70 = vld [vmem:[%s0 + $0xc4] sm:$0xf]
  %v71 = vld [vmem:[%s0 + $0xc8] sm:$0xf]
  %v72 = vld [vmem:[%s0 + $0xcc] sm:$0xf]
  %v73 = vld [vmem:[%s0 + $0xd0] sm:$0xf]
  %v74 = vld [vmem:[%s0 + $0xd4] sm:$0xf]
  %v75 = vld [vmem:[%s0 + $0xd8] sm:$0xf]
  %v76 = vld [vmem:[%s0 + $0xdc] sm:$0xf]
  %v77 = vld [vmem:[%s0 + $0xe0] sm:$0xf]
  %v78 = vld [vmem:[%s0 + $0xe4] sm:$0xf]
  %v79 = vld [vmem:[%s0 + $0xe8] sm:$0xf]
  %v80 = vld [vmem:[%s0 + $0xec] sm:$0xf]
  %v81 = vld [vmem:[%s0 + $0xf0] sm:$0xf]
  %v82 = vld [vmem:[%s0 + $0xf4] sm:$0xf]
  %v83 = vld [vmem:[%s0 + $0xf8] sm:$0xf]
  %v84 = vld [vmem:[%s0 + $0xfc] sm:$0xf]
  %v85 = vld [vmem:[%s1] sm:$0x3]
  %v86 = vld [vmem:[%s2] sm:$0x1]
  %v88 = vlaneseq
  %v89 = vshrl.u32 %v88, 7
  %v90 = vsub.s32 0, %v89
  %v91 = vrot.slane %v86, %v90
  %v157 = vunpack.c.l.b16 %v21
  %v158 = vunpack.c.l.b16 %v22
  %v159 = vunpack.c.l.b16 %v23
  %v160 = vunpack.c.l.b16 %v24
  %v161 = vunpack.c.l.b16 %v25
  %v162 = vunpack.c.l.b16 %v26
  %v163 = vunpack.c.l.b16 %v27
  %v164 = vunpack.c.l.b16 %v28
  %v165 = vunpack.c.l.b16 %v29
  %v166 = vunpack.c.l.b16 %v30
  %v167 = vunpack.c.l.b16 %v31
  %v168 = vunpack.c.l.b16 %v32
  %v169 = vunpack.c.l.b16 %v33
  %v170 = vunpack.c.l.b16 %v34
  %v171 = vunpack.c.l.b16 %v35
  %v172 = vunpack.c.l.b16 %v36
  %v173 = vunpack.c.l.b16 %v37
  %v174 = vunpack.c.l.b16 %v38
  %v175 = vunpack.c.l.b16 %v39
  %v176 = vunpack.c.l.b16 %v40
  %v177 = vunpack.c.l.b16 %v41
  %v178 = vunpack.c.l.b16 %v42
  %v179 = vunpack.c.l.b16 %v43
  %v180 = vunpack.c.l.b16 %v44
  %v181 = vunpack.c.l.b16 %v45
  %v182 = vunpack.c.l.b16 %v46
  %v183 = vunpack.c.l.b16 %v47
  %v184 = vunpack.c.l.b16 %v48
  %v185 = vunpack.c.l.b16 %v49
  %v186 = vunpack.c.l.b16 %v50
  %v187 = vunpack.c.l.b16 %v51
  %v188 = vunpack.c.l.b16 %v52
  %v189 = vunpack.c.l.b16 %v53
  %v190 = vunpack.c.l.b16 %v54
  %v191 = vunpack.c.l.b16 %v55
  %v192 = vunpack.c.l.b16 %v56
  %v193 = vunpack.c.l.b16 %v57
  %v194 = vunpack.c.l.b16 %v58
  %v195 = vunpack.c.l.b16 %v59
  %v196 = vunpack.c.l.b16 %v60
  %v197 = vunpack.c.l.b16 %v61
  %v198 = vunpack.c.l.b16 %v62
  %v199 = vunpack.c.l.b16 %v63
  %v200 = vunpack.c.l.b16 %v64
  %v201 = vunpack.c.l.b16 %v65
  %v202 = vunpack.c.l.b16 %v66
  %v203 = vunpack.c.l.b16 %v67
  %v204 = vunpack.c.l.b16 %v68
  %v205 = vunpack.c.l.b16 %v69
  %v206 = vunpack.c.l.b16 %v70
  %v207 = vunpack.c.l.b16 %v71
  %v208 = vunpack.c.l.b16 %v72
  %v209 = vunpack.c.l.b16 %v73
  %v210 = vunpack.c.l.b16 %v74
  %v211 = vunpack.c.l.b16 %v75
  %v212 = vunpack.c.l.b16 %v76
  %v213 = vunpack.c.l.b16 %v77
  %v214 = vunpack.c.l.b16 %v78
  %v215 = vunpack.c.l.b16 %v79
  %v216 = vunpack.c.l.b16 %v80
  %v217 = vunpack.c.l.b16 %v81
  %v218 = vunpack.c.l.b16 %v82
  %v219 = vunpack.c.l.b16 %v83
  %v220 = vunpack.c.l.b16 %v84
  %v221 = vpack.c.b16 %v158, %v157
  %v222 = vpack.c.b16 %v160, %v159
  %v223 = vpack.c.b16 %v162, %v161
  %v224 = vpack.c.b16 %v164, %v163
  %v225 = vpack.c.b16 %v166, %v165
  %v226 = vpack.c.b16 %v168, %v167
  %v227 = vpack.c.b16 %v170, %v169
  %v228 = vpack.c.b16 %v172, %v171
  %v229 = vpack.c.b16 %v174, %v173
  %v230 = vpack.c.b16 %v176, %v175
  %v231 = vpack.c.b16 %v178, %v177
  %v232 = vpack.c.b16 %v180, %v179
  %v233 = vpack.c.b16 %v182, %v181
  %v234 = vpack.c.b16 %v184, %v183
  %v235 = vpack.c.b16 %v186, %v185
  %v236 = vpack.c.b16 %v188, %v187
  %v237 = vpack.c.b16 %v190, %v189
  %v238 = vpack.c.b16 %v192, %v191
  %v239 = vpack.c.b16 %v194, %v193
  %v240 = vpack.c.b16 %v196, %v195
  %v241 = vpack.c.b16 %v198, %v197
  %v242 = vpack.c.b16 %v200, %v199
  %v243 = vpack.c.b16 %v202, %v201
  %v244 = vpack.c.b16 %v204, %v203
  %v245 = vpack.c.b16 %v206, %v205
  %v246 = vpack.c.b16 %v208, %v207
  %v247 = vpack.c.b16 %v210, %v209
  %v248 = vpack.c.b16 %v212, %v211
  %v249 = vpack.c.b16 %v214, %v213
  %v250 = vpack.c.b16 %v216, %v215
  %v251 = vpack.c.b16 %v218, %v217
  %v252 = vpack.c.b16 %v220, %v219
  %vm253 = vcmask 23552
  %v255 = vsel %vm253, %v221, 0
  %v258 = vsel %vm253, %v222, 0
  %v261 = vsel %vm253, %v223, 0
  %v264 = vsel %vm253, %v224, 0
  %v267 = vsel %vm253, %v225, 0
  %v270 = vsel %vm253, %v226, 0
  %v273 = vsel %vm253, %v227, 0
  %v276 = vsel %vm253, %v228, 0
  %v279 = vsel %vm253, %v229, 0
  %v282 = vsel %vm253, %v230, 0
  %v285 = vsel %vm253, %v231, 0
  %v288 = vsel %vm253, %v232, 0
  %v291 = vsel %vm253, %v233, 0
  %v294 = vsel %vm253, %v234, 0
  %v297 = vsel %vm253, %v235, 0
  %v300 = vsel %vm253, %v236, 0
  %v303 = vsel %vm253, %v237, 0
  %v306 = vsel %vm253, %v238, 0
  %v309 = vsel %vm253, %v239, 0
  %v312 = vsel %vm253, %v240, 0
  %v315 = vsel %vm253, %v241, 0
  %v318 = vsel %vm253, %v242, 0
  %v321 = vsel %vm253, %v243, 0
  %v324 = vsel %vm253, %v244, 0
  %v327 = vsel %vm253, %v245, 0
  %v330 = vsel %vm253, %v246, 0
  %v333 = vsel %vm253, %v247, 0
  %v336 = vsel %vm253, %v248, 0
  %v339 = vsel %vm253, %v249, 0
  %v342 = vsel %vm253, %v250, 0
  %v345 = vsel %vm253, %v251, 0
  %v348 = vsel %vm253, %v252, 0
  %vm350 = vcmask 1040384
  %vm351 = vcmask 1041408
  %v352 = vsel %vm350, 4294967295, 65535
  %v353 = vsel %vm351, %v352, 0
  %v355 = vand.u32 %v85, %v353
  %357 = vmatprep.subr.bf16.mxu0 0
  %358 = vmatpush1.bf16.msra.mxu0 %v355
  %359 = vmatprep.subr.bf16.mxu0 0
  %360 = vmatpush1.bf16.msra.mxu0 0
  %361 = vmatprep.subr.bf16.mxu0 0
  %362 = vmatpush1.bf16.msra.mxu0 0
  %363 = vmatprep.subr.bf16.mxu0 0
  %364 = vmatpush1.bf16.msra.mxu0 0
  %365 = vmatprep.subr.bf16.mxu0 0
  %366 = vmatpush1.bf16.msra.mxu0 0
  %367 = vmatprep.subr.bf16.mxu0 0
  %368 = vmatpush1.bf16.msra.mxu0 0
  %369 = vmatprep.subr.bf16.mxu0 0
  %370 = vmatpush1.bf16.msra.mxu0 0
  %371 = vmatprep.subr.bf16.mxu0 0
  %372 = vmatpush1.bf16.msra.mxu0 0
  %373 = vmatprep.subr.bf16.mxu0 0
  %374 = vmatpush1.bf16.msra.mxu0 0
  %375 = vmatprep.subr.bf16.mxu0 0
  %376 = vmatpush1.bf16.msra.mxu0 0
  %377 = vmatprep.subr.bf16.mxu0 0
  %378 = vmatpush1.bf16.msra.mxu0 0
  %379 = vmatprep.subr.bf16.mxu0 0
  %380 = vmatpush1.bf16.msra.mxu0 0
  %381 = vmatprep.subr.bf16.mxu0 0
  %382 = vmatpush1.bf16.msra.mxu0 0
  %383 = vmatprep.subr.bf16.mxu0 0
  %384 = vmatpush1.bf16.msra.mxu0 0
  %385 = vmatprep.subr.bf16.mxu0 0
  %386 = vmatpush1.bf16.msra.mxu0 0
  %387 = vmatprep.subr.bf16.mxu0 0
  %388 = vmatpush1.bf16.msra.mxu0 0
  %389 = vmatprep.mubr.bf16.mxu0 0
  %390 = vmatmul.mubr.bf16.gmra.mrb[0].mxu0 %v255
  %v391 = vpop.f32.mrb[0].mxu0
  %v392 = vadd.f32 %v91, %v391
  %v393 = vpop.f32.mrb[0].mxu0
  %v394 = vpop.f32.mrb[0].mxu0
  %v395 = vadd.f32 %v91, %v394
  %v396 = vpop.f32.mrb[0].mxu0
  %397 = vmatprep.mubr.bf16.mxu0 0
  %398 = vmatmul.mubr.bf16.gmra.mrb[0].mxu0 %v258
  %v399 = vpop.f32.mrb[0].mxu0
  %v400 = vadd.f32 %v91, %v399
  %v401 = vpop.f32.mrb[0].mxu0
  %v402 = vpop.f32.mrb[0].mxu0
  %v403 = vadd.f32 %v91, %v402
  %v404 = vpop.f32.mrb[0].mxu0
  %405 = vmatprep.mubr.bf16.mxu0 0
  %406 = vmatmul.mubr.bf16.gmra.mrb[0].mxu0 %v261
  %v407 = vpop.f32.mrb[0].mxu0
  %v408 = vadd.f32 %v91, %v407
  %v409 = vpop.f32.mrb[0].mxu0
  %v410 = vpop.f32.mrb[0].mxu0
  %v411 = vadd.f32 %v91, %v410
  %v412 = vpop.f32.mrb[0].mxu0
  %413 = vmatprep.mubr.bf16.mxu0 0
  %414 = vmatmul.mubr.bf16.gmra.mrb[0].mxu0 %v264
  %v415 = vpop.f32.mrb[0].mxu0
  %v416 = vadd.f32 %v91, %v415
  %v417 = vpop.f32.mrb[0].mxu0
  %v418 = vpop.f32.mrb[0].mxu0
  %v419 = vadd.f32 %v91, %v418
  %v420 = vpop.f32.mrb[0].mxu0
  %421 = vmatprep.mubr.bf16.mxu0 0
  %422 = vmatmul.mubr.bf16.gmra.mrb[0].mxu0 %v267
  %v423 = vpop.f32.mrb[0].mxu0
  %v424 = vadd.f32 %v91, %v423
  %v425 = vpop.f32.mrb[0].mxu0
  %v426 = vpop.f32.mrb[0].mxu0
  %v427 = vadd.f32 %v91, %v426
  %v428 = vpop.f32.mrb[0].mxu0
  %429 = vmatprep.mubr.bf16.mxu0 0
  %430 = vmatmul.mubr.bf16.gmra.mrb[0].mxu0 %v270
  %v431 = vpop.f32.mrb[0].mxu0
  %v432 = vadd.f32 %v91, %v431
  %v433 = vpop.f32.mrb[0].mxu0
  %v434 = vpop.f32.mrb[0].mxu0
  %v435 = vadd.f32 %v91, %v434
  %v436 = vpop.f32.mrb[0].mxu0
  %437 = vmatprep.mubr.bf16.mxu0 0
  %438 = vmatmul.mubr.bf16.gmra.mrb[0].mxu0 %v273
  %v439 = vpop.f32.mrb[0].mxu0
  %v440 = vadd.f32 %v91, %v439
  %v441 = vpop.f32.mrb[0].mxu0
  %v442 = vpop.f32.mrb[0].mxu0
  %v443 = vadd.f32 %v91, %v442
  %v444 = vpop.f32.mrb[0].mxu0
  %445 = vmatprep.mubr.bf16.mxu0 0
  %446 = vmatmul.mubr.bf16.gmra.mrb[0].mxu0 %v276
  %v447 = vpop.f32.mrb[0].mxu0
  %v448 = vadd.f32 %v91, %v447
  %v449 = vpop.f32.mrb[0].mxu0
  %v450 = vpop.f32.mrb[0].mxu0
  %v451 = vadd.f32 %v91, %v450
  %v452 = vpop.f32.mrb[0].mxu0
  %453 = vmatprep.mubr.bf16.mxu0 0
  %454 = vmatmul.mubr.bf16.gmra.mrb[0].mxu0 %v279
  %v455 = vpop.f32.mrb[0].mxu0
  %v456 = vadd.f32 %v91, %v455
  %v457 = vpop.f32.mrb[0].mxu0
  %v458 = vpop.f32.mrb[0].mxu0
  %v459 = vadd.f32 %v91, %v458
  %v460 = vpop.f32.mrb[0].mxu0
  %461 = vmatprep.mubr.bf16.mxu0 0
  %462 = vmatmul.mubr.bf16.gmra.mrb[0].mxu0 %v282
  %v463 = vpop.f32.mrb[0].mxu0
  %v464 = vadd.f32 %v91, %v463
  %v465 = vpop.f32.mrb[0].mxu0
  %v466 = vpop.f32.mrb[0].mxu0
  %v467 = vadd.f32 %v91, %v466
  %v468 = vpop.f32.mrb[0].mxu0
  %469 = vmatprep.mubr.bf16.mxu0 0
  %470 = vmatmul.mubr.bf16.gmra.mrb[0].mxu0 %v285
  %v471 = vpop.f32.mrb[0].mxu0
  %v472 = vadd.f32 %v91, %v471
  %v473 = vpop.f32.mrb[0].mxu0
  %v474 = vpop.f32.mrb[0].mxu0
  %v475 = vadd.f32 %v91, %v474
  %v476 = vpop.f32.mrb[0].mxu0
  %477 = vmatprep.mubr.bf16.mxu0 0
  %478 = vmatmul.mubr.bf16.gmra.mrb[0].mxu0 %v288
  %v479 = vpop.f32.mrb[0].mxu0
  %v480 = vadd.f32 %v91, %v479
  %v481 = vpop.f32.mrb[0].mxu0
  %v482 = vpop.f32.mrb[0].mxu0
  %v483 = vadd.f32 %v91, %v482
  %v484 = vpop.f32.mrb[0].mxu0
  %485 = vmatprep.mubr.bf16.mxu0 0
  %486 = vmatmul.mubr.bf16.gmra.mrb[0].mxu0 %v291
  %v487 = vpop.f32.mrb[0].mxu0
  %v488 = vadd.f32 %v91, %v487
  %v489 = vpop.f32.mrb[0].mxu0
  %v490 = vpop.f32.mrb[0].mxu0
  %v491 = vadd.f32 %v91, %v490
  %v492 = vpop.f32.mrb[0].mxu0
  %493 = vmatprep.mubr.bf16.mxu0 0
  %494 = vmatmul.mubr.bf16.gmra.mrb[0].mxu0 %v294
  %v495 = vpop.f32.mrb[0].mxu0
  %v496 = vadd.f32 %v91, %v495
  %v497 = vpop.f32.mrb[0].mxu0
  %v498 = vpop.f32.mrb[0].mxu0
  %v499 = vadd.f32 %v91, %v498
  %v500 = vpop.f32.mrb[0].mxu0
  %501 = vmatprep.mubr.bf16.mxu0 0
  %502 = vmatmul.mubr.bf16.gmra.mrb[0].mxu0 %v297
  %v503 = vpop.f32.mrb[0].mxu0
  %v504 = vadd.f32 %v91, %v503
  %v505 = vpop.f32.mrb[0].mxu0
  %v506 = vpop.f32.mrb[0].mxu0
  %v507 = vadd.f32 %v91, %v506
  %v508 = vpop.f32.mrb[0].mxu0
  %509 = vmatprep.mubr.bf16.mxu0 0
  %510 = vmatmul.mubr.bf16.gmra.mrb[0].mxu0 %v300
  %v511 = vpop.f32.mrb[0].mxu0
  %v512 = vadd.f32 %v91, %v511
  %v513 = vpop.f32.mrb[0].mxu0
  %v514 = vpop.f32.mrb[0].mxu0
  %v515 = vadd.f32 %v91, %v514
  %v516 = vpop.f32.mrb[0].mxu0
  %517 = vmatprep.mubr.bf16.mxu0 0
  %518 = vmatmul.mubr.bf16.gmra.mrb[0].mxu0 %v303
  %v519 = vpop.f32.mrb[0].mxu0
  %v520 = vadd.f32 %v91, %v519
  %v521 = vpop.f32.mrb[0].mxu0
  %v522 = vpop.f32.mrb[0].mxu0
  %v523 = vadd.f32 %v91, %v522
  %v524 = vpop.f32.mrb[0].mxu0
  %525 = vmatprep.mubr.bf16.mxu0 0
  %526 = vmatmul.mubr.bf16.gmra.mrb[0].mxu0 %v306
  %v527 = vpop.f32.mrb[0].mxu0
  %v528 = vadd.f32 %v91, %v527
  %v529 = vpop.f32.mrb[0].mxu0
  %v530 = vpop.f32.mrb[0].mxu0
  %v531 = vadd.f32 %v91, %v530
  %v532 = vpop.f32.mrb[0].mxu0
  %533 = vmatprep.mubr.bf16.mxu0 0
  %534 = vmatmul.mubr.bf16.gmra.mrb[0].mxu0 %v309
  %v535 = vpop.f32.mrb[0].mxu0
  %v536 = vadd.f32 %v91, %v535
  %v537 = vpop.f32.mrb[0].mxu0
  %v538 = vpop.f32.mrb[0].mxu0
  %v539 = vadd.f32 %v91, %v538
  %v540 = vpop.f32.mrb[0].mxu0
  %541 = vmatprep.mubr.bf16.mxu0 0
  %542 = vmatmul.mubr.bf16.gmra.mrb[0].mxu0 %v312
  %v543 = vpop.f32.mrb[0].mxu0
  %v544 = vadd.f32 %v91, %v543
  %v545 = vpop.f32.mrb[0].mxu0
  %v546 = vpop.f32.mrb[0].mxu0
  %v547 = vadd.f32 %v91, %v546
  %v548 = vpop.f32.mrb[0].mxu0
  %549 = vmatprep.mubr.bf16.mxu0 0
  %550 = vmatmul.mubr.bf16.gmra.mrb[0].mxu0 %v315
  %v551 = vpop.f32.mrb[0].mxu0
  %v552 = vadd.f32 %v91, %v551
  %v553 = vpop.f32.mrb[0].mxu0
  %v554 = vpop.f32.mrb[0].mxu0
  %v555 = vadd.f32 %v91, %v554
  %v556 = vpop.f32.mrb[0].mxu0
  %557 = vmatprep.mubr.bf16.mxu0 0
  %558 = vmatmul.mubr.bf16.gmra.mrb[0].mxu0 %v318
  %v559 = vpop.f32.mrb[0].mxu0
  %v560 = vadd.f32 %v91, %v559
  %v561 = vpop.f32.mrb[0].mxu0
  %v562 = vpop.f32.mrb[0].mxu0
  %v563 = vadd.f32 %v91, %v562
  %v564 = vpop.f32.mrb[0].mxu0
  %565 = vmatprep.mubr.bf16.mxu0 0
  %566 = vmatmul.mubr.bf16.gmra.mrb[0].mxu0 %v321
  %v567 = vpop.f32.mrb[0].mxu0
  %v568 = vadd.f32 %v91, %v567
  %v569 = vpop.f32.mrb[0].mxu0
  %v570 = vpop.f32.mrb[0].mxu0
  %v571 = vadd.f32 %v91, %v570
  %v572 = vpop.f32.mrb[0].mxu0
  %573 = vmatprep.mubr.bf16.mxu0 0
  %574 = vmatmul.mubr.bf16.gmra.mrb[0].mxu0 %v324
  %v575 = vpop.f32.mrb[0].mxu0
  %v576 = vadd.f32 %v91, %v575
  %v577 = vpop.f32.mrb[0].mxu0
  %v578 = vpop.f32.mrb[0].mxu0
  %v579 = vadd.f32 %v91, %v578
  %v580 = vpop.f32.mrb[0].mxu0
  %581 = vmatprep.mubr.bf16.mxu0 0
  %582 = vmatmul.mubr.bf16.gmra.mrb[0].mxu0 %v327
  %v583 = vpop.f32.mrb[0].mxu0
  %v584 = vadd.f32 %v91, %v583
  %v585 = vpop.f32.mrb[0].mxu0
  %v586 = vpop.f32.mrb[0].mxu0
  %v587 = vadd.f32 %v91, %v586
  %v588 = vpop.f32.mrb[0].mxu0
  %589 = vmatprep.mubr.bf16.mxu0 0
  %590 = vmatmul.mubr.bf16.gmra.mrb[0].mxu0 %v330
  %v591 = vpop.f32.mrb[0].mxu0
  %v592 = vadd.f32 %v91, %v591
  %v593 = vpop.f32.mrb[0].mxu0
  %v594 = vpop.f32.mrb[0].mxu0
  %v595 = vadd.f32 %v91, %v594
  %v596 = vpop.f32.mrb[0].mxu0
  %597 = vmatprep.mubr.bf16.mxu0 0
  %598 = vmatmul.mubr.bf16.gmra.mrb[0].mxu0 %v333
  %v599 = vpop.f32.mrb[0].mxu0
  %v600 = vadd.f32 %v91, %v599
  %v601 = vpop.f32.mrb[0].mxu0
  %v602 = vpop.f32.mrb[0].mxu0
  %v603 = vadd.f32 %v91, %v602
  %v604 = vpop.f32.mrb[0].mxu0
  %605 = vmatprep.mubr.bf16.mxu0 0
  %606 = vmatmul.mubr.bf16.gmra.mrb[0].mxu0 %v336
  %v607 = vpop.f32.mrb[0].mxu0
  %v608 = vadd.f32 %v91, %v607
  %v609 = vpop.f32.mrb[0].mxu0
  %v610 = vpop.f32.mrb[0].mxu0
  %v611 = vadd.f32 %v91, %v610
  %v612 = vpop.f32.mrb[0].mxu0
  %613 = vmatprep.mubr.bf16.mxu0 0
  %614 = vmatmul.mubr.bf16.gmra.mrb[0].mxu0 %v339
  %v615 = vpop.f32.mrb[0].mxu0
  %v616 = vadd.f32 %v91, %v615
  %v617 = vpop.f32.mrb[0].mxu0
  %v618 = vpop.f32.mrb[0].mxu0
  %v619 = vadd.f32 %v91, %v618
  %v620 = vpop.f32.mrb[0].mxu0
  %621 = vmatprep.mubr.bf16.mxu0 0
  %622 = vmatmul.mubr.bf16.gmra.mrb[0].mxu0 %v342
  %v623 = vpop.f32.mrb[0].mxu0
  %v624 = vadd.f32 %v91, %v623
  %v625 = vpop.f32.mrb[0].mxu0
  %v626 = vpop.f32.mrb[0].mxu0
  %v627 = vadd.f32 %v91, %v626
  %v628 = vpop.f32.mrb[0].mxu0
  %629 = vmatprep.mubr.bf16.mxu0 0
  %630 = vmatmul.mubr.bf16.gmra.mrb[0].mxu0 %v345
  %v631 = vpop.f32.mrb[0].mxu0
  %v632 = vadd.f32 %v91, %v631
  %v633 = vpop.f32.mrb[0].mxu0
  %v634 = vpop.f32.mrb[0].mxu0
  %v635 = vadd.f32 %v91, %v634
  %v636 = vpop.f32.mrb[0].mxu0
  %637 = vmatprep.mubr.bf16.mxu0 0
  %638 = vmatmul.mubr.bf16.gmra.mrb[0].mxu0 %v348
  %v639 = vpop.f32.mrb[0].mxu0
  %v640 = vadd.f32 %v91, %v639
  %v641 = vpop.f32.mrb[0].mxu0
  %v642 = vpop.f32.mrb[0].mxu0
  %v643 = vadd.f32 %v91, %v642
  %v644 = vpop.f32.mrb[0].mxu0
  %645 = vdwg.mxu0
  %v646 = vmax.f32 %v392, 0.0
  %v647 = vmax.f32 %v395, 0.0
  %v648 = vmax.f32 %v400, 0.0
  %v649 = vmax.f32 %v403, 0.0
  %v650 = vmax.f32 %v408, 0.0
  %v651 = vmax.f32 %v411, 0.0
  %v652 = vmax.f32 %v416, 0.0
  %v653 = vmax.f32 %v419, 0.0
  %v654 = vmax.f32 %v424, 0.0
  %v655 = vmax.f32 %v427, 0.0
  %v656 = vmax.f32 %v432, 0.0
  %v657 = vmax.f32 %v435, 0.0
  %v658 = vmax.f32 %v440, 0.0
  %v659 = vmax.f32 %v443, 0.0
  %v660 = vmax.f32 %v448, 0.0
  %v661 = vmax.f32 %v451, 0.0
  %v662 = vmax.f32 %v456, 0.0
  %v663 = vmax.f32 %v459, 0.0
  %v664 = vmax.f32 %v464, 0.0
  %v665 = vmax.f32 %v467, 0.0
  %v666 = vmax.f32 %v472, 0.0
  %v667 = vmax.f32 %v475, 0.0
  %v668 = vmax.f32 %v480, 0.0
  %v669 = vmax.f32 %v483, 0.0
  %v670 = vmax.f32 %v488, 0.0
  %v671 = vmax.f32 %v491, 0.0
  %v672 = vmax.f32 %v496, 0.0
  %v673 = vmax.f32 %v499, 0.0
  %v674 = vmax.f32 %v504, 0.0
  %v675 = vmax.f32 %v507, 0.0
  %v676 = vmax.f32 %v512, 0.0
  %v677 = vmax.f32 %v515, 0.0
  %v678 = vmax.f32 %v520, 0.0
  %v679 = vmax.f32 %v523, 0.0
  %v680 = vmax.f32 %v528, 0.0
  %v681 = vmax.f32 %v531, 0.0
  %v682 = vmax.f32 %v536, 0.0
  %v683 = vmax.f32 %v539, 0.0
  %v684 = vmax.f32 %v544, 0.0
  %v685 = vmax.f32 %v547, 0.0
  %v686 = vmax.f32 %v552, 0.0
  %v687 = vmax.f32 %v555, 0.0
  %v688 = vmax.f32 %v560, 0.0
  %v689 = vmax.f32 %v563, 0.0
  %v690 = vmax.f32 %v568, 0.0
  %v691 = vmax.f32 %v571, 0.0
  %v692 = vmax.f32 %v576, 0.0
  %v693 = vmax.f32 %v579, 0.0
  %v694 = vmax.f32 %v584, 0.0
  %v695 = vmax.f32 %v587, 0.0
  %v696 = vmax.f32 %v592, 0.0
  %v697 = vmax.f32 %v595, 0.0
  %v698 = vmax.f32 %v600, 0.0
  %v699 = vmax.f32 %v603, 0.0
  %v700 = vmax.f32 %v608, 0.0
  %v701 = vmax.f32 %v611, 0.0
  %v702 = vmax.f32 %v616, 0.0
  %v703 = vmax.f32 %v619, 0.0
  %v704 = vmax.f32 %v624, 0.0
  %v705 = vmax.f32 %v627, 0.0
  %v706 = vmax.f32 %v632, 0.0
  %v707 = vmax.f32 %v635, 0.0
  %v708 = vmax.f32 %v640, 0.0
  %v709 = vmax.f32 %v643, 0.0
  %v710 = vadd.f32 %v646, %v662
  %v711 = vadd.f32 %v710, %v678
  %v712 = vadd.f32 %v711, %v694
  %v713 = vadd.f32 %v647, %v663
  %v714 = vadd.f32 %v713, %v679
  %v715 = vadd.f32 %v714, %v695
  %v716 = vadd.f32 %v648, %v664
  %v717 = vadd.f32 %v716, %v680
  %v718 = vadd.f32 %v717, %v696
  %v719 = vadd.f32 %v649, %v665
  %v720 = vadd.f32 %v719, %v681
  %v721 = vadd.f32 %v720, %v697
  %v722 = vadd.f32 %v650, %v666
  %v723 = vadd.f32 %v722, %v682
  %v724 = vadd.f32 %v723, %v698
  %v725 = vadd.f32 %v651, %v667
  %v726 = vadd.f32 %v725, %v683
  %v727 = vadd.f32 %v726, %v699
  %v728 = vadd.f32 %v652, %v668
  %v729 = vadd.f32 %v728, %v684
  %v730 = vadd.f32 %v729, %v700
  %v731 = vadd.f32 %v653, %v669
  %v732 = vadd.f32 %v731, %v685
  %v733 = vadd.f32 %v732, %v701
  %v734 = vadd.f32 %v654, %v670
  %v735 = vadd.f32 %v734, %v686
  %v736 = vadd.f32 %v735, %v702
  %v737 = vadd.f32 %v655, %v671
  %v738 = vadd.f32 %v737, %v687
  %v739 = vadd.f32 %v738, %v703
  %v740 = vadd.f32 %v656, %v672
  %v741 = vadd.f32 %v740, %v688
  %v742 = vadd.f32 %v741, %v704
  %v743 = vadd.f32 %v657, %v673
  %v744 = vadd.f32 %v743, %v689
  %v745 = vadd.f32 %v744, %v705
  %v746 = vadd.f32 %v658, %v674
  %v747 = vadd.f32 %v746, %v690
  %v748 = vadd.f32 %v747, %v706
  %v749 = vadd.f32 %v659, %v675
  %v750 = vadd.f32 %v749, %v691
  %v751 = vadd.f32 %v750, %v707
  %v752 = vadd.f32 %v660, %v676
  %v753 = vadd.f32 %v752, %v692
  %v754 = vadd.f32 %v753, %v708
  %v755 = vadd.f32 %v661, %v677
  %v756 = vadd.f32 %v755, %v693
  %v757 = vadd.f32 %v756, %v709
  %v758 = vmul.f32 %v712, 0.25
  %v759 = vmul.f32 %v715, 0.25
  %v760 = vmul.f32 %v718, 0.25
  %v761 = vmul.f32 %v721, 0.25
  %v762 = vmul.f32 %v724, 0.25
  %v763 = vmul.f32 %v727, 0.25
  %v764 = vmul.f32 %v730, 0.25
  %v765 = vmul.f32 %v733, 0.25
  %v766 = vmul.f32 %v736, 0.25
  %v767 = vmul.f32 %v739, 0.25
  %v768 = vmul.f32 %v742, 0.25
  %v769 = vmul.f32 %v745, 0.25
  %v770 = vmul.f32 %v748, 0.25
  %v771 = vmul.f32 %v751, 0.25
  %v772 = vmul.f32 %v754, 0.25
  %v773 = vmul.f32 %v757, 0.25
  %v774 = vpack.c.bf16 %v759, %v758
  %v775 = vpack.c.bf16 %v761, %v760
  %v776 = vpack.c.bf16 %v763, %v762
  %v777 = vpack.c.bf16 %v765, %v764
  %v778 = vpack.c.bf16 %v767, %v766
  %v779 = vpack.c.bf16 %v769, %v768
  %v780 = vpack.c.bf16 %v771, %v770
  %v781 = vpack.c.bf16 %v773, %v772
  %v782 = vld [vmem:[%s3] sm:$0xf]
  %v783 = vld [vmem:[%s3 + $0x4] sm:$0xf]
  %v784 = vld [vmem:[%s3 + $0x8] sm:$0xf]
  %v785 = vld [vmem:[%s3 + $0xc] sm:$0xf]
  %v786 = vld [vmem:[%s3 + $0x10] sm:$0xf]
  %v787 = vld [vmem:[%s3 + $0x14] sm:$0xf]
  %v788 = vld [vmem:[%s3 + $0x18] sm:$0xf]
  %v789 = vld [vmem:[%s3 + $0x1c] sm:$0xf]
  %v790 = vld [vmem:[%s3 + $0x20] sm:$0xf]
  %v791 = vld [vmem:[%s3 + $0x24] sm:$0xf]
  %v792 = vld [vmem:[%s3 + $0x28] sm:$0xf]
  %v793 = vld [vmem:[%s3 + $0x2c] sm:$0xf]
  %v794 = vld [vmem:[%s3 + $0x30] sm:$0xf]
  %v795 = vld [vmem:[%s3 + $0x34] sm:$0xf]
  %v796 = vld [vmem:[%s3 + $0x38] sm:$0xf]
  %v797 = vld [vmem:[%s3 + $0x3c] sm:$0xf]
  %v798 = vld [vmem:[%s4] sm:$0x1]
  %v800 = vlaneseq
  %v801 = vshrl.u32 %v800, 7
  %v802 = vsub.s32 0, %v801
  %v803 = vrot.slane %v798, %v802
  %v821 = vunpack.c.l.b16 %v782
  %v822 = vunpack.c.l.b16 %v783
  %v823 = vunpack.c.l.b16 %v784
  %v824 = vunpack.c.l.b16 %v785
  %v825 = vunpack.c.l.b16 %v786
  %v826 = vunpack.c.l.b16 %v787
  %v827 = vunpack.c.l.b16 %v788
  %v828 = vunpack.c.l.b16 %v789
  %v829 = vunpack.c.l.b16 %v790
  %v830 = vunpack.c.l.b16 %v791
  %v831 = vunpack.c.l.b16 %v792
  %v832 = vunpack.c.l.b16 %v793
  %v833 = vunpack.c.l.b16 %v794
  %v834 = vunpack.c.l.b16 %v795
  %v835 = vunpack.c.l.b16 %v796
  %v836 = vunpack.c.l.b16 %v797
  %v837 = vpack.c.b16 %v822, %v821
  %v838 = vpack.c.b16 %v824, %v823
  %v839 = vpack.c.b16 %v826, %v825
  %v840 = vpack.c.b16 %v828, %v827
  %v841 = vpack.c.b16 %v830, %v829
  %v842 = vpack.c.b16 %v832, %v831
  %v843 = vpack.c.b16 %v834, %v833
  %v844 = vpack.c.b16 %v836, %v835
  %853 = vmatprep.subr.bf16.mxu0 0
  %854 = vmatpush1.bf16.msra.mxu0 %v837
  %855 = vmatprep.subr.bf16.mxu0 0
  %856 = vmatpush1.bf16.msra.mxu0 %v838
  %857 = vmatprep.subr.bf16.mxu0 0
  %858 = vmatpush1.bf16.msra.mxu0 %v839
  %859 = vmatprep.subr.bf16.mxu0 0
  %860 = vmatpush1.bf16.msra.mxu0 %v840
  %861 = vmatprep.subr.bf16.mxu0 0
  %862 = vmatpush1.bf16.msra.mxu0 %v841
  %863 = vmatprep.subr.bf16.mxu0 0
  %864 = vmatpush1.bf16.msra.mxu0 %v842
  %865 = vmatprep.subr.bf16.mxu0 0
  %866 = vmatpush1.bf16.msra.mxu0 %v843
  %867 = vmatprep.subr.bf16.mxu0 0
  %868 = vmatpush1.bf16.msra.mxu0 %v844
  %869 = vmatprep.subr.bf16.mxu0 0
  %870 = vmatpush1.bf16.msra.mxu0 0
  %871 = vmatprep.subr.bf16.mxu0 0
  %872 = vmatpush1.bf16.msra.mxu0 0
  %873 = vmatprep.subr.bf16.mxu0 0
  %874 = vmatpush1.bf16.msra.mxu0 0
  %875 = vmatprep.subr.bf16.mxu0 0
  %876 = vmatpush1.bf16.msra.mxu0 0
  %877 = vmatprep.subr.bf16.mxu0 0
  %878 = vmatpush1.bf16.msra.mxu0 0
  %879 = vmatprep.subr.bf16.mxu0 0
  %880 = vmatpush1.bf16.msra.mxu0 0
  %881 = vmatprep.subr.bf16.mxu0 0
  %882 = vmatpush1.bf16.msra.mxu0 0
  %883 = vmatprep.subr.bf16.mxu0 0
  %884 = vmatpush1.bf16.msra.mxu0 0
  %885 = vmatprep.mubr.bf16.mxu0 0
  %886 = vmatmul.mubr.bf16.gmra.mrb[0].mxu0 %v774
  %v887 = vpop.f32.mrb[0].mxu0
  %v888 = vadd.f32 %v803, %v887
  %v889 = vpop.f32.mrb[0].mxu0
  %v890 = vpop.f32.mrb[0].mxu0
  %v891 = vadd.f32 %v803, %v890
  %v892 = vpop.f32.mrb[0].mxu0
  %893 = vmatprep.mubr.bf16.mxu0 0
  %894 = vmatmul.mubr.bf16.gmra.mrb[0].mxu0 %v775
  %v895 = vpop.f32.mrb[0].mxu0
  %v896 = vadd.f32 %v803, %v895
  %v897 = vpop.f32.mrb[0].mxu0
  %v898 = vpop.f32.mrb[0].mxu0
  %v899 = vadd.f32 %v803, %v898
  %v900 = vpop.f32.mrb[0].mxu0
  %901 = vmatprep.mubr.bf16.mxu0 0
  %902 = vmatmul.mubr.bf16.gmra.mrb[0].mxu0 %v776
  %v903 = vpop.f32.mrb[0].mxu0
  %v904 = vadd.f32 %v803, %v903
  %v905 = vpop.f32.mrb[0].mxu0
  %v906 = vpop.f32.mrb[0].mxu0
  %v907 = vadd.f32 %v803, %v906
  %v908 = vpop.f32.mrb[0].mxu0
  %909 = vmatprep.mubr.bf16.mxu0 0
  %910 = vmatmul.mubr.bf16.gmra.mrb[0].mxu0 %v777
  %v911 = vpop.f32.mrb[0].mxu0
  %v912 = vadd.f32 %v803, %v911
  %v913 = vpop.f32.mrb[0].mxu0
  %v914 = vpop.f32.mrb[0].mxu0
  %v915 = vadd.f32 %v803, %v914
  %v916 = vpop.f32.mrb[0].mxu0
  %917 = vmatprep.mubr.bf16.mxu0 0
  %918 = vmatmul.mubr.bf16.gmra.mrb[0].mxu0 %v778
  %v919 = vpop.f32.mrb[0].mxu0
  %v920 = vadd.f32 %v803, %v919
  %v921 = vpop.f32.mrb[0].mxu0
  %v922 = vpop.f32.mrb[0].mxu0
  %v923 = vadd.f32 %v803, %v922
  %v924 = vpop.f32.mrb[0].mxu0
  %925 = vmatprep.mubr.bf16.mxu0 0
  %926 = vmatmul.mubr.bf16.gmra.mrb[0].mxu0 %v779
  %v927 = vpop.f32.mrb[0].mxu0
  %v928 = vadd.f32 %v803, %v927
  %v929 = vpop.f32.mrb[0].mxu0
  %v930 = vpop.f32.mrb[0].mxu0
  %v931 = vadd.f32 %v803, %v930
  %v932 = vpop.f32.mrb[0].mxu0
  %933 = vmatprep.mubr.bf16.mxu0 0
  %934 = vmatmul.mubr.bf16.gmra.mrb[0].mxu0 %v780
  %v935 = vpop.f32.mrb[0].mxu0
  %v936 = vadd.f32 %v803, %v935
  %v937 = vpop.f32.mrb[0].mxu0
  %v938 = vpop.f32.mrb[0].mxu0
  %v939 = vadd.f32 %v803, %v938
  %v940 = vpop.f32.mrb[0].mxu0
  %941 = vmatprep.mubr.bf16.mxu0 0
  %942 = vmatmul.mubr.bf16.gmra.mrb[0].mxu0 %v781
  %v943 = vpop.f32.mrb[0].mxu0
  %v944 = vadd.f32 %v803, %v943
  %v945 = vpop.f32.mrb[0].mxu0
  %v946 = vpop.f32.mrb[0].mxu0
  %v947 = vadd.f32 %v803, %v946
  %v948 = vpop.f32.mrb[0].mxu0
  %949 = vdwg.mxu0
  %950 = vst [vmem:[%s5] sm:$0xff] %v888
  %951 = vst [vmem:[%s5 + $0x8] sm:$0xff] %v891
  %952 = vst [vmem:[%s5 + $0x10] sm:$0xff] %v896
  %953 = vst [vmem:[%s5 + $0x18] sm:$0xff] %v899
  %954 = vst [vmem:[%s5 + $0x20] sm:$0xff] %v904
  %955 = vst [vmem:[%s5 + $0x28] sm:$0xff] %v907
  %956 = vst [vmem:[%s5 + $0x30] sm:$0xff] %v912
  %957 = vst [vmem:[%s5 + $0x38] sm:$0xff] %v915
  %958 = vst [vmem:[%s5 + $0x40] sm:$0xff] %v920
  %959 = vst [vmem:[%s5 + $0x48] sm:$0xff] %v923
  %960 = vst [vmem:[%s5 + $0x50] sm:$0xff] %v928
  %961 = vst [vmem:[%s5 + $0x58] sm:$0xff] %v931
  %962 = vst [vmem:[%s5 + $0x60] sm:$0xff] %v936
  %963 = vst [vmem:[%s5 + $0x68] sm:$0xff] %v939
  %964 = vst [vmem:[%s5 + $0x70] sm:$0xff] %v944
  %965 = vst [vmem:[%s5 + $0x78] sm:$0xff] %v947
  // Predicated region
  $region22: #{detr_forward.4} parent=0 // pred_check
    _
  $region23: #{detr_forward.4} parent=0 // pred_check_branch
    %967 = sbr.rel (0) target = $region25
  $region24: #{detr_forward.4} parent=0 // pred_region
    _
  $region25: #{detr_forward.4} parent=0 // pred_fallthru
    _
  // Predicated region
  $region26: #{detr_forward.4} parent=0 // pred_check
    _
  $region27: #{detr_forward.4} parent=0 // pred_check_branch
    %969 = sbr.rel (0) target = $region29
  $region28: #{detr_forward.4} parent=0 // pred_region
    _
  $region29: #{detr_forward.4} parent=0 // pred_fallthru
    _

// kernel: detr_forward.5
$region0: #{detr_forward.5}
  #allocation0 [shape = 'u32[]', space=smem, size = 0x4, offset = 0x4, fixed_abs, tag = 'smem constant byte address 0x4 - core index']
  #allocation1 [shape = 'u32[144,128]{1,0:T(1,128)}', space=vmem, size = 0x12000, scoped, tag = 'internal scratch']
  %s0 = inlined_call_operand.vmem [shape: f32[2,64,128], index: 0, kind: input, shape index: {}]
  %s1 = inlined_call_operand.vmem [shape: f32[2,64,128], index: 1, kind: input, shape index: {}]
  %s2 = inlined_call_operand.vmem [shape: bf16[1,128,256], index: 2, kind: input, shape index: {}]
  %s3 = inlined_call_operand.vmem [shape: bf16[1,128,128], index: 3, kind: input, shape index: {}]
  %s4 = inlined_call_operand.vmem [shape: bf16[1,128,128], index: 4, kind: input, shape index: {}]
  %s5 = inlined_call_operand.vmem [shape: bf16[1,128,128], index: 5, kind: input, shape index: {}]
  %s6 = inlined_call_operand.vmem [shape: bf16[1,128,128], index: 6, kind: input, shape index: {}]
  %s7 = inlined_call_operand.vmem [shape: f32[1,16,128], index: 7, kind: input, shape index: {}]
  %s8 = inlined_call_operand.vmem [shape: f32[1,1,128], index: 8, kind: input, shape index: {}]
  %s9 = inlined_call_operand.vmem [shape: f32[2,64,128], index: 9, kind: output, shape index: {}]
  %s10 = sld [smem:[#allocation0]]
  $region50: #{detr_forward.5} parent=0
    _
  %s12 = ssub.s32 1, %s10
  %s13 = scalar_select 0, %s12, %s10
  // Predicated region
  $region2: #{detr_forward.5} parent=0 // pred_check
    _
  $region3: #{detr_forward.5} parent=0 // pred_check_branch
    %15 = sbr.rel (0) target = $region5
  $region4: #{detr_forward.5} parent=0 // pred_region
    _
  $region5: #{detr_forward.5} parent=0 // pred_fallthru
    _
  // Predicated region
  $region6: #{detr_forward.5} parent=0 // pred_check
    _
  $region7: #{detr_forward.5} parent=0 // pred_check_branch
    %17 = sbr.rel (0) target = $region9
  $region8: #{detr_forward.5} parent=0 // pred_region
    _
  $region9: #{detr_forward.5} parent=0 // pred_fallthru
    _
  // Predicated region
  $region10: #{detr_forward.5} parent=0 // pred_check
    _
  $region11: #{detr_forward.5} parent=0 // pred_check_branch
    %19 = sbr.rel (0) target = $region13
  $region12: #{detr_forward.5} parent=0 // pred_region
    _
  $region13: #{detr_forward.5} parent=0 // pred_fallthru
    _
  // Predicated region
  $region14: #{detr_forward.5} parent=0 // pred_check
    _
  $region15: #{detr_forward.5} parent=0 // pred_check_branch
    %21 = sbr.rel (0) target = $region17
  $region16: #{detr_forward.5} parent=0 // pred_region
    _
  $region17: #{detr_forward.5} parent=0 // pred_fallthru
    _
  // Predicated region
  $region18: #{detr_forward.5} parent=0 // pred_check
    _
  $region19: #{detr_forward.5} parent=0 // pred_check_branch
    %23 = sbr.rel (0) target = $region21
  $region20: #{detr_forward.5} parent=0 // pred_region
    _
  $region21: #{detr_forward.5} parent=0 // pred_fallthru
    _
  // Predicated region
  $region22: #{detr_forward.5} parent=0 // pred_check
    _
  $region23: #{detr_forward.5} parent=0 // pred_check_branch
    %25 = sbr.rel (0) target = $region25
  $region24: #{detr_forward.5} parent=0 // pred_region
    _
  $region25: #{detr_forward.5} parent=0 // pred_fallthru
    _
  // Predicated region
  $region26: #{detr_forward.5} parent=0 // pred_check
    _
  $region27: #{detr_forward.5} parent=0 // pred_check_branch
    %27 = sbr.rel (0) target = $region29
  $region28: #{detr_forward.5} parent=0 // pred_region
    _
  $region29: #{detr_forward.5} parent=0 // pred_fallthru
    _
  // Predicated region
  $region30: #{detr_forward.5} parent=0 // pred_check
    _
  $region31: #{detr_forward.5} parent=0 // pred_check_branch
    %29 = sbr.rel (0) target = $region33
  $region32: #{detr_forward.5} parent=0 // pred_region
    _
  $region33: #{detr_forward.5} parent=0 // pred_fallthru
    _
  // Predicated region
  $region34: #{detr_forward.5} parent=0 // pred_check
    _
  $region35: #{detr_forward.5} parent=0 // pred_check_branch
    %31 = sbr.rel (0) target = $region37
  $region36: #{detr_forward.5} parent=0 // pred_region
    _
  $region37: #{detr_forward.5} parent=0 // pred_fallthru
    _
  %p33 = scmp.eq.s32.totalorder 0, 0
  // Predicated region
  $region38: #{detr_forward.5} parent=0 // pred_check
    %p34 = pneg %p33
  $region39: #{detr_forward.5} parent=0 // pred_check_branch
    %36 = sbr.rel (%p34) target = $region41
  $region40: #{detr_forward.5} parent=0 // pred_region
    %v37 = vld [vmem:[%s0] sm:$0xff]
    %v38 = vld [vmem:[%s0 + $0x8] sm:$0xff]
    %v39 = vld [vmem:[%s0 + $0x10] sm:$0xff]
    %v40 = vld [vmem:[%s0 + $0x18] sm:$0xff]
    %v41 = vld [vmem:[%s0 + $0x20] sm:$0xff]
    %v42 = vld [vmem:[%s0 + $0x28] sm:$0xff]
    %v43 = vld [vmem:[%s0 + $0x30] sm:$0xff]
    %v44 = vld [vmem:[%s0 + $0x38] sm:$0xff]
    %v45 = vld [vmem:[%s0 + $0x40] sm:$0xff]
    %v46 = vld [vmem:[%s0 + $0x48] sm:$0xff]
    %v47 = vld [vmem:[%s0 + $0x50] sm:$0xff]
    %v48 = vld [vmem:[%s0 + $0x58] sm:$0xff]
    %v49 = vld [vmem:[%s0 + $0x60] sm:$0xff]
    %v50 = vld [vmem:[%s0 + $0x68] sm:$0xff]
    %v51 = vld [vmem:[%s0 + $0x70] sm:$0xff]
    %v52 = vld [vmem:[%s0 + $0x78] sm:$0xff]
    %53 = vst [vmem:[%s9] sm:$0xff] %v37
    %54 = vst [vmem:[%s9 + $0x8] sm:$0xff] %v38
    %55 = vst [vmem:[%s9 + $0x10] sm:$0xff] %v39
    %56 = vst [vmem:[%s9 + $0x18] sm:$0xff] %v40
    %57 = vst [vmem:[%s9 + $0x20] sm:$0xff] %v41
    %58 = vst [vmem:[%s9 + $0x28] sm:$0xff] %v42
    %59 = vst [vmem:[%s9 + $0x30] sm:$0xff] %v43
    %60 = vst [vmem:[%s9 + $0x38] sm:$0xff] %v44
    %61 = vst [vmem:[%s9 + $0x40] sm:$0xff] %v45
    %62 = vst [vmem:[%s9 + $0x48] sm:$0xff] %v46
    %63 = vst [vmem:[%s9 + $0x50] sm:$0xff] %v47
    %64 = vst [vmem:[%s9 + $0x58] sm:$0xff] %v48
    %65 = vst [vmem:[%s9 + $0x60] sm:$0xff] %v49
    %66 = vst [vmem:[%s9 + $0x68] sm:$0xff] %v50
    %67 = vst [vmem:[%s9 + $0x70] sm:$0xff] %v51
    %68 = vst [vmem:[%s9 + $0x78] sm:$0xff] %v52
  $region41: #{detr_forward.5} parent=0 // pred_fallthru
    _
  %v69 = vld [vmem:[%s9] sm:$0xff]
  %v70 = vld [vmem:[%s9 + $0x8] sm:$0xff]
  %v71 = vld [vmem:[%s9 + $0x10] sm:$0xff]
  %v72 = vld [vmem:[%s9 + $0x18] sm:$0xff]
  %v73 = vld [vmem:[%s9 + $0x20] sm:$0xff]
  %v74 = vld [vmem:[%s9 + $0x28] sm:$0xff]
  %v75 = vld [vmem:[%s9 + $0x30] sm:$0xff]
  %v76 = vld [vmem:[%s9 + $0x38] sm:$0xff]
  %v77 = vld [vmem:[%s9 + $0x40] sm:$0xff]
  %v78 = vld [vmem:[%s9 + $0x48] sm:$0xff]
  %v79 = vld [vmem:[%s9 + $0x50] sm:$0xff]
  %v80 = vld [vmem:[%s9 + $0x58] sm:$0xff]
  %v81 = vld [vmem:[%s9 + $0x60] sm:$0xff]
  %v82 = vld [vmem:[%s9 + $0x68] sm:$0xff]
  %v83 = vld [vmem:[%s9 + $0x70] sm:$0xff]
  %v84 = vld [vmem:[%s9 + $0x78] sm:$0xff]
  %v85 = vld [vmem:[%s1] sm:$0xff]
  %v86 = vld [vmem:[%s1 + $0x8] sm:$0xff]
  %v87 = vld [vmem:[%s1 + $0x10] sm:$0xff]
  %v88 = vld [vmem:[%s1 + $0x18] sm:$0xff]
  %v89 = vld [vmem:[%s1 + $0x20] sm:$0xff]
  %v90 = vld [vmem:[%s1 + $0x28] sm:$0xff]
  %v91 = vld [vmem:[%s1 + $0x30] sm:$0xff]
  %v92 = vld [vmem:[%s1 + $0x38] sm:$0xff]
  %v93 = vld [vmem:[%s1 + $0x40] sm:$0xff]
  %v94 = vld [vmem:[%s1 + $0x48] sm:$0xff]
  %v95 = vld [vmem:[%s1 + $0x50] sm:$0xff]
  %v96 = vld [vmem:[%s1 + $0x58] sm:$0xff]
  %v97 = vld [vmem:[%s1 + $0x60] sm:$0xff]
  %v98 = vld [vmem:[%s1 + $0x68] sm:$0xff]
  %v99 = vld [vmem:[%s1 + $0x70] sm:$0xff]
  %v100 = vld [vmem:[%s1 + $0x78] sm:$0xff]
  %v101 = vld [vmem:[%s7] sm:$0xff]
  %v102 = vld [vmem:[%s7 + $0x8] sm:$0xff]
  %v103 = vadd.f32 %v69, %v85
  %v104 = vadd.f32 %v70, %v86
  %v105 = vadd.f32 %v71, %v87
  %v106 = vadd.f32 %v72, %v88
  %v107 = vadd.f32 %v73, %v89
  %v108 = vadd.f32 %v74, %v90
  %v109 = vadd.f32 %v75, %v91
  %v110 = vadd.f32 %v76, %v92
  %v111 = vadd.f32 %v77, %v93
  %v112 = vadd.f32 %v78, %v94
  %v113 = vadd.f32 %v79, %v95
  %v114 = vadd.f32 %v80, %v96
  %v115 = vadd.f32 %v81, %v97
  %v116 = vadd.f32 %v82, %v98
  %v117 = vadd.f32 %v83, %v99
  %v118 = vadd.f32 %v84, %v100
  %v119 = vpack.c.bf16 %v104, %v103
  %v120 = vpack.c.bf16 %v106, %v105
  %v121 = vpack.c.bf16 %v108, %v107
  %v122 = vpack.c.bf16 %v110, %v109
  %v123 = vpack.c.bf16 %v112, %v111
  %v124 = vpack.c.bf16 %v114, %v113
  %v125 = vpack.c.bf16 %v116, %v115
  %v126 = vpack.c.bf16 %v118, %v117
  %v127 = vld [vmem:[%s2] sm:$0xff]
  %v128 = vld [vmem:[%s2 + $0x8] sm:$0xff]
  %v129 = vld [vmem:[%s2 + $0x10] sm:$0xff]
  %v130 = vld [vmem:[%s2 + $0x18] sm:$0xff]
  %v131 = vld [vmem:[%s2 + $0x20] sm:$0xff]
  %v132 = vld [vmem:[%s2 + $0x28] sm:$0xff]
  %v133 = vld [vmem:[%s2 + $0x30] sm:$0xff]
  %v134 = vld [vmem:[%s2 + $0x38] sm:$0xff]
  %v135 = vld [vmem:[%s2 + $0x40] sm:$0xff]
  %v136 = vld [vmem:[%s2 + $0x48] sm:$0xff]
  %v137 = vld [vmem:[%s2 + $0x50] sm:$0xff]
  %v138 = vld [vmem:[%s2 + $0x58] sm:$0xff]
  %v139 = vld [vmem:[%s2 + $0x60] sm:$0xff]
  %v140 = vld [vmem:[%s2 + $0x68] sm:$0xff]
  %v141 = vld [vmem:[%s2 + $0x70] sm:$0xff]
  %v142 = vld [vmem:[%s2 + $0x78] sm:$0xff]
  %v159 = vunpack.c.l.b16 %v127
  %v160 = vunpack.c.h.b16 %v127
  %v161 = vunpack.c.l.b16 %v128
  %v162 = vunpack.c.h.b16 %v128
  %v163 = vunpack.c.l.b16 %v129
  %v164 = vunpack.c.h.b16 %v129
  %v165 = vunpack.c.l.b16 %v130
  %v166 = vunpack.c.h.b16 %v130
  %v167 = vunpack.c.l.b16 %v131
  %v168 = vunpack.c.h.b16 %v131
  %v169 = vunpack.c.l.b16 %v132
  %v170 = vunpack.c.h.b16 %v132
  %v171 = vunpack.c.l.b16 %v133
  %v172 = vunpack.c.h.b16 %v133
  %v173 = vunpack.c.l.b16 %v134
  %v174 = vunpack.c.h.b16 %v134
  %v175 = vunpack.c.l.b16 %v135
  %v176 = vunpack.c.h.b16 %v135
  %v177 = vunpack.c.l.b16 %v136
  %v178 = vunpack.c.h.b16 %v136
  %v179 = vunpack.c.l.b16 %v137
  %v180 = vunpack.c.h.b16 %v137
  %v181 = vunpack.c.l.b16 %v138
  %v182 = vunpack.c.h.b16 %v138
  %v183 = vunpack.c.l.b16 %v139
  %v184 = vunpack.c.h.b16 %v139
  %v185 = vunpack.c.l.b16 %v140
  %v186 = vunpack.c.h.b16 %v140
  %v187 = vunpack.c.l.b16 %v141
  %v188 = vunpack.c.h.b16 %v141
  %v189 = vunpack.c.l.b16 %v142
  %v190 = vunpack.c.h.b16 %v142
  %v191 = vpack.c.b16 %v161, %v159
  %v192 = vpack.c.b16 %v162, %v160
  %v193 = vpack.c.b16 %v165, %v163
  %v194 = vpack.c.b16 %v166, %v164
  %v195 = vpack.c.b16 %v169, %v167
  %v196 = vpack.c.b16 %v170, %v168
  %v197 = vpack.c.b16 %v173, %v171
  %v198 = vpack.c.b16 %v174, %v172
  %v199 = vpack.c.b16 %v177, %v175
  %v200 = vpack.c.b16 %v178, %v176
  %v201 = vpack.c.b16 %v181, %v179
  %v202 = vpack.c.b16 %v182, %v180
  %v203 = vpack.c.b16 %v185, %v183
  %v204 = vpack.c.b16 %v186, %v184
  %v205 = vpack.c.b16 %v189, %v187
  %v206 = vpack.c.b16 %v190, %v188
  %223 = vmatprep.subr.bf16.mxu0 %v192
  %224 = vmatpush1.bf16.msra.mxu0 %v191
  %225 = vmatprep.subr.bf16.mxu0 %v194
  %226 = vmatpush1.bf16.msra.mxu0 %v193
  %227 = vmatprep.subr.bf16.mxu0 %v196
  %228 = vmatpush1.bf16.msra.mxu0 %v195
  %229 = vmatprep.subr.bf16.mxu0 %v198
  %230 = vmatpush1.bf16.msra.mxu0 %v197
  %231 = vmatprep.subr.bf16.mxu0 %v200
  %232 = vmatpush1.bf16.msra.mxu0 %v199
  %233 = vmatprep.subr.bf16.mxu0 %v202
  %234 = vmatpush1.bf16.msra.mxu0 %v201
  %235 = vmatprep.subr.bf16.mxu0 %v204
  %236 = vmatpush1.bf16.msra.mxu0 %v203
  %237 = vmatprep.subr.bf16.mxu0 %v206
  %238 = vmatpush1.bf16.msra.mxu0 %v205
  %239 = vmatprep.subr.bf16.mxu0 0
  %240 = vmatpush1.bf16.msra.mxu0 0
  %241 = vmatprep.subr.bf16.mxu0 0
  %242 = vmatpush1.bf16.msra.mxu0 0
  %243 = vmatprep.subr.bf16.mxu0 0
  %244 = vmatpush1.bf16.msra.mxu0 0
  %245 = vmatprep.subr.bf16.mxu0 0
  %246 = vmatpush1.bf16.msra.mxu0 0
  %247 = vmatprep.subr.bf16.mxu0 0
  %248 = vmatpush1.bf16.msra.mxu0 0
  %249 = vmatprep.subr.bf16.mxu0 0
  %250 = vmatpush1.bf16.msra.mxu0 0
  %251 = vmatprep.subr.bf16.mxu0 0
  %252 = vmatpush1.bf16.msra.mxu0 0
  %253 = vmatprep.subr.bf16.mxu0 0
  %254 = vmatpush1.bf16.msra.mxu0 0
  %255 = vmatprep.mubr.bf16.mxu0 0
  %256 = vmatmul.mubr.bf16.gmra.mrb[0].mxu0 %v119
  %v257 = vpop.f32.mrb[0].mxu0
  %v258 = vadd.f32 0.0, %v257
  %v259 = vpop.f32.mrb[0].mxu0
  %v260 = vadd.f32 0.0, %v259
  %v261 = vpop.f32.mrb[0].mxu0
  %v262 = vadd.f32 0.0, %v261
  %v263 = vpop.f32.mrb[0].mxu0
  %v264 = vadd.f32 0.0, %v263
  %265 = vmatprep.mubr.bf16.mxu0 0
  %266 = vmatmul.mubr.bf16.gmra.mrb[0].mxu0 %v120
  %v267 = vpop.f32.mrb[0].mxu0
  %v268 = vadd.f32 0.0, %v267
  %v269 = vpop.f32.mrb[0].mxu0
  %v270 = vadd.f32 0.0, %v269
  %v271 = vpop.f32.mrb[0].mxu0
  %v272 = vadd.f32 0.0, %v271
  %v273 = vpop.f32.mrb[0].mxu0
  %v274 = vadd.f32 0.0, %v273
  %275 = vmatprep.mubr.bf16.mxu0 0
  %276 = vmatmul.mubr.bf16.gmra.mrb[0].mxu0 %v121
  %v277 = vpop.f32.mrb[0].mxu0
  %v278 = vadd.f32 0.0, %v277
  %v279 = vpop.f32.mrb[0].mxu0
  %v280 = vadd.f32 0.0, %v279
  %v281 = vpop.f32.mrb[0].mxu0
  %v282 = vadd.f32 0.0, %v281
  %v283 = vpop.f32.mrb[0].mxu0
  %v284 = vadd.f32 0.0, %v283
  %285 = vmatprep.mubr.bf16.mxu0 0
  %286 = vmatmul.mubr.bf16.gmra.mrb[0].mxu0 %v122
  %v287 = vpop.f32.mrb[0].mxu0
  %v288 = vadd.f32 0.0, %v287
  %v289 = vpop.f32.mrb[0].mxu0
  %v290 = vadd.f32 0.0, %v289
  %v291 = vpop.f32.mrb[0].mxu0
  %v292 = vadd.f32 0.0, %v291
  %v293 = vpop.f32.mrb[0].mxu0
  %v294 = vadd.f32 0.0, %v293
  %295 = vmatprep.mubr.bf16.mxu0 0
  %296 = vmatmul.mubr.bf16.gmra.mrb[0].mxu0 %v123
  %v297 = vpop.f32.mrb[0].mxu0
  %v298 = vadd.f32 0.0, %v297
  %v299 = vpop.f32.mrb[0].mxu0
  %v300 = vadd.f32 0.0, %v299
  %v301 = vpop.f32.mrb[0].mxu0
  %v302 = vadd.f32 0.0, %v301
  %v303 = vpop.f32.mrb[0].mxu0
  %v304 = vadd.f32 0.0, %v303
  %305 = vmatprep.mubr.bf16.mxu0 0
  %306 = vmatmul.mubr.bf16.gmra.mrb[0].mxu0 %v124
  %v307 = vpop.f32.mrb[0].mxu0
  %v308 = vadd.f32 0.0, %v307
  %v309 = vpop.f32.mrb[0].mxu0
  %v310 = vadd.f32 0.0, %v309
  %v311 = vpop.f32.mrb[0].mxu0
  %v312 = vadd.f32 0.0, %v311
  %v313 = vpop.f32.mrb[0].mxu0
  %v314 = vadd.f32 0.0, %v313
  %315 = vmatprep.mubr.bf16.mxu0 0
  %316 = vmatmul.mubr.bf16.gmra.mrb[0].mxu0 %v125
  %v317 = vpop.f32.mrb[0].mxu0
  %v318 = vadd.f32 0.0, %v317
  %v319 = vpop.f32.mrb[0].mxu0
  %v320 = vadd.f32 0.0, %v319
  %v321 = vpop.f32.mrb[0].mxu0
  %v322 = vadd.f32 0.0, %v321
  %v323 = vpop.f32.mrb[0].mxu0
  %v324 = vadd.f32 0.0, %v323
  %325 = vmatprep.mubr.bf16.mxu0 0
  %326 = vmatmul.mubr.bf16.gmra.mrb[0].mxu0 %v126
  %v327 = vpop.f32.mrb[0].mxu0
  %v328 = vadd.f32 0.0, %v327
  %v329 = vpop.f32.mrb[0].mxu0
  %v330 = vadd.f32 0.0, %v329
  %v331 = vpop.f32.mrb[0].mxu0
  %v332 = vadd.f32 0.0, %v331
  %v333 = vpop.f32.mrb[0].mxu0
  %v334 = vadd.f32 0.0, %v333
  %335 = vdwg.mxu0
  %v336 = vlaneseq
  %v337 = vshrl.u32 %v336, 7
  %v338 = vsub.s32 0, %v337
  %v339 = vrot.slane %v101, %v338
  %v340 = vadd.f32 %v258, %v339
  %v341 = vadd.f32 %v262, %v339
  %v342 = vadd.f32 %v268, %v339
  %v343 = vadd.f32 %v272, %v339
  %v344 = vadd.f32 %v278, %v339
  %v345 = vadd.f32 %v282, %v339
  %v346 = vadd.f32 %v288, %v339
  %v347 = vadd.f32 %v292, %v339
  %v348 = vadd.f32 %v298, %v339
  %v349 = vadd.f32 %v302, %v339
  %v350 = vadd.f32 %v308, %v339
  %v351 = vadd.f32 %v312, %v339
  %v352 = vadd.f32 %v318, %v339
  %v353 = vadd.f32 %v322, %v339
  %v354 = vadd.f32 %v328, %v339
  %v355 = vadd.f32 %v332, %v339
  %v356 = vpack.c.bf16 %v341, %v340
  %v357 = vpack.c.bf16 %v343, %v342
  %v358 = vpack.c.bf16 %v345, %v344
  %v359 = vpack.c.bf16 %v347, %v346
  %v360 = vpack.c.bf16 %v349, %v348
  %v361 = vpack.c.bf16 %v351, %v350
  %v362 = vpack.c.bf16 %v353, %v352
  %v363 = vpack.c.bf16 %v355, %v354
  %v364 = vlaneseq
  %v365 = vshrl.u32 %v364, 7
  %v366 = vsub.s32 1, %v365
  %v367 = vrot.slane %v101, %v366
  %v368 = vadd.f32 %v260, %v367
  %v369 = vadd.f32 %v264, %v367
  %v370 = vadd.f32 %v270, %v367
  %v371 = vadd.f32 %v274, %v367
  %v372 = vadd.f32 %v280, %v367
  %v373 = vadd.f32 %v284, %v367
  %v374 = vadd.f32 %v290, %v367
  %v375 = vadd.f32 %v294, %v367
  %v376 = vadd.f32 %v300, %v367
  %v377 = vadd.f32 %v304, %v367
  %v378 = vadd.f32 %v310, %v367
  %v379 = vadd.f32 %v314, %v367
  %v380 = vadd.f32 %v320, %v367
  %v381 = vadd.f32 %v324, %v367
  %v382 = vadd.f32 %v330, %v367
  %v383 = vadd.f32 %v334, %v367
  %v384 = vpack.c.bf16 %v369, %v368
  %v385 = vpack.c.bf16 %v371, %v370
  %v386 = vpack.c.bf16 %v373, %v372
  %v387 = vpack.c.bf16 %v375, %v374
  %v388 = vpack.c.bf16 %v377, %v376
  %v389 = vpack.c.bf16 %v379, %v378
  %v390 = vpack.c.bf16 %v381, %v380
  %v391 = vpack.c.bf16 %v383, %v382
  %v392 = vpack.c.bf16 %v70, %v69
  %v393 = vpack.c.bf16 %v72, %v71
  %v394 = vpack.c.bf16 %v74, %v73
  %v395 = vpack.c.bf16 %v76, %v75
  %v396 = vpack.c.bf16 %v78, %v77
  %v397 = vpack.c.bf16 %v80, %v79
  %v398 = vpack.c.bf16 %v82, %v81
  %v399 = vpack.c.bf16 %v84, %v83
  %v400 = vld [vmem:[%s3] sm:$0xf]
  %v401 = vld [vmem:[%s3 + $0x4] sm:$0xf]
  %v402 = vld [vmem:[%s3 + $0x8] sm:$0xf]
  %v403 = vld [vmem:[%s3 + $0xc] sm:$0xf]
  %v404 = vld [vmem:[%s3 + $0x10] sm:$0xf]
  %v405 = vld [vmem:[%s3 + $0x14] sm:$0xf]
  %v406 = vld [vmem:[%s3 + $0x18] sm:$0xf]
  %v407 = vld [vmem:[%s3 + $0x1c] sm:$0xf]
  %v408 = vld [vmem:[%s3 + $0x20] sm:$0xf]
  %v409 = vld [vmem:[%s3 + $0x24] sm:$0xf]
  %v410 = vld [vmem:[%s3 + $0x28] sm:$0xf]
  %v411 = vld [vmem:[%s3 + $0x2c] sm:$0xf]
  %v412 = vld [vmem:[%s3 + $0x30] sm:$0xf]
  %v413 = vld [vmem:[%s3 + $0x34] sm:$0xf]
  %v414 = vld [vmem:[%s3 + $0x38] sm:$0xf]
  %v415 = vld [vmem:[%s3 + $0x3c] sm:$0xf]
  %v416 = vlaneseq
  %v417 = vshrl.u32 %v416, 7
  %v418 = vsub.s32 2, %v417
  %v419 = vrot.slane %v101, %v418
  %v436 = vunpack.c.l.b16 %v400
  %v437 = vunpack.c.l.b16 %v401
  %v438 = vunpack.c.l.b16 %v402
  %v439 = vunpack.c.l.b16 %v403
  %v440 = vunpack.c.l.b16 %v404
  %v441 = vunpack.c.l.b16 %v405
  %v442 = vunpack.c.l.b16 %v406
  %v443 = vunpack.c.l.b16 %v407
  %v444 = vunpack.c.l.b16 %v408
  %v445 = vunpack.c.l.b16 %v409
  %v446 = vunpack.c.l.b16 %v410
  %v447 = vunpack.c.l.b16 %v411
  %v448 = vunpack.c.l.b16 %v412
  %v449 = vunpack.c.l.b16 %v413
  %v450 = vunpack.c.l.b16 %v414
  %v451 = vunpack.c.l.b16 %v415
  %v452 = vpack.c.b16 %v437, %v436
  %v453 = vpack.c.b16 %v439, %v438
  %v454 = vpack.c.b16 %v441, %v440
  %v455 = vpack.c.b16 %v443, %v442
  %v456 = vpack.c.b16 %v445, %v444
  %v457 = vpack.c.b16 %v447, %v446
  %v458 = vpack.c.b16 %v449, %v448
  %v459 = vpack.c.b16 %v451, %v450
  %468 = vmatprep.subr.bf16.mxu0 0
  %469 = vmatpush1.bf16.msra.mxu0 %v452
  %470 = vmatprep.subr.bf16.mxu0 0
  %471 = vmatpush1.bf16.msra.mxu0 %v453
  %472 = vmatprep.subr.bf16.mxu0 0
  %473 = vmatpush1.bf16.msra.mxu0 %v454
  %474 = vmatprep.subr.bf16.mxu0 0
  %475 = vmatpush1.bf16.msra.mxu0 %v455
  %476 = vmatprep.subr.bf16.mxu0 0
  %477 = vmatpush1.bf16.msra.mxu0 %v456
  %478 = vmatprep.subr.bf16.mxu0 0
  %479 = vmatpush1.bf16.msra.mxu0 %v457
  %480 = vmatprep.subr.bf16.mxu0 0
  %481 = vmatpush1.bf16.msra.mxu0 %v458
  %482 = vmatprep.subr.bf16.mxu0 0
  %483 = vmatpush1.bf16.msra.mxu0 %v459
  %484 = vmatprep.subr.bf16.mxu0 0
  %485 = vmatpush1.bf16.msra.mxu0 0
  %486 = vmatprep.subr.bf16.mxu0 0
  %487 = vmatpush1.bf16.msra.mxu0 0
  %488 = vmatprep.subr.bf16.mxu0 0
  %489 = vmatpush1.bf16.msra.mxu0 0
  %490 = vmatprep.subr.bf16.mxu0 0
  %491 = vmatpush1.bf16.msra.mxu0 0
  %492 = vmatprep.subr.bf16.mxu0 0
  %493 = vmatpush1.bf16.msra.mxu0 0
  %494 = vmatprep.subr.bf16.mxu0 0
  %495 = vmatpush1.bf16.msra.mxu0 0
  %496 = vmatprep.subr.bf16.mxu0 0
  %497 = vmatpush1.bf16.msra.mxu0 0
  %498 = vmatprep.subr.bf16.mxu0 0
  %499 = vmatpush1.bf16.msra.mxu0 0
  %500 = vmatprep.mubr.bf16.mxu0 0
  %501 = vmatmul.mubr.bf16.gmra.mrb[0].mxu0 %v392
  %v502 = vpop.f32.mrb[0].mxu0
  %v503 = vadd.f32 %v419, %v502
  %v504 = vpop.f32.mrb[0].mxu0
  %v505 = vpop.f32.mrb[0].mxu0
  %v506 = vadd.f32 %v419, %v505
  %v507 = vpop.f32.mrb[0].mxu0
  %508 = vmatprep.mubr.bf16.mxu0 0
  %509 = vmatmul.mubr.bf16.gmra.mrb[0].mxu0 %v393
  %v510 = vpop.f32.mrb[0].mxu0
  %v511 = vadd.f32 %v419, %v510
  %v512 = vpop.f32.mrb[0].mxu0
  %v513 = vpop.f32.mrb[0].mxu0
  %v514 = vadd.f32 %v419, %v513
  %v515 = vpop.f32.mrb[0].mxu0
  %516 = vmatprep.mubr.bf16.mxu0 0
  %517 = vmatmul.mubr.bf16.gmra.mrb[0].mxu0 %v394
  %v518 = vpop.f32.mrb[0].mxu0
  %v519 = vadd.f32 %v419, %v518
  %v520 = vpop.f32.mrb[0].mxu0
  %v521 = vpop.f32.mrb[0].mxu0
  %v522 = vadd.f32 %v419, %v521
  %v523 = vpop.f32.mrb[0].mxu0
  %524 = vmatprep.mubr.bf16.mxu0 0
  %525 = vmatmul.mubr.bf16.gmra.mrb[0].mxu0 %v395
  %v526 = vpop.f32.mrb[0].mxu0
  %v527 = vadd.f32 %v419, %v526
  %v528 = vpop.f32.mrb[0].mxu0
  %v529 = vpop.f32.mrb[0].mxu0
  %v530 = vadd.f32 %v419, %v529
  %v531 = vpop.f32.mrb[0].mxu0
  %532 = vmatprep.mubr.bf16.mxu0 0
  %533 = vmatmul.mubr.bf16.gmra.mrb[0].mxu0 %v396
  %v534 = vpop.f32.mrb[0].mxu0
  %v535 = vadd.f32 %v419, %v534
  %v536 = vpop.f32.mrb[0].mxu0
  %v537 = vpop.f32.mrb[0].mxu0
  %v538 = vadd.f32 %v419, %v537
  %v539 = vpop.f32.mrb[0].mxu0
  %540 = vmatprep.mubr.bf16.mxu0 0
  %541 = vmatmul.mubr.bf16.gmra.mrb[0].mxu0 %v397
  %v542 = vpop.f32.mrb[0].mxu0
  %v543 = vadd.f32 %v419, %v542
  %v544 = vpop.f32.mrb[0].mxu0
  %v545 = vpop.f32.mrb[0].mxu0
  %v546 = vadd.f32 %v419, %v545
  %v547 = vpop.f32.mrb[0].mxu0
  %548 = vmatprep.mubr.bf16.mxu0 0
  %549 = vmatmul.mubr.bf16.gmra.mrb[0].mxu0 %v398
  %v550 = vpop.f32.mrb[0].mxu0
  %v551 = vadd.f32 %v419, %v550
  %v552 = vpop.f32.mrb[0].mxu0
  %v553 = vpop.f32.mrb[0].mxu0
  %v554 = vadd.f32 %v419, %v553
  %v555 = vpop.f32.mrb[0].mxu0
  %556 = vmatprep.mubr.bf16.mxu0 0
  %557 = vmatmul.mubr.bf16.gmra.mrb[0].mxu0 %v399
  %v558 = vpop.f32.mrb[0].mxu0
  %v559 = vadd.f32 %v419, %v558
  %v560 = vpop.f32.mrb[0].mxu0
  %v561 = vpop.f32.mrb[0].mxu0
  %v562 = vadd.f32 %v419, %v561
  %v563 = vpop.f32.mrb[0].mxu0
  %564 = vdwg.mxu0
  %v565 = vpack.c.bf16 %v506, %v503
  %v566 = vpack.c.bf16 %v514, %v511
  %v567 = vpack.c.bf16 %v522, %v519
  %v568 = vpack.c.bf16 %v530, %v527
  %v569 = vpack.c.bf16 %v538, %v535
  %v570 = vpack.c.bf16 %v546, %v543
  %v571 = vpack.c.bf16 %v554, %v551
  %v572 = vpack.c.bf16 %v562, %v559
  %573 = vmatprep.subr.bf16.mxu0 0
  %574 = vmatpush1.bf16.xpose.msra.mxu0 %v384
  %575 = vmatprep.subr.bf16.mxu0 0
  %576 = vmatpush1.bf16.xpose.msra.mxu0 %v385
  %577 = vmatprep.subr.bf16.mxu0 0
  %578 = vmatpush1.bf16.xpose.msra.mxu0 %v386
  %579 = vmatprep.subr.bf16.mxu0 0
  %580 = vmatpush1.bf16.xpose.msra.mxu0 %v387
  %581 = vmatprep.subr.bf16.mxu0 0
  %582 = vmatpush1.bf16.xpose.msra.mxu0 0
  %583 = vmatprep.subr.bf16.mxu0 0
  %584 = vmatpush1.bf16.xpose.msra.mxu0 0
  %585 = vmatprep.subr.bf16.mxu0 0
  %586 = vmatpush1.bf16.xpose.msra.mxu0 0
  %587 = vmatprep.subr.bf16.mxu0 0
  %588 = vmatpush1.bf16.xpose.msra.mxu0 0
  %589 = vmatprep.subr.bf16.mxu0 0
  %590 = vmatpush1.bf16.xpose.msra.mxu0 0
  %591 = vmatprep.subr.bf16.mxu0 0
  %592 = vmatpush1.bf16.xpose.msra.mxu0 0
  %593 = vmatprep.subr.bf16.mxu0 0
  %594 = vmatpush1.bf16.xpose.msra.mxu0 0
  %595 = vmatprep.subr.bf16.mxu0 0
  %596 = vmatpush1.bf16.xpose.msra.mxu0 0
  %597 = vmatprep.subr.bf16.mxu0 0
  %598 = vmatpush1.bf16.xpose.msra.mxu0 0
  %599 = vmatprep.subr.bf16.mxu0 0
  %600 = vmatpush1.bf16.xpose.msra.mxu0 0
  %601 = vmatprep.subr.bf16.mxu0 0
  %602 = vmatpush1.bf16.xpose.msra.mxu0 0
  %603 = vmatprep.subr.bf16.mxu0 0
  %604 = vmatpush1.bf16.xpose.msra.mxu0 0
  %605 = vmatprep.mubr.bf16.mxu0 0
  %606 = vmatmul.mubr.bf16.gmra.mrb[0].mxu0 %v356
  %v607 = vpop.f32.mrb[0].mxu0
  %v608 = vadd.f32 0.0, %v607
  %v609 = vpop.f32.mrb[0].mxu0
  %v610 = vpop.f32.mrb[0].mxu0
  %v611 = vadd.f32 0.0, %v610
  %v612 = vpop.f32.mrb[0].mxu0
  %613 = vmatprep.mubr.bf16.mxu0 0
  %614 = vmatmul.mubr.bf16.gmra.mrb[0].mxu0 %v357
  %v615 = vpop.f32.mrb[0].mxu0
  %v616 = vadd.f32 0.0, %v615
  %v617 = vpop.f32.mrb[0].mxu0
  %v618 = vpop.f32.mrb[0].mxu0
  %v619 = vadd.f32 0.0, %v618
  %v620 = vpop.f32.mrb[0].mxu0
  %621 = vmatprep.mubr.bf16.mxu0 0
  %622 = vmatmul.mubr.bf16.gmra.mrb[0].mxu0 %v358
  %v623 = vpop.f32.mrb[0].mxu0
  %v624 = vadd.f32 0.0, %v623
  %v625 = vpop.f32.mrb[0].mxu0
  %v626 = vpop.f32.mrb[0].mxu0
  %v627 = vadd.f32 0.0, %v626
  %v628 = vpop.f32.mrb[0].mxu0
  %629 = vmatprep.mubr.bf16.mxu0 0
  %630 = vmatmul.mubr.bf16.gmra.mrb[0].mxu0 %v359
  %v631 = vpop.f32.mrb[0].mxu0
  %v632 = vadd.f32 0.0, %v631
  %v633 = vpop.f32.mrb[0].mxu0
  %v634 = vpop.f32.mrb[0].mxu0
  %v635 = vadd.f32 0.0, %v634
  %v636 = vpop.f32.mrb[0].mxu0
  %637 = vdwg.mxu0
  %638 = vmatprep.subr.bf16.mxu0 0
  %639 = vmatpush1.bf16.xpose.msra.mxu0 %v388
  %640 = vmatprep.subr.bf16.mxu0 0
  %641 = vmatpush1.bf16.xpose.msra.mxu0 %v389
  %642 = vmatprep.subr.bf16.mxu0 0
  %643 = vmatpush1.bf16.xpose.msra.mxu0 %v390
  %644 = vmatprep.subr.bf16.mxu0 0
  %645 = vmatpush1.bf16.xpose.msra.mxu0 %v391
  %646 = vmatprep.subr.bf16.mxu0 0
  %647 = vmatpush1.bf16.xpose.msra.mxu0 0
  %648 = vmatprep.subr.bf16.mxu0 0
  %649 = vmatpush1.bf16.xpose.msra.mxu0 0
  %650 = vmatprep.subr.bf16.mxu0 0
  %651 = vmatpush1.bf16.xpose.msra.mxu0 0
  %652 = vmatprep.subr.bf16.mxu0 0
  %653 = vmatpush1.bf16.xpose.msra.mxu0 0
  %654 = vmatprep.subr.bf16.mxu0 0
  %655 = vmatpush1.bf16.xpose.msra.mxu0 0
  %656 = vmatprep.subr.bf16.mxu0 0
  %657 = vmatpush1.bf16.xpose.msra.mxu0 0
  %658 = vmatprep.subr.bf16.mxu0 0
  %659 = vmatpush1.bf16.xpose.msra.mxu0 0
  %660 = vmatprep.subr.bf16.mxu0 0
  %661 = vmatpush1.bf16.xpose.msra.mxu0 0
  %662 = vmatprep.subr.bf16.mxu0 0
  %663 = vmatpush1.bf16.xpose.msra.mxu0 0
  %664 = vmatprep.subr.bf16.mxu0 0
  %665 = vmatpush1.bf16.xpose.msra.mxu0 0
  %666 = vmatprep.subr.bf16.mxu0 0
  %667 = vmatpush1.bf16.xpose.msra.mxu0 0
  %668 = vmatprep.subr.bf16.mxu0 0
  %669 = vmatpush1.bf16.xpose.msra.mxu0 0
  %670 = vmatprep.mubr.bf16.mxu0 0
  %671 = vmatmul.mubr.bf16.gmra.mrb[0].mxu0 %v360
  %v672 = vpop.f32.mrb[0].mxu0
  %v673 = vadd.f32 0.0, %v672
  %v674 = vpop.f32.mrb[0].mxu0
  %v675 = vpop.f32.mrb[0].mxu0
  %v676 = vadd.f32 0.0, %v675
  %v677 = vpop.f32.mrb[0].mxu0
  %678 = vmatprep.mubr.bf16.mxu0 0
  %679 = vmatmul.mubr.bf16.gmra.mrb[0].mxu0 %v361
  %v680 = vpop.f32.mrb[0].mxu0
  %v681 = vadd.f32 0.0, %v680
  %v682 = vpop.f32.mrb[0].mxu0
  %v683 = vpop.f32.mrb[0].mxu0
  %v684 = vadd.f32 0.0, %v683
  %v685 = vpop.f32.mrb[0].mxu0
  %686 = vmatprep.mubr.bf16.mxu0 0
  %687 = vmatmul.mubr.bf16.gmra.mrb[0].mxu0 %v362
  %v688 = vpop.f32.mrb[0].mxu0
  %v689 = vadd.f32 0.0, %v688
  %v690 = vpop.f32.mrb[0].mxu0
  %v691 = vpop.f32.mrb[0].mxu0
  %v692 = vadd.f32 0.0, %v691
  %v693 = vpop.f32.mrb[0].mxu0
  %694 = vmatprep.mubr.bf16.mxu0 0
  %695 = vmatmul.mubr.bf16.gmra.mrb[0].mxu0 %v363
  %v696 = vpop.f32.mrb[0].mxu0
  %v697 = vadd.f32 0.0, %v696
  %v698 = vpop.f32.mrb[0].mxu0
  %v699 = vpop.f32.mrb[0].mxu0
  %v700 = vadd.f32 0.0, %v699
  %v701 = vpop.f32.mrb[0].mxu0
  %702 = vdwg.mxu0
  %vm703 = vcmask 523264
  %v704 = vsel %vm703, %v608, -inf
  %705 = vmax.xlane.f32.xlu0 %v704
  %v706 = vpop.xlane.xlu0 %705
  %v707 = vsel %vm703, %v611, -inf
  %708 = vmax.xlane.f32.xlu0 %v707
  %v709 = vpop.xlane.xlu0 %708
  %v710 = vsel %vm703, %v616, -inf
  %711 = vmax.xlane.f32.xlu0 %v710
  %v712 = vpop.xlane.xlu0 %711
  %v713 = vsel %vm703, %v619, -inf
  %714 = vmax.xlane.f32.xlu0 %v713
  %v715 = vpop.xlane.xlu0 %714
  %v716 = vsel %vm703, %v624, -inf
  %717 = vmax.xlane.f32.xlu0 %v716
  %v718 = vpop.xlane.xlu0 %717
  %v719 = vsel %vm703, %v627, -inf
  %720 = vmax.xlane.f32.xlu0 %v719
  %v721 = vpop.xlane.xlu0 %720
  %v722 = vsel %vm703, %v632, -inf
  %723 = vmax.xlane.f32.xlu0 %v722
  %v724 = vpop.xlane.xlu0 %723
  %v725 = vsel %vm703, %v635, -inf
  %726 = vmax.xlane.f32.xlu0 %v725
  %v727 = vpop.xlane.xlu0 %726
  %v728 = vsel %vm703, %v673, -inf
  %729 = vmax.xlane.f32.xlu0 %v728
  %v730 = vpop.xlane.xlu0 %729
  %v731 = vsel %vm703, %v676, -inf
  %732 = vmax.xlane.f32.xlu0 %v731
  %v733 = vpop.xlane.xlu0 %732
  %v734 = vsel %vm703, %v681, -inf
  %735 = vmax.xlane.f32.xlu0 %v734
  %v736 = vpop.xlane.xlu0 %735
  %v737 = vsel %vm703, %v684, -inf
  %738 = vmax.xlane.f32.xlu0 %v737
  %v739 = vpop.xlane.xlu0 %738
  %v740 = vsel %vm703, %v689, -inf
  %741 = vmax.xlane.f32.xlu0 %v740
  %v742 = vpop.xlane.xlu0 %741
  %v743 = vsel %vm703, %v692, -inf
  %744 = vmax.xlane.f32.xlu0 %v743
  %v745 = vpop.xlane.xlu0 %744
  %v746 = vsel %vm703, %v697, -inf
  %747 = vmax.xlane.f32.xlu0 %v746
  %v748 = vpop.xlane.xlu0 %747
  %v749 = vsel %vm703, %v700, -inf
  %750 = vmax.xlane.f32.xlu0 %v749
  %v751 = vpop.xlane.xlu0 %750
  %v752 = vsub.f32 %v608, %v706
  %v753 = vsub.f32 %v611, %v709
  %v754 = vsub.f32 %v616, %v712
  %v755 = vsub.f32 %v619, %v715
  %v756 = vsub.f32 %v624, %v718
  %v757 = vsub.f32 %v627, %v721
  %v758 = vsub.f32 %v632, %v724
  %v759 = vsub.f32 %v635, %v727
  %v760 = vsub.f32 %v673, %v730
  %v761 = vsub.f32 %v676, %v733
  %v762 = vsub.f32 %v681, %v736
  %v763 = vsub.f32 %v684, %v739
  %v764 = vsub.f32 %v689, %v742
  %v765 = vsub.f32 %v692, %v745
  %v766 = vsub.f32 %v697, %v748
  %v767 = vsub.f32 %v700, %v751
  %v768 = vmul.f32 %v752, 1.442695
  %v769 = vpow.pop %v768
  %v770 = vmul.f32 %v753, 1.442695
  %v771 = vpow.pop %v770
  %v772 = vmul.f32 %v754, 1.442695
  %v773 = vpow.pop %v772
  %v774 = vmul.f32 %v755, 1.442695
  %v775 = vpow.pop %v774
  %v776 = vmul.f32 %v756, 1.442695
  %v777 = vpow.pop %v776
  %v778 = vmul.f32 %v757, 1.442695
  %v779 = vpow.pop %v778
  %v780 = vmul.f32 %v758, 1.442695
  %v781 = vpow.pop %v780
  %v782 = vmul.f32 %v759, 1.442695
  %v783 = vpow.pop %v782
  %v784 = vmul.f32 %v760, 1.442695
  %v785 = vpow.pop %v784
  %v786 = vmul.f32 %v761, 1.442695
  %v787 = vpow.pop %v786
  %v788 = vmul.f32 %v762, 1.442695
  %v789 = vpow.pop %v788
  %v790 = vmul.f32 %v763, 1.442695
  %v791 = vpow.pop %v790
  %v792 = vmul.f32 %v764, 1.442695
  %v793 = vpow.pop %v792
  %v794 = vmul.f32 %v765, 1.442695
  %v795 = vpow.pop %v794
  %v796 = vmul.f32 %v766, 1.442695
  %v797 = vpow.pop %v796
  %v798 = vmul.f32 %v767, 1.442695
  %v799 = vpow.pop %v798
  %v800 = vsel %vm703, %v769, 0.0
  %801 = vadd.xlane.f32.xlu0 %v800
  %v802 = vpop.xlane.xlu0 %801
  %v803 = vsel %vm703, %v771, 0.0
  %804 = vadd.xlane.f32.xlu0 %v803
  %v805 = vpop.xlane.xlu0 %804
  %v806 = vsel %vm703, %v773, 0.0
  %807 = vadd.xlane.f32.xlu0 %v806
  %v808 = vpop.xlane.xlu0 %807
  %v809 = vsel %vm703, %v775, 0.0
  %810 = vadd.xlane.f32.xlu0 %v809
  %v811 = vpop.xlane.xlu0 %810
  %v812 = vsel %vm703, %v777, 0.0
  %813 = vadd.xlane.f32.xlu0 %v812
  %v814 = vpop.xlane.xlu0 %813
  %v815 = vsel %vm703, %v779, 0.0
  %816 = vadd.xlane.f32.xlu0 %v815
  %v817 = vpop.xlane.xlu0 %816
  %v818 = vsel %vm703, %v781, 0.0
  %819 = vadd.xlane.f32.xlu0 %v818
  %v820 = vpop.xlane.xlu0 %819
  %v821 = vsel %vm703, %v783, 0.0
  %822 = vadd.xlane.f32.xlu0 %v821
  %v823 = vpop.xlane.xlu0 %822
  %v824 = vsel %vm703, %v785, 0.0
  %825 = vadd.xlane.f32.xlu0 %v824
  %v826 = vpop.xlane.xlu0 %825
  %v827 = vsel %vm703, %v787, 0.0
  %828 = vadd.xlane.f32.xlu0 %v827
  %v829 = vpop.xlane.xlu0 %828
  %v830 = vsel %vm703, %v789, 0.0
  %831 = vadd.xlane.f32.xlu0 %v830
  %v832 = vpop.xlane.xlu0 %831
  %v833 = vsel %vm703, %v791, 0.0
  %834 = vadd.xlane.f32.xlu0 %v833
  %v835 = vpop.xlane.xlu0 %834
  %v836 = vsel %vm703, %v793, 0.0
  %837 = vadd.xlane.f32.xlu0 %v836
  %v838 = vpop.xlane.xlu0 %837
  %v839 = vsel %vm703, %v795, 0.0
  %840 = vadd.xlane.f32.xlu0 %v839
  %v841 = vpop.xlane.xlu0 %840
  %v842 = vsel %vm703, %v797, 0.0
  %843 = vadd.xlane.f32.xlu0 %v842
  %v844 = vpop.xlane.xlu0 %843
  %v845 = vsel %vm703, %v799, 0.0
  %846 = vadd.xlane.f32.xlu0 %v845
  %v847 = vpop.xlane.xlu0 %846
  %v848 = vpack.c.bf16 %v771, %v769
  %v849 = vpack.c.bf16 %v775, %v773
  %v850 = vpack.c.bf16 %v779, %v777
  %v851 = vpack.c.bf16 %v783, %v781
  %v852 = vpack.c.bf16 %v787, %v785
  %v853 = vpack.c.bf16 %v791, %v789
  %v854 = vpack.c.bf16 %v795, %v793
  %v855 = vpack.c.bf16 %v799, %v797
  %v857 = vsel %vm703, %v848, 0
  %v860 = vsel %vm703, %v849, 0
  %v863 = vsel %vm703, %v850, 0
  %v866 = vsel %vm703, %v851, 0
  %868 = vmatprep.subr.bf16.mxu0 0
  %869 = vmatpush1.bf16.msra.mxu0 %v565
  %870 = vmatprep.subr.bf16.mxu0 0
  %871 = vmatpush1.bf16.msra.mxu0 %v566
  %872 = vmatprep.subr.bf16.mxu0 0
  %873 = vmatpush1.bf16.msra.mxu0 %v567
  %874 = vmatprep.subr.bf16.mxu0 0
  %875 = vmatpush1.bf16.msra.mxu0 %v568
  %876 = vmatprep.subr.bf16.mxu0 0
  %877 = vmatpush1.bf16.msra.mxu0 0
  %878 = vmatprep.subr.bf16.mxu0 0
  %879 = vmatpush1.bf16.msra.mxu0 0
  %880 = vmatprep.subr.bf16.mxu0 0
  %881 = vmatpush1.bf16.msra.mxu0 0
  %882 = vmatprep.subr.bf16.mxu0 0
  %883 = vmatpush1.bf16.msra.mxu0 0
  %884 = vmatprep.subr.bf16.mxu0 0
  %885 = vmatpush1.bf16.msra.mxu0 0
  %886 = vmatprep.subr.bf16.mxu0 0
  %887 = vmatpush1.bf16.msra.mxu0 0
  %888 = vmatprep.subr.bf16.mxu0 0
  %889 = vmatpush1.bf16.msra.mxu0 0
  %890 = vmatprep.subr.bf16.mxu0 0
  %891 = vmatpush1.bf16.msra.mxu0 0
  %892 = vmatprep.subr.bf16.mxu0 0
  %893 = vmatpush1.bf16.msra.mxu0 0
  %894 = vmatprep.subr.bf16.mxu0 0
  %895 = vmatpush1.bf16.msra.mxu0 0
  %896 = vmatprep.subr.bf16.mxu0 0
  %897 = vmatpush1.bf16.msra.mxu0 0
  %898 = vmatprep.subr.bf16.mxu0 0
  %899 = vmatpush1.bf16.msra.mxu0 0
  %900 = vmatprep.mubr.bf16.mxu0 0
  %901 = vmatmul.mubr.bf16.gmra.mrb[0].mxu0 %v857
  %v902 = vpop.f32.mrb[0].mxu0
  %v903 = vadd.f32 0.0, %v902
  %v904 = vpop.f32.mrb[0].mxu0
  %v905 = vpop.f32.mrb[0].mxu0
  %v906 = vadd.f32 0.0, %v905
  %v907 = vpop.f32.mrb[0].mxu0
  %908 = vmatprep.mubr.bf16.mxu0 0
  %909 = vmatmul.mubr.bf16.gmra.mrb[0].mxu0 %v860
  %v910 = vpop.f32.mrb[0].mxu0
  %v911 = vadd.f32 0.0, %v910
  %v912 = vpop.f32.mrb[0].mxu0
  %v913 = vpop.f32.mrb[0].mxu0
  %v914 = vadd.f32 0.0, %v913
  %v915 = vpop.f32.mrb[0].mxu0
  %916 = vmatprep.mubr.bf16.mxu0 0
  %917 = vmatmul.mubr.bf16.gmra.mrb[0].mxu0 %v863
  %v918 = vpop.f32.mrb[0].mxu0
  %v919 = vadd.f32 0.0, %v918
  %v920 = vpop.f32.mrb[0].mxu0
  %v921 = vpop.f32.mrb[0].mxu0
  %v922 = vadd.f32 0.0, %v921
  %v923 = vpop.f32.mrb[0].mxu0
  %924 = vmatprep.mubr.bf16.mxu0 0
  %925 = vmatmul.mubr.bf16.gmra.mrb[0].mxu0 %v866
  %v926 = vpop.f32.mrb[0].mxu0
  %v927 = vadd.f32 0.0, %v926
  %v928 = vpop.f32.mrb[0].mxu0
  %v929 = vpop.f32.mrb[0].mxu0
  %v930 = vadd.f32 0.0, %v929
  %v931 = vpop.f32.mrb[0].mxu0
  %932 = vdwg.mxu0
  %v934 = vsel %vm703, %v852, 0
  %v937 = vsel %vm703, %v853, 0
  %v940 = vsel %vm703, %v854, 0
  %v943 = vsel %vm703, %v855, 0
  %945 = vmatprep.subr.bf16.mxu0 0
  %946 = vmatpush1.bf16.msra.mxu0 %v569
  %947 = vmatprep.subr.bf16.mxu0 0
  %948 = vmatpush1.bf16.msra.mxu0 %v570
  %949 = vmatprep.subr.bf16.mxu0 0
  %950 = vmatpush1.bf16.msra.mxu0 %v571
  %951 = vmatprep.subr.bf16.mxu0 0
  %952 = vmatpush1.bf16.msra.mxu0 %v572
  %953 = vmatprep.subr.bf16.mxu0 0
  %954 = vmatpush1.bf16.msra.mxu0 0
  %955 = vmatprep.subr.bf16.mxu0 0
  %956 = vmatpush1.bf16.msra.mxu0 0
  %957 = vmatprep.subr.bf16.mxu0 0
  %958 = vmatpush1.bf16.msra.mxu0 0
  %959 = vmatprep.subr.bf16.mxu0 0
  %960 = vmatpush1.bf16.msra.mxu0 0
  %961 = vmatprep.subr.bf16.mxu0 0
  %962 = vmatpush1.bf16.msra.mxu0 0
  %963 = vmatprep.subr.bf16.mxu0 0
  %964 = vmatpush1.bf16.msra.mxu0 0
  %965 = vmatprep.subr.bf16.mxu0 0
  %966 = vmatpush1.bf16.msra.mxu0 0
  %967 = vmatprep.subr.bf16.mxu0 0
  %968 = vmatpush1.bf16.msra.mxu0 0
  %969 = vmatprep.subr.bf16.mxu0 0
  %970 = vmatpush1.bf16.msra.mxu0 0
  %971 = vmatprep.subr.bf16.mxu0 0
  %972 = vmatpush1.bf16.msra.mxu0 0
  %973 = vmatprep.subr.bf16.mxu0 0
  %974 = vmatpush1.bf16.msra.mxu0 0
  %975 = vmatprep.subr.bf16.mxu0 0
  %976 = vmatpush1.bf16.msra.mxu0 0
  %977 = vmatprep.mubr.bf16.mxu0 0
  %978 = vmatmul.mubr.bf16.gmra.mrb[0].mxu0 %v934
  %v979 = vpop.f32.mrb[0].mxu0
  %v980 = vadd.f32 0.0, %v979
  %v981 = vpop.f32.mrb[0].mxu0
  %v982 = vpop.f32.mrb[0].mxu0
  %v983 = vadd.f32 0.0, %v982
  %v984 = vpop.f32.mrb[0].mxu0
  %985 = vmatprep.mubr.bf16.mxu0 0
  %986 = vmatmul.mubr.bf16.gmra.mrb[0].mxu0 %v937
  %v987 = vpop.f32.mrb[0].mxu0
  %v988 = vadd.f32 0.0, %v987
  %v989 = vpop.f32.mrb[0].mxu0
  %v990 = vpop.f32.mrb[0].mxu0
  %v991 = vadd.f32 0.0, %v990
  %v992 = vpop.f32.mrb[0].mxu0
  %993 = vmatprep.mubr.bf16.mxu0 0
  %994 = vmatmul.mubr.bf16.gmra.mrb[0].mxu0 %v940
  %v995 = vpop.f32.mrb[0].mxu0
  %v996 = vadd.f32 0.0, %v995
  %v997 = vpop.f32.mrb[0].mxu0
  %v998 = vpop.f32.mrb[0].mxu0
  %v999 = vadd.f32 0.0, %v998
  %v1000 = vpop.f32.mrb[0].mxu0
  %1001 = vmatprep.mubr.bf16.mxu0 0
  %1002 = vmatmul.mubr.bf16.gmra.mrb[0].mxu0 %v943
  %v1003 = vpop.f32.mrb[0].mxu0
  %v1004 = vadd.f32 0.0, %v1003
  %v1005 = vpop.f32.mrb[0].mxu0
  %v1006 = vpop.f32.mrb[0].mxu0
  %v1007 = vadd.f32 0.0, %v1006
  %v1008 = vpop.f32.mrb[0].mxu0
  %1009 = vdwg.mxu0
  %v1010 = vrcp.pop %v802
  %v1011 = vrcp.pop %v805
  %v1012 = vrcp.pop %v808
  %v1013 = vrcp.pop %v811
  %v1014 = vrcp.pop %v814
  %v1015 = vrcp.pop %v817
  %v1016 = vrcp.pop %v820
  %v1017 = vrcp.pop %v823
  %v1018 = vrcp.pop %v826
  %v1019 = vrcp.pop %v829
  %v1020 = vrcp.pop %v832
  %v1021 = vrcp.pop %v835
  %v1022 = vrcp.pop %v838
  %v1023 = vrcp.pop %v841
  %v1024 = vrcp.pop %v844
  %v1025 = vrcp.pop %v847
  %v1026 = vmul.f32 %v903, %v1010
  %v1027 = vmul.f32 %v906, %v1011
  %v1028 = vmul.f32 %v911, %v1012
  %v1029 = vmul.f32 %v914, %v1013
  %v1030 = vmul.f32 %v919, %v1014
  %v1031 = vmul.f32 %v922, %v1015
  %v1032 = vmul.f32 %v927, %v1016
  %v1033 = vmul.f32 %v930, %v1017
  %v1034 = vmul.f32 %v980, %v1018
  %v1035 = vmul.f32 %v983, %v1019
  %v1036 = vmul.f32 %v988, %v1020
  %v1037 = vmul.f32 %v991, %v1021
  %v1038 = vmul.f32 %v996, %v1022
  %v1039 = vmul.f32 %v999, %v1023
  %v1040 = vmul.f32 %v1004, %v1024
  %v1041 = vmul.f32 %v1007, %v1025
  %v1042 = vpack.c.bf16 %v1027, %v1026
  %v1043 = vpack.c.bf16 %v1029, %v1028
  %v1044 = vpack.c.bf16 %v1031, %v1030
  %v1045 = vpack.c.bf16 %v1033, %v1032
  %v1046 = vpack.c.bf16 %v1035, %v1034
  %v1047 = vpack.c.bf16 %v1037, %v1036
  %v1048 = vpack.c.bf16 %v1039, %v1038
  %v1049 = vpack.c.bf16 %v1041, %v1040
  %v1050 = vld [vmem:[%s4] sm:$0xf]
  %v1051 = vld [vmem:[%s4 + $0x4] sm:$0xf]
  %v1052 = vld [vmem:[%s4 + $0x8] sm:$0xf]
  %v1053 = vld [vmem:[%s4 + $0xc] sm:$0xf]
  %v1054 = vld [vmem:[%s4 + $0x10] sm:$0xf]
  %v1055 = vld [vmem:[%s4 + $0x14] sm:$0xf]
  %v1056 = vld [vmem:[%s4 + $0x18] sm:$0xf]
  %v1057 = vld [vmem:[%s4 + $0x1c] sm:$0xf]
  %v1058 = vld [vmem:[%s4 + $0x20] sm:$0xf]
  %v1059 = vld [vmem:[%s4 + $0x24] sm:$0xf]
  %v1060 = vld [vmem:[%s4 + $0x28] sm:$0xf]
  %v1061 = vld [vmem:[%s4 + $0x2c] sm:$0xf]
  %v1062 = vld [vmem:[%s4 + $0x30] sm:$0xf]
  %v1063 = vld [vmem:[%s4 + $0x34] sm:$0xf]
  %v1064 = vld [vmem:[%s4 + $0x38] sm:$0xf]
  %v1065 = vld [vmem:[%s4 + $0x3c] sm:$0xf]
  %v1066 = vlaneseq
  %v1067 = vshrl.u32 %v1066, 7
  %v1068 = vsub.s32 3, %v1067
  %v1069 = vrot.slane %v101, %v1068
  %v1086 = vunpack.c.l.b16 %v1050
  %v1087 = vunpack.c.l.b16 %v1051
  %v1088 = vunpack.c.l.b16 %v1052
  %v1089 = vunpack.c.l.b16 %v1053
  %v1090 = vunpack.c.l.b16 %v1054
  %v1091 = vunpack.c.l.b16 %v1055
  %v1092 = vunpack.c.l.b16 %v1056
  %v1093 = vunpack.c.l.b16 %v1057
  %v1094 = vunpack.c.l.b16 %v1058
  %v1095 = vunpack.c.l.b16 %v1059
  %v1096 = vunpack.c.l.b16 %v1060
  %v1097 = vunpack.c.l.b16 %v1061
  %v1098 = vunpack.c.l.b16 %v1062
  %v1099 = vunpack.c.l.b16 %v1063
  %v1100 = vunpack.c.l.b16 %v1064
  %v1101 = vunpack.c.l.b16 %v1065
  %v1102 = vpack.c.b16 %v1087, %v1086
  %v1103 = vpack.c.b16 %v1089, %v1088
  %v1104 = vpack.c.b16 %v1091, %v1090
  %v1105 = vpack.c.b16 %v1093, %v1092
  %v1106 = vpack.c.b16 %v1095, %v1094
  %v1107 = vpack.c.b16 %v1097, %v1096
  %v1108 = vpack.c.b16 %v1099, %v1098
  %v1109 = vpack.c.b16 %v1101, %v1100
  %1118 = vmatprep.subr.bf16.mxu0 0
  %1119 = vmatpush1.bf16.msra.mxu0 %v1102
  %1120 = vmatprep.subr.bf16.mxu0 0
  %1121 = vmatpush1.bf16.msra.mxu0 %v1103
  %1122 = vmatprep.subr.bf16.mxu0 0
  %1123 = vmatpush1.bf16.msra.mxu0 %v1104
  %1124 = vmatprep.subr.bf16.mxu0 0
  %1125 = vmatpush1.bf16.msra.mxu0 %v1105
  %1126 = vmatprep.subr.bf16.mxu0 0
  %1127 = vmatpush1.bf16.msra.mxu0 %v1106
  %1128 = vmatprep.subr.bf16.mxu0 0
  %1129 = vmatpush1.bf16.msra.mxu0 %v1107
  %1130 = vmatprep.subr.bf16.mxu0 0
  %1131 = vmatpush1.bf16.msra.mxu0 %v1108
  %1132 = vmatprep.subr.bf16.mxu0 0
  %1133 = vmatpush1.bf16.msra.mxu0 %v1109
  %1134 = vmatprep.subr.bf16.mxu0 0
  %1135 = vmatpush1.bf16.msra.mxu0 0
  %1136 = vmatprep.subr.bf16.mxu0 0
  %1137 = vmatpush1.bf16.msra.mxu0 0
  %1138 = vmatprep.subr.bf16.mxu0 0
  %1139 = vmatpush1.bf16.msra.mxu0 0
  %1140 = vmatprep.subr.bf16.mxu0 0
  %1141 = vmatpush1.bf16.msra.mxu0 0
  %1142 = vmatprep.subr.bf16.mxu0 0
  %1143 = vmatpush1.bf16.msra.mxu0 0
  %1144 = vmatprep.subr.bf16.mxu0 0
  %1145 = vmatpush1.bf16.msra.mxu0 0
  %1146 = vmatprep.subr.bf16.mxu0 0
  %1147 = vmatpush1.bf16.msra.mxu0 0
  %1148 = vmatprep.subr.bf16.mxu0 0
  %1149 = vmatpush1.bf16.msra.mxu0 0
  %1150 = vmatprep.mubr.bf16.mxu0 0
  %1151 = vmatmul.mubr.bf16.gmra.mrb[0].mxu0 %v1042
  %v1152 = vpop.f32.mrb[0].mxu0
  %v1153 = vadd.f32 %v1069, %v1152
  %v1154 = vpop.f32.mrb[0].mxu0
  %v1155 = vpop.f32.mrb[0].mxu0
  %v1156 = vadd.f32 %v1069, %v1155
  %v1157 = vpop.f32.mrb[0].mxu0
  %1158 = vmatprep.mubr.bf16.mxu0 0
  %1159 = vmatmul.mubr.bf16.gmra.mrb[0].mxu0 %v1043
  %v1160 = vpop.f32.mrb[0].mxu0
  %v1161 = vadd.f32 %v1069, %v1160
  %v1162 = vpop.f32.mrb[0].mxu0
  %v1163 = vpop.f32.mrb[0].mxu0
  %v1164 = vadd.f32 %v1069, %v1163
  %v1165 = vpop.f32.mrb[0].mxu0
  %1166 = vmatprep.mubr.bf16.mxu0 0
  %1167 = vmatmul.mubr.bf16.gmra.mrb[0].mxu0 %v1044
  %v1168 = vpop.f32.mrb[0].mxu0
  %v1169 = vadd.f32 %v1069, %v1168
  %v1170 = vpop.f32.mrb[0].mxu0
  %v1171 = vpop.f32.mrb[0].mxu0
  %v1172 = vadd.f32 %v1069, %v1171
  %v1173 = vpop.f32.mrb[0].mxu0
  %1174 = vmatprep.mubr.bf16.mxu0 0
  %1175 = vmatmul.mubr.bf16.gmra.mrb[0].mxu0 %v1045
  %v1176 = vpop.f32.mrb[0].mxu0
  %v1177 = vadd.f32 %v1069, %v1176
  %v1178 = vpop.f32.mrb[0].mxu0
  %v1179 = vpop.f32.mrb[0].mxu0
  %v1180 = vadd.f32 %v1069, %v1179
  %v1181 = vpop.f32.mrb[0].mxu0
  %1182 = vmatprep.mubr.bf16.mxu0 0
  %1183 = vmatmul.mubr.bf16.gmra.mrb[0].mxu0 %v1046
  %v1184 = vpop.f32.mrb[0].mxu0
  %v1185 = vadd.f32 %v1069, %v1184
  %v1186 = vpop.f32.mrb[0].mxu0
  %v1187 = vpop.f32.mrb[0].mxu0
  %v1188 = vadd.f32 %v1069, %v1187
  %v1189 = vpop.f32.mrb[0].mxu0
  %1190 = vmatprep.mubr.bf16.mxu0 0
  %1191 = vmatmul.mubr.bf16.gmra.mrb[0].mxu0 %v1047
  %v1192 = vpop.f32.mrb[0].mxu0
  %v1193 = vadd.f32 %v1069, %v1192
  %v1194 = vpop.f32.mrb[0].mxu0
  %v1195 = vpop.f32.mrb[0].mxu0
  %v1196 = vadd.f32 %v1069, %v1195
  %v1197 = vpop.f32.mrb[0].mxu0
  %1198 = vmatprep.mubr.bf16.mxu0 0
  %1199 = vmatmul.mubr.bf16.gmra.mrb[0].mxu0 %v1048
  %v1200 = vpop.f32.mrb[0].mxu0
  %v1201 = vadd.f32 %v1069, %v1200
  %v1202 = vpop.f32.mrb[0].mxu0
  %v1203 = vpop.f32.mrb[0].mxu0
  %v1204 = vadd.f32 %v1069, %v1203
  %v1205 = vpop.f32.mrb[0].mxu0
  %1206 = vmatprep.mubr.bf16.mxu0 0
  %1207 = vmatmul.mubr.bf16.gmra.mrb[0].mxu0 %v1049
  %v1208 = vpop.f32.mrb[0].mxu0
  %v1209 = vadd.f32 %v1069, %v1208
  %v1210 = vpop.f32.mrb[0].mxu0
  %v1211 = vpop.f32.mrb[0].mxu0
  %v1212 = vadd.f32 %v1069, %v1211
  %v1213 = vpop.f32.mrb[0].mxu0
  %1214 = vdwg.mxu0
  %v1215 = vadd.f32 %v69, %v1153
  %v1216 = vadd.f32 %v70, %v1156
  %v1217 = vadd.f32 %v71, %v1161
  %v1218 = vadd.f32 %v72, %v1164
  %v1219 = vadd.f32 %v73, %v1169
  %v1220 = vadd.f32 %v74, %v1172
  %v1221 = vadd.f32 %v75, %v1177
  %v1222 = vadd.f32 %v76, %v1180
  %v1223 = vadd.f32 %v77, %v1185
  %v1224 = vadd.f32 %v78, %v1188
  %v1225 = vadd.f32 %v79, %v1193
  %v1226 = vadd.f32 %v80, %v1196
  %v1227 = vadd.f32 %v81, %v1201
  %v1228 = vadd.f32 %v82, %v1204
  %v1229 = vadd.f32 %v83, %v1209
  %v1230 = vadd.f32 %v84, %v1212
  %1231 = vadd.xlane.f32.xlu0 %v1215
  %v1232 = vpop.xlane.xlu0 %1231
  %1233 = vadd.xlane.f32.xlu0 %v1216
  %v1234 = vpop.xlane.xlu0 %1233
  %1235 = vadd.xlane.f32.xlu0 %v1217
  %v1236 = vpop.xlane.xlu0 %1235
  %1237 = vadd.xlane.f32.xlu0 %v1218
  %v1238 = vpop.xlane.xlu0 %1237
  %1239 = vadd.xlane.f32.xlu0 %v1219
  %v1240 = vpop.xlane.xlu0 %1239
  %1241 = vadd.xlane.f32.xlu0 %v1220
  %v1242 = vpop.xlane.xlu0 %1241
  %1243 = vadd.xlane.f32.xlu0 %v1221
  %v1244 = vpop.xlane.xlu0 %1243
  %1245 = vadd.xlane.f32.xlu0 %v1222
  %v1246 = vpop.xlane.xlu0 %1245
  %1247 = vadd.xlane.f32.xlu0 %v1223
  %v1248 = vpop.xlane.xlu0 %1247
  %1249 = vadd.xlane.f32.xlu0 %v1224
  %v1250 = vpop.xlane.xlu0 %1249
  %1251 = vadd.xlane.f32.xlu0 %v1225
  %v1252 = vpop.xlane.xlu0 %1251
  %1253 = vadd.xlane.f32.xlu0 %v1226
  %v1254 = vpop.xlane.xlu0 %1253
  %1255 = vadd.xlane.f32.xlu0 %v1227
  %v1256 = vpop.xlane.xlu0 %1255
  %1257 = vadd.xlane.f32.xlu0 %v1228
  %v1258 = vpop.xlane.xlu0 %1257
  %1259 = vadd.xlane.f32.xlu0 %v1229
  %v1260 = vpop.xlane.xlu0 %1259
  %1261 = vadd.xlane.f32.xlu0 %v1230
  %v1262 = vpop.xlane.xlu0 %1261
  %v1263 = vmul.f32 %v1215, %v1215
  %v1264 = vmul.f32 %v1216, %v1216
  %v1265 = vmul.f32 %v1217, %v1217
  %v1266 = vmul.f32 %v1218, %v1218
  %v1267 = vmul.f32 %v1219, %v1219
  %v1268 = vmul.f32 %v1220, %v1220
  %v1269 = vmul.f32 %v1221, %v1221
  %v1270 = vmul.f32 %v1222, %v1222
  %v1271 = vmul.f32 %v1223, %v1223
  %v1272 = vmul.f32 %v1224, %v1224
  %v1273 = vmul.f32 %v1225, %v1225
  %v1274 = vmul.f32 %v1226, %v1226
  %v1275 = vmul.f32 %v1227, %v1227
  %v1276 = vmul.f32 %v1228, %v1228
  %v1277 = vmul.f32 %v1229, %v1229
  %v1278 = vmul.f32 %v1230, %v1230
  %1279 = vadd.xlane.f32.xlu0 %v1263
  %v1280 = vpop.xlane.xlu0 %1279
  %1281 = vadd.xlane.f32.xlu0 %v1264
  %v1282 = vpop.xlane.xlu0 %1281
  %1283 = vadd.xlane.f32.xlu0 %v1265
  %v1284 = vpop.xlane.xlu0 %1283
  %1285 = vadd.xlane.f32.xlu0 %v1266
  %v1286 = vpop.xlane.xlu0 %1285
  %1287 = vadd.xlane.f32.xlu0 %v1267
  %v1288 = vpop.xlane.xlu0 %1287
  %1289 = vadd.xlane.f32.xlu0 %v1268
  %v1290 = vpop.xlane.xlu0 %1289
  %1291 = vadd.xlane.f32.xlu0 %v1269
  %v1292 = vpop.xlane.xlu0 %1291
  %1293 = vadd.xlane.f32.xlu0 %v1270
  %v1294 = vpop.xlane.xlu0 %1293
  %1295 = vadd.xlane.f32.xlu0 %v1271
  %v1296 = vpop.xlane.xlu0 %1295
  %1297 = vadd.xlane.f32.xlu0 %v1272
  %v1298 = vpop.xlane.xlu0 %1297
  %1299 = vadd.xlane.f32.xlu0 %v1273
  %v1300 = vpop.xlane.xlu0 %1299
  %1301 = vadd.xlane.f32.xlu0 %v1274
  %v1302 = vpop.xlane.xlu0 %1301
  %1303 = vadd.xlane.f32.xlu0 %v1275
  %v1304 = vpop.xlane.xlu0 %1303
  %1305 = vadd.xlane.f32.xlu0 %v1276
  %v1306 = vpop.xlane.xlu0 %1305
  %1307 = vadd.xlane.f32.xlu0 %v1277
  %v1308 = vpop.xlane.xlu0 %1307
  %1309 = vadd.xlane.f32.xlu0 %v1278
  %v1310 = vpop.xlane.xlu0 %1309
  %v1311 = vmul.f32 %v1232, 0.03125
  %v1312 = vmul.f32 %v1234, 0.03125
  %v1313 = vmul.f32 %v1236, 0.03125
  %v1314 = vmul.f32 %v1238, 0.03125
  %v1315 = vmul.f32 %v1240, 0.03125
  %v1316 = vmul.f32 %v1242, 0.03125
  %v1317 = vmul.f32 %v1244, 0.03125
  %v1318 = vmul.f32 %v1246, 0.03125
  %v1319 = vmul.f32 %v1248, 0.03125
  %v1320 = vmul.f32 %v1250, 0.03125
  %v1321 = vmul.f32 %v1252, 0.03125
  %v1322 = vmul.f32 %v1254, 0.03125
  %v1323 = vmul.f32 %v1256, 0.03125
  %v1324 = vmul.f32 %v1258, 0.03125
  %v1325 = vmul.f32 %v1260, 0.03125
  %v1326 = vmul.f32 %v1262, 0.03125
  %v1327 = vmul.f32 %v1280, 0.03125
  %v1328 = vmul.f32 %v1282, 0.03125
  %v1329 = vmul.f32 %v1284, 0.03125
  %v1330 = vmul.f32 %v1286, 0.03125
  %v1331 = vmul.f32 %v1288, 0.03125
  %v1332 = vmul.f32 %v1290, 0.03125
  %v1333 = vmul.f32 %v1292, 0.03125
  %v1334 = vmul.f32 %v1294, 0.03125
  %v1335 = vmul.f32 %v1296, 0.03125
  %v1336 = vmul.f32 %v1298, 0.03125
  %v1337 = vmul.f32 %v1300, 0.03125
  %v1338 = vmul.f32 %v1302, 0.03125
  %v1339 = vmul.f32 %v1304, 0.03125
  %v1340 = vmul.f32 %v1306, 0.03125
  %v1341 = vmul.f32 %v1308, 0.03125
  %v1342 = vmul.f32 %v1310, 0.03125
  %v1343 = vmul.f32 %v1311, %v1311
  %v1344 = vmul.f32 %v1312, %v1312
  %v1345 = vmul.f32 %v1313, %v1313
  %v1346 = vmul.f32 %v1314, %v1314
  %v1347 = vmul.f32 %v1315, %v1315
  %v1348 = vmul.f32 %v1316, %v1316
  %v1349 = vmul.f32 %v1317, %v1317
  %v1350 = vmul.f32 %v1318, %v1318
  %v1351 = vmul.f32 %v1319, %v1319
  %v1352 = vmul.f32 %v1320, %v1320
  %v1353 = vmul.f32 %v1321, %v1321
  %v1354 = vmul.f32 %v1322, %v1322
  %v1355 = vmul.f32 %v1323, %v1323
  %v1356 = vmul.f32 %v1324, %v1324
  %v1357 = vmul.f32 %v1325, %v1325
  %v1358 = vmul.f32 %v1326, %v1326
  %v1359 = vsub.f32 %v1327, %v1343
  %v1360 = vsub.f32 %v1328, %v1344
  %v1361 = vsub.f32 %v1329, %v1345
  %v1362 = vsub.f32 %v1330, %v1346
  %v1363 = vsub.f32 %v1331, %v1347
  %v1364 = vsub.f32 %v1332, %v1348
  %v1365 = vsub.f32 %v1333, %v1349
  %v1366 = vsub.f32 %v1334, %v1350
  %v1367 = vsub.f32 %v1335, %v1351
  %v1368 = vsub.f32 %v1336, %v1352
  %v1369 = vsub.f32 %v1337, %v1353
  %v1370 = vsub.f32 %v1338, %v1354
  %v1371 = vsub.f32 %v1339, %v1355
  %v1372 = vsub.f32 %v1340, %v1356
  %v1373 = vsub.f32 %v1341, %v1357
  %v1374 = vsub.f32 %v1342, %v1358
  %v1375 = vmax.f32 %v1359, 0.0
  %v1376 = vmax.f32 %v1360, 0.0
  %v1377 = vmax.f32 %v1361, 0.0
  %v1378 = vmax.f32 %v1362, 0.0
  %v1379 = vmax.f32 %v1363, 0.0
  %v1380 = vmax.f32 %v1364, 0.0
  %v1381 = vmax.f32 %v1365, 0.0
  %v1382 = vmax.f32 %v1366, 0.0
  %v1383 = vmax.f32 %v1367, 0.0
  %v1384 = vmax.f32 %v1368, 0.0
  %v1385 = vmax.f32 %v1369, 0.0
  %v1386 = vmax.f32 %v1370, 0.0
  %v1387 = vmax.f32 %v1371, 0.0
  %v1388 = vmax.f32 %v1372, 0.0
  %v1389 = vmax.f32 %v1373, 0.0
  %v1390 = vmax.f32 %v1374, 0.0
  %v1391 = vsub.f32 %v1215, %v1311
  %v1392 = vsub.f32 %v1216, %v1312
  %v1393 = vsub.f32 %v1217, %v1313
  %v1394 = vsub.f32 %v1218, %v1314
  %v1395 = vsub.f32 %v1219, %v1315
  %v1396 = vsub.f32 %v1220, %v1316
  %v1397 = vsub.f32 %v1221, %v1317
  %v1398 = vsub.f32 %v1222, %v1318
  %v1399 = vsub.f32 %v1223, %v1319
  %v1400 = vsub.f32 %v1224, %v1320
  %v1401 = vsub.f32 %v1225, %v1321
  %v1402 = vsub.f32 %v1226, %v1322
  %v1403 = vsub.f32 %v1227, %v1323
  %v1404 = vsub.f32 %v1228, %v1324
  %v1405 = vsub.f32 %v1229, %v1325
  %v1406 = vsub.f32 %v1230, %v1326
  %v1407 = vadd.f32 %v1375, 1e-05
  %v1408 = vadd.f32 %v1376, 1e-05
  %v1409 = vadd.f32 %v1377, 1e-05
  %v1410 = vadd.f32 %v1378, 1e-05
  %v1411 = vadd.f32 %v1379, 1e-05
  %v1412 = vadd.f32 %v1380, 1e-05
  %v1413 = vadd.f32 %v1381, 1e-05
  %v1414 = vadd.f32 %v1382, 1e-05
  %v1415 = vadd.f32 %v1383, 1e-05
  %v1416 = vadd.f32 %v1384, 1e-05
  %v1417 = vadd.f32 %v1385, 1e-05
  %v1418 = vadd.f32 %v1386, 1e-05
  %v1419 = vadd.f32 %v1387, 1e-05
  %v1420 = vadd.f32 %v1388, 1e-05
  %v1421 = vadd.f32 %v1389, 1e-05
  %v1422 = vadd.f32 %v1390, 1e-05
  %v1423 = vrsqrt.pop %v1407
  %v1424 = vrsqrt.pop %v1408
  %v1425 = vrsqrt.pop %v1409
  %v1426 = vrsqrt.pop %v1410
  %v1427 = vrsqrt.pop %v1411
  %v1428 = vrsqrt.pop %v1412
  %v1429 = vrsqrt.pop %v1413
  %v1430 = vrsqrt.pop %v1414
  %v1431 = vrsqrt.pop %v1415
  %v1432 = vrsqrt.pop %v1416
  %v1433 = vrsqrt.pop %v1417
  %v1434 = vrsqrt.pop %v1418
  %v1435 = vrsqrt.pop %v1419
  %v1436 = vrsqrt.pop %v1420
  %v1437 = vrsqrt.pop %v1421
  %v1438 = vrsqrt.pop %v1422
  %v1439 = vmul.f32 %v1391, %v1423
  %v1440 = vmul.f32 %v1392, %v1424
  %v1441 = vmul.f32 %v1393, %v1425
  %v1442 = vmul.f32 %v1394, %v1426
  %v1443 = vmul.f32 %v1395, %v1427
  %v1444 = vmul.f32 %v1396, %v1428
  %v1445 = vmul.f32 %v1397, %v1429
  %v1446 = vmul.f32 %v1398, %v1430
  %v1447 = vmul.f32 %v1399, %v1431
  %v1448 = vmul.f32 %v1400, %v1432
  %v1449 = vmul.f32 %v1401, %v1433
  %v1450 = vmul.f32 %v1402, %v1434
  %v1451 = vmul.f32 %v1403, %v1435
  %v1452 = vmul.f32 %v1404, %v1436
  %v1453 = vmul.f32 %v1405, %v1437
  %v1454 = vmul.f32 %v1406, %v1438
  %v1455 = vlaneseq
  %v1456 = vshrl.u32 %v1455, 7
  %v1457 = vsub.s32 4, %v1456
  %v1458 = vrot.slane %v101, %v1457
  %v1459 = vmul.f32 %v1439, %v1458
  %v1460 = vmul.f32 %v1440, %v1458
  %v1461 = vmul.f32 %v1441, %v1458
  %v1462 = vmul.f32 %v1442, %v1458
  %v1463 = vmul.f32 %v1443, %v1458
  %v1464 = vmul.f32 %v1444, %v1458
  %v1465 = vmul.f32 %v1445, %v1458
  %v1466 = vmul.f32 %v1446, %v1458
  %v1467 = vmul.f32 %v1447, %v1458
  %v1468 = vmul.f32 %v1448, %v1458
  %v1469 = vmul.f32 %v1449, %v1458
  %v1470 = vmul.f32 %v1450, %v1458
  %v1471 = vmul.f32 %v1451, %v1458
  %v1472 = vmul.f32 %v1452, %v1458
  %v1473 = vmul.f32 %v1453, %v1458
  %v1474 = vmul.f32 %v1454, %v1458
  %v1475 = vlaneseq
  %v1476 = vshrl.u32 %v1475, 7
  %v1477 = vsub.s32 5, %v1476
  %v1478 = vrot.slane %v101, %v1477
  %v1479 = vadd.f32 %v1459, %v1478
  %v1480 = vadd.f32 %v1460, %v1478
  %v1481 = vadd.f32 %v1461, %v1478
  %v1482 = vadd.f32 %v1462, %v1478
  %v1483 = vadd.f32 %v1463, %v1478
  %v1484 = vadd.f32 %v1464, %v1478
  %v1485 = vadd.f32 %v1465, %v1478
  %v1486 = vadd.f32 %v1466, %v1478
  %v1487 = vadd.f32 %v1467, %v1478
  %v1488 = vadd.f32 %v1468, %v1478
  %v1489 = vadd.f32 %v1469, %v1478
  %v1490 = vadd.f32 %v1470, %v1478
  %v1491 = vadd.f32 %v1471, %v1478
  %v1492 = vadd.f32 %v1472, %v1478
  %v1493 = vadd.f32 %v1473, %v1478
  %v1494 = vadd.f32 %v1474, %v1478
  %v1495 = vpack.c.bf16 %v1480, %v1479
  %v1496 = vpack.c.bf16 %v1482, %v1481
  %v1497 = vpack.c.bf16 %v1484, %v1483
  %v1498 = vpack.c.bf16 %v1486, %v1485
  %v1499 = vpack.c.bf16 %v1488, %v1487
  %v1500 = vpack.c.bf16 %v1490, %v1489
  %v1501 = vpack.c.bf16 %v1492, %v1491
  %v1502 = vpack.c.bf16 %v1494, %v1493
  %v1503 = vld [vmem:[%s8] sm:$0x1]
  %v1504 = vld [vmem:[%s5] sm:$0xf]
  %v1505 = vld [vmem:[%s5 + $0x4] sm:$0xf]
  %v1506 = vld [vmem:[%s5 + $0x8] sm:$0xf]
  %v1507 = vld [vmem:[%s5 + $0xc] sm:$0xf]
  %v1508 = vld [vmem:[%s5 + $0x10] sm:$0xf]
  %v1509 = vld [vmem:[%s5 + $0x14] sm:$0xf]
  %v1510 = vld [vmem:[%s5 + $0x18] sm:$0xf]
  %v1511 = vld [vmem:[%s5 + $0x1c] sm:$0xf]
  %v1512 = vld [vmem:[%s5 + $0x20] sm:$0xf]
  %v1513 = vld [vmem:[%s5 + $0x24] sm:$0xf]
  %v1514 = vld [vmem:[%s5 + $0x28] sm:$0xf]
  %v1515 = vld [vmem:[%s5 + $0x2c] sm:$0xf]
  %v1516 = vld [vmem:[%s5 + $0x30] sm:$0xf]
  %v1517 = vld [vmem:[%s5 + $0x34] sm:$0xf]
  %v1518 = vld [vmem:[%s5 + $0x38] sm:$0xf]
  %v1519 = vld [vmem:[%s5 + $0x3c] sm:$0xf]
  %v1521 = vlaneseq
  %v1522 = vshrl.u32 %v1521, 7
  %v1523 = vsub.s32 0, %v1522
  %v1524 = vrot.slane %v1503, %v1523
  %v1542 = vunpack.c.l.b16 %v1504
  %v1543 = vunpack.c.l.b16 %v1505
  %v1544 = vunpack.c.l.b16 %v1506
  %v1545 = vunpack.c.l.b16 %v1507
  %v1546 = vunpack.c.l.b16 %v1508
  %v1547 = vunpack.c.l.b16 %v1509
  %v1548 = vunpack.c.l.b16 %v1510
  %v1549 = vunpack.c.l.b16 %v1511
  %v1550 = vunpack.c.l.b16 %v1512
  %v1551 = vunpack.c.l.b16 %v1513
  %v1552 = vunpack.c.l.b16 %v1514
  %v1553 = vunpack.c.l.b16 %v1515
  %v1554 = vunpack.c.l.b16 %v1516
  %v1555 = vunpack.c.l.b16 %v1517
  %v1556 = vunpack.c.l.b16 %v1518
  %v1557 = vunpack.c.l.b16 %v1519
  %v1558 = vpack.c.b16 %v1543, %v1542
  %v1559 = vpack.c.b16 %v1545, %v1544
  %v1560 = vpack.c.b16 %v1547, %v1546
  %v1561 = vpack.c.b16 %v1549, %v1548
  %v1562 = vpack.c.b16 %v1551, %v1550
  %v1563 = vpack.c.b16 %v1553, %v1552
  %v1564 = vpack.c.b16 %v1555, %v1554
  %v1565 = vpack.c.b16 %v1557, %v1556
  %1574 = vmatprep.subr.bf16.mxu0 0
  %1575 = vmatpush1.bf16.msra.mxu0 %v1558
  %1576 = vmatprep.subr.bf16.mxu0 0
  %1577 = vmatpush1.bf16.msra.mxu0 %v1559
  %1578 = vmatprep.subr.bf16.mxu0 0
  %1579 = vmatpush1.bf16.msra.mxu0 %v1560
  %1580 = vmatprep.subr.bf16.mxu0 0
  %1581 = vmatpush1.bf16.msra.mxu0 %v1561
  %1582 = vmatprep.subr.bf16.mxu0 0
  %1583 = vmatpush1.bf16.msra.mxu0 %v1562
  %1584 = vmatprep.subr.bf16.mxu0 0
  %1585 = vmatpush1.bf16.msra.mxu0 %v1563
  %1586 = vmatprep.subr.bf16.mxu0 0
  %1587 = vmatpush1.bf16.msra.mxu0 %v1564
  %1588 = vmatprep.subr.bf16.mxu0 0
  %1589 = vmatpush1.bf16.msra.mxu0 %v1565
  %1590 = vmatprep.subr.bf16.mxu0 0
  %1591 = vmatpush1.bf16.msra.mxu0 0
  %1592 = vmatprep.subr.bf16.mxu0 0
  %1593 = vmatpush1.bf16.msra.mxu0 0
  %1594 = vmatprep.subr.bf16.mxu0 0
  %1595 = vmatpush1.bf16.msra.mxu0 0
  %1596 = vmatprep.subr.bf16.mxu0 0
  %1597 = vmatpush1.bf16.msra.mxu0 0
  %1598 = vmatprep.subr.bf16.mxu0 0
  %1599 = vmatpush1.bf16.msra.mxu0 0
  %1600 = vmatprep.subr.bf16.mxu0 0
  %1601 = vmatpush1.bf16.msra.mxu0 0
  %1602 = vmatprep.subr.bf16.mxu0 0
  %1603 = vmatpush1.bf16.msra.mxu0 0
  %1604 = vmatprep.subr.bf16.mxu0 0
  %1605 = vmatpush1.bf16.msra.mxu0 0
  %1606 = vmatprep.mubr.bf16.mxu0 0
  %1607 = vmatmul.mubr.bf16.gmra.mrb[0].mxu0 %v1495
  %v1608 = vpop.f32.mrb[0].mxu0
  %v1609 = vadd.f32 %v1524, %v1608
  %v1610 = vpop.f32.mrb[0].mxu0
  %v1611 = vpop.f32.mrb[0].mxu0
  %v1612 = vadd.f32 %v1524, %v1611
  %v1613 = vpop.f32.mrb[0].mxu0
  %1614 = vmatprep.mubr.bf16.mxu0 0
  %1615 = vmatmul.mubr.bf16.gmra.mrb[0].mxu0 %v1496
  %v1616 = vpop.f32.mrb[0].mxu0
  %v1617 = vadd.f32 %v1524, %v1616
  %v1618 = vpop.f32.mrb[0].mxu0
  %v1619 = vpop.f32.mrb[0].mxu0
  %v1620 = vadd.f32 %v1524, %v1619
  %v1621 = vpop.f32.mrb[0].mxu0
  %1622 = vmatprep.mubr.bf16.mxu0 0
  %1623 = vmatmul.mubr.bf16.gmra.mrb[0].mxu0 %v1497
  %v1624 = vpop.f32.mrb[0].mxu0
  %v1625 = vadd.f32 %v1524, %v1624
  %v1626 = vpop.f32.mrb[0].mxu0
  %v1627 = vpop.f32.mrb[0].mxu0
  %v1628 = vadd.f32 %v1524, %v1627
  %v1629 = vpop.f32.mrb[0].mxu0
  %1630 = vmatprep.mubr.bf16.mxu0 0
  %1631 = vmatmul.mubr.bf16.gmra.mrb[0].mxu0 %v1498
  %v1632 = vpop.f32.mrb[0].mxu0
  %v1633 = vadd.f32 %v1524, %v1632
  %v1634 = vpop.f32.mrb[0].mxu0
  %v1635 = vpop.f32.mrb[0].mxu0
  %v1636 = vadd.f32 %v1524, %v1635
  %v1637 = vpop.f32.mrb[0].mxu0
  %1638 = vmatprep.mubr.bf16.mxu0 0
  %1639 = vmatmul.mubr.bf16.gmra.mrb[0].mxu0 %v1499
  %v1640 = vpop.f32.mrb[0].mxu0
  %v1641 = vadd.f32 %v1524, %v1640
  %v1642 = vpop.f32.mrb[0].mxu0
  %v1643 = vpop.f32.mrb[0].mxu0
  %v1644 = vadd.f32 %v1524, %v1643
  %v1645 = vpop.f32.mrb[0].mxu0
  %1646 = vmatprep.mubr.bf16.mxu0 0
  %1647 = vmatmul.mubr.bf16.gmra.mrb[0].mxu0 %v1500
  %v1648 = vpop.f32.mrb[0].mxu0
  %v1649 = vadd.f32 %v1524, %v1648
  %v1650 = vpop.f32.mrb[0].mxu0
  %v1651 = vpop.f32.mrb[0].mxu0
  %v1652 = vadd.f32 %v1524, %v1651
  %v1653 = vpop.f32.mrb[0].mxu0
  %1654 = vmatprep.mubr.bf16.mxu0 0
  %1655 = vmatmul.mubr.bf16.gmra.mrb[0].mxu0 %v1501
  %v1656 = vpop.f32.mrb[0].mxu0
  %v1657 = vadd.f32 %v1524, %v1656
  %v1658 = vpop.f32.mrb[0].mxu0
  %v1659 = vpop.f32.mrb[0].mxu0
  %v1660 = vadd.f32 %v1524, %v1659
  %v1661 = vpop.f32.mrb[0].mxu0
  %1662 = vmatprep.mubr.bf16.mxu0 0
  %1663 = vmatmul.mubr.bf16.gmra.mrb[0].mxu0 %v1502
  %v1664 = vpop.f32.mrb[0].mxu0
  %v1665 = vadd.f32 %v1524, %v1664
  %v1666 = vpop.f32.mrb[0].mxu0
  %v1667 = vpop.f32.mrb[0].mxu0
  %v1668 = vadd.f32 %v1524, %v1667
  %v1669 = vpop.f32.mrb[0].mxu0
  %1670 = vdwg.mxu0
  %v1671 = vmax.f32 %v1609, 0.0
  %v1672 = vmax.f32 %v1612, 0.0
  %v1673 = vmax.f32 %v1617, 0.0
  %v1674 = vmax.f32 %v1620, 0.0
  %v1675 = vmax.f32 %v1625, 0.0
  %v1676 = vmax.f32 %v1628, 0.0
  %v1677 = vmax.f32 %v1633, 0.0
  %v1678 = vmax.f32 %v1636, 0.0
  %v1679 = vmax.f32 %v1641, 0.0
  %v1680 = vmax.f32 %v1644, 0.0
  %v1681 = vmax.f32 %v1649, 0.0
  %v1682 = vmax.f32 %v1652, 0.0
  %v1683 = vmax.f32 %v1657, 0.0
  %v1684 = vmax.f32 %v1660, 0.0
  %v1685 = vmax.f32 %v1665, 0.0
  %v1686 = vmax.f32 %v1668, 0.0
  %v1687 = vpack.c.bf16 %v1672, %v1671
  %v1688 = vpack.c.bf16 %v1674, %v1673
  %v1689 = vpack.c.bf16 %v1676, %v1675
  %v1690 = vpack.c.bf16 %v1678, %v1677
  %v1691 = vpack.c.bf16 %v1680, %v1679
  %v1692 = vpack.c.bf16 %v1682, %v1681
  %v1693 = vpack.c.bf16 %v1684, %v1683
  %v1694 = vpack.c.bf16 %v1686, %v1685
  %v1695 = vld [vmem:[%s6] sm:$0xf]
  %v1696 = vld [vmem:[%s6 + $0x4] sm:$0xf]
  %v1697 = vld [vmem:[%s6 + $0x8] sm:$0xf]
  %v1698 = vld [vmem:[%s6 + $0xc] sm:$0xf]
  %v1699 = vld [vmem:[%s6 + $0x10] sm:$0xf]
  %v1700 = vld [vmem:[%s6 + $0x14] sm:$0xf]
  %v1701 = vld [vmem:[%s6 + $0x18] sm:$0xf]
  %v1702 = vld [vmem:[%s6 + $0x1c] sm:$0xf]
  %v1703 = vld [vmem:[%s6 + $0x20] sm:$0xf]
  %v1704 = vld [vmem:[%s6 + $0x24] sm:$0xf]
  %v1705 = vld [vmem:[%s6 + $0x28] sm:$0xf]
  %v1706 = vld [vmem:[%s6 + $0x2c] sm:$0xf]
  %v1707 = vld [vmem:[%s6 + $0x30] sm:$0xf]
  %v1708 = vld [vmem:[%s6 + $0x34] sm:$0xf]
  %v1709 = vld [vmem:[%s6 + $0x38] sm:$0xf]
  %v1710 = vld [vmem:[%s6 + $0x3c] sm:$0xf]
  %v1711 = vlaneseq
  %v1712 = vshrl.u32 %v1711, 7
  %v1713 = vsub.s32 6, %v1712
  %v1714 = vrot.slane %v101, %v1713
  %v1731 = vunpack.c.l.b16 %v1695
  %v1732 = vunpack.c.l.b16 %v1696
  %v1733 = vunpack.c.l.b16 %v1697
  %v1734 = vunpack.c.l.b16 %v1698
  %v1735 = vunpack.c.l.b16 %v1699
  %v1736 = vunpack.c.l.b16 %v1700
  %v1737 = vunpack.c.l.b16 %v1701
  %v1738 = vunpack.c.l.b16 %v1702
  %v1739 = vunpack.c.l.b16 %v1703
  %v1740 = vunpack.c.l.b16 %v1704
  %v1741 = vunpack.c.l.b16 %v1705
  %v1742 = vunpack.c.l.b16 %v1706
  %v1743 = vunpack.c.l.b16 %v1707
  %v1744 = vunpack.c.l.b16 %v1708
  %v1745 = vunpack.c.l.b16 %v1709
  %v1746 = vunpack.c.l.b16 %v1710
  %v1747 = vpack.c.b16 %v1732, %v1731
  %v1748 = vpack.c.b16 %v1734, %v1733
  %v1749 = vpack.c.b16 %v1736, %v1735
  %v1750 = vpack.c.b16 %v1738, %v1737
  %v1751 = vpack.c.b16 %v1740, %v1739
  %v1752 = vpack.c.b16 %v1742, %v1741
  %v1753 = vpack.c.b16 %v1744, %v1743
  %v1754 = vpack.c.b16 %v1746, %v1745
  %1763 = vmatprep.subr.bf16.mxu0 0
  %1764 = vmatpush1.bf16.msra.mxu0 %v1747
  %1765 = vmatprep.subr.bf16.mxu0 0
  %1766 = vmatpush1.bf16.msra.mxu0 %v1748
  %1767 = vmatprep.subr.bf16.mxu0 0
  %1768 = vmatpush1.bf16.msra.mxu0 %v1749
  %1769 = vmatprep.subr.bf16.mxu0 0
  %1770 = vmatpush1.bf16.msra.mxu0 %v1750
  %1771 = vmatprep.subr.bf16.mxu0 0
  %1772 = vmatpush1.bf16.msra.mxu0 %v1751
  %1773 = vmatprep.subr.bf16.mxu0 0
  %1774 = vmatpush1.bf16.msra.mxu0 %v1752
  %1775 = vmatprep.subr.bf16.mxu0 0
  %1776 = vmatpush1.bf16.msra.mxu0 %v1753
  %1777 = vmatprep.subr.bf16.mxu0 0
  %1778 = vmatpush1.bf16.msra.mxu0 %v1754
  %1779 = vmatprep.subr.bf16.mxu0 0
  %1780 = vmatpush1.bf16.msra.mxu0 0
  %1781 = vmatprep.subr.bf16.mxu0 0
  %1782 = vmatpush1.bf16.msra.mxu0 0
  %1783 = vmatprep.subr.bf16.mxu0 0
  %1784 = vmatpush1.bf16.msra.mxu0 0
  %1785 = vmatprep.subr.bf16.mxu0 0
  %1786 = vmatpush1.bf16.msra.mxu0 0
  %1787 = vmatprep.subr.bf16.mxu0 0
  %1788 = vmatpush1.bf16.msra.mxu0 0
  %1789 = vmatprep.subr.bf16.mxu0 0
  %1790 = vmatpush1.bf16.msra.mxu0 0
  %1791 = vmatprep.subr.bf16.mxu0 0
  %1792 = vmatpush1.bf16.msra.mxu0 0
  %1793 = vmatprep.subr.bf16.mxu0 0
  %1794 = vmatpush1.bf16.msra.mxu0 0
  %1795 = vmatprep.mubr.bf16.mxu0 0
  %1796 = vmatmul.mubr.bf16.gmra.mrb[0].mxu0 %v1687
  %v1797 = vpop.f32.mrb[0].mxu0
  %v1798 = vadd.f32 %v1714, %v1797
  %v1799 = vpop.f32.mrb[0].mxu0
  %v1800 = vpop.f32.mrb[0].mxu0
  %v1801 = vadd.f32 %v1714, %v1800
  %v1802 = vpop.f32.mrb[0].mxu0
  %1803 = vmatprep.mubr.bf16.mxu0 0
  %1804 = vmatmul.mubr.bf16.gmra.mrb[0].mxu0 %v1688
  %v1805 = vpop.f32.mrb[0].mxu0
  %v1806 = vadd.f32 %v1714, %v1805
  %v1807 = vpop.f32.mrb[0].mxu0
  %v1808 = vpop.f32.mrb[0].mxu0
  %v1809 = vadd.f32 %v1714, %v1808
  %v1810 = vpop.f32.mrb[0].mxu0
  %1811 = vmatprep.mubr.bf16.mxu0 0
  %1812 = vmatmul.mubr.bf16.gmra.mrb[0].mxu0 %v1689
  %v1813 = vpop.f32.mrb[0].mxu0
  %v1814 = vadd.f32 %v1714, %v1813
  %v1815 = vpop.f32.mrb[0].mxu0
  %v1816 = vpop.f32.mrb[0].mxu0
  %v1817 = vadd.f32 %v1714, %v1816
  %v1818 = vpop.f32.mrb[0].mxu0
  %1819 = vmatprep.mubr.bf16.mxu0 0
  %1820 = vmatmul.mubr.bf16.gmra.mrb[0].mxu0 %v1690
  %v1821 = vpop.f32.mrb[0].mxu0
  %v1822 = vadd.f32 %v1714, %v1821
  %v1823 = vpop.f32.mrb[0].mxu0
  %v1824 = vpop.f32.mrb[0].mxu0
  %v1825 = vadd.f32 %v1714, %v1824
  %v1826 = vpop.f32.mrb[0].mxu0
  %1827 = vmatprep.mubr.bf16.mxu0 0
  %1828 = vmatmul.mubr.bf16.gmra.mrb[0].mxu0 %v1691
  %v1829 = vpop.f32.mrb[0].mxu0
  %v1830 = vadd.f32 %v1714, %v1829
  %v1831 = vpop.f32.mrb[0].mxu0
  %v1832 = vpop.f32.mrb[0].mxu0
  %v1833 = vadd.f32 %v1714, %v1832
  %v1834 = vpop.f32.mrb[0].mxu0
  %1835 = vmatprep.mubr.bf16.mxu0 0
  %1836 = vmatmul.mubr.bf16.gmra.mrb[0].mxu0 %v1692
  %v1837 = vpop.f32.mrb[0].mxu0
  %v1838 = vadd.f32 %v1714, %v1837
  %v1839 = vpop.f32.mrb[0].mxu0
  %v1840 = vpop.f32.mrb[0].mxu0
  %v1841 = vadd.f32 %v1714, %v1840
  %v1842 = vpop.f32.mrb[0].mxu0
  %1843 = vmatprep.mubr.bf16.mxu0 0
  %1844 = vmatmul.mubr.bf16.gmra.mrb[0].mxu0 %v1693
  %v1845 = vpop.f32.mrb[0].mxu0
  %v1846 = vadd.f32 %v1714, %v1845
  %v1847 = vpop.f32.mrb[0].mxu0
  %v1848 = vpop.f32.mrb[0].mxu0
  %v1849 = vadd.f32 %v1714, %v1848
  %v1850 = vpop.f32.mrb[0].mxu0
  %1851 = vmatprep.mubr.bf16.mxu0 0
  %1852 = vmatmul.mubr.bf16.gmra.mrb[0].mxu0 %v1694
  %v1853 = vpop.f32.mrb[0].mxu0
  %v1854 = vadd.f32 %v1714, %v1853
  %v1855 = vpop.f32.mrb[0].mxu0
  %v1856 = vpop.f32.mrb[0].mxu0
  %v1857 = vadd.f32 %v1714, %v1856
  %v1858 = vpop.f32.mrb[0].mxu0
  %1859 = vdwg.mxu0
  %v1860 = vadd.f32 %v1479, %v1798
  %v1861 = vadd.f32 %v1480, %v1801
  %v1862 = vadd.f32 %v1481, %v1806
  %v1863 = vadd.f32 %v1482, %v1809
  %v1864 = vadd.f32 %v1483, %v1814
  %v1865 = vadd.f32 %v1484, %v1817
  %v1866 = vadd.f32 %v1485, %v1822
  %v1867 = vadd.f32 %v1486, %v1825
  %v1868 = vadd.f32 %v1487, %v1830
  %v1869 = vadd.f32 %v1488, %v1833
  %v1870 = vadd.f32 %v1489, %v1838
  %v1871 = vadd.f32 %v1490, %v1841
  %v1872 = vadd.f32 %v1491, %v1846
  %v1873 = vadd.f32 %v1492, %v1849
  %v1874 = vadd.f32 %v1493, %v1854
  %v1875 = vadd.f32 %v1494, %v1857
  %1876 = vadd.xlane.f32.xlu0 %v1860
  %v1877 = vpop.xlane.xlu0 %1876
  %1878 = vadd.xlane.f32.xlu0 %v1861
  %v1879 = vpop.xlane.xlu0 %1878
  %1880 = vadd.xlane.f32.xlu0 %v1862
  %v1881 = vpop.xlane.xlu0 %1880
  %1882 = vadd.xlane.f32.xlu0 %v1863
  %v1883 = vpop.xlane.xlu0 %1882
  %1884 = vadd.xlane.f32.xlu0 %v1864
  %v1885 = vpop.xlane.xlu0 %1884
  %1886 = vadd.xlane.f32.xlu0 %v1865
  %v1887 = vpop.xlane.xlu0 %1886
  %1888 = vadd.xlane.f32.xlu0 %v1866
  %v1889 = vpop.xlane.xlu0 %1888
  %1890 = vadd.xlane.f32.xlu0 %v1867
  %v1891 = vpop.xlane.xlu0 %1890
  %1892 = vadd.xlane.f32.xlu0 %v1868
  %v1893 = vpop.xlane.xlu0 %1892
  %1894 = vadd.xlane.f32.xlu0 %v1869
  %v1895 = vpop.xlane.xlu0 %1894
  %1896 = vadd.xlane.f32.xlu0 %v1870
  %v1897 = vpop.xlane.xlu0 %1896
  %1898 = vadd.xlane.f32.xlu0 %v1871
  %v1899 = vpop.xlane.xlu0 %1898
  %1900 = vadd.xlane.f32.xlu0 %v1872
  %v1901 = vpop.xlane.xlu0 %1900
  %1902 = vadd.xlane.f32.xlu0 %v1873
  %v1903 = vpop.xlane.xlu0 %1902
  %1904 = vadd.xlane.f32.xlu0 %v1874
  %v1905 = vpop.xlane.xlu0 %1904
  %1906 = vadd.xlane.f32.xlu0 %v1875
  %v1907 = vpop.xlane.xlu0 %1906
  %v1908 = vmul.f32 %v1860, %v1860
  %v1909 = vmul.f32 %v1861, %v1861
  %v1910 = vmul.f32 %v1862, %v1862
  %v1911 = vmul.f32 %v1863, %v1863
  %v1912 = vmul.f32 %v1864, %v1864
  %v1913 = vmul.f32 %v1865, %v1865
  %v1914 = vmul.f32 %v1866, %v1866
  %v1915 = vmul.f32 %v1867, %v1867
  %v1916 = vmul.f32 %v1868, %v1868
  %v1917 = vmul.f32 %v1869, %v1869
  %v1918 = vmul.f32 %v1870, %v1870
  %v1919 = vmul.f32 %v1871, %v1871
  %v1920 = vmul.f32 %v1872, %v1872
  %v1921 = vmul.f32 %v1873, %v1873
  %v1922 = vmul.f32 %v1874, %v1874
  %v1923 = vmul.f32 %v1875, %v1875
  %1924 = vadd.xlane.f32.xlu0 %v1908
  %v1925 = vpop.xlane.xlu0 %1924
  %1926 = vadd.xlane.f32.xlu0 %v1909
  %v1927 = vpop.xlane.xlu0 %1926
  %1928 = vadd.xlane.f32.xlu0 %v1910
  %v1929 = vpop.xlane.xlu0 %1928
  %1930 = vadd.xlane.f32.xlu0 %v1911
  %v1931 = vpop.xlane.xlu0 %1930
  %1932 = vadd.xlane.f32.xlu0 %v1912
  %v1933 = vpop.xlane.xlu0 %1932
  %1934 = vadd.xlane.f32.xlu0 %v1913
  %v1935 = vpop.xlane.xlu0 %1934
  %1936 = vadd.xlane.f32.xlu0 %v1914
  %v1937 = vpop.xlane.xlu0 %1936
  %1938 = vadd.xlane.f32.xlu0 %v1915
  %v1939 = vpop.xlane.xlu0 %1938
  %1940 = vadd.xlane.f32.xlu0 %v1916
  %v1941 = vpop.xlane.xlu0 %1940
  %1942 = vadd.xlane.f32.xlu0 %v1917
  %v1943 = vpop.xlane.xlu0 %1942
  %1944 = vadd.xlane.f32.xlu0 %v1918
  %v1945 = vpop.xlane.xlu0 %1944
  %1946 = vadd.xlane.f32.xlu0 %v1919
  %v1947 = vpop.xlane.xlu0 %1946
  %1948 = vadd.xlane.f32.xlu0 %v1920
  %v1949 = vpop.xlane.xlu0 %1948
  %1950 = vadd.xlane.f32.xlu0 %v1921
  %v1951 = vpop.xlane.xlu0 %1950
  %1952 = vadd.xlane.f32.xlu0 %v1922
  %v1953 = vpop.xlane.xlu0 %1952
  %1954 = vadd.xlane.f32.xlu0 %v1923
  %v1955 = vpop.xlane.xlu0 %1954
  %v1956 = vmul.f32 %v1877, 0.03125
  %v1957 = vmul.f32 %v1879, 0.03125
  %v1958 = vmul.f32 %v1881, 0.03125
  %v1959 = vmul.f32 %v1883, 0.03125
  %v1960 = vmul.f32 %v1885, 0.03125
  %v1961 = vmul.f32 %v1887, 0.03125
  %v1962 = vmul.f32 %v1889, 0.03125
  %v1963 = vmul.f32 %v1891, 0.03125
  %v1964 = vmul.f32 %v1893, 0.03125
  %v1965 = vmul.f32 %v1895, 0.03125
  %v1966 = vmul.f32 %v1897, 0.03125
  %v1967 = vmul.f32 %v1899, 0.03125
  %v1968 = vmul.f32 %v1901, 0.03125
  %v1969 = vmul.f32 %v1903, 0.03125
  %v1970 = vmul.f32 %v1905, 0.03125
  %v1971 = vmul.f32 %v1907, 0.03125
  %v1972 = vmul.f32 %v1925, 0.03125
  %v1973 = vmul.f32 %v1927, 0.03125
  %v1974 = vmul.f32 %v1929, 0.03125
  %v1975 = vmul.f32 %v1931, 0.03125
  %v1976 = vmul.f32 %v1933, 0.03125
  %v1977 = vmul.f32 %v1935, 0.03125
  %v1978 = vmul.f32 %v1937, 0.03125
  %v1979 = vmul.f32 %v1939, 0.03125
  %v1980 = vmul.f32 %v1941, 0.03125
  %v1981 = vmul.f32 %v1943, 0.03125
  %v1982 = vmul.f32 %v1945, 0.03125
  %v1983 = vmul.f32 %v1947, 0.03125
  %v1984 = vmul.f32 %v1949, 0.03125
  %v1985 = vmul.f32 %v1951, 0.03125
  %v1986 = vmul.f32 %v1953, 0.03125
  %v1987 = vmul.f32 %v1955, 0.03125
  %v1988 = vmul.f32 %v1956, %v1956
  %v1989 = vmul.f32 %v1957, %v1957
  %v1990 = vmul.f32 %v1958, %v1958
  %v1991 = vmul.f32 %v1959, %v1959
  %v1992 = vmul.f32 %v1960, %v1960
  %v1993 = vmul.f32 %v1961, %v1961
  %v1994 = vmul.f32 %v1962, %v1962
  %v1995 = vmul.f32 %v1963, %v1963
  %v1996 = vmul.f32 %v1964, %v1964
  %v1997 = vmul.f32 %v1965, %v1965
  %v1998 = vmul.f32 %v1966, %v1966
  %v1999 = vmul.f32 %v1967, %v1967
  %v2000 = vmul.f32 %v1968, %v1968
  %v2001 = vmul.f32 %v1969, %v1969
  %v2002 = vmul.f32 %v1970, %v1970
  %v2003 = vmul.f32 %v1971, %v1971
  %v2004 = vsub.f32 %v1972, %v1988
  %v2005 = vsub.f32 %v1973, %v1989
  %v2006 = vsub.f32 %v1974, %v1990
  %v2007 = vsub.f32 %v1975, %v1991
  %v2008 = vsub.f32 %v1976, %v1992
  %v2009 = vsub.f32 %v1977, %v1993
  %v2010 = vsub.f32 %v1978, %v1994
  %v2011 = vsub.f32 %v1979, %v1995
  %v2012 = vsub.f32 %v1980, %v1996
  %v2013 = vsub.f32 %v1981, %v1997
  %v2014 = vsub.f32 %v1982, %v1998
  %v2015 = vsub.f32 %v1983, %v1999
  %v2016 = vsub.f32 %v1984, %v2000
  %v2017 = vsub.f32 %v1985, %v2001
  %v2018 = vsub.f32 %v1986, %v2002
  %v2019 = vsub.f32 %v1987, %v2003
  %v2020 = vmax.f32 %v2004, 0.0
  %v2021 = vmax.f32 %v2005, 0.0
  %v2022 = vmax.f32 %v2006, 0.0
  %v2023 = vmax.f32 %v2007, 0.0
  %v2024 = vmax.f32 %v2008, 0.0
  %v2025 = vmax.f32 %v2009, 0.0
  %v2026 = vmax.f32 %v2010, 0.0
  %v2027 = vmax.f32 %v2011, 0.0
  %v2028 = vmax.f32 %v2012, 0.0
  %v2029 = vmax.f32 %v2013, 0.0
  %v2030 = vmax.f32 %v2014, 0.0
  %v2031 = vmax.f32 %v2015, 0.0
  %v2032 = vmax.f32 %v2016, 0.0
  %v2033 = vmax.f32 %v2017, 0.0
  %v2034 = vmax.f32 %v2018, 0.0
  %v2035 = vmax.f32 %v2019, 0.0
  %v2036 = vsub.f32 %v1860, %v1956
  %v2037 = vsub.f32 %v1861, %v1957
  %v2038 = vsub.f32 %v1862, %v1958
  %v2039 = vsub.f32 %v1863, %v1959
  %v2040 = vsub.f32 %v1864, %v1960
  %v2041 = vsub.f32 %v1865, %v1961
  %v2042 = vsub.f32 %v1866, %v1962
  %v2043 = vsub.f32 %v1867, %v1963
  %v2044 = vsub.f32 %v1868, %v1964
  %v2045 = vsub.f32 %v1869, %v1965
  %v2046 = vsub.f32 %v1870, %v1966
  %v2047 = vsub.f32 %v1871, %v1967
  %v2048 = vsub.f32 %v1872, %v1968
  %v2049 = vsub.f32 %v1873, %v1969
  %v2050 = vsub.f32 %v1874, %v1970
  %v2051 = vsub.f32 %v1875, %v1971
  %v2052 = vadd.f32 %v2020, 1e-05
  %v2053 = vadd.f32 %v2021, 1e-05
  %v2054 = vadd.f32 %v2022, 1e-05
  %v2055 = vadd.f32 %v2023, 1e-05
  %v2056 = vadd.f32 %v2024, 1e-05
  %v2057 = vadd.f32 %v2025, 1e-05
  %v2058 = vadd.f32 %v2026, 1e-05
  %v2059 = vadd.f32 %v2027, 1e-05
  %v2060 = vadd.f32 %v2028, 1e-05
  %v2061 = vadd.f32 %v2029, 1e-05
  %v2062 = vadd.f32 %v2030, 1e-05
  %v2063 = vadd.f32 %v2031, 1e-05
  %v2064 = vadd.f32 %v2032, 1e-05
  %v2065 = vadd.f32 %v2033, 1e-05
  %v2066 = vadd.f32 %v2034, 1e-05
  %v2067 = vadd.f32 %v2035, 1e-05
  %v2068 = vrsqrt.pop %v2052
  %v2069 = vrsqrt.pop %v2053
  %v2070 = vrsqrt.pop %v2054
  %v2071 = vrsqrt.pop %v2055
  %v2072 = vrsqrt.pop %v2056
  %v2073 = vrsqrt.pop %v2057
  %v2074 = vrsqrt.pop %v2058
  %v2075 = vrsqrt.pop %v2059
  %v2076 = vrsqrt.pop %v2060
  %v2077 = vrsqrt.pop %v2061
  %v2078 = vrsqrt.pop %v2062
  %v2079 = vrsqrt.pop %v2063
  %v2080 = vrsqrt.pop %v2064
  %v2081 = vrsqrt.pop %v2065
  %v2082 = vrsqrt.pop %v2066
  %v2083 = vrsqrt.pop %v2067
  %v2084 = vmul.f32 %v2036, %v2068
  %v2085 = vmul.f32 %v2037, %v2069
  %v2086 = vmul.f32 %v2038, %v2070
  %v2087 = vmul.f32 %v2039, %v2071
  %v2088 = vmul.f32 %v2040, %v2072
  %v2089 = vmul.f32 %v2041, %v2073
  %v2090 = vmul.f32 %v2042, %v2074
  %v2091 = vmul.f32 %v2043, %v2075
  %v2092 = vmul.f32 %v2044, %v2076
  %v2093 = vmul.f32 %v2045, %v2077
  %v2094 = vmul.f32 %v2046, %v2078
  %v2095 = vmul.f32 %v2047, %v2079
  %v2096 = vmul.f32 %v2048, %v2080
  %v2097 = vmul.f32 %v2049, %v2081
  %v2098 = vmul.f32 %v2050, %v2082
  %v2099 = vmul.f32 %v2051, %v2083
  %v2100 = vlaneseq
  %v2101 = vshrl.u32 %v2100, 7
  %v2102 = vsub.s32 7, %v2101
  %v2103 = vrot.slane %v101, %v2102
  %v2104 = vmul.f32 %v2084, %v2103
  %v2105 = vmul.f32 %v2085, %v2103
  %v2106 = vmul.f32 %v2086, %v2103
  %v2107 = vmul.f32 %v2087, %v2103
  %v2108 = vmul.f32 %v2088, %v2103
  %v2109 = vmul.f32 %v2089, %v2103
  %v2110 = vmul.f32 %v2090, %v2103
  %v2111 = vmul.f32 %v2091, %v2103
  %v2112 = vmul.f32 %v2092, %v2103
  %v2113 = vmul.f32 %v2093, %v2103
  %v2114 = vmul.f32 %v2094, %v2103
  %v2115 = vmul.f32 %v2095, %v2103
  %v2116 = vmul.f32 %v2096, %v2103
  %v2117 = vmul.f32 %v2097, %v2103
  %v2118 = vmul.f32 %v2098, %v2103
  %v2119 = vmul.f32 %v2099, %v2103
  %v2120 = vlaneseq
  %v2121 = vshrl.u32 %v2120, 7
  %v2122 = vsub.s32 0, %v2121
  %v2123 = vrot.slane %v102, %v2122
  %v2124 = vadd.f32 %v2104, %v2123
  %v2125 = vadd.f32 %v2105, %v2123
  %v2126 = vadd.f32 %v2106, %v2123
  %v2127 = vadd.f32 %v2107, %v2123
  %v2128 = vadd.f32 %v2108, %v2123
  %v2129 = vadd.f32 %v2109, %v2123
  %v2130 = vadd.f32 %v2110, %v2123
  %v2131 = vadd.f32 %v2111, %v2123
  %v2132 = vadd.f32 %v2112, %v2123
  %v2133 = vadd.f32 %v2113, %v2123
  %v2134 = vadd.f32 %v2114, %v2123
  %v2135 = vadd.f32 %v2115, %v2123
  %v2136 = vadd.f32 %v2116, %v2123
  %v2137 = vadd.f32 %v2117, %v2123
  %v2138 = vadd.f32 %v2118, %v2123
  %v2139 = vadd.f32 %v2119, %v2123
  %2140 = vst [vmem:[%s9] sm:$0xff] %v2124
  %2141 = vst [vmem:[%s9 + $0x8] sm:$0xff] %v2125
  %2142 = vst [vmem:[%s9 + $0x10] sm:$0xff] %v2126
  %2143 = vst [vmem:[%s9 + $0x18] sm:$0xff] %v2127
  %2144 = vst [vmem:[%s9 + $0x20] sm:$0xff] %v2128
  %2145 = vst [vmem:[%s9 + $0x28] sm:$0xff] %v2129
  %2146 = vst [vmem:[%s9 + $0x30] sm:$0xff] %v2130
  %2147 = vst [vmem:[%s9 + $0x38] sm:$0xff] %v2131
  %2148 = vst [vmem:[%s9 + $0x40] sm:$0xff] %v2132
  %2149 = vst [vmem:[%s9 + $0x48] sm:$0xff] %v2133
  %2150 = vst [vmem:[%s9 + $0x50] sm:$0xff] %v2134
  %2151 = vst [vmem:[%s9 + $0x58] sm:$0xff] %v2135
  %2152 = vst [vmem:[%s9 + $0x60] sm:$0xff] %v2136
  %2153 = vst [vmem:[%s9 + $0x68] sm:$0xff] %v2137
  %2154 = vst [vmem:[%s9 + $0x70] sm:$0xff] %v2138
  %2155 = vst [vmem:[%s9 + $0x78] sm:$0xff] %v2139
  // Predicated region
  $region42: #{detr_forward.5} parent=0 // pred_check
    _
  $region43: #{detr_forward.5} parent=0 // pred_check_branch
    %2157 = sbr.rel (0) target = $region45
  $region44: #{detr_forward.5} parent=0 // pred_region
    _
  $region45: #{detr_forward.5} parent=0 // pred_fallthru
    _
  // Predicated region
  $region46: #{detr_forward.5} parent=0 // pred_check
    _
  $region47: #{detr_forward.5} parent=0 // pred_check_branch
    %2159 = sbr.rel (0) target = $region49
  $region48: #{detr_forward.5} parent=0 // pred_region
    _
  $region49: #{detr_forward.5} parent=0 // pred_fallthru
    _

// kernel: detr_forward.6
$region0: #{detr_forward.6}
  #allocation0 [shape = 'u32[]', space=smem, size = 0x4, offset = 0x4, fixed_abs, tag = 'smem constant byte address 0x4 - core index']
  #allocation1 [shape = 'u32[144,128]{1,0:T(1,128)}', space=vmem, size = 0x12000, scoped, tag = 'internal scratch']
  #allocation2 [shape = 'f32[2,8,128]{2,1,0:T(8,128)}', space=vmem, size = 0x2000, scoped, tag = 'scratch operand']
  %s0 = inlined_call_operand.vmem [shape: f32[2,64,128], index: 0, kind: input, shape index: {}]
  %s1 = inlined_call_operand.vmem [shape: f32[2,64,128], index: 1, kind: input, shape index: {}]
  %s2 = inlined_call_operand.vmem [shape: f32[8,128], index: 2, kind: input, shape index: {}]
  %s3 = inlined_call_operand.vmem [shape: bf16[2,128,256], index: 3, kind: input, shape index: {}]
  %s4 = inlined_call_operand.vmem [shape: bf16[2,128,128], index: 4, kind: input, shape index: {}]
  %s5 = inlined_call_operand.vmem [shape: bf16[2,128,128], index: 5, kind: input, shape index: {}]
  %s6 = inlined_call_operand.vmem [shape: bf16[2,128,128], index: 6, kind: input, shape index: {}]
  %s7 = inlined_call_operand.vmem [shape: bf16[2,128,128], index: 7, kind: input, shape index: {}]
  %s8 = inlined_call_operand.vmem [shape: bf16[2,128,128], index: 8, kind: input, shape index: {}]
  %s9 = inlined_call_operand.vmem [shape: bf16[2,128,128], index: 9, kind: input, shape index: {}]
  %s10 = inlined_call_operand.vmem [shape: bf16[2,128,128], index: 10, kind: input, shape index: {}]
  %s11 = inlined_call_operand.vmem [shape: bf16[2,128,128], index: 11, kind: input, shape index: {}]
  %s12 = inlined_call_operand.vmem [shape: f32[2,16,128], index: 12, kind: input, shape index: {}]
  %s13 = inlined_call_operand.vmem [shape: f32[2,1,128], index: 13, kind: input, shape index: {}]
  %s14 = inlined_call_operand.vmem [shape: f32[2,128], index: 14, kind: input, shape index: {}]
  %s15 = inlined_call_operand.vmem [shape: bf16[2,8,128], index: 15, kind: output, shape index: {}]
  %s16 = sld [smem:[#allocation0]]
  $region101: #{detr_forward.6} parent=0
    _
  %s18 = ssub.s32 1, %s16
  %s19 = scalar_select 0, %s18, %s16
  loop: start=0, step=1, limit=4
  $region2: #{detr_forward.6} parent=0 // loop_pre_header
    _
  $region3: #{detr_forward.6} parent=0 // loop_header
    %s21 = sphi 0, %s25
    %p22 = scmp.ge.s32.totalorder %s21, 4
    %s28 = sphi 0, %s40
    %s29 = sphi 0, %s36
    %s30 = sphi 0, %s28
    %s31 = sphi 0, %s29
    %s32 = sphi 0, %s30
    %s33 = sphi 0, %s31
    %s43 = sphi 0, %s45
    %s46 = sphi 0, %s43
    %s47 = sphi 0, %s46
    %s63 = sphi 0, %s47
    %s69 = sphi 0, %s71
    %s72 = sphi 0, %s69
    %s73 = sphi 0, %s72
    %s89 = sphi 0, %s73
    %s93 = sphi 0, %s93
    %s95 = sphi 0, %s93
    %s96 = sphi 0, %s95
    %s110 = sphi 0, %s96
    %s116 = sphi 0, %s118
    %s119 = sphi 0, %s116
    %s120 = sphi 0, %s119
    %s136 = sphi 0, %s120
    %s142 = sphi 0, %s144
    %s145 = sphi 0, %s142
    %s146 = sphi 0, %s145
    %s162 = sphi 0, %s146
    %s168 = sphi 0, %s170
    %s171 = sphi 0, %s168
    %s172 = sphi 0, %s171
    %s188 = sphi 0, %s172
    %s194 = sphi 0, %s196
    %s197 = sphi 0, %s194
    %s198 = sphi 0, %s197
    %s214 = sphi 0, %s198
    %s220 = sphi 0, %s222
    %s223 = sphi 0, %s220
    %s224 = sphi 0, %s223
    %s240 = sphi 0, %s224
    %s246 = sphi 0, %s248
    %s249 = sphi 0, %s246
    %s250 = sphi 0, %s249
    %s266 = sphi 0, %s250
    %s272 = sphi 0, %s274
    %s275 = sphi 0, %s272
    %s276 = sphi 0, %s275
    %s292 = sphi 0, %s276
    %s298 = sphi 0, %s300
    %s301 = sphi 0, %s298
    %s302 = sphi 0, %s301
    %s318 = sphi 0, %s302
    %s324 = sphi 0, %s326
    %s327 = sphi 0, %s324
    %s328 = sphi 0, %s327
    %s344 = sphi 0, %s328
    %s350 = sphi 0, %s352
    %s353 = sphi 0, %s350
    %s354 = sphi 0, %s353
    %s370 = sphi 0, %s354
    %s376 = sphi 0, %s378
    %s379 = sphi 0, %s376
    %s380 = sphi 0, %s379
    %s396 = sphi 0, %s380
    %s400 = sphi 0, %s400
    %s402 = sphi 0, %s400
    %s403 = sphi 0, %s402
    %s417 = sphi 0, %s403
    %s423 = sphi 0, %s425
    %s426 = sphi 0, %s423
    %s427 = sphi 0, %s426
    %s443 = sphi 0, %s427
  $region4: #{detr_forward.6} parent=0 // loop_header_branch
    %24 = sbr.rel (%p22) target = $region8
  $region5: #{detr_forward.6} parent=0 // loop_body
    %s26 = ssub.s32 %s21, 1
    %s27 = ssub.s32 %s21, 2
    %s34 = sadd.s32 1, %s29
    %p35 = scmp.ge.s32.totalorder %s34, 2
    %s36 = scalar_select %p35, 0, %s34
    %s37 = sadd.s32 1, %s28
    %s38 = scalar_select %p35, %s37, %s28
    %p39 = scmp.ge.s32.totalorder %s38, 1
    %s40 = scalar_select %p39, 0, %s38
    %s41 = ssub.s32 %s28, %s40
    %p42 = scmp.eq.s32.totalorder %s41, 0
    %s44 = sadd.s32 %s43, 1
    %s45 = scalar_select %p42, %s43, %s44
    %p48 = pneg %p42
    %p49 = scmp.eq.s32.totalorder %s21, 1
    %p50 = por %p48, %p49
    %p51 = scmp.ne.s32.totalorder %s43, %s46
    %p52 = scmp.eq.s32.totalorder %s21, 0
    %p53 = por %p51, %p52
    %p54 = scmp.ne.s32.totalorder %s43, %s46
    %p55 = scmp.eq.s32.totalorder %s26, 1
    %p56 = por %p54, %p55
    %p57 = scmp.ne.s32.totalorder %s46, %s47
    %p58 = scmp.eq.s32.totalorder %s26, 0
    %p59 = por %p57, %p58
    %p60 = scmp.ne.s32.totalorder %s46, %s47
    %p61 = scmp.eq.s32.totalorder %s27, 1
    %p62 = por %p60, %p61
    %p64 = scmp.ne.s32.totalorder %s47, %s63
    %p65 = scmp.eq.s32.totalorder %s27, 0
    %p66 = por %p64, %p65
    %s67 = ssub.s32 %s28, %s40
    %p68 = scmp.eq.s32.totalorder %s67, 0
    %s70 = sadd.s32 %s69, 1
    %s71 = scalar_select %p68, %s69, %s70
    %p74 = pneg %p68
    %p75 = scmp.eq.s32.totalorder %s21, 1
    %p76 = por %p74, %p75
    %p77 = scmp.ne.s32.totalorder %s69, %s72
    %p78 = scmp.eq.s32.totalorder %s21, 0
    %p79 = por %p77, %p78
    %p80 = scmp.ne.s32.totalorder %s69, %s72
    %p81 = scmp.eq.s32.totalorder %s26, 1
    %p82 = por %p80, %p81
    %p83 = scmp.ne.s32.totalorder %s72, %s73
    %p84 = scmp.eq.s32.totalorder %s26, 0
    %p85 = por %p83, %p84
    %p86 = scmp.ne.s32.totalorder %s72, %s73
    %p87 = scmp.eq.s32.totalorder %s27, 1
    %p88 = por %p86, %p87
    %p90 = scmp.ne.s32.totalorder %s73, %s89
    %p91 = scmp.eq.s32.totalorder %s27, 0
    %p92 = por %p90, %p91
    %s94 = sadd.s32 %s93, 1
    %p97 = scmp.eq.s32.totalorder %s21, 1
    %p98 = scmp.ne.s32.totalorder %s93, %s95
    %p99 = scmp.eq.s32.totalorder %s21, 0
    %p100 = por %p98, %p99
    %p101 = scmp.ne.s32.totalorder %s93, %s95
    %p102 = scmp.eq.s32.totalorder %s26, 1
    %p103 = por %p101, %p102
    %p104 = scmp.ne.s32.totalorder %s95, %s96
    %p105 = scmp.eq.s32.totalorder %s26, 0
    %p106 = por %p104, %p105
    %p107 = scmp.ne.s32.totalorder %s95, %s96
    %p108 = scmp.eq.s32.totalorder %s27, 1
    %p109 = por %p107, %p108
    %p111 = scmp.ne.s32.totalorder %s96, %s110
    %p112 = scmp.eq.s32.totalorder %s27, 0
    %p113 = por %p111, %p112
    %s114 = ssub.s32 %s29, %s36
    %p115 = scmp.eq.s32.totalorder %s114, 0
    %s117 = sadd.s32 %s116, 1
    %s118 = scalar_select %p115, %s116, %s117
    %p121 = pneg %p115
    %p122 = scmp.eq.s32.totalorder %s21, 1
    %p123 = por %p121, %p122
    %p124 = scmp.ne.s32.totalorder %s116, %s119
    %p125 = scmp.eq.s32.totalorder %s21, 0
    %p126 = por %p124, %p125
    %p127 = scmp.ne.s32.totalorder %s116, %s119
    %p128 = scmp.eq.s32.totalorder %s26, 1
    %p129 = por %p127, %p128
    %p130 = scmp.ne.s32.totalorder %s119, %s120
    %p131 = scmp.eq.s32.totalorder %s26, 0
    %p132 = por %p130, %p131
    %p133 = scmp.ne.s32.totalorder %s119, %s120
    %p134 = scmp.eq.s32.totalorder %s27, 1
    %p135 = por %p133, %p134
    %p137 = scmp.ne.s32.totalorder %s120, %s136
    %p138 = scmp.eq.s32.totalorder %s27, 0
    %p139 = por %p137, %p138
    %s140 = ssub.s32 %s29, %s36
    %p141 = scmp.eq.s32.totalorder %s140, 0
    %s143 = sadd.s32 %s142, 1
    %s144 = scalar_select %p141, %s142, %s143
    %p147 = pneg %p141
    %p148 = scmp.eq.s32.totalorder %s21, 1
    %p149 = por %p147, %p148
    %p150 = scmp.ne.s32.totalorder %s142, %s145
    %p151 = scmp.eq.s32.totalorder %s21, 0
    %p152 = por %p150, %p151
    %p153 = scmp.ne.s32.totalorder %s142, %s145
    %p154 = scmp.eq.s32.totalorder %s26, 1
    %p155 = por %p153, %p154
    %p156 = scmp.ne.s32.totalorder %s145, %s146
    %p157 = scmp.eq.s32.totalorder %s26, 0
    %p158 = por %p156, %p157
    %p159 = scmp.ne.s32.totalorder %s145, %s146
    %p160 = scmp.eq.s32.totalorder %s27, 1
    %p161 = por %p159, %p160
    %p163 = scmp.ne.s32.totalorder %s146, %s162
    %p164 = scmp.eq.s32.totalorder %s27, 0
    %p165 = por %p163, %p164
    %s166 = ssub.s32 %s29, %s36
    %p167 = scmp.eq.s32.totalorder %s166, 0
    %s169 = sadd.s32 %s168, 1
    %s170 = scalar_select %p167, %s168, %s169
    %p173 = pneg %p167
    %p174 = scmp.eq.s32.totalorder %s21, 1
    %p175 = por %p173, %p174
    %p176 = scmp.ne.s32.totalorder %s168, %s171
    %p177 = scmp.eq.s32.totalorder %s21, 0
    %p178 = por %p176, %p177
    %p179 = scmp.ne.s32.totalorder %s168, %s171
    %p180 = scmp.eq.s32.totalorder %s26, 1
    %p181 = por %p179, %p180
    %p182 = scmp.ne.s32.totalorder %s171, %s172
    %p183 = scmp.eq.s32.totalorder %s26, 0
    %p184 = por %p182, %p183
    %p185 = scmp.ne.s32.totalorder %s171, %s172
    %p186 = scmp.eq.s32.totalorder %s27, 1
    %p187 = por %p185, %p186
    %p189 = scmp.ne.s32.totalorder %s172, %s188
    %p190 = scmp.eq.s32.totalorder %s27, 0
    %p191 = por %p189, %p190
    %s192 = ssub.s32 %s29, %s36
    %p193 = scmp.eq.s32.totalorder %s192, 0
    %s195 = sadd.s32 %s194, 1
    %s196 = scalar_select %p193, %s194, %s195
    %p199 = pneg %p193
    %p200 = scmp.eq.s32.totalorder %s21, 1
    %p201 = por %p199, %p200
    %p202 = scmp.ne.s32.totalorder %s194, %s197
    %p203 = scmp.eq.s32.totalorder %s21, 0
    %p204 = por %p202, %p203
    %p205 = scmp.ne.s32.totalorder %s194, %s197
    %p206 = scmp.eq.s32.totalorder %s26, 1
    %p207 = por %p205, %p206
    %p208 = scmp.ne.s32.totalorder %s197, %s198
    %p209 = scmp.eq.s32.totalorder %s26, 0
    %p210 = por %p208, %p209
    %p211 = scmp.ne.s32.totalorder %s197, %s198
    %p212 = scmp.eq.s32.totalorder %s27, 1
    %p213 = por %p211, %p212
    %p215 = scmp.ne.s32.totalorder %s198, %s214
    %p216 = scmp.eq.s32.totalorder %s27, 0
    %p217 = por %p215, %p216
    %s218 = ssub.s32 %s29, %s36
    %p219 = scmp.eq.s32.totalorder %s218, 0
    %s221 = sadd.s32 %s220, 1
    %s222 = scalar_select %p219, %s220, %s221
    %p225 = pneg %p219
    %p226 = scmp.eq.s32.totalorder %s21, 1
    %p227 = por %p225, %p226
    %p228 = scmp.ne.s32.totalorder %s220, %s223
    %p229 = scmp.eq.s32.totalorder %s21, 0
    %p230 = por %p228, %p229
    %p231 = scmp.ne.s32.totalorder %s220, %s223
    %p232 = scmp.eq.s32.totalorder %s26, 1
    %p233 = por %p231, %p232
    %p234 = scmp.ne.s32.totalorder %s223, %s224
    %p235 = scmp.eq.s32.totalorder %s26, 0
    %p236 = por %p234, %p235
    %p237 = scmp.ne.s32.totalorder %s223, %s224
    %p238 = scmp.eq.s32.totalorder %s27, 1
    %p239 = por %p237, %p238
    %p241 = scmp.ne.s32.totalorder %s224, %s240
    %p242 = scmp.eq.s32.totalorder %s27, 0
    %p243 = por %p241, %p242
    %s244 = ssub.s32 %s29, %s36
    %p245 = scmp.eq.s32.totalorder %s244, 0
    %s247 = sadd.s32 %s246, 1
    %s248 = scalar_select %p245, %s246, %s247
    %p251 = pneg %p245
    %p252 = scmp.eq.s32.totalorder %s21, 1
    %p253 = por %p251, %p252
    %p254 = scmp.ne.s32.totalorder %s246, %s249
    %p255 = scmp.eq.s32.totalorder %s21, 0
    %p256 = por %p254, %p255
    %p257 = scmp.ne.s32.totalorder %s246, %s249
    %p258 = scmp.eq.s32.totalorder %s26, 1
    %p259 = por %p257, %p258
    %p260 = scmp.ne.s32.totalorder %s249, %s250
    %p261 = scmp.eq.s32.totalorder %s26, 0
    %p262 = por %p260, %p261
    %p263 = scmp.ne.s32.totalorder %s249, %s250
    %p264 = scmp.eq.s32.totalorder %s27, 1
    %p265 = por %p263, %p264
    %p267 = scmp.ne.s32.totalorder %s250, %s266
    %p268 = scmp.eq.s32.totalorder %s27, 0
    %p269 = por %p267, %p268
    %s270 = ssub.s32 %s29, %s36
    %p271 = scmp.eq.s32.totalorder %s270, 0
    %s273 = sadd.s32 %s272, 1
    %s274 = scalar_select %p271, %s272, %s273
    %p277 = pneg %p271
    %p278 = scmp.eq.s32.totalorder %s21, 1
    %p279 = por %p277, %p278
    %p280 = scmp.ne.s32.totalorder %s272, %s275
    %p281 = scmp.eq.s32.totalorder %s21, 0
    %p282 = por %p280, %p281
    %p283 = scmp.ne.s32.totalorder %s272, %s275
    %p284 = scmp.eq.s32.totalorder %s26, 1
    %p285 = por %p283, %p284
    %p286 = scmp.ne.s32.totalorder %s275, %s276
    %p287 = scmp.eq.s32.totalorder %s26, 0
    %p288 = por %p286, %p287
    %p289 = scmp.ne.s32.totalorder %s275, %s276
    %p290 = scmp.eq.s32.totalorder %s27, 1
    %p291 = por %p289, %p290
    %p293 = scmp.ne.s32.totalorder %s276, %s292
    %p294 = scmp.eq.s32.totalorder %s27, 0
    %p295 = por %p293, %p294
    %s296 = ssub.s32 %s29, %s36
    %p297 = scmp.eq.s32.totalorder %s296, 0
    %s299 = sadd.s32 %s298, 1
    %s300 = scalar_select %p297, %s298, %s299
    %p303 = pneg %p297
    %p304 = scmp.eq.s32.totalorder %s21, 1
    %p305 = por %p303, %p304
    %p306 = scmp.ne.s32.totalorder %s298, %s301
    %p307 = scmp.eq.s32.totalorder %s21, 0
    %p308 = por %p306, %p307
    %p309 = scmp.ne.s32.totalorder %s298, %s301
    %p310 = scmp.eq.s32.totalorder %s26, 1
    %p311 = por %p309, %p310
    %p312 = scmp.ne.s32.totalorder %s301, %s302
    %p313 = scmp.eq.s32.totalorder %s26, 0
    %p314 = por %p312, %p313
    %p315 = scmp.ne.s32.totalorder %s301, %s302
    %p316 = scmp.eq.s32.totalorder %s27, 1
    %p317 = por %p315, %p316
    %p319 = scmp.ne.s32.totalorder %s302, %s318
    %p320 = scmp.eq.s32.totalorder %s27, 0
    %p321 = por %p319, %p320
    %s322 = ssub.s32 %s29, %s36
    %p323 = scmp.eq.s32.totalorder %s322, 0
    %s325 = sadd.s32 %s324, 1
    %s326 = scalar_select %p323, %s324, %s325
    %p329 = pneg %p323
    %p330 = scmp.eq.s32.totalorder %s21, 1
    %p331 = por %p329, %p330
    %p332 = scmp.ne.s32.totalorder %s324, %s327
    %p333 = scmp.eq.s32.totalorder %s21, 0
    %p334 = por %p332, %p333
    %p335 = scmp.ne.s32.totalorder %s324, %s327
    %p336 = scmp.eq.s32.totalorder %s26, 1
    %p337 = por %p335, %p336
    %p338 = scmp.ne.s32.totalorder %s327, %s328
    %p339 = scmp.eq.s32.totalorder %s26, 0
    %p340 = por %p338, %p339
    %p341 = scmp.ne.s32.totalorder %s327, %s328
    %p342 = scmp.eq.s32.totalorder %s27, 1
    %p343 = por %p341, %p342
    %p345 = scmp.ne.s32.totalorder %s328, %s344
    %p346 = scmp.eq.s32.totalorder %s27, 0
    %p347 = por %p345, %p346
    %s348 = ssub.s32 %s29, %s36
    %p349 = scmp.eq.s32.totalorder %s348, 0
    %s351 = sadd.s32 %s350, 1
    %s352 = scalar_select %p349, %s350, %s351
    %p355 = pneg %p349
    %p356 = scmp.eq.s32.totalorder %s21, 1
    %p357 = por %p355, %p356
    %p358 = scmp.ne.s32.totalorder %s350, %s353
    %p359 = scmp.eq.s32.totalorder %s21, 0
    %p360 = por %p358, %p359
    %p361 = scmp.ne.s32.totalorder %s350, %s353
    %p362 = scmp.eq.s32.totalorder %s26, 1
    %p363 = por %p361, %p362
    %p364 = scmp.ne.s32.totalorder %s353, %s354
    %p365 = scmp.eq.s32.totalorder %s26, 0
    %p366 = por %p364, %p365
    %p367 = scmp.ne.s32.totalorder %s353, %s354
    %p368 = scmp.eq.s32.totalorder %s27, 1
    %p369 = por %p367, %p368
    %p371 = scmp.ne.s32.totalorder %s354, %s370
    %p372 = scmp.eq.s32.totalorder %s27, 0
    %p373 = por %p371, %p372
    %s374 = ssub.s32 %s29, %s36
    %p375 = scmp.eq.s32.totalorder %s374, 0
    %s377 = sadd.s32 %s376, 1
    %s378 = scalar_select %p375, %s376, %s377
    %p381 = pneg %p375
    %p382 = scmp.eq.s32.totalorder %s21, 1
    %p383 = por %p381, %p382
    %p384 = scmp.ne.s32.totalorder %s376, %s379
    %p385 = scmp.eq.s32.totalorder %s21, 0
    %p386 = por %p384, %p385
    %p387 = scmp.ne.s32.totalorder %s376, %s379
    %p388 = scmp.eq.s32.totalorder %s26, 1
    %p389 = por %p387, %p388
    %p390 = scmp.ne.s32.totalorder %s379, %s380
    %p391 = scmp.eq.s32.totalorder %s26, 0
    %p392 = por %p390, %p391
    %p393 = scmp.ne.s32.totalorder %s379, %s380
    %p394 = scmp.eq.s32.totalorder %s27, 1
    %p395 = por %p393, %p394
    %p397 = scmp.ne.s32.totalorder %s380, %s396
    %p398 = scmp.eq.s32.totalorder %s27, 0
    %p399 = por %p397, %p398
    %s401 = sadd.s32 %s400, 1
    %p404 = scmp.eq.s32.totalorder %s21, 1
    %p405 = scmp.ne.s32.totalorder %s400, %s402
    %p406 = scmp.eq.s32.totalorder %s21, 0
    %p407 = por %p405, %p406
    %p408 = scmp.ne.s32.totalorder %s400, %s402
    %p409 = scmp.eq.s32.totalorder %s26, 1
    %p410 = por %p408, %p409
    %p411 = scmp.ne.s32.totalorder %s402, %s403
    %p412 = scmp.eq.s32.totalorder %s26, 0
    %p413 = por %p411, %p412
    %p414 = scmp.ne.s32.totalorder %s402, %s403
    %p415 = scmp.eq.s32.totalorder %s27, 1
    %p416 = por %p414, %p415
    %p418 = scmp.ne.s32.totalorder %s403, %s417
    %p419 = scmp.eq.s32.totalorder %s27, 0
    %p420 = por %p418, %p419
    %s421 = ssub.s32 %s28, %s40
    %p422 = scmp.eq.s32.totalorder %s421, 0
    %s424 = sadd.s32 %s423, 1
    %s425 = scalar_select %p422, %s423, %s424
    %p428 = pneg %p422
    %p429 = scmp.eq.s32.totalorder %s21, 1
    %p430 = por %p428, %p429
    %p431 = scmp.ne.s32.totalorder %s423, %s426
    %p432 = scmp.eq.s32.totalorder %s21, 0
    %p433 = por %p431, %p432
    %p434 = scmp.ne.s32.totalorder %s423, %s426
    %p435 = scmp.eq.s32.totalorder %s26, 1
    %p436 = por %p434, %p435
    %p437 = scmp.ne.s32.totalorder %s426, %s427
    %p438 = scmp.eq.s32.totalorder %s26, 0
    %p439 = por %p437, %p438
    %p440 = scmp.ne.s32.totalorder %s426, %s427
    %p441 = scmp.eq.s32.totalorder %s27, 1
    %p442 = por %p440, %p441
    %p444 = scmp.ne.s32.totalorder %s427, %s443
    %p445 = scmp.eq.s32.totalorder %s27, 0
    %p446 = por %p444, %p445
    %p447 = scmp.le.s32.totalorder 1, %s21
    %p448 = scmp.lt.s32.totalorder %s21, 3
    %p449 = pnand %p447, %p448
    %p450 = pneg %p449
    // Predicated region
    $region9: #{detr_forward.6} parent=5 // pred_check
      _
    $region10: #{detr_forward.6} parent=5 // pred_check_branch
      %452 = sbr.rel (%p449) target = $region12
    $region11: #{detr_forward.6} parent=5 // pred_region
      %s453 = ssub.s32 %s21, 1
      // Predicated region
      $region13: #{detr_forward.6} parent=11 // pred_check
        %p454 = pneg %p59
      $region14: #{detr_forward.6} parent=11 // pred_check_branch
        %456 = sbr.rel (%p454) target = $region16
      $region15: #{detr_forward.6} parent=11 // pred_region
        %s457 = smul.u32 2, %s30
        %p458 = scmp.lt.s32.totalorder %s457, 1
        %s459 = scalar_select %p458, %s457, 1
        %s460 = smul.addr %s459, 8
        %s461 = smul.addr %s460, 8
        %s462 = scalar_lea.vmem %s0, %s461
        %s463 = smul.u32 2, %s30
      $region16: #{detr_forward.6} parent=11 // pred_fallthru
        _
      // Predicated region
      $region17: #{detr_forward.6} parent=11 // pred_check
        %p464 = pneg %p85
      $region18: #{detr_forward.6} parent=11 // pred_check_branch
        %466 = sbr.rel (%p464) target = $region20
      $region19: #{detr_forward.6} parent=11 // pred_region
        %s467 = smul.u32 2, %s30
        %p468 = scmp.lt.s32.totalorder %s467, 1
        %s469 = scalar_select %p468, %s467, 1
        %s470 = smul.addr %s469, 8
        %s471 = smul.addr %s470, 8
        %s472 = scalar_lea.vmem %s1, %s471
        %s473 = smul.u32 2, %s30
      $region20: #{detr_forward.6} parent=11 // pred_fallthru
        _
      // Predicated region
      $region21: #{detr_forward.6} parent=11 // pred_check
        %p474 = pneg %p106
      $region22: #{detr_forward.6} parent=11 // pred_check_branch
        %476 = sbr.rel (%p474) target = $region24
      $region23: #{detr_forward.6} parent=11 // pred_region
        _
      $region24: #{detr_forward.6} parent=11 // pred_fallthru
        _
      // Predicated region
      $region25: #{detr_forward.6} parent=11 // pred_check
        %p477 = pneg %p413
      $region26: #{detr_forward.6} parent=11 // pred_check_branch
        %479 = sbr.rel (%p477) target = $region28
      $region27: #{detr_forward.6} parent=11 // pred_region
        _
      $region28: #{detr_forward.6} parent=11 // pred_fallthru
        _
    $region12: #{detr_forward.6} parent=5 // pred_fallthru
      _
    %p480 = scmp.lt.s32.totalorder %s21, 2
    // Predicated region
    $region29: #{detr_forward.6} parent=5 // pred_check
      %p481 = pneg %p480
    $region30: #{detr_forward.6} parent=5 // pred_check_branch
      %483 = sbr.rel (%p481) target = $region32
    $region31: #{detr_forward.6} parent=5 // pred_region
      // Predicated region
      $region33: #{detr_forward.6} parent=31 // pred_check
        %p484 = pneg %p126
      $region34: #{detr_forward.6} parent=31 // pred_check_branch
        %486 = sbr.rel (%p484) target = $region36
      $region35: #{detr_forward.6} parent=31 // pred_region
        %p487 = scmp.lt.s32.totalorder %s29, 1
        %s488 = scalar_select %p487, %s29, 1
        %s489 = smul.addr %s488, 32
        %s490 = smul.addr %s489, 4
        %s491 = scalar_lea.vmem %s3, %s490
      $region36: #{detr_forward.6} parent=31 // pred_fallthru
        _
      // Predicated region
      $region37: #{detr_forward.6} parent=31 // pred_check
        %p492 = pneg %p152
      $region38: #{detr_forward.6} parent=31 // pred_check_branch
        %494 = sbr.rel (%p492) target = $region40
      $region39: #{detr_forward.6} parent=31 // pred_region
        %p495 = scmp.lt.s32.totalorder %s29, 1
        %s496 = scalar_select %p495, %s29, 1
        %s497 = smul.addr %s496, 16
        %s498 = smul.addr %s497, 4
        %s499 = scalar_lea.vmem %s4, %s498
      $region40: #{detr_forward.6} parent=31 // pred_fallthru
        _
      // Predicated region
      $region41: #{detr_forward.6} parent=31 // pred_check
        %p500 = pneg %p178
      $region42: #{detr_forward.6} parent=31 // pred_check_branch
        %502 = sbr.rel (%p500) target = $region44
      $region43: #{detr_forward.6} parent=31 // pred_region
        %p503 = scmp.lt.s32.totalorder %s29, 1
        %s504 = scalar_select %p503, %s29, 1
        %s505 = smul.addr %s504, 16
        %s506 = smul.addr %s505, 4
        %s507 = scalar_lea.vmem %s5, %s506
      $region44: #{detr_forward.6} parent=31 // pred_fallthru
        _
      // Predicated region
      $region45: #{detr_forward.6} parent=31 // pred_check
        %p508 = pneg %p204
      $region46: #{detr_forward.6} parent=31 // pred_check_branch
        %510 = sbr.rel (%p508) target = $region48
      $region47: #{detr_forward.6} parent=31 // pred_region
        %p511 = scmp.lt.s32.totalorder %s29, 1
        %s512 = scalar_select %p511, %s29, 1
        %s513 = smul.addr %s512, 16
        %s514 = smul.addr %s513, 4
        %s515 = scalar_lea.vmem %s6, %s514
      $region48: #{detr_forward.6} parent=31 // pred_fallthru
        _
      // Predicated region
      $region49: #{detr_forward.6} parent=31 // pred_check
        %p516 = pneg %p230
      $region50: #{detr_forward.6} parent=31 // pred_check_branch
        %518 = sbr.rel (%p516) target = $region52
      $region51: #{detr_forward.6} parent=31 // pred_region
        %p519 = scmp.lt.s32.totalorder %s29, 1
        %s520 = scalar_select %p519, %s29, 1
        %s521 = smul.addr %s520, 16
        %s522 = smul.addr %s521, 4
        %s523 = scalar_lea.vmem %s7, %s522
      $region52: #{detr_forward.6} parent=31 // pred_fallthru
        _
      // Predicated region
      $region53: #{detr_forward.6} parent=31 // pred_check
        %p524 = pneg %p256
      $region54: #{detr_forward.6} parent=31 // pred_check_branch
        %526 = sbr.rel (%p524) target = $region56
      $region55: #{detr_forward.6} parent=31 // pred_region
        %p527 = scmp.lt.s32.totalorder %s29, 1
        %s528 = scalar_select %p527, %s29, 1
        %s529 = smul.addr %s528, 16
        %s530 = smul.addr %s529, 4
        %s531 = scalar_lea.vmem %s8, %s530
      $region56: #{detr_forward.6} parent=31 // pred_fallthru
        _
      // Predicated region
      $region57: #{detr_forward.6} parent=31 // pred_check
        %p532 = pneg %p282
      $region58: #{detr_forward.6} parent=31 // pred_check_branch
        %534 = sbr.rel (%p532) target = $region60
      $region59: #{detr_forward.6} parent=31 // pred_region
        %p535 = scmp.lt.s32.totalorder %s29, 1
        %s536 = scalar_select %p535, %s29, 1
        %s537 = smul.addr %s536, 16
        %s538 = smul.addr %s537, 4
        %s539 = scalar_lea.vmem %s9, %s538
      $region60: #{detr_forward.6} parent=31 // pred_fallthru
        _
      // Predicated region
      $region61: #{detr_forward.6} parent=31 // pred_check
        %p540 = pneg %p308
      $region62: #{detr_forward.6} parent=31 // pred_check_branch
        %542 = sbr.rel (%p540) target = $region64
      $region63: #{detr_forward.6} parent=31 // pred_region
        %p543 = scmp.lt.s32.totalorder %s29, 1
        %s544 = scalar_select %p543, %s29, 1
        %s545 = smul.addr %s544, 16
        %s546 = smul.addr %s545, 4
        %s547 = scalar_lea.vmem %s10, %s546
      $region64: #{detr_forward.6} parent=31 // pred_fallthru
        _
      // Predicated region
      $region65: #{detr_forward.6} parent=31 // pred_check
        %p548 = pneg %p334
      $region66: #{detr_forward.6} parent=31 // pred_check_branch
        %550 = sbr.rel (%p548) target = $region68
      $region67: #{detr_forward.6} parent=31 // pred_region
        %p551 = scmp.lt.s32.totalorder %s29, 1
        %s552 = scalar_select %p551, %s29, 1
        %s553 = smul.addr %s552, 16
        %s554 = smul.addr %s553, 4
        %s555 = scalar_lea.vmem %s11, %s554
      $region68: #{detr_forward.6} parent=31 // pred_fallthru
        _
      // Predicated region
      $region69: #{detr_forward.6} parent=31 // pred_check
        %p556 = pneg %p360
      $region70: #{detr_forward.6} parent=31 // pred_check_branch
        %558 = sbr.rel (%p556) target = $region72
      $region71: #{detr_forward.6} parent=31 // pred_region
        %p559 = scmp.lt.s32.totalorder %s29, 1
        %s560 = scalar_select %p559, %s29, 1
        %s561 = smul.addr %s560, 2
        %s562 = smul.addr %s561, 8
        %s563 = scalar_lea.vmem %s12, %s562
      $region72: #{detr_forward.6} parent=31 // pred_fallthru
        _
      // Predicated region
      $region73: #{detr_forward.6} parent=31 // pred_check
        %p564 = pneg %p386
      $region74: #{detr_forward.6} parent=31 // pred_check_branch
        %566 = sbr.rel (%p564) target = $region76
      $region75: #{detr_forward.6} parent=31 // pred_region
        %p567 = scmp.lt.s32.totalorder %s29, 1
        %s568 = scalar_select %p567, %s29, 1
        %s569 = scalar_lea.vmem %s13, %s568
      $region76: #{detr_forward.6} parent=31 // pred_fallthru
        _
    $region32: #{detr_forward.6} parent=5 // pred_fallthru
      _
    %p570 = scmp.le.s32.totalorder 1, %s21
    %p571 = scmp.lt.s32.totalorder %s21, 3
    %p572 = pnand %p570, %p571
    %p573 = pneg %p572
    // Predicated region
    $region77: #{detr_forward.6} parent=5 // pred_check
      _
    $region78: #{detr_forward.6} parent=5 // pred_check_branch
      %575 = sbr.rel (%p572) target = $region80
    $region79: #{detr_forward.6} parent=5 // pred_region
      %s576 = ssub.s32 %s21, 1
      %s577 = smul.u32 2, %s30
      %p578 = scmp.lt.s32.totalorder %s577, 1
      %s579 = scalar_select %p578, %s577, 1
      %s580 = smul.addr %s579, 8
      %s581 = smul.addr %s580, 8
      %s582 = scalar_lea.vmem %s0, %s581
      %p583 = pneg %p59
      %p584 = pneg %p56
      %s585 = smul.u32 2, %s30
      %p586 = scmp.lt.s32.totalorder %s585, 1
      %s587 = scalar_select %p586, %s585, 1
      %s588 = smul.addr %s587, 8
      %s589 = smul.addr %s588, 8
      %s590 = scalar_lea.vmem %s1, %s589
      %p591 = pneg %p85
      %p592 = pneg %p82
      %p593 = pneg %p106
      %p594 = pneg %p103
      %p595 = scmp.lt.s32.totalorder %s31, 1
      %s596 = scalar_select %p595, %s31, 1
      %s597 = smul.addr %s596, 32
      %s598 = smul.addr %s597, 4
      %s599 = scalar_lea.vmem %s3, %s598
      %p600 = pneg %p132
      %p601 = pneg %p129
      %p602 = scmp.lt.s32.totalorder %s31, 1
      %s603 = scalar_select %p602, %s31, 1
      %s604 = smul.addr %s603, 16
      %s605 = smul.addr %s604, 4
      %s606 = scalar_lea.vmem %s4, %s605
      %p607 = pneg %p158
      %p608 = pneg %p155
      %p609 = scmp.lt.s32.totalorder %s31, 1
      %s610 = scalar_select %p609, %s31, 1
      %s611 = smul.addr %s610, 16
      %s612 = smul.addr %s611, 4
      %s613 = scalar_lea.vmem %s5, %s612
      %p614 = pneg %p184
      %p615 = pneg %p181
      %p616 = scmp.lt.s32.totalorder %s31, 1
      %s617 = scalar_select %p616, %s31, 1
      %s618 = smul.addr %s617, 16
      %s619 = smul.addr %s618, 4
      %s620 = scalar_lea.vmem %s6, %s619
      %p621 = pneg %p210
      %p622 = pneg %p207
      %p623 = scmp.lt.s32.totalorder %s31, 1
      %s624 = scalar_select %p623, %s31, 1
      %s625 = smul.addr %s624, 16
      %s626 = smul.addr %s625, 4
      %s627 = scalar_lea.vmem %s7, %s626
      %p628 = pneg %p236
      %p629 = pneg %p233
      %p630 = scmp.lt.s32.totalorder %s31, 1
      %s631 = scalar_select %p630, %s31, 1
      %s632 = smul.addr %s631, 16
      %s633 = smul.addr %s632, 4
      %s634 = scalar_lea.vmem %s8, %s633
      %p635 = pneg %p262
      %p636 = pneg %p259
      %p637 = scmp.lt.s32.totalorder %s31, 1
      %s638 = scalar_select %p637, %s31, 1
      %s639 = smul.addr %s638, 16
      %s640 = smul.addr %s639, 4
      %s641 = scalar_lea.vmem %s9, %s640
      %p642 = pneg %p288
      %p643 = pneg %p285
      %p644 = scmp.lt.s32.totalorder %s31, 1
      %s645 = scalar_select %p644, %s31, 1
      %s646 = smul.addr %s645, 16
      %s647 = smul.addr %s646, 4
      %s648 = scalar_lea.vmem %s10, %s647
      %p649 = pneg %p314
      %p650 = pneg %p311
      %p651 = scmp.lt.s32.totalorder %s31, 1
      %s652 = scalar_select %p651, %s31, 1
      %s653 = smul.addr %s652, 16
      %s654 = smul.addr %s653, 4
      %s655 = scalar_lea.vmem %s11, %s654
      %p656 = pneg %p340
      %p657 = pneg %p337
      %p658 = scmp.lt.s32.totalorder %s31, 1
      %s659 = scalar_select %p658, %s31, 1
      %s660 = smul.addr %s659, 2
      %s661 = smul.addr %s660, 8
      %s662 = scalar_lea.vmem %s12, %s661
      %p663 = pneg %p366
      %p664 = pneg %p363
      %p665 = scmp.lt.s32.totalorder %s31, 1
      %s666 = scalar_select %p665, %s31, 1
      %s667 = scalar_lea.vmem %s13, %s666
      %p668 = pneg %p392
      %p669 = pneg %p389
      %p670 = pneg %p413
      %p671 = pneg %p410
      %p672 = pneg %p439
      %p673 = pneg %p436
      %s674 = smul.u32 2, %s30
      %p675 = scmp.lt.s32.totalorder %s674, 1
      %s676 = scalar_select %p675, %s674, 1
      %s677 = smul.addr %s676, 4
      %s678 = scalar_lea.vmem %s15, %s677
      %s679 = smul.u32 2, %s30
      %p680 = scmp.lt.s32.totalorder %s679, 1
      %s681 = scalar_select %p680, %s679, 1
      %s682 = smul.addr %s681, 8
      %s683 = smul.addr %s682, 8
      %s684 = scalar_lea.vmem %s0, %s683
      %s685 = smul.u32 2, %s30
      %s686 = smul.u32 2, %s30
      %p687 = scmp.lt.s32.totalorder %s686, 1
      %s688 = scalar_select %p687, %s686, 1
      %s689 = smul.addr %s688, 8
      %s690 = smul.addr %s689, 8
      %s691 = scalar_lea.vmem %s1, %s690
      %s692 = smul.u32 2, %s30
      %p693 = scmp.lt.s32.totalorder %s31, 1
      %s694 = scalar_select %p693, %s31, 1
      %s695 = smul.addr %s694, 32
      %s696 = smul.addr %s695, 4
      %s697 = scalar_lea.vmem %s3, %s696
      %p698 = scmp.lt.s32.totalorder %s31, 1
      %s699 = scalar_select %p698, %s31, 1
      %s700 = smul.addr %s699, 16
      %s701 = smul.addr %s700, 4
      %s702 = scalar_lea.vmem %s4, %s701
      %p703 = scmp.lt.s32.totalorder %s31, 1
      %s704 = scalar_select %p703, %s31, 1
      %s705 = smul.addr %s704, 16
      %s706 = smul.addr %s705, 4
      %s707 = scalar_lea.vmem %s5, %s706
      %p708 = scmp.lt.s32.totalorder %s31, 1
      %s709 = scalar_select %p708, %s31, 1
      %s710 = smul.addr %s709, 16
      %s711 = smul.addr %s710, 4
      %s712 = scalar_lea.vmem %s6, %s711
      %p713 = scmp.lt.s32.totalorder %s31, 1
      %s714 = scalar_select %p713, %s31, 1
      %s715 = smul.addr %s714, 16
      %s716 = smul.addr %s715, 4
      %s717 = scalar_lea.vmem %s7, %s716
      %p718 = scmp.lt.s32.totalorder %s31, 1
      %s719 = scalar_select %p718, %s31, 1
      %s720 = smul.addr %s719, 16
      %s721 = smul.addr %s720, 4
      %s722 = scalar_lea.vmem %s8, %s721
      %p723 = scmp.lt.s32.totalorder %s31, 1
      %s724 = scalar_select %p723, %s31, 1
      %s725 = smul.addr %s724, 16
      %s726 = smul.addr %s725, 4
      %s727 = scalar_lea.vmem %s9, %s726
      %p728 = scmp.lt.s32.totalorder %s31, 1
      %s729 = scalar_select %p728, %s31, 1
      %s730 = smul.addr %s729, 16
      %s731 = smul.addr %s730, 4
      %s732 = scalar_lea.vmem %s10, %s731
      %p733 = scmp.lt.s32.totalorder %s31, 1
      %s734 = scalar_select %p733, %s31, 1
      %s735 = smul.addr %s734, 16
      %s736 = smul.addr %s735, 4
      %s737 = scalar_lea.vmem %s11, %s736
      %p738 = scmp.lt.s32.totalorder %s31, 1
      %s739 = scalar_select %p738, %s31, 1
      %s740 = smul.addr %s739, 2
      %s741 = smul.addr %s740, 8
      %s742 = scalar_lea.vmem %s12, %s741
      %p743 = scmp.lt.s32.totalorder %s31, 1
      %s744 = scalar_select %p743, %s31, 1
      %s745 = scalar_lea.vmem %s13, %s744
      %s746 = smul.u32 2, %s30
      %p747 = scmp.lt.s32.totalorder %s746, 1
      %s748 = scalar_select %p747, %s746, 1
      %s749 = smul.addr %s748, 4
      %s750 = scalar_lea.vmem %s15, %s749
      %s751 = smul.u32 2, %s30
      %p753 = scmp.eq.s32.totalorder %s31, 0
      // Predicated region
      $region81: #{detr_forward.6} parent=79 // pred_check
        %p754 = pneg %p753
      $region82: #{detr_forward.6} parent=79 // pred_check_branch
        %756 = sbr.rel (%p754) target = $region84
      $region83: #{detr_forward.6} parent=79 // pred_region
        %757 = vst [vmem:[#allocation2] sm:$0xff] 0.0
        %758 = vst [vmem:[#allocation2 + $0x8] sm:$0xff] 0.0
      $region84: #{detr_forward.6} parent=79 // pred_fallthru
        _
      %v759 = vld [vmem:[#allocation2] sm:$0xff]
      %v760 = vld [vmem:[#allocation2 + $0x8] sm:$0xff]
      %v761 = vld [vmem:[%s684] sm:$0xff]
      %v762 = vld [vmem:[%s684 + $0x8] sm:$0xff]
      %v763 = vld [vmem:[%s684 + $0x10] sm:$0xff]
      %v764 = vld [vmem:[%s684 + $0x18] sm:$0xff]
      %v765 = vld [vmem:[%s684 + $0x20] sm:$0xff]
      %v766 = vld [vmem:[%s684 + $0x28] sm:$0xff]
      %v767 = vld [vmem:[%s684 + $0x30] sm:$0xff]
      %v768 = vld [vmem:[%s684 + $0x38] sm:$0xff]
      %v769 = vld [vmem:[%s684 + $0x40] sm:$0xff]
      %v770 = vld [vmem:[%s684 + $0x48] sm:$0xff]
      %v771 = vld [vmem:[%s684 + $0x50] sm:$0xff]
      %v772 = vld [vmem:[%s684 + $0x58] sm:$0xff]
      %v773 = vld [vmem:[%s684 + $0x60] sm:$0xff]
      %v774 = vld [vmem:[%s684 + $0x68] sm:$0xff]
      %v775 = vld [vmem:[%s684 + $0x70] sm:$0xff]
      %v776 = vld [vmem:[%s684 + $0x78] sm:$0xff]
      %v777 = vld [vmem:[%s691] sm:$0xff]
      %v778 = vld [vmem:[%s691 + $0x8] sm:$0xff]
      %v779 = vld [vmem:[%s691 + $0x10] sm:$0xff]
      %v780 = vld [vmem:[%s691 + $0x18] sm:$0xff]
      %v781 = vld [vmem:[%s691 + $0x20] sm:$0xff]
      %v782 = vld [vmem:[%s691 + $0x28] sm:$0xff]
      %v783 = vld [vmem:[%s691 + $0x30] sm:$0xff]
      %v784 = vld [vmem:[%s691 + $0x38] sm:$0xff]
      %v785 = vld [vmem:[%s691 + $0x40] sm:$0xff]
      %v786 = vld [vmem:[%s691 + $0x48] sm:$0xff]
      %v787 = vld [vmem:[%s691 + $0x50] sm:$0xff]
      %v788 = vld [vmem:[%s691 + $0x58] sm:$0xff]
      %v789 = vld [vmem:[%s691 + $0x60] sm:$0xff]
      %v790 = vld [vmem:[%s691 + $0x68] sm:$0xff]
      %v791 = vld [vmem:[%s691 + $0x70] sm:$0xff]
      %v792 = vld [vmem:[%s691 + $0x78] sm:$0xff]
      %v793 = vld [vmem:[%s2] sm:$0xff]
      %v794 = vld [vmem:[%s742] sm:$0xff]
      %v795 = vld [vmem:[%s742 + $0x8] sm:$0xff]
      %v796 = vld [vmem:[%s745] sm:$0x1]
      %v797 = vadd.f32 %v759, %v793
      %v798 = vadd.f32 %v760, %v793
      %v799 = vpack.c.bf16 %v798, %v797
      %v800 = vld [vmem:[%s697] sm:$0xff]
      %v801 = vld [vmem:[%s697 + $0x8] sm:$0xff]
      %v802 = vld [vmem:[%s697 + $0x10] sm:$0xff]
      %v803 = vld [vmem:[%s697 + $0x18] sm:$0xff]
      %v804 = vld [vmem:[%s697 + $0x20] sm:$0xff]
      %v805 = vld [vmem:[%s697 + $0x28] sm:$0xff]
      %v806 = vld [vmem:[%s697 + $0x30] sm:$0xff]
      %v807 = vld [vmem:[%s697 + $0x38] sm:$0xff]
      %v808 = vld [vmem:[%s697 + $0x40] sm:$0xff]
      %v809 = vld [vmem:[%s697 + $0x48] sm:$0xff]
      %v810 = vld [vmem:[%s697 + $0x50] sm:$0xff]
      %v811 = vld [vmem:[%s697 + $0x58] sm:$0xff]
      %v812 = vld [vmem:[%s697 + $0x60] sm:$0xff]
      %v813 = vld [vmem:[%s697 + $0x68] sm:$0xff]
      %v814 = vld [vmem:[%s697 + $0x70] sm:$0xff]
      %v815 = vld [vmem:[%s697 + $0x78] sm:$0xff]
      %v832 = vunpack.c.l.b16 %v800
      %v833 = vunpack.c.h.b16 %v800
      %v834 = vunpack.c.l.b16 %v801
      %v835 = vunpack.c.h.b16 %v801
      %v836 = vunpack.c.l.b16 %v802
      %v837 = vunpack.c.h.b16 %v802
      %v838 = vunpack.c.l.b16 %v803
      %v839 = vunpack.c.h.b16 %v803
      %v840 = vunpack.c.l.b16 %v804
      %v841 = vunpack.c.h.b16 %v804
      %v842 = vunpack.c.l.b16 %v805
      %v843 = vunpack.c.h.b16 %v805
      %v844 = vunpack.c.l.b16 %v806
      %v845 = vunpack.c.h.b16 %v806
      %v846 = vunpack.c.l.b16 %v807
      %v847 = vunpack.c.h.b16 %v807
      %v848 = vunpack.c.l.b16 %v808
      %v849 = vunpack.c.h.b16 %v808
      %v850 = vunpack.c.l.b16 %v809
      %v851 = vunpack.c.h.b16 %v809
      %v852 = vunpack.c.l.b16 %v810
      %v853 = vunpack.c.h.b16 %v810
      %v854 = vunpack.c.l.b16 %v811
      %v855 = vunpack.c.h.b16 %v811
      %v856 = vunpack.c.l.b16 %v812
      %v857 = vunpack.c.h.b16 %v812
      %v858 = vunpack.c.l.b16 %v813
      %v859 = vunpack.c.h.b16 %v813
      %v860 = vunpack.c.l.b16 %v814
      %v861 = vunpack.c.h.b16 %v814
      %v862 = vunpack.c.l.b16 %v815
      %v863 = vunpack.c.h.b16 %v815
      %v864 = vpack.c.b16 %v834, %v832
      %v865 = vpack.c.b16 %v835, %v833
      %v866 = vpack.c.b16 %v838, %v836
      %v867 = vpack.c.b16 %v839, %v837
      %v868 = vpack.c.b16 %v842, %v840
      %v869 = vpack.c.b16 %v843, %v841
      %v870 = vpack.c.b16 %v846, %v844
      %v871 = vpack.c.b16 %v847, %v845
      %v872 = vpack.c.b16 %v850, %v848
      %v873 = vpack.c.b16 %v851, %v849
      %v874 = vpack.c.b16 %v854, %v852
      %v875 = vpack.c.b16 %v855, %v853
      %v876 = vpack.c.b16 %v858, %v856
      %v877 = vpack.c.b16 %v859, %v857
      %v878 = vpack.c.b16 %v862, %v860
      %v879 = vpack.c.b16 %v863, %v861
      %896 = vmatprep.subr.bf16.mxu0 %v865
      %897 = vmatpush1.bf16.msra.mxu0 %v864
      %898 = vmatprep.subr.bf16.mxu0 %v867
      %899 = vmatpush1.bf16.msra.mxu0 %v866
      %900 = vmatprep.subr.bf16.mxu0 %v869
      %901 = vmatpush1.bf16.msra.mxu0 %v868
      %902 = vmatprep.subr.bf16.mxu0 %v871
      %903 = vmatpush1.bf16.msra.mxu0 %v870
      %904 = vmatprep.subr.bf16.mxu0 %v873
      %905 = vmatpush1.bf16.msra.mxu0 %v872
      %906 = vmatprep.subr.bf16.mxu0 %v875
      %907 = vmatpush1.bf16.msra.mxu0 %v874
      %908 = vmatprep.subr.bf16.mxu0 %v877
      %909 = vmatpush1.bf16.msra.mxu0 %v876
      %910 = vmatprep.subr.bf16.mxu0 %v879
      %911 = vmatpush1.bf16.msra.mxu0 %v878
      %912 = vmatprep.subr.bf16.mxu0 0
      %913 = vmatpush1.bf16.msra.mxu0 0
      %914 = vmatprep.subr.bf16.mxu0 0
      %915 = vmatpush1.bf16.msra.mxu0 0
      %916 = vmatprep.subr.bf16.mxu0 0
      %917 = vmatpush1.bf16.msra.mxu0 0
      %918 = vmatprep.subr.bf16.mxu0 0
      %919 = vmatpush1.bf16.msra.mxu0 0
      %920 = vmatprep.subr.bf16.mxu0 0
      %921 = vmatpush1.bf16.msra.mxu0 0
      %922 = vmatprep.subr.bf16.mxu0 0
      %923 = vmatpush1.bf16.msra.mxu0 0
      %924 = vmatprep.subr.bf16.mxu0 0
      %925 = vmatpush1.bf16.msra.mxu0 0
      %926 = vmatprep.subr.bf16.mxu0 0
      %927 = vmatpush1.bf16.msra.mxu0 0
      %928 = vmatprep.mubr.bf16.mxu0 0
      %929 = vmatmul.mubr.bf16.gmra.mrb[0].mxu0 %v799
      %v930 = vpop.f32.mrb[0].mxu0
      %v931 = vadd.f32 0.0, %v930
      %v932 = vpop.f32.mrb[0].mxu0
      %v933 = vadd.f32 0.0, %v932
      %v934 = vpop.f32.mrb[0].mxu0
      %v935 = vadd.f32 0.0, %v934
      %v936 = vpop.f32.mrb[0].mxu0
      %v937 = vadd.f32 0.0, %v936
      %938 = vdwg.mxu0
      %v939 = vlaneseq
      %v940 = vshrl.u32 %v939, 7
      %v941 = vsub.s32 0, %v940
      %v942 = vrot.slane %v794, %v941
      %v943 = vadd.f32 %v931, %v942
      %v944 = vadd.f32 %v935, %v942
      %v945 = vpack.c.bf16 %v944, %v943
      %v947 = vunpack.c.l.b16 %v945
      %v948 = vunpack.c.h.b16 %v945
      %v949 = vpack.c.b16 %v947, %v947
      %v950 = vpack.c.b16 %v948, %v948
      %v953 = vlaneseq
      %v954 = vshrl.u32 %v953, 7
      %v955 = vsub.s32 1, %v954
      %v956 = vrot.slane %v794, %v955
      %v957 = vadd.f32 %v933, %v956
      %v958 = vadd.f32 %v937, %v956
      %v959 = vpack.c.bf16 %v958, %v957
      %v961 = vunpack.c.l.b16 %v959
      %v962 = vunpack.c.h.b16 %v959
      %v963 = vpack.c.b16 %v961, %v961
      %v964 = vpack.c.b16 %v962, %v962
      %v967 = vpack.c.bf16 %v760, %v759
      %v968 = vld [vmem:[%s702] sm:$0xf]
      %v969 = vld [vmem:[%s702 + $0x4] sm:$0xf]
      %v970 = vld [vmem:[%s702 + $0x8] sm:$0xf]
      %v971 = vld [vmem:[%s702 + $0xc] sm:$0xf]
      %v972 = vld [vmem:[%s702 + $0x10] sm:$0xf]
      %v973 = vld [vmem:[%s702 + $0x14] sm:$0xf]
      %v974 = vld [vmem:[%s702 + $0x18] sm:$0xf]
      %v975 = vld [vmem:[%s702 + $0x1c] sm:$0xf]
      %v976 = vld [vmem:[%s702 + $0x20] sm:$0xf]
      %v977 = vld [vmem:[%s702 + $0x24] sm:$0xf]
      %v978 = vld [vmem:[%s702 + $0x28] sm:$0xf]
      %v979 = vld [vmem:[%s702 + $0x2c] sm:$0xf]
      %v980 = vld [vmem:[%s702 + $0x30] sm:$0xf]
      %v981 = vld [vmem:[%s702 + $0x34] sm:$0xf]
      %v982 = vld [vmem:[%s702 + $0x38] sm:$0xf]
      %v983 = vld [vmem:[%s702 + $0x3c] sm:$0xf]
      %v984 = vlaneseq
      %v985 = vshrl.u32 %v984, 7
      %v986 = vsub.s32 2, %v985
      %v987 = vrot.slane %v794, %v986
      %v1004 = vunpack.c.l.b16 %v968
      %v1005 = vunpack.c.l.b16 %v969
      %v1006 = vunpack.c.l.b16 %v970
      %v1007 = vunpack.c.l.b16 %v971
      %v1008 = vunpack.c.l.b16 %v972
      %v1009 = vunpack.c.l.b16 %v973
      %v1010 = vunpack.c.l.b16 %v974
      %v1011 = vunpack.c.l.b16 %v975
      %v1012 = vunpack.c.l.b16 %v976
      %v1013 = vunpack.c.l.b16 %v977
      %v1014 = vunpack.c.l.b16 %v978
      %v1015 = vunpack.c.l.b16 %v979
      %v1016 = vunpack.c.l.b16 %v980
      %v1017 = vunpack.c.l.b16 %v981
      %v1018 = vunpack.c.l.b16 %v982
      %v1019 = vunpack.c.l.b16 %v983
      %v1020 = vpack.c.b16 %v1005, %v1004
      %v1021 = vpack.c.b16 %v1007, %v1006
      %v1022 = vpack.c.b16 %v1009, %v1008
      %v1023 = vpack.c.b16 %v1011, %v1010
      %v1024 = vpack.c.b16 %v1013, %v1012
      %v1025 = vpack.c.b16 %v1015, %v1014
      %v1026 = vpack.c.b16 %v1017, %v1016
      %v1027 = vpack.c.b16 %v1019, %v1018
      %1036 = vmatprep.subr.bf16.mxu0 0
      %1037 = vmatpush1.bf16.msra.mxu0 %v1020
      %1038 = vmatprep.subr.bf16.mxu0 0
      %1039 = vmatpush1.bf16.msra.mxu0 %v1021
      %1040 = vmatprep.subr.bf16.mxu0 0
      %1041 = vmatpush1.bf16.msra.mxu0 %v1022
      %1042 = vmatprep.subr.bf16.mxu0 0
      %1043 = vmatpush1.bf16.msra.mxu0 %v1023
      %1044 = vmatprep.subr.bf16.mxu0 0
      %1045 = vmatpush1.bf16.msra.mxu0 %v1024
      %1046 = vmatprep.subr.bf16.mxu0 0
      %1047 = vmatpush1.bf16.msra.mxu0 %v1025
      %1048 = vmatprep.subr.bf16.mxu0 0
      %1049 = vmatpush1.bf16.msra.mxu0 %v1026
      %1050 = vmatprep.subr.bf16.mxu0 0
      %1051 = vmatpush1.bf16.msra.mxu0 %v1027
      %1052 = vmatprep.subr.bf16.mxu0 0
      %1053 = vmatpush1.bf16.msra.mxu0 0
      %1054 = vmatprep.subr.bf16.mxu0 0
      %1055 = vmatpush1.bf16.msra.mxu0 0
      %1056 = vmatprep.subr.bf16.mxu0 0
      %1057 = vmatpush1.bf16.msra.mxu0 0
      %1058 = vmatprep.subr.bf16.mxu0 0
      %1059 = vmatpush1.bf16.msra.mxu0 0
      %1060 = vmatprep.subr.bf16.mxu0 0
      %1061 = vmatpush1.bf16.msra.mxu0 0
      %1062 = vmatprep.subr.bf16.mxu0 0
      %1063 = vmatpush1.bf16.msra.mxu0 0
      %1064 = vmatprep.subr.bf16.mxu0 0
      %1065 = vmatpush1.bf16.msra.mxu0 0
      %1066 = vmatprep.subr.bf16.mxu0 0
      %1067 = vmatpush1.bf16.msra.mxu0 0
      %1068 = vmatprep.mubr.bf16.mxu0 0
      %1069 = vmatmul.mubr.bf16.gmra.mrb[0].mxu0 %v967
      %v1070 = vpop.f32.mrb[0].mxu0
      %v1071 = vadd.f32 %v987, %v1070
      %v1072 = vpop.f32.mrb[0].mxu0
      %v1073 = vpop.f32.mrb[0].mxu0
      %v1074 = vadd.f32 %v987, %v1073
      %v1075 = vpop.f32.mrb[0].mxu0
      %1076 = vdwg.mxu0
      %v1077 = vpack.c.bf16 %v1074, %v1071
      %v1079 = vunpack.c.l.b16 %v1077
      %v1080 = vunpack.c.h.b16 %v1077
      %v1081 = vpack.c.b16 %v1079, %v1079
      %v1082 = vpack.c.b16 %v1080, %v1080
      %1083 = vmatprep.subr.bf16.mxu0 0
      %1084 = vmatpush1.bf16.xpose.msra.mxu0 %v963
      %1085 = vmatprep.subr.bf16.mxu0 0
      %1086 = vmatpush1.bf16.xpose.msra.mxu0 0
      %1087 = vmatprep.subr.bf16.mxu0 0
      %1088 = vmatpush1.bf16.xpose.msra.mxu0 0
      %1089 = vmatprep.subr.bf16.mxu0 0
      %1090 = vmatpush1.bf16.xpose.msra.mxu0 0
      %1091 = vmatprep.subr.bf16.mxu0 0
      %1092 = vmatpush1.bf16.xpose.msra.mxu0 0
      %1093 = vmatprep.subr.bf16.mxu0 0
      %1094 = vmatpush1.bf16.xpose.msra.mxu0 0
      %1095 = vmatprep.subr.bf16.mxu0 0
      %1096 = vmatpush1.bf16.xpose.msra.mxu0 0
      %1097 = vmatprep.subr.bf16.mxu0 0
      %1098 = vmatpush1.bf16.xpose.msra.mxu0 0
      %1099 = vmatprep.subr.bf16.mxu0 0
      %1100 = vmatpush1.bf16.xpose.msra.mxu0 0
      %1101 = vmatprep.subr.bf16.mxu0 0
      %1102 = vmatpush1.bf16.xpose.msra.mxu0 0
      %1103 = vmatprep.subr.bf16.mxu0 0
      %1104 = vmatpush1.bf16.xpose.msra.mxu0 0
      %1105 = vmatprep.subr.bf16.mxu0 0
      %1106 = vmatpush1.bf16.xpose.msra.mxu0 0
      %1107 = vmatprep.subr.bf16.mxu0 0
      %1108 = vmatpush1.bf16.xpose.msra.mxu0 0
      %1109 = vmatprep.subr.bf16.mxu0 0
      %1110 = vmatpush1.bf16.xpose.msra.mxu0 0
      %1111 = vmatprep.subr.bf16.mxu0 0
      %1112 = vmatpush1.bf16.xpose.msra.mxu0 0
      %1113 = vmatprep.subr.bf16.mxu0 0
      %1114 = vmatpush1.bf16.xpose.msra.mxu0 0
      %1115 = vmatprep.mubr.bf16.mxu0 0
      %1116 = vmatmul.mubr.bf16.gmra.mrb[0].mxu0 %v949
      %v1117 = vpop.f32.mrb[0].mxu0
      %v1118 = vadd.f32 0.0, %v1117
      %v1119 = vpop.f32.mrb[0].mxu0
      %v1120 = vpop.f32.mrb[0].mxu0
      %v1121 = vpop.f32.mrb[0].mxu0
      %1122 = vdwg.mxu0
      %1123 = vmatprep.subr.bf16.mxu0 0
      %1124 = vmatpush1.bf16.xpose.msra.mxu0 %v964
      %1125 = vmatprep.subr.bf16.mxu0 0
      %1126 = vmatpush1.bf16.xpose.msra.mxu0 0
      %1127 = vmatprep.subr.bf16.mxu0 0
      %1128 = vmatpush1.bf16.xpose.msra.mxu0 0
      %1129 = vmatprep.subr.bf16.mxu0 0
      %1130 = vmatpush1.bf16.xpose.msra.mxu0 0
      %1131 = vmatprep.subr.bf16.mxu0 0
      %1132 = vmatpush1.bf16.xpose.msra.mxu0 0
      %1133 = vmatprep.subr.bf16.mxu0 0
      %1134 = vmatpush1.bf16.xpose.msra.mxu0 0
      %1135 = vmatprep.subr.bf16.mxu0 0
      %1136 = vmatpush1.bf16.xpose.msra.mxu0 0
      %1137 = vmatprep.subr.bf16.mxu0 0
      %1138 = vmatpush1.bf16.xpose.msra.mxu0 0
      %1139 = vmatprep.subr.bf16.mxu0 0
      %1140 = vmatpush1.bf16.xpose.msra.mxu0 0
      %1141 = vmatprep.subr.bf16.mxu0 0
      %1142 = vmatpush1.bf16.xpose.msra.mxu0 0
      %1143 = vmatprep.subr.bf16.mxu0 0
      %1144 = vmatpush1.bf16.xpose.msra.mxu0 0
      %1145 = vmatprep.subr.bf16.mxu0 0
      %1146 = vmatpush1.bf16.xpose.msra.mxu0 0
      %1147 = vmatprep.subr.bf16.mxu0 0
      %1148 = vmatpush1.bf16.xpose.msra.mxu0 0
      %1149 = vmatprep.subr.bf16.mxu0 0
      %1150 = vmatpush1.bf16.xpose.msra.mxu0 0
      %1151 = vmatprep.subr.bf16.mxu0 0
      %1152 = vmatpush1.bf16.xpose.msra.mxu0 0
      %1153 = vmatprep.subr.bf16.mxu0 0
      %1154 = vmatpush1.bf16.xpose.msra.mxu0 0
      %1155 = vmatprep.mubr.bf16.mxu0 0
      %1156 = vmatmul.mubr.bf16.gmra.mrb[0].mxu0 %v950
      %v1157 = vpop.f32.mrb[0].mxu0
      %v1158 = vadd.f32 0.0, %v1157
      %v1159 = vpop.f32.mrb[0].mxu0
      %v1160 = vpop.f32.mrb[0].mxu0
      %v1161 = vpop.f32.mrb[0].mxu0
      %1162 = vdwg.mxu0
      %vm1163 = vcmask 64512
      %v1164 = vsel %vm1163, %v1118, -inf
      %1165 = vmax.xlane.f32.xlu0 %v1164
      %v1166 = vpop.xlane.xlu0 %1165
      %v1167 = vsel %vm1163, %v1158, -inf
      %1168 = vmax.xlane.f32.xlu0 %v1167
      %v1169 = vpop.xlane.xlu0 %1168
      %v1170 = vsub.f32 %v1118, %v1166
      %v1171 = vsub.f32 %v1158, %v1169
      %v1172 = vmul.f32 %v1170, 1.442695
      %v1173 = vpow.pop %v1172
      %v1174 = vmul.f32 %v1171, 1.442695
      %v1175 = vpow.pop %v1174
      %v1176 = vsel %vm1163, %v1173, 0.0
      %1177 = vadd.xlane.f32.xlu0 %v1176
      %v1178 = vpop.xlane.xlu0 %1177
      %v1179 = vsel %vm1163, %v1175, 0.0
      %1180 = vadd.xlane.f32.xlu0 %v1179
      %v1181 = vpop.xlane.xlu0 %1180
      %v1182 = vpack.c.bf16 %v1173, %v1173
      %v1183 = vpack.c.bf16 %v1175, %v1175
      %v1185 = vsel %vm1163, %v1182, 0
      %vm1187 = vcmask 1043456
      %v1189 = vsel %vm1187, %v1081, 0
      %1191 = vmatprep.subr.bf16.mxu0 0
      %1192 = vmatpush1.bf16.msra.mxu0 %v1189
      %1193 = vmatprep.subr.bf16.mxu0 0
      %1194 = vmatpush1.bf16.msra.mxu0 0
      %1195 = vmatprep.subr.bf16.mxu0 0
      %1196 = vmatpush1.bf16.msra.mxu0 0
      %1197 = vmatprep.subr.bf16.mxu0 0
      %1198 = vmatpush1.bf16.msra.mxu0 0
      %1199 = vmatprep.subr.bf16.mxu0 0
      %1200 = vmatpush1.bf16.msra.mxu0 0
      %1201 = vmatprep.subr.bf16.mxu0 0
      %1202 = vmatpush1.bf16.msra.mxu0 0
      %1203 = vmatprep.subr.bf16.mxu0 0
      %1204 = vmatpush1.bf16.msra.mxu0 0
      %1205 = vmatprep.subr.bf16.mxu0 0
      %1206 = vmatpush1.bf16.msra.mxu0 0
      %1207 = vmatprep.subr.bf16.mxu0 0
      %1208 = vmatpush1.bf16.msra.mxu0 0
      %1209 = vmatprep.subr.bf16.mxu0 0
      %1210 = vmatpush1.bf16.msra.mxu0 0
      %1211 = vmatprep.subr.bf16.mxu0 0
      %1212 = vmatpush1.bf16.msra.mxu0 0
      %1213 = vmatprep.subr.bf16.mxu0 0
      %1214 = vmatpush1.bf16.msra.mxu0 0
      %1215 = vmatprep.subr.bf16.mxu0 0
      %1216 = vmatpush1.bf16.msra.mxu0 0
      %1217 = vmatprep.subr.bf16.mxu0 0
      %1218 = vmatpush1.bf16.msra.mxu0 0
      %1219 = vmatprep.subr.bf16.mxu0 0
      %1220 = vmatpush1.bf16.msra.mxu0 0
      %1221 = vmatprep.subr.bf16.mxu0 0
      %1222 = vmatpush1.bf16.msra.mxu0 0
      %1223 = vmatprep.mubr.bf16.mxu0 0
      %1224 = vmatmul.mubr.bf16.gmra.mrb[0].mxu0 %v1185
      %v1225 = vpop.f32.mrb[0].mxu0
      %v1226 = vadd.f32 0.0, %v1225
      %v1227 = vpop.f32.mrb[0].mxu0
      %v1228 = vpop.f32.mrb[0].mxu0
      %v1229 = vpop.f32.mrb[0].mxu0
      %1230 = vdwg.mxu0
      %v1232 = vsel %vm1163, %v1183, 0
      %v1235 = vsel %vm1187, %v1082, 0
      %1237 = vmatprep.subr.bf16.mxu0 0
      %1238 = vmatpush1.bf16.msra.mxu0 %v1235
      %1239 = vmatprep.subr.bf16.mxu0 0
      %1240 = vmatpush1.bf16.msra.mxu0 0
      %1241 = vmatprep.subr.bf16.mxu0 0
      %1242 = vmatpush1.bf16.msra.mxu0 0
      %1243 = vmatprep.subr.bf16.mxu0 0
      %1244 = vmatpush1.bf16.msra.mxu0 0
      %1245 = vmatprep.subr.bf16.mxu0 0
      %1246 = vmatpush1.bf16.msra.mxu0 0
      %1247 = vmatprep.subr.bf16.mxu0 0
      %1248 = vmatpush1.bf16.msra.mxu0 0
      %1249 = vmatprep.subr.bf16.mxu0 0
      %1250 = vmatpush1.bf16.msra.mxu0 0
      %1251 = vmatprep.subr.bf16.mxu0 0
      %1252 = vmatpush1.bf16.msra.mxu0 0
      %1253 = vmatprep.subr.bf16.mxu0 0
      %1254 = vmatpush1.bf16.msra.mxu0 0
      %1255 = vmatprep.subr.bf16.mxu0 0
      %1256 = vmatpush1.bf16.msra.mxu0 0
      %1257 = vmatprep.subr.bf16.mxu0 0
      %1258 = vmatpush1.bf16.msra.mxu0 0
      %1259 = vmatprep.subr.bf16.mxu0 0
      %1260 = vmatpush1.bf16.msra.mxu0 0
      %1261 = vmatprep.subr.bf16.mxu0 0
      %1262 = vmatpush1.bf16.msra.mxu0 0
      %1263 = vmatprep.subr.bf16.mxu0 0
      %1264 = vmatpush1.bf16.msra.mxu0 0
      %1265 = vmatprep.subr.bf16.mxu0 0
      %1266 = vmatpush1.bf16.msra.mxu0 0
      %1267 = vmatprep.subr.bf16.mxu0 0
      %1268 = vmatpush1.bf16.msra.mxu0 0
      %1269 = vmatprep.mubr.bf16.mxu0 0
      %1270 = vmatmul.mubr.bf16.gmra.mrb[0].mxu0 %v1232
      %v1271 = vpop.f32.mrb[0].mxu0
      %v1272 = vadd.f32 0.0, %v1271
      %v1273 = vpop.f32.mrb[0].mxu0
      %v1274 = vpop.f32.mrb[0].mxu0
      %v1275 = vpop.f32.mrb[0].mxu0
      %1276 = vdwg.mxu0
      %v1277 = vrcp.pop %v1178
      %v1278 = vrcp.pop %v1181
      %v1279 = vmul.f32 %v1226, %v1277
      %v1280 = vmul.f32 %v1272, %v1278
      %v1281 = vpack.c.bf16 %v1280, %v1279
      %v1282 = vld [vmem:[%s707] sm:$0xf]
      %v1283 = vld [vmem:[%s707 + $0x4] sm:$0xf]
      %v1284 = vld [vmem:[%s707 + $0x8] sm:$0xf]
      %v1285 = vld [vmem:[%s707 + $0xc] sm:$0xf]
      %v1286 = vld [vmem:[%s707 + $0x10] sm:$0xf]
      %v1287 = vld [vmem:[%s707 + $0x14] sm:$0xf]
      %v1288 = vld [vmem:[%s707 + $0x18] sm:$0xf]
      %v1289 = vld [vmem:[%s707 + $0x1c] sm:$0xf]
      %v1290 = vld [vmem:[%s707 + $0x20] sm:$0xf]
      %v1291 = vld [vmem:[%s707 + $0x24] sm:$0xf]
      %v1292 = vld [vmem:[%s707 + $0x28] sm:$0xf]
      %v1293 = vld [vmem:[%s707 + $0x2c] sm:$0xf]
      %v1294 = vld [vmem:[%s707 + $0x30] sm:$0xf]
      %v1295 = vld [vmem:[%s707 + $0x34] sm:$0xf]
      %v1296 = vld [vmem:[%s707 + $0x38] sm:$0xf]
      %v1297 = vld [vmem:[%s707 + $0x3c] sm:$0xf]
      %v1298 = vlaneseq
      %v1299 = vshrl.u32 %v1298, 7
      %v1300 = vsub.s32 3, %v1299
      %v1301 = vrot.slane %v794, %v1300
      %v1318 = vunpack.c.l.b16 %v1282
      %v1319 = vunpack.c.l.b16 %v1283
      %v1320 = vunpack.c.l.b16 %v1284
      %v1321 = vunpack.c.l.b16 %v1285
      %v1322 = vunpack.c.l.b16 %v1286
      %v1323 = vunpack.c.l.b16 %v1287
      %v1324 = vunpack.c.l.b16 %v1288
      %v1325 = vunpack.c.l.b16 %v1289
      %v1326 = vunpack.c.l.b16 %v1290
      %v1327 = vunpack.c.l.b16 %v1291
      %v1328 = vunpack.c.l.b16 %v1292
      %v1329 = vunpack.c.l.b16 %v1293
      %v1330 = vunpack.c.l.b16 %v1294
      %v1331 = vunpack.c.l.b16 %v1295
      %v1332 = vunpack.c.l.b16 %v1296
      %v1333 = vunpack.c.l.b16 %v1297
      %v1334 = vpack.c.b16 %v1319, %v1318
      %v1335 = vpack.c.b16 %v1321, %v1320
      %v1336 = vpack.c.b16 %v1323, %v1322
      %v1337 = vpack.c.b16 %v1325, %v1324
      %v1338 = vpack.c.b16 %v1327, %v1326
      %v1339 = vpack.c.b16 %v1329, %v1328
      %v1340 = vpack.c.b16 %v1331, %v1330
      %v1341 = vpack.c.b16 %v1333, %v1332
      %1350 = vmatprep.subr.bf16.mxu0 0
      %1351 = vmatpush1.bf16.msra.mxu0 %v1334
      %1352 = vmatprep.subr.bf16.mxu0 0
      %1353 = vmatpush1.bf16.msra.mxu0 %v1335
      %1354 = vmatprep.subr.bf16.mxu0 0
      %1355 = vmatpush1.bf16.msra.mxu0 %v1336
      %1356 = vmatprep.subr.bf16.mxu0 0
      %1357 = vmatpush1.bf16.msra.mxu0 %v1337
      %1358 = vmatprep.subr.bf16.mxu0 0
      %1359 = vmatpush1.bf16.msra.mxu0 %v1338
      %1360 = vmatprep.subr.bf16.mxu0 0
      %1361 = vmatpush1.bf16.msra.mxu0 %v1339
      %1362 = vmatprep.subr.bf16.mxu0 0
      %1363 = vmatpush1.bf16.msra.mxu0 %v1340
      %1364 = vmatprep.subr.bf16.mxu0 0
      %1365 = vmatpush1.bf16.msra.mxu0 %v1341
      %1366 = vmatprep.subr.bf16.mxu0 0
      %1367 = vmatpush1.bf16.msra.mxu0 0
      %1368 = vmatprep.subr.bf16.mxu0 0
      %1369 = vmatpush1.bf16.msra.mxu0 0
      %1370 = vmatprep.subr.bf16.mxu0 0
      %1371 = vmatpush1.bf16.msra.mxu0 0
      %1372 = vmatprep.subr.bf16.mxu0 0
      %1373 = vmatpush1.bf16.msra.mxu0 0
      %1374 = vmatprep.subr.bf16.mxu0 0
      %1375 = vmatpush1.bf16.msra.mxu0 0
      %1376 = vmatprep.subr.bf16.mxu0 0
      %1377 = vmatpush1.bf16.msra.mxu0 0
      %1378 = vmatprep.subr.bf16.mxu0 0
      %1379 = vmatpush1.bf16.msra.mxu0 0
      %1380 = vmatprep.subr.bf16.mxu0 0
      %1381 = vmatpush1.bf16.msra.mxu0 0
      %1382 = vmatprep.mubr.bf16.mxu0 0
      %1383 = vmatmul.mubr.bf16.gmra.mrb[0].mxu0 %v1281
      %v1384 = vpop.f32.mrb[0].mxu0
      %v1385 = vadd.f32 %v1301, %v1384
      %v1386 = vpop.f32.mrb[0].mxu0
      %v1387 = vpop.f32.mrb[0].mxu0
      %v1388 = vadd.f32 %v1301, %v1387
      %v1389 = vpop.f32.mrb[0].mxu0
      %1390 = vdwg.mxu0
      %v1391 = vadd.f32 %v759, %v1385
      %v1392 = vadd.f32 %v760, %v1388
      %1393 = vadd.xlane.f32.xlu0 %v1391
      %v1394 = vpop.xlane.xlu0 %1393
      %1395 = vadd.xlane.f32.xlu0 %v1392
      %v1396 = vpop.xlane.xlu0 %1395
      %v1397 = vmul.f32 %v1391, %v1391
      %v1398 = vmul.f32 %v1392, %v1392
      %1399 = vadd.xlane.f32.xlu0 %v1397
      %v1400 = vpop.xlane.xlu0 %1399
      %1401 = vadd.xlane.f32.xlu0 %v1398
      %v1402 = vpop.xlane.xlu0 %1401
      %v1403 = vmul.f32 %v1394, 0.03125
      %v1404 = vmul.f32 %v1396, 0.03125
      %v1405 = vmul.f32 %v1400, 0.03125
      %v1406 = vmul.f32 %v1402, 0.03125
      %v1407 = vmul.f32 %v1403, %v1403
      %v1408 = vmul.f32 %v1404, %v1404
      %v1409 = vsub.f32 %v1405, %v1407
      %v1410 = vsub.f32 %v1406, %v1408
      %v1411 = vmax.f32 %v1409, 0.0
      %v1412 = vmax.f32 %v1410, 0.0
      %v1413 = vsub.f32 %v1391, %v1403
      %v1414 = vsub.f32 %v1392, %v1404
      %v1415 = vadd.f32 %v1411, 1e-05
      %v1416 = vadd.f32 %v1412, 1e-05
      %v1417 = vrsqrt.pop %v1415
      %v1418 = vrsqrt.pop %v1416
      %v1419 = vmul.f32 %v1413, %v1417
      %v1420 = vmul.f32 %v1414, %v1418
      %v1421 = vlaneseq
      %v1422 = vshrl.u32 %v1421, 7
      %v1423 = vsub.s32 4, %v1422
      %v1424 = vrot.slane %v794, %v1423
      %v1425 = vmul.f32 %v1419, %v1424
      %v1426 = vmul.f32 %v1420, %v1424
      %v1427 = vlaneseq
      %v1428 = vshrl.u32 %v1427, 7
      %v1429 = vsub.s32 5, %v1428
      %v1430 = vrot.slane %v794, %v1429
      %v1431 = vadd.f32 %v1425, %v1430
      %v1432 = vadd.f32 %v1426, %v1430
      %v1433 = vadd.f32 %v1431, %v793
      %v1434 = vadd.f32 %v1432, %v793
      %v1435 = vpack.c.bf16 %v1434, %v1433
      %v1436 = vadd.f32 %v761, %v777
      %v1437 = vadd.f32 %v762, %v778
      %v1438 = vadd.f32 %v763, %v779
      %v1439 = vadd.f32 %v764, %v780
      %v1440 = vadd.f32 %v765, %v781
      %v1441 = vadd.f32 %v766, %v782
      %v1442 = vadd.f32 %v767, %v783
      %v1443 = vadd.f32 %v768, %v784
      %v1444 = vadd.f32 %v769, %v785
      %v1445 = vadd.f32 %v770, %v786
      %v1446 = vadd.f32 %v771, %v787
      %v1447 = vadd.f32 %v772, %v788
      %v1448 = vadd.f32 %v773, %v789
      %v1449 = vadd.f32 %v774, %v790
      %v1450 = vadd.f32 %v775, %v791
      %v1451 = vadd.f32 %v776, %v792
      %v1452 = vpack.c.bf16 %v1437, %v1436
      %v1453 = vpack.c.bf16 %v1439, %v1438
      %v1454 = vpack.c.bf16 %v1441, %v1440
      %v1455 = vpack.c.bf16 %v1443, %v1442
      %v1456 = vpack.c.bf16 %v1445, %v1444
      %v1457 = vpack.c.bf16 %v1447, %v1446
      %v1458 = vpack.c.bf16 %v1449, %v1448
      %v1459 = vpack.c.bf16 %v1451, %v1450
      %v1460 = vpack.c.bf16 %v762, %v761
      %v1461 = vpack.c.bf16 %v764, %v763
      %v1462 = vpack.c.bf16 %v766, %v765
      %v1463 = vpack.c.bf16 %v768, %v767
      %v1464 = vpack.c.bf16 %v770, %v769
      %v1465 = vpack.c.bf16 %v772, %v771
      %v1466 = vpack.c.bf16 %v774, %v773
      %v1467 = vpack.c.bf16 %v776, %v775
      %v1468 = vld [vmem:[%s712] sm:$0xf]
      %v1469 = vld [vmem:[%s712 + $0x4] sm:$0xf]
      %v1470 = vld [vmem:[%s712 + $0x8] sm:$0xf]
      %v1471 = vld [vmem:[%s712 + $0xc] sm:$0xf]
      %v1472 = vld [vmem:[%s712 + $0x10] sm:$0xf]
      %v1473 = vld [vmem:[%s712 + $0x14] sm:$0xf]
      %v1474 = vld [vmem:[%s712 + $0x18] sm:$0xf]
      %v1475 = vld [vmem:[%s712 + $0x1c] sm:$0xf]
      %v1476 = vld [vmem:[%s712 + $0x20] sm:$0xf]
      %v1477 = vld [vmem:[%s712 + $0x24] sm:$0xf]
      %v1478 = vld [vmem:[%s712 + $0x28] sm:$0xf]
      %v1479 = vld [vmem:[%s712 + $0x2c] sm:$0xf]
      %v1480 = vld [vmem:[%s712 + $0x30] sm:$0xf]
      %v1481 = vld [vmem:[%s712 + $0x34] sm:$0xf]
      %v1482 = vld [vmem:[%s712 + $0x38] sm:$0xf]
      %v1483 = vld [vmem:[%s712 + $0x3c] sm:$0xf]
      %v1484 = vlaneseq
      %v1485 = vshrl.u32 %v1484, 7
      %v1486 = vsub.s32 6, %v1485
      %v1487 = vrot.slane %v794, %v1486
      %v1504 = vunpack.c.l.b16 %v1468
      %v1505 = vunpack.c.l.b16 %v1469
      %v1506 = vunpack.c.l.b16 %v1470
      %v1507 = vunpack.c.l.b16 %v1471
      %v1508 = vunpack.c.l.b16 %v1472
      %v1509 = vunpack.c.l.b16 %v1473
      %v1510 = vunpack.c.l.b16 %v1474
      %v1511 = vunpack.c.l.b16 %v1475
      %v1512 = vunpack.c.l.b16 %v1476
      %v1513 = vunpack.c.l.b16 %v1477
      %v1514 = vunpack.c.l.b16 %v1478
      %v1515 = vunpack.c.l.b16 %v1479
      %v1516 = vunpack.c.l.b16 %v1480
      %v1517 = vunpack.c.l.b16 %v1481
      %v1518 = vunpack.c.l.b16 %v1482
      %v1519 = vunpack.c.l.b16 %v1483
      %v1520 = vpack.c.b16 %v1505, %v1504
      %v1521 = vpack.c.b16 %v1507, %v1506
      %v1522 = vpack.c.b16 %v1509, %v1508
      %v1523 = vpack.c.b16 %v1511, %v1510
      %v1524 = vpack.c.b16 %v1513, %v1512
      %v1525 = vpack.c.b16 %v1515, %v1514
      %v1526 = vpack.c.b16 %v1517, %v1516
      %v1527 = vpack.c.b16 %v1519, %v1518
      %1536 = vmatprep.subr.bf16.mxu0 0
      %1537 = vmatpush1.bf16.msra.mxu0 %v1520
      %1538 = vmatprep.subr.bf16.mxu0 0
      %1539 = vmatpush1.bf16.msra.mxu0 %v1521
      %1540 = vmatprep.subr.bf16.mxu0 0
      %1541 = vmatpush1.bf16.msra.mxu0 %v1522
      %1542 = vmatprep.subr.bf16.mxu0 0
      %1543 = vmatpush1.bf16.msra.mxu0 %v1523
      %1544 = vmatprep.subr.bf16.mxu0 0
      %1545 = vmatpush1.bf16.msra.mxu0 %v1524
      %1546 = vmatprep.subr.bf16.mxu0 0
      %1547 = vmatpush1.bf16.msra.mxu0 %v1525
      %1548 = vmatprep.subr.bf16.mxu0 0
      %1549 = vmatpush1.bf16.msra.mxu0 %v1526
      %1550 = vmatprep.subr.bf16.mxu0 0
      %1551 = vmatpush1.bf16.msra.mxu0 %v1527
      %1552 = vmatprep.subr.bf16.mxu0 0
      %1553 = vmatpush1.bf16.msra.mxu0 0
      %1554 = vmatprep.subr.bf16.mxu0 0
      %1555 = vmatpush1.bf16.msra.mxu0 0
      %1556 = vmatprep.subr.bf16.mxu0 0
      %1557 = vmatpush1.bf16.msra.mxu0 0
      %1558 = vmatprep.subr.bf16.mxu0 0
      %1559 = vmatpush1.bf16.msra.mxu0 0
      %1560 = vmatprep.subr.bf16.mxu0 0
      %1561 = vmatpush1.bf16.msra.mxu0 0
      %1562 = vmatprep.subr.bf16.mxu0 0
      %1563 = vmatpush1.bf16.msra.mxu0 0
      %1564 = vmatprep.subr.bf16.mxu0 0
      %1565 = vmatpush1.bf16.msra.mxu0 0
      %1566 = vmatprep.subr.bf16.mxu0 0
      %1567 = vmatpush1.bf16.msra.mxu0 0
      %1568 = vmatprep.mubr.bf16.mxu0 0
      %1569 = vmatmul.mubr.bf16.gmra.mrb[0].mxu0 %v1435
      %v1570 = vpop.f32.mrb[0].mxu0
      %v1571 = vadd.f32 %v1487, %v1570
      %v1572 = vpop.f32.mrb[0].mxu0
      %v1573 = vpop.f32.mrb[0].mxu0
      %v1574 = vadd.f32 %v1487, %v1573
      %v1575 = vpop.f32.mrb[0].mxu0
      %1576 = vdwg.mxu0
      %v1577 = vpack.c.bf16 %v1574, %v1571
      %v1579 = vunpack.c.l.b16 %v1577
      %v1580 = vunpack.c.h.b16 %v1577
      %v1581 = vpack.c.b16 %v1579, %v1579
      %v1582 = vpack.c.b16 %v1580, %v1580
      %v1585 = vld [vmem:[%s717] sm:$0xf]
      %v1586 = vld [vmem:[%s717 + $0x4] sm:$0xf]
      %v1587 = vld [vmem:[%s717 + $0x8] sm:$0xf]
      %v1588 = vld [vmem:[%s717 + $0xc] sm:$0xf]
      %v1589 = vld [vmem:[%s717 + $0x10] sm:$0xf]
      %v1590 = vld [vmem:[%s717 + $0x14] sm:$0xf]
      %v1591 = vld [vmem:[%s717 + $0x18] sm:$0xf]
      %v1592 = vld [vmem:[%s717 + $0x1c] sm:$0xf]
      %v1593 = vld [vmem:[%s717 + $0x20] sm:$0xf]
      %v1594 = vld [vmem:[%s717 + $0x24] sm:$0xf]
      %v1595 = vld [vmem:[%s717 + $0x28] sm:$0xf]
      %v1596 = vld [vmem:[%s717 + $0x2c] sm:$0xf]
      %v1597 = vld [vmem:[%s717 + $0x30] sm:$0xf]
      %v1598 = vld [vmem:[%s717 + $0x34] sm:$0xf]
      %v1599 = vld [vmem:[%s717 + $0x38] sm:$0xf]
      %v1600 = vld [vmem:[%s717 + $0x3c] sm:$0xf]
      %v1601 = vlaneseq
      %v1602 = vshrl.u32 %v1601, 7
      %v1603 = vsub.s32 7, %v1602
      %v1604 = vrot.slane %v794, %v1603
      %v1621 = vunpack.c.l.b16 %v1585
      %v1622 = vunpack.c.l.b16 %v1586
      %v1623 = vunpack.c.l.b16 %v1587
      %v1624 = vunpack.c.l.b16 %v1588
      %v1625 = vunpack.c.l.b16 %v1589
      %v1626 = vunpack.c.l.b16 %v1590
      %v1627 = vunpack.c.l.b16 %v1591
      %v1628 = vunpack.c.l.b16 %v1592
      %v1629 = vunpack.c.l.b16 %v1593
      %v1630 = vunpack.c.l.b16 %v1594
      %v1631 = vunpack.c.l.b16 %v1595
      %v1632 = vunpack.c.l.b16 %v1596
      %v1633 = vunpack.c.l.b16 %v1597
      %v1634 = vunpack.c.l.b16 %v1598
      %v1635 = vunpack.c.l.b16 %v1599
      %v1636 = vunpack.c.l.b16 %v1600
      %v1637 = vpack.c.b16 %v1622, %v1621
      %v1638 = vpack.c.b16 %v1624, %v1623
      %v1639 = vpack.c.b16 %v1626, %v1625
      %v1640 = vpack.c.b16 %v1628, %v1627
      %v1641 = vpack.c.b16 %v1630, %v1629
      %v1642 = vpack.c.b16 %v1632, %v1631
      %v1643 = vpack.c.b16 %v1634, %v1633
      %v1644 = vpack.c.b16 %v1636, %v1635
      %1653 = vmatprep.subr.bf16.mxu0 0
      %1654 = vmatpush1.bf16.msra.mxu0 %v1637
      %1655 = vmatprep.subr.bf16.mxu0 0
      %1656 = vmatpush1.bf16.msra.mxu0 %v1638
      %1657 = vmatprep.subr.bf16.mxu0 0
      %1658 = vmatpush1.bf16.msra.mxu0 %v1639
      %1659 = vmatprep.subr.bf16.mxu0 0
      %1660 = vmatpush1.bf16.msra.mxu0 %v1640
      %1661 = vmatprep.subr.bf16.mxu0 0
      %1662 = vmatpush1.bf16.msra.mxu0 %v1641
      %1663 = vmatprep.subr.bf16.mxu0 0
      %1664 = vmatpush1.bf16.msra.mxu0 %v1642
      %1665 = vmatprep.subr.bf16.mxu0 0
      %1666 = vmatpush1.bf16.msra.mxu0 %v1643
      %1667 = vmatprep.subr.bf16.mxu0 0
      %1668 = vmatpush1.bf16.msra.mxu0 %v1644
      %1669 = vmatprep.subr.bf16.mxu0 0
      %1670 = vmatpush1.bf16.msra.mxu0 0
      %1671 = vmatprep.subr.bf16.mxu0 0
      %1672 = vmatpush1.bf16.msra.mxu0 0
      %1673 = vmatprep.subr.bf16.mxu0 0
      %1674 = vmatpush1.bf16.msra.mxu0 0
      %1675 = vmatprep.subr.bf16.mxu0 0
      %1676 = vmatpush1.bf16.msra.mxu0 0
      %1677 = vmatprep.subr.bf16.mxu0 0
      %1678 = vmatpush1.bf16.msra.mxu0 0
      %1679 = vmatprep.subr.bf16.mxu0 0
      %1680 = vmatpush1.bf16.msra.mxu0 0
      %1681 = vmatprep.subr.bf16.mxu0 0
      %1682 = vmatpush1.bf16.msra.mxu0 0
      %1683 = vmatprep.subr.bf16.mxu0 0
      %1684 = vmatpush1.bf16.msra.mxu0 0
      %1685 = vmatprep.mubr.bf16.mxu0 0
      %1686 = vmatmul.mubr.bf16.gmra.mrb[0].mxu0 %v1452
      %v1687 = vpop.f32.mrb[0].mxu0
      %v1688 = vadd.f32 %v1604, %v1687
      %v1689 = vpop.f32.mrb[0].mxu0
      %v1690 = vpop.f32.mrb[0].mxu0
      %v1691 = vadd.f32 %v1604, %v1690
      %v1692 = vpop.f32.mrb[0].mxu0
      %1693 = vmatprep.mubr.bf16.mxu0 0
      %1694 = vmatmul.mubr.bf16.gmra.mrb[0].mxu0 %v1453
      %v1695 = vpop.f32.mrb[0].mxu0
      %v1696 = vadd.f32 %v1604, %v1695
      %v1697 = vpop.f32.mrb[0].mxu0
      %v1698 = vpop.f32.mrb[0].mxu0
      %v1699 = vadd.f32 %v1604, %v1698
      %v1700 = vpop.f32.mrb[0].mxu0
      %1701 = vmatprep.mubr.bf16.mxu0 0
      %1702 = vmatmul.mubr.bf16.gmra.mrb[0].mxu0 %v1454
      %v1703 = vpop.f32.mrb[0].mxu0
      %v1704 = vadd.f32 %v1604, %v1703
      %v1705 = vpop.f32.mrb[0].mxu0
      %v1706 = vpop.f32.mrb[0].mxu0
      %v1707 = vadd.f32 %v1604, %v1706
      %v1708 = vpop.f32.mrb[0].mxu0
      %1709 = vmatprep.mubr.bf16.mxu0 0
      %1710 = vmatmul.mubr.bf16.gmra.mrb[0].mxu0 %v1455
      %v1711 = vpop.f32.mrb[0].mxu0
      %v1712 = vadd.f32 %v1604, %v1711
      %v1713 = vpop.f32.mrb[0].mxu0
      %v1714 = vpop.f32.mrb[0].mxu0
      %v1715 = vadd.f32 %v1604, %v1714
      %v1716 = vpop.f32.mrb[0].mxu0
      %1717 = vmatprep.mubr.bf16.mxu0 0
      %1718 = vmatmul.mubr.bf16.gmra.mrb[0].mxu0 %v1456
      %v1719 = vpop.f32.mrb[0].mxu0
      %v1720 = vadd.f32 %v1604, %v1719
      %v1721 = vpop.f32.mrb[0].mxu0
      %v1722 = vpop.f32.mrb[0].mxu0
      %v1723 = vadd.f32 %v1604, %v1722
      %v1724 = vpop.f32.mrb[0].mxu0
      %1725 = vmatprep.mubr.bf16.mxu0 0
      %1726 = vmatmul.mubr.bf16.gmra.mrb[0].mxu0 %v1457
      %v1727 = vpop.f32.mrb[0].mxu0
      %v1728 = vadd.f32 %v1604, %v1727
      %v1729 = vpop.f32.mrb[0].mxu0
      %v1730 = vpop.f32.mrb[0].mxu0
      %v1731 = vadd.f32 %v1604, %v1730
      %v1732 = vpop.f32.mrb[0].mxu0
      %1733 = vmatprep.mubr.bf16.mxu0 0
      %1734 = vmatmul.mubr.bf16.gmra.mrb[0].mxu0 %v1458
      %v1735 = vpop.f32.mrb[0].mxu0
      %v1736 = vadd.f32 %v1604, %v1735
      %v1737 = vpop.f32.mrb[0].mxu0
      %v1738 = vpop.f32.mrb[0].mxu0
      %v1739 = vadd.f32 %v1604, %v1738
      %v1740 = vpop.f32.mrb[0].mxu0
      %1741 = vmatprep.mubr.bf16.mxu0 0
      %1742 = vmatmul.mubr.bf16.gmra.mrb[0].mxu0 %v1459
      %v1743 = vpop.f32.mrb[0].mxu0
      %v1744 = vadd.f32 %v1604, %v1743
      %v1745 = vpop.f32.mrb[0].mxu0
      %v1746 = vpop.f32.mrb[0].mxu0
      %v1747 = vadd.f32 %v1604, %v1746
      %v1748 = vpop.f32.mrb[0].mxu0
      %1749 = vdwg.mxu0
      %v1750 = vpack.c.bf16 %v1691, %v1688
      %v1751 = vpack.c.bf16 %v1699, %v1696
      %v1752 = vpack.c.bf16 %v1707, %v1704
      %v1753 = vpack.c.bf16 %v1715, %v1712
      %v1754 = vpack.c.bf16 %v1723, %v1720
      %v1755 = vpack.c.bf16 %v1731, %v1728
      %v1756 = vpack.c.bf16 %v1739, %v1736
      %v1757 = vpack.c.bf16 %v1747, %v1744
      %v1758 = vld [vmem:[%s722] sm:$0xf]
      %v1759 = vld [vmem:[%s722 + $0x4] sm:$0xf]
      %v1760 = vld [vmem:[%s722 + $0x8] sm:$0xf]
      %v1761 = vld [vmem:[%s722 + $0xc] sm:$0xf]
      %v1762 = vld [vmem:[%s722 + $0x10] sm:$0xf]
      %v1763 = vld [vmem:[%s722 + $0x14] sm:$0xf]
      %v1764 = vld [vmem:[%s722 + $0x18] sm:$0xf]
      %v1765 = vld [vmem:[%s722 + $0x1c] sm:$0xf]
      %v1766 = vld [vmem:[%s722 + $0x20] sm:$0xf]
      %v1767 = vld [vmem:[%s722 + $0x24] sm:$0xf]
      %v1768 = vld [vmem:[%s722 + $0x28] sm:$0xf]
      %v1769 = vld [vmem:[%s722 + $0x2c] sm:$0xf]
      %v1770 = vld [vmem:[%s722 + $0x30] sm:$0xf]
      %v1771 = vld [vmem:[%s722 + $0x34] sm:$0xf]
      %v1772 = vld [vmem:[%s722 + $0x38] sm:$0xf]
      %v1773 = vld [vmem:[%s722 + $0x3c] sm:$0xf]
      %v1774 = vlaneseq
      %v1775 = vshrl.u32 %v1774, 7
      %v1776 = vsub.s32 0, %v1775
      %v1777 = vrot.slane %v795, %v1776
      %v1794 = vunpack.c.l.b16 %v1758
      %v1795 = vunpack.c.l.b16 %v1759
      %v1796 = vunpack.c.l.b16 %v1760
      %v1797 = vunpack.c.l.b16 %v1761
      %v1798 = vunpack.c.l.b16 %v1762
      %v1799 = vunpack.c.l.b16 %v1763
      %v1800 = vunpack.c.l.b16 %v1764
      %v1801 = vunpack.c.l.b16 %v1765
      %v1802 = vunpack.c.l.b16 %v1766
      %v1803 = vunpack.c.l.b16 %v1767
      %v1804 = vunpack.c.l.b16 %v1768
      %v1805 = vunpack.c.l.b16 %v1769
      %v1806 = vunpack.c.l.b16 %v1770
      %v1807 = vunpack.c.l.b16 %v1771
      %v1808 = vunpack.c.l.b16 %v1772
      %v1809 = vunpack.c.l.b16 %v1773
      %v1810 = vpack.c.b16 %v1795, %v1794
      %v1811 = vpack.c.b16 %v1797, %v1796
      %v1812 = vpack.c.b16 %v1799, %v1798
      %v1813 = vpack.c.b16 %v1801, %v1800
      %v1814 = vpack.c.b16 %v1803, %v1802
      %v1815 = vpack.c.b16 %v1805, %v1804
      %v1816 = vpack.c.b16 %v1807, %v1806
      %v1817 = vpack.c.b16 %v1809, %v1808
      %1826 = vmatprep.subr.bf16.mxu0 0
      %1827 = vmatpush1.bf16.msra.mxu0 %v1810
      %1828 = vmatprep.subr.bf16.mxu0 0
      %1829 = vmatpush1.bf16.msra.mxu0 %v1811
      %1830 = vmatprep.subr.bf16.mxu0 0
      %1831 = vmatpush1.bf16.msra.mxu0 %v1812
      %1832 = vmatprep.subr.bf16.mxu0 0
      %1833 = vmatpush1.bf16.msra.mxu0 %v1813
      %1834 = vmatprep.subr.bf16.mxu0 0
      %1835 = vmatpush1.bf16.msra.mxu0 %v1814
      %1836 = vmatprep.subr.bf16.mxu0 0
      %1837 = vmatpush1.bf16.msra.mxu0 %v1815
      %1838 = vmatprep.subr.bf16.mxu0 0
      %1839 = vmatpush1.bf16.msra.mxu0 %v1816
      %1840 = vmatprep.subr.bf16.mxu0 0
      %1841 = vmatpush1.bf16.msra.mxu0 %v1817
      %1842 = vmatprep.subr.bf16.mxu0 0
      %1843 = vmatpush1.bf16.msra.mxu0 0
      %1844 = vmatprep.subr.bf16.mxu0 0
      %1845 = vmatpush1.bf16.msra.mxu0 0
      %1846 = vmatprep.subr.bf16.mxu0 0
      %1847 = vmatpush1.bf16.msra.mxu0 0
      %1848 = vmatprep.subr.bf16.mxu0 0
      %1849 = vmatpush1.bf16.msra.mxu0 0
      %1850 = vmatprep.subr.bf16.mxu0 0
      %1851 = vmatpush1.bf16.msra.mxu0 0
      %1852 = vmatprep.subr.bf16.mxu0 0
      %1853 = vmatpush1.bf16.msra.mxu0 0
      %1854 = vmatprep.subr.bf16.mxu0 0
      %1855 = vmatpush1.bf16.msra.mxu0 0
      %1856 = vmatprep.subr.bf16.mxu0 0
      %1857 = vmatpush1.bf16.msra.mxu0 0
      %1858 = vmatprep.mubr.bf16.mxu0 0
      %1859 = vmatmul.mubr.bf16.gmra.mrb[0].mxu0 %v1460
      %v1860 = vpop.f32.mrb[0].mxu0
      %v1861 = vadd.f32 %v1777, %v1860
      %v1862 = vpop.f32.mrb[0].mxu0
      %v1863 = vpop.f32.mrb[0].mxu0
      %v1864 = vadd.f32 %v1777, %v1863
      %v1865 = vpop.f32.mrb[0].mxu0
      %1866 = vmatprep.mubr.bf16.mxu0 0
      %1867 = vmatmul.mubr.bf16.gmra.mrb[0].mxu0 %v1461
      %v1868 = vpop.f32.mrb[0].mxu0
      %v1869 = vadd.f32 %v1777, %v1868
      %v1870 = vpop.f32.mrb[0].mxu0
      %v1871 = vpop.f32.mrb[0].mxu0
      %v1872 = vadd.f32 %v1777, %v1871
      %v1873 = vpop.f32.mrb[0].mxu0
      %1874 = vmatprep.mubr.bf16.mxu0 0
      %1875 = vmatmul.mubr.bf16.gmra.mrb[0].mxu0 %v1462
      %v1876 = vpop.f32.mrb[0].mxu0
      %v1877 = vadd.f32 %v1777, %v1876
      %v1878 = vpop.f32.mrb[0].mxu0
      %v1879 = vpop.f32.mrb[0].mxu0
      %v1880 = vadd.f32 %v1777, %v1879
      %v1881 = vpop.f32.mrb[0].mxu0
      %1882 = vmatprep.mubr.bf16.mxu0 0
      %1883 = vmatmul.mubr.bf16.gmra.mrb[0].mxu0 %v1463
      %v1884 = vpop.f32.mrb[0].mxu0
      %v1885 = vadd.f32 %v1777, %v1884
      %v1886 = vpop.f32.mrb[0].mxu0
      %v1887 = vpop.f32.mrb[0].mxu0
      %v1888 = vadd.f32 %v1777, %v1887
      %v1889 = vpop.f32.mrb[0].mxu0
      %1890 = vmatprep.mubr.bf16.mxu0 0
      %1891 = vmatmul.mubr.bf16.gmra.mrb[0].mxu0 %v1464
      %v1892 = vpop.f32.mrb[0].mxu0
      %v1893 = vadd.f32 %v1777, %v1892
      %v1894 = vpop.f32.mrb[0].mxu0
      %v1895 = vpop.f32.mrb[0].mxu0
      %v1896 = vadd.f32 %v1777, %v1895
      %v1897 = vpop.f32.mrb[0].mxu0
      %1898 = vmatprep.mubr.bf16.mxu0 0
      %1899 = vmatmul.mubr.bf16.gmra.mrb[0].mxu0 %v1465
      %v1900 = vpop.f32.mrb[0].mxu0
      %v1901 = vadd.f32 %v1777, %v1900
      %v1902 = vpop.f32.mrb[0].mxu0
      %v1903 = vpop.f32.mrb[0].mxu0
      %v1904 = vadd.f32 %v1777, %v1903
      %v1905 = vpop.f32.mrb[0].mxu0
      %1906 = vmatprep.mubr.bf16.mxu0 0
      %1907 = vmatmul.mubr.bf16.gmra.mrb[0].mxu0 %v1466
      %v1908 = vpop.f32.mrb[0].mxu0
      %v1909 = vadd.f32 %v1777, %v1908
      %v1910 = vpop.f32.mrb[0].mxu0
      %v1911 = vpop.f32.mrb[0].mxu0
      %v1912 = vadd.f32 %v1777, %v1911
      %v1913 = vpop.f32.mrb[0].mxu0
      %1914 = vmatprep.mubr.bf16.mxu0 0
      %1915 = vmatmul.mubr.bf16.gmra.mrb[0].mxu0 %v1467
      %v1916 = vpop.f32.mrb[0].mxu0
      %v1917 = vadd.f32 %v1777, %v1916
      %v1918 = vpop.f32.mrb[0].mxu0
      %v1919 = vpop.f32.mrb[0].mxu0
      %v1920 = vadd.f32 %v1777, %v1919
      %v1921 = vpop.f32.mrb[0].mxu0
      %1922 = vdwg.mxu0
      %v1923 = vpack.c.bf16 %v1864, %v1861
      %v1924 = vpack.c.bf16 %v1872, %v1869
      %v1925 = vpack.c.bf16 %v1880, %v1877
      %v1926 = vpack.c.bf16 %v1888, %v1885
      %v1927 = vpack.c.bf16 %v1896, %v1893
      %v1928 = vpack.c.bf16 %v1904, %v1901
      %v1929 = vpack.c.bf16 %v1912, %v1909
      %v1930 = vpack.c.bf16 %v1920, %v1917
      %1931 = vmatprep.subr.bf16.mxu0 0
      %1932 = vmatpush1.bf16.xpose.msra.mxu0 %v1750
      %1933 = vmatprep.subr.bf16.mxu0 0
      %1934 = vmatpush1.bf16.xpose.msra.mxu0 %v1751
      %1935 = vmatprep.subr.bf16.mxu0 0
      %1936 = vmatpush1.bf16.xpose.msra.mxu0 %v1752
      %1937 = vmatprep.subr.bf16.mxu0 0
      %1938 = vmatpush1.bf16.xpose.msra.mxu0 %v1753
      %1939 = vmatprep.subr.bf16.mxu0 0
      %1940 = vmatpush1.bf16.xpose.msra.mxu0 0
      %1941 = vmatprep.subr.bf16.mxu0 0
      %1942 = vmatpush1.bf16.xpose.msra.mxu0 0
      %1943 = vmatprep.subr.bf16.mxu0 0
      %1944 = vmatpush1.bf16.xpose.msra.mxu0 0
      %1945 = vmatprep.subr.bf16.mxu0 0
      %1946 = vmatpush1.bf16.xpose.msra.mxu0 0
      %1947 = vmatprep.subr.bf16.mxu0 0
      %1948 = vmatpush1.bf16.xpose.msra.mxu0 0
      %1949 = vmatprep.subr.bf16.mxu0 0
      %1950 = vmatpush1.bf16.xpose.msra.mxu0 0
      %1951 = vmatprep.subr.bf16.mxu0 0
      %1952 = vmatpush1.bf16.xpose.msra.mxu0 0
      %1953 = vmatprep.subr.bf16.mxu0 0
      %1954 = vmatpush1.bf16.xpose.msra.mxu0 0
      %1955 = vmatprep.subr.bf16.mxu0 0
      %1956 = vmatpush1.bf16.xpose.msra.mxu0 0
      %1957 = vmatprep.subr.bf16.mxu0 0
      %1958 = vmatpush1.bf16.xpose.msra.mxu0 0
      %1959 = vmatprep.subr.bf16.mxu0 0
      %1960 = vmatpush1.bf16.xpose.msra.mxu0 0
      %1961 = vmatprep.subr.bf16.mxu0 0
      %1962 = vmatpush1.bf16.xpose.msra.mxu0 0
      %1963 = vmatprep.mubr.bf16.mxu0 0
      %1964 = vmatmul.mubr.bf16.gmra.mrb[0].mxu0 %v1581
      %v1965 = vpop.f32.mrb[0].mxu0
      %v1966 = vadd.f32 0.0, %v1965
      %v1967 = vpop.f32.mrb[0].mxu0
      %v1968 = vpop.f32.mrb[0].mxu0
      %v1969 = vpop.f32.mrb[0].mxu0
      %1970 = vdwg.mxu0
      %1971 = vmatprep.subr.bf16.mxu0 0
      %1972 = vmatpush1.bf16.xpose.msra.mxu0 %v1754
      %1973 = vmatprep.subr.bf16.mxu0 0
      %1974 = vmatpush1.bf16.xpose.msra.mxu0 %v1755
      %1975 = vmatprep.subr.bf16.mxu0 0
      %1976 = vmatpush1.bf16.xpose.msra.mxu0 %v1756
      %1977 = vmatprep.subr.bf16.mxu0 0
      %1978 = vmatpush1.bf16.xpose.msra.mxu0 %v1757
      %1979 = vmatprep.subr.bf16.mxu0 0
      %1980 = vmatpush1.bf16.xpose.msra.mxu0 0
      %1981 = vmatprep.subr.bf16.mxu0 0
      %1982 = vmatpush1.bf16.xpose.msra.mxu0 0
      %1983 = vmatprep.subr.bf16.mxu0 0
      %1984 = vmatpush1.bf16.xpose.msra.mxu0 0
      %1985 = vmatprep.subr.bf16.mxu0 0
      %1986 = vmatpush1.bf16.xpose.msra.mxu0 0
      %1987 = vmatprep.subr.bf16.mxu0 0
      %1988 = vmatpush1.bf16.xpose.msra.mxu0 0
      %1989 = vmatprep.subr.bf16.mxu0 0
      %1990 = vmatpush1.bf16.xpose.msra.mxu0 0
      %1991 = vmatprep.subr.bf16.mxu0 0
      %1992 = vmatpush1.bf16.xpose.msra.mxu0 0
      %1993 = vmatprep.subr.bf16.mxu0 0
      %1994 = vmatpush1.bf16.xpose.msra.mxu0 0
      %1995 = vmatprep.subr.bf16.mxu0 0
      %1996 = vmatpush1.bf16.xpose.msra.mxu0 0
      %1997 = vmatprep.subr.bf16.mxu0 0
      %1998 = vmatpush1.bf16.xpose.msra.mxu0 0
      %1999 = vmatprep.subr.bf16.mxu0 0
      %2000 = vmatpush1.bf16.xpose.msra.mxu0 0
      %2001 = vmatprep.subr.bf16.mxu0 0
      %2002 = vmatpush1.bf16.xpose.msra.mxu0 0
      %2003 = vmatprep.mubr.bf16.mxu0 0
      %2004 = vmatmul.mubr.bf16.gmra.mrb[0].mxu0 %v1582
      %v2005 = vpop.f32.mrb[0].mxu0
      %v2006 = vadd.f32 0.0, %v2005
      %v2007 = vpop.f32.mrb[0].mxu0
      %v2008 = vpop.f32.mrb[0].mxu0
      %v2009 = vpop.f32.mrb[0].mxu0
      %2010 = vdwg.mxu0
      %vm2011 = vcmask 523264
      %v2012 = vsel %vm2011, %v1966, -inf
      %2013 = vmax.xlane.f32.xlu0 %v2012
      %v2014 = vpop.xlane.xlu0 %2013
      %v2015 = vsel %vm2011, %v2006, -inf
      %2016 = vmax.xlane.f32.xlu0 %v2015
      %v2017 = vpop.xlane.xlu0 %2016
      %v2018 = vsub.f32 %v1966, %v2014
      %v2019 = vsub.f32 %v2006, %v2017
      %v2020 = vmul.f32 %v2018, 1.442695
      %v2021 = vpow.pop %v2020
      %v2022 = vmul.f32 %v2019, 1.442695
      %v2023 = vpow.pop %v2022
      %v2024 = vsel %vm2011, %v2021, 0.0
      %2025 = vadd.xlane.f32.xlu0 %v2024
      %v2026 = vpop.xlane.xlu0 %2025
      %v2027 = vsel %vm2011, %v2023, 0.0
      %2028 = vadd.xlane.f32.xlu0 %v2027
      %v2029 = vpop.xlane.xlu0 %2028
      %v2030 = vpack.c.bf16 %v2021, %v2021
      %v2031 = vpack.c.bf16 %v2023, %v2023
      %v2033 = vsel %vm2011, %v2030, 0
      %2035 = vmatprep.subr.bf16.mxu0 0
      %2036 = vmatpush1.bf16.msra.mxu0 %v1923
      %2037 = vmatprep.subr.bf16.mxu0 0
      %2038 = vmatpush1.bf16.msra.mxu0 %v1924
      %2039 = vmatprep.subr.bf16.mxu0 0
      %2040 = vmatpush1.bf16.msra.mxu0 %v1925
      %2041 = vmatprep.subr.bf16.mxu0 0
      %2042 = vmatpush1.bf16.msra.mxu0 %v1926
      %2043 = vmatprep.subr.bf16.mxu0 0
      %2044 = vmatpush1.bf16.msra.mxu0 0
      %2045 = vmatprep.subr.bf16.mxu0 0
      %2046 = vmatpush1.bf16.msra.mxu0 0
      %2047 = vmatprep.subr.bf16.mxu0 0
      %2048 = vmatpush1.bf16.msra.mxu0 0
      %2049 = vmatprep.subr.bf16.mxu0 0
      %2050 = vmatpush1.bf16.msra.mxu0 0
      %2051 = vmatprep.subr.bf16.mxu0 0
      %2052 = vmatpush1.bf16.msra.mxu0 0
      %2053 = vmatprep.subr.bf16.mxu0 0
      %2054 = vmatpush1.bf16.msra.mxu0 0
      %2055 = vmatprep.subr.bf16.mxu0 0
      %2056 = vmatpush1.bf16.msra.mxu0 0
      %2057 = vmatprep.subr.bf16.mxu0 0
      %2058 = vmatpush1.bf16.msra.mxu0 0
      %2059 = vmatprep.subr.bf16.mxu0 0
      %2060 = vmatpush1.bf16.msra.mxu0 0
      %2061 = vmatprep.subr.bf16.mxu0 0
      %2062 = vmatpush1.bf16.msra.mxu0 0
      %2063 = vmatprep.subr.bf16.mxu0 0
      %2064 = vmatpush1.bf16.msra.mxu0 0
      %2065 = vmatprep.subr.bf16.mxu0 0
      %2066 = vmatpush1.bf16.msra.mxu0 0
      %2067 = vmatprep.mubr.bf16.mxu0 0
      %2068 = vmatmul.mubr.bf16.gmra.mrb[0].mxu0 %v2033
      %v2069 = vpop.f32.mrb[0].mxu0
      %v2070 = vadd.f32 0.0, %v2069
      %v2071 = vpop.f32.mrb[0].mxu0
      %v2072 = vpop.f32.mrb[0].mxu0
      %v2073 = vpop.f32.mrb[0].mxu0
      %2074 = vdwg.mxu0
      %v2076 = vsel %vm2011, %v2031, 0
      %2078 = vmatprep.subr.bf16.mxu0 0
      %2079 = vmatpush1.bf16.msra.mxu0 %v1927
      %2080 = vmatprep.subr.bf16.mxu0 0
      %2081 = vmatpush1.bf16.msra.mxu0 %v1928
      %2082 = vmatprep.subr.bf16.mxu0 0
      %2083 = vmatpush1.bf16.msra.mxu0 %v1929
      %2084 = vmatprep.subr.bf16.mxu0 0
      %2085 = vmatpush1.bf16.msra.mxu0 %v1930
      %2086 = vmatprep.subr.bf16.mxu0 0
      %2087 = vmatpush1.bf16.msra.mxu0 0
      %2088 = vmatprep.subr.bf16.mxu0 0
      %2089 = vmatpush1.bf16.msra.mxu0 0
      %2090 = vmatprep.subr.bf16.mxu0 0
      %2091 = vmatpush1.bf16.msra.mxu0 0
      %2092 = vmatprep.subr.bf16.mxu0 0
      %2093 = vmatpush1.bf16.msra.mxu0 0
      %2094 = vmatprep.subr.bf16.mxu0 0
      %2095 = vmatpush1.bf16.msra.mxu0 0
      %2096 = vmatprep.subr.bf16.mxu0 0
      %2097 = vmatpush1.bf16.msra.mxu0 0
      %2098 = vmatprep.subr.bf16.mxu0 0
      %2099 = vmatpush1.bf16.msra.mxu0 0
      %2100 = vmatprep.subr.bf16.mxu0 0
      %2101 = vmatpush1.bf16.msra.mxu0 0
      %2102 = vmatprep.subr.bf16.mxu0 0
      %2103 = vmatpush1.bf16.msra.mxu0 0
      %2104 = vmatprep.subr.bf16.mxu0 0
      %2105 = vmatpush1.bf16.msra.mxu0 0
      %2106 = vmatprep.subr.bf16.mxu0 0
      %2107 = vmatpush1.bf16.msra.mxu0 0
      %2108 = vmatprep.subr.bf16.mxu0 0
      %2109 = vmatpush1.bf16.msra.mxu0 0
      %2110 = vmatprep.mubr.bf16.mxu0 0
      %2111 = vmatmul.mubr.bf16.gmra.mrb[0].mxu0 %v2076
      %v2112 = vpop.f32.mrb[0].mxu0
      %v2113 = vadd.f32 0.0, %v2112
      %v2114 = vpop.f32.mrb[0].mxu0
      %v2115 = vpop.f32.mrb[0].mxu0
      %v2116 = vpop.f32.mrb[0].mxu0
      %2117 = vdwg.mxu0
      %v2118 = vrcp.pop %v2026
      %v2119 = vrcp.pop %v2029
      %v2120 = vmul.f32 %v2070, %v2118
      %v2121 = vmul.f32 %v2113, %v2119
      %v2122 = vpack.c.bf16 %v2121, %v2120
      %v2123 = vld [vmem:[%s727] sm:$0xf]
      %v2124 = vld [vmem:[%s727 + $0x4] sm:$0xf]
      %v2125 = vld [vmem:[%s727 + $0x8] sm:$0xf]
      %v2126 = vld [vmem:[%s727 + $0xc] sm:$0xf]
      %v2127 = vld [vmem:[%s727 + $0x10] sm:$0xf]
      %v2128 = vld [vmem:[%s727 + $0x14] sm:$0xf]
      %v2129 = vld [vmem:[%s727 + $0x18] sm:$0xf]
      %v2130 = vld [vmem:[%s727 + $0x1c] sm:$0xf]
      %v2131 = vld [vmem:[%s727 + $0x20] sm:$0xf]
      %v2132 = vld [vmem:[%s727 + $0x24] sm:$0xf]
      %v2133 = vld [vmem:[%s727 + $0x28] sm:$0xf]
      %v2134 = vld [vmem:[%s727 + $0x2c] sm:$0xf]
      %v2135 = vld [vmem:[%s727 + $0x30] sm:$0xf]
      %v2136 = vld [vmem:[%s727 + $0x34] sm:$0xf]
      %v2137 = vld [vmem:[%s727 + $0x38] sm:$0xf]
      %v2138 = vld [vmem:[%s727 + $0x3c] sm:$0xf]
      %v2139 = vlaneseq
      %v2140 = vshrl.u32 %v2139, 7
      %v2141 = vsub.s32 1, %v2140
      %v2142 = vrot.slane %v795, %v2141
      %v2159 = vunpack.c.l.b16 %v2123
      %v2160 = vunpack.c.l.b16 %v2124
      %v2161 = vunpack.c.l.b16 %v2125
      %v2162 = vunpack.c.l.b16 %v2126
      %v2163 = vunpack.c.l.b16 %v2127
      %v2164 = vunpack.c.l.b16 %v2128
      %v2165 = vunpack.c.l.b16 %v2129
      %v2166 = vunpack.c.l.b16 %v2130
      %v2167 = vunpack.c.l.b16 %v2131
      %v2168 = vunpack.c.l.b16 %v2132
      %v2169 = vunpack.c.l.b16 %v2133
      %v2170 = vunpack.c.l.b16 %v2134
      %v2171 = vunpack.c.l.b16 %v2135
      %v2172 = vunpack.c.l.b16 %v2136
      %v2173 = vunpack.c.l.b16 %v2137
      %v2174 = vunpack.c.l.b16 %v2138
      %v2175 = vpack.c.b16 %v2160, %v2159
      %v2176 = vpack.c.b16 %v2162, %v2161
      %v2177 = vpack.c.b16 %v2164, %v2163
      %v2178 = vpack.c.b16 %v2166, %v2165
      %v2179 = vpack.c.b16 %v2168, %v2167
      %v2180 = vpack.c.b16 %v2170, %v2169
      %v2181 = vpack.c.b16 %v2172, %v2171
      %v2182 = vpack.c.b16 %v2174, %v2173
      %2191 = vmatprep.subr.bf16.mxu0 0
      %2192 = vmatpush1.bf16.msra.mxu0 %v2175
      %2193 = vmatprep.subr.bf16.mxu0 0
      %2194 = vmatpush1.bf16.msra.mxu0 %v2176
      %2195 = vmatprep.subr.bf16.mxu0 0
      %2196 = vmatpush1.bf16.msra.mxu0 %v2177
      %2197 = vmatprep.subr.bf16.mxu0 0
      %2198 = vmatpush1.bf16.msra.mxu0 %v2178
      %2199 = vmatprep.subr.bf16.mxu0 0
      %2200 = vmatpush1.bf16.msra.mxu0 %v2179
      %2201 = vmatprep.subr.bf16.mxu0 0
      %2202 = vmatpush1.bf16.msra.mxu0 %v2180
      %2203 = vmatprep.subr.bf16.mxu0 0
      %2204 = vmatpush1.bf16.msra.mxu0 %v2181
      %2205 = vmatprep.subr.bf16.mxu0 0
      %2206 = vmatpush1.bf16.msra.mxu0 %v2182
      %2207 = vmatprep.subr.bf16.mxu0 0
      %2208 = vmatpush1.bf16.msra.mxu0 0
      %2209 = vmatprep.subr.bf16.mxu0 0
      %2210 = vmatpush1.bf16.msra.mxu0 0
      %2211 = vmatprep.subr.bf16.mxu0 0
      %2212 = vmatpush1.bf16.msra.mxu0 0
      %2213 = vmatprep.subr.bf16.mxu0 0
      %2214 = vmatpush1.bf16.msra.mxu0 0
      %2215 = vmatprep.subr.bf16.mxu0 0
      %2216 = vmatpush1.bf16.msra.mxu0 0
      %2217 = vmatprep.subr.bf16.mxu0 0
      %2218 = vmatpush1.bf16.msra.mxu0 0
      %2219 = vmatprep.subr.bf16.mxu0 0
      %2220 = vmatpush1.bf16.msra.mxu0 0
      %2221 = vmatprep.subr.bf16.mxu0 0
      %2222 = vmatpush1.bf16.msra.mxu0 0
      %2223 = vmatprep.mubr.bf16.mxu0 0
      %2224 = vmatmul.mubr.bf16.gmra.mrb[0].mxu0 %v2122
      %v2225 = vpop.f32.mrb[0].mxu0
      %v2226 = vadd.f32 %v2142, %v2225
      %v2227 = vpop.f32.mrb[0].mxu0
      %v2228 = vpop.f32.mrb[0].mxu0
      %v2229 = vadd.f32 %v2142, %v2228
      %v2230 = vpop.f32.mrb[0].mxu0
      %2231 = vdwg.mxu0
      %v2232 = vadd.f32 %v1431, %v2226
      %v2233 = vadd.f32 %v1432, %v2229
      %2234 = vadd.xlane.f32.xlu0 %v2232
      %v2235 = vpop.xlane.xlu0 %2234
      %2236 = vadd.xlane.f32.xlu0 %v2233
      %v2237 = vpop.xlane.xlu0 %2236
      %v2238 = vmul.f32 %v2232, %v2232
      %v2239 = vmul.f32 %v2233, %v2233
      %2240 = vadd.xlane.f32.xlu0 %v2238
      %v2241 = vpop.xlane.xlu0 %2240
      %2242 = vadd.xlane.f32.xlu0 %v2239
      %v2243 = vpop.xlane.xlu0 %2242
      %v2244 = vmul.f32 %v2235, 0.03125
      %v2245 = vmul.f32 %v2237, 0.03125
      %v2246 = vmul.f32 %v2241, 0.03125
      %v2247 = vmul.f32 %v2243, 0.03125
      %v2248 = vmul.f32 %v2244, %v2244
      %v2249 = vmul.f32 %v2245, %v2245
      %v2250 = vsub.f32 %v2246, %v2248
      %v2251 = vsub.f32 %v2247, %v2249
      %v2252 = vmax.f32 %v2250, 0.0
      %v2253 = vmax.f32 %v2251, 0.0
      %v2254 = vsub.f32 %v2232, %v2244
      %v2255 = vsub.f32 %v2233, %v2245
      %v2256 = vadd.f32 %v2252, 1e-05
      %v2257 = vadd.f32 %v2253, 1e-05
      %v2258 = vrsqrt.pop %v2256
      %v2259 = vrsqrt.pop %v2257
      %v2260 = vmul.f32 %v2254, %v2258
      %v2261 = vmul.f32 %v2255, %v2259
      %v2262 = vlaneseq
      %v2263 = vshrl.u32 %v2262, 7
      %v2264 = vsub.s32 2, %v2263
      %v2265 = vrot.slane %v795, %v2264
      %v2266 = vmul.f32 %v2260, %v2265
      %v2267 = vmul.f32 %v2261, %v2265
      %v2268 = vlaneseq
      %v2269 = vshrl.u32 %v2268, 7
      %v2270 = vsub.s32 3, %v2269
      %v2271 = vrot.slane %v795, %v2270
      %v2272 = vadd.f32 %v2266, %v2271
      %v2273 = vadd.f32 %v2267, %v2271
      %v2274 = vpack.c.bf16 %v2273, %v2272
      %v2275 = vld [vmem:[%s732] sm:$0xf]
      %v2276 = vld [vmem:[%s732 + $0x4] sm:$0xf]
      %v2277 = vld [vmem:[%s732 + $0x8] sm:$0xf]
      %v2278 = vld [vmem:[%s732 + $0xc] sm:$0xf]
      %v2279 = vld [vmem:[%s732 + $0x10] sm:$0xf]
      %v2280 = vld [vmem:[%s732 + $0x14] sm:$0xf]
      %v2281 = vld [vmem:[%s732 + $0x18] sm:$0xf]
      %v2282 = vld [vmem:[%s732 + $0x1c] sm:$0xf]
      %v2283 = vld [vmem:[%s732 + $0x20] sm:$0xf]
      %v2284 = vld [vmem:[%s732 + $0x24] sm:$0xf]
      %v2285 = vld [vmem:[%s732 + $0x28] sm:$0xf]
      %v2286 = vld [vmem:[%s732 + $0x2c] sm:$0xf]
      %v2287 = vld [vmem:[%s732 + $0x30] sm:$0xf]
      %v2288 = vld [vmem:[%s732 + $0x34] sm:$0xf]
      %v2289 = vld [vmem:[%s732 + $0x38] sm:$0xf]
      %v2290 = vld [vmem:[%s732 + $0x3c] sm:$0xf]
      %v2292 = vlaneseq
      %v2293 = vshrl.u32 %v2292, 7
      %v2294 = vsub.s32 0, %v2293
      %v2295 = vrot.slane %v796, %v2294
      %v2313 = vunpack.c.l.b16 %v2275
      %v2314 = vunpack.c.l.b16 %v2276
      %v2315 = vunpack.c.l.b16 %v2277
      %v2316 = vunpack.c.l.b16 %v2278
      %v2317 = vunpack.c.l.b16 %v2279
      %v2318 = vunpack.c.l.b16 %v2280
      %v2319 = vunpack.c.l.b16 %v2281
      %v2320 = vunpack.c.l.b16 %v2282
      %v2321 = vunpack.c.l.b16 %v2283
      %v2322 = vunpack.c.l.b16 %v2284
      %v2323 = vunpack.c.l.b16 %v2285
      %v2324 = vunpack.c.l.b16 %v2286
      %v2325 = vunpack.c.l.b16 %v2287
      %v2326 = vunpack.c.l.b16 %v2288
      %v2327 = vunpack.c.l.b16 %v2289
      %v2328 = vunpack.c.l.b16 %v2290
      %v2329 = vpack.c.b16 %v2314, %v2313
      %v2330 = vpack.c.b16 %v2316, %v2315
      %v2331 = vpack.c.b16 %v2318, %v2317
      %v2332 = vpack.c.b16 %v2320, %v2319
      %v2333 = vpack.c.b16 %v2322, %v2321
      %v2334 = vpack.c.b16 %v2324, %v2323
      %v2335 = vpack.c.b16 %v2326, %v2325
      %v2336 = vpack.c.b16 %v2328, %v2327
      %2345 = vmatprep.subr.bf16.mxu0 0
      %2346 = vmatpush1.bf16.msra.mxu0 %v2329
      %2347 = vmatprep.subr.bf16.mxu0 0
      %2348 = vmatpush1.bf16.msra.mxu0 %v2330
      %2349 = vmatprep.subr.bf16.mxu0 0
      %2350 = vmatpush1.bf16.msra.mxu0 %v2331
      %2351 = vmatprep.subr.bf16.mxu0 0
      %2352 = vmatpush1.bf16.msra.mxu0 %v2332
      %2353 = vmatprep.subr.bf16.mxu0 0
      %2354 = vmatpush1.bf16.msra.mxu0 %v2333
      %2355 = vmatprep.subr.bf16.mxu0 0
      %2356 = vmatpush1.bf16.msra.mxu0 %v2334
      %2357 = vmatprep.subr.bf16.mxu0 0
      %2358 = vmatpush1.bf16.msra.mxu0 %v2335
      %2359 = vmatprep.subr.bf16.mxu0 0
      %2360 = vmatpush1.bf16.msra.mxu0 %v2336
      %2361 = vmatprep.subr.bf16.mxu0 0
      %2362 = vmatpush1.bf16.msra.mxu0 0
      %2363 = vmatprep.subr.bf16.mxu0 0
      %2364 = vmatpush1.bf16.msra.mxu0 0
      %2365 = vmatprep.subr.bf16.mxu0 0
      %2366 = vmatpush1.bf16.msra.mxu0 0
      %2367 = vmatprep.subr.bf16.mxu0 0
      %2368 = vmatpush1.bf16.msra.mxu0 0
      %2369 = vmatprep.subr.bf16.mxu0 0
      %2370 = vmatpush1.bf16.msra.mxu0 0
      %2371 = vmatprep.subr.bf16.mxu0 0
      %2372 = vmatpush1.bf16.msra.mxu0 0
      %2373 = vmatprep.subr.bf16.mxu0 0
      %2374 = vmatpush1.bf16.msra.mxu0 0
      %2375 = vmatprep.subr.bf16.mxu0 0
      %2376 = vmatpush1.bf16.msra.mxu0 0
      %2377 = vmatprep.mubr.bf16.mxu0 0
      %2378 = vmatmul.mubr.bf16.gmra.mrb[0].mxu0 %v2274
      %v2379 = vpop.f32.mrb[0].mxu0
      %v2380 = vadd.f32 %v2295, %v2379
      %v2381 = vpop.f32.mrb[0].mxu0
      %v2382 = vpop.f32.mrb[0].mxu0
      %v2383 = vadd.f32 %v2295, %v2382
      %v2384 = vpop.f32.mrb[0].mxu0
      %2385 = vdwg.mxu0
      %v2386 = vmax.f32 %v2380, 0.0
      %v2387 = vmax.f32 %v2383, 0.0
      %v2388 = vpack.c.bf16 %v2387, %v2386
      %v2389 = vld [vmem:[%s737] sm:$0xf]
      %v2390 = vld [vmem:[%s737 + $0x4] sm:$0xf]
      %v2391 = vld [vmem:[%s737 + $0x8] sm:$0xf]
      %v2392 = vld [vmem:[%s737 + $0xc] sm:$0xf]
      %v2393 = vld [vmem:[%s737 + $0x10] sm:$0xf]
      %v2394 = vld [vmem:[%s737 + $0x14] sm:$0xf]
      %v2395 = vld [vmem:[%s737 + $0x18] sm:$0xf]
      %v2396 = vld [vmem:[%s737 + $0x1c] sm:$0xf]
      %v2397 = vld [vmem:[%s737 + $0x20] sm:$0xf]
      %v2398 = vld [vmem:[%s737 + $0x24] sm:$0xf]
      %v2399 = vld [vmem:[%s737 + $0x28] sm:$0xf]
      %v2400 = vld [vmem:[%s737 + $0x2c] sm:$0xf]
      %v2401 = vld [vmem:[%s737 + $0x30] sm:$0xf]
      %v2402 = vld [vmem:[%s737 + $0x34] sm:$0xf]
      %v2403 = vld [vmem:[%s737 + $0x38] sm:$0xf]
      %v2404 = vld [vmem:[%s737 + $0x3c] sm:$0xf]
      %v2405 = vlaneseq
      %v2406 = vshrl.u32 %v2405, 7
      %v2407 = vsub.s32 4, %v2406
      %v2408 = vrot.slane %v795, %v2407
      %v2425 = vunpack.c.l.b16 %v2389
      %v2426 = vunpack.c.l.b16 %v2390
      %v2427 = vunpack.c.l.b16 %v2391
      %v2428 = vunpack.c.l.b16 %v2392
      %v2429 = vunpack.c.l.b16 %v2393
      %v2430 = vunpack.c.l.b16 %v2394
      %v2431 = vunpack.c.l.b16 %v2395
      %v2432 = vunpack.c.l.b16 %v2396
      %v2433 = vunpack.c.l.b16 %v2397
      %v2434 = vunpack.c.l.b16 %v2398
      %v2435 = vunpack.c.l.b16 %v2399
      %v2436 = vunpack.c.l.b16 %v2400
      %v2437 = vunpack.c.l.b16 %v2401
      %v2438 = vunpack.c.l.b16 %v2402
      %v2439 = vunpack.c.l.b16 %v2403
      %v2440 = vunpack.c.l.b16 %v2404
      %v2441 = vpack.c.b16 %v2426, %v2425
      %v2442 = vpack.c.b16 %v2428, %v2427
      %v2443 = vpack.c.b16 %v2430, %v2429
      %v2444 = vpack.c.b16 %v2432, %v2431
      %v2445 = vpack.c.b16 %v2434, %v2433
      %v2446 = vpack.c.b16 %v2436, %v2435
      %v2447 = vpack.c.b16 %v2438, %v2437
      %v2448 = vpack.c.b16 %v2440, %v2439
      %2457 = vmatprep.subr.bf16.mxu0 0
      %2458 = vmatpush1.bf16.msra.mxu0 %v2441
      %2459 = vmatprep.subr.bf16.mxu0 0
      %2460 = vmatpush1.bf16.msra.mxu0 %v2442
      %2461 = vmatprep.subr.bf16.mxu0 0
      %2462 = vmatpush1.bf16.msra.mxu0 %v2443
      %2463 = vmatprep.subr.bf16.mxu0 0
      %2464 = vmatpush1.bf16.msra.mxu0 %v2444
      %2465 = vmatprep.subr.bf16.mxu0 0
      %2466 = vmatpush1.bf16.msra.mxu0 %v2445
      %2467 = vmatprep.subr.bf16.mxu0 0
      %2468 = vmatpush1.bf16.msra.mxu0 %v2446
      %2469 = vmatprep.subr.bf16.mxu0 0
      %2470 = vmatpush1.bf16.msra.mxu0 %v2447
      %2471 = vmatprep.subr.bf16.mxu0 0
      %2472 = vmatpush1.bf16.msra.mxu0 %v2448
      %2473 = vmatprep.subr.bf16.mxu0 0
      %2474 = vmatpush1.bf16.msra.mxu0 0
      %2475 = vmatprep.subr.bf16.mxu0 0
      %2476 = vmatpush1.bf16.msra.mxu0 0
      %2477 = vmatprep.subr.bf16.mxu0 0
      %2478 = vmatpush1.bf16.msra.mxu0 0
      %2479 = vmatprep.subr.bf16.mxu0 0
      %2480 = vmatpush1.bf16.msra.mxu0 0
      %2481 = vmatprep.subr.bf16.mxu0 0
      %2482 = vmatpush1.bf16.msra.mxu0 0
      %2483 = vmatprep.subr.bf16.mxu0 0
      %2484 = vmatpush1.bf16.msra.mxu0 0
      %2485 = vmatprep.subr.bf16.mxu0 0
      %2486 = vmatpush1.bf16.msra.mxu0 0
      %2487 = vmatprep.subr.bf16.mxu0 0
      %2488 = vmatpush1.bf16.msra.mxu0 0
      %2489 = vmatprep.mubr.bf16.mxu0 0
      %2490 = vmatmul.mubr.bf16.gmra.mrb[0].mxu0 %v2388
      %v2491 = vpop.f32.mrb[0].mxu0
      %v2492 = vadd.f32 %v2408, %v2491
      %v2493 = vpop.f32.mrb[0].mxu0
      %v2494 = vpop.f32.mrb[0].mxu0
      %v2495 = vadd.f32 %v2408, %v2494
      %v2496 = vpop.f32.mrb[0].mxu0
      %2497 = vdwg.mxu0
      %v2498 = vadd.f32 %v2272, %v2492
      %v2499 = vadd.f32 %v2273, %v2495
      %2500 = vadd.xlane.f32.xlu0 %v2498
      %v2501 = vpop.xlane.xlu0 %2500
      %2502 = vadd.xlane.f32.xlu0 %v2499
      %v2503 = vpop.xlane.xlu0 %2502
      %v2504 = vmul.f32 %v2498, %v2498
      %v2505 = vmul.f32 %v2499, %v2499
      %2506 = vadd.xlane.f32.xlu0 %v2504
      %v2507 = vpop.xlane.xlu0 %2506
      %2508 = vadd.xlane.f32.xlu0 %v2505
      %v2509 = vpop.xlane.xlu0 %2508
      %v2510 = vmul.f32 %v2501, 0.03125
      %v2511 = vmul.f32 %v2503, 0.03125
      %v2512 = vmul.f32 %v2507, 0.03125
      %v2513 = vmul.f32 %v2509, 0.03125
      %v2514 = vmul.f32 %v2510, %v2510
      %v2515 = vmul.f32 %v2511, %v2511
      %v2516 = vsub.f32 %v2512, %v2514
      %v2517 = vsub.f32 %v2513, %v2515
      %v2518 = vmax.f32 %v2516, 0.0
      %v2519 = vmax.f32 %v2517, 0.0
      %v2520 = vsub.f32 %v2498, %v2510
      %v2521 = vsub.f32 %v2499, %v2511
      %v2522 = vadd.f32 %v2518, 1e-05
      %v2523 = vadd.f32 %v2519, 1e-05
      %v2524 = vrsqrt.pop %v2522
      %v2525 = vrsqrt.pop %v2523
      %v2526 = vmul.f32 %v2520, %v2524
      %v2527 = vmul.f32 %v2521, %v2525
      %v2528 = vlaneseq
      %v2529 = vshrl.u32 %v2528, 7
      %v2530 = vsub.s32 5, %v2529
      %v2531 = vrot.slane %v795, %v2530
      %v2532 = vmul.f32 %v2526, %v2531
      %v2533 = vmul.f32 %v2527, %v2531
      %v2534 = vlaneseq
      %v2535 = vshrl.u32 %v2534, 7
      %v2536 = vsub.s32 6, %v2535
      %v2537 = vrot.slane %v795, %v2536
      %v2538 = vadd.f32 %v2532, %v2537
      %v2539 = vadd.f32 %v2533, %v2537
      %2540 = vst [vmem:[#allocation2] sm:$0xff] %v2538
      %2541 = vst [vmem:[#allocation2 + $0x8] sm:$0xff] %v2539
      %p2542 = scmp.eq.s32.totalorder %s31, 1
      // Predicated region
      $region85: #{detr_forward.6} parent=79 // pred_check
        %p2543 = pneg %p2542
      $region86: #{detr_forward.6} parent=79 // pred_check_branch
        %2545 = sbr.rel (%p2543) target = $region88
      $region87: #{detr_forward.6} parent=79 // pred_region
        %v2546 = vld [vmem:[%s14] sm:$0x3]
        %2547 = vadd.xlane.f32.xlu0 %v2538
        %v2548 = vpop.xlane.xlu0 %2547
        %2549 = vadd.xlane.f32.xlu0 %v2539
        %v2550 = vpop.xlane.xlu0 %2549
        %v2551 = vmul.f32 %v2538, %v2538
        %v2552 = vmul.f32 %v2539, %v2539
        %2553 = vadd.xlane.f32.xlu0 %v2551
        %v2554 = vpop.xlane.xlu0 %2553
        %2555 = vadd.xlane.f32.xlu0 %v2552
        %v2556 = vpop.xlane.xlu0 %2555
        %v2557 = vmul.f32 %v2548, 0.03125
        %v2558 = vmul.f32 %v2550, 0.03125
        %v2559 = vmul.f32 %v2554, 0.03125
        %v2560 = vmul.f32 %v2556, 0.03125
        %v2561 = vmul.f32 %v2557, %v2557
        %v2562 = vmul.f32 %v2558, %v2558
        %v2563 = vsub.f32 %v2559, %v2561
        %v2564 = vsub.f32 %v2560, %v2562
        %v2565 = vmax.f32 %v2563, 0.0
        %v2566 = vmax.f32 %v2564, 0.0
        %v2567 = vsub.f32 %v2538, %v2557
        %v2568 = vsub.f32 %v2539, %v2558
        %v2569 = vadd.f32 %v2565, 1e-05
        %v2570 = vadd.f32 %v2566, 1e-05
        %v2571 = vrsqrt.pop %v2569
        %v2572 = vrsqrt.pop %v2570
        %v2573 = vmul.f32 %v2567, %v2571
        %v2574 = vmul.f32 %v2568, %v2572
        %v2575 = vlaneseq
        %v2576 = vshrl.u32 %v2575, 7
        %v2577 = vsub.s32 0, %v2576
        %v2578 = vrot.slane %v2546, %v2577
        %v2579 = vmul.f32 %v2573, %v2578
        %v2580 = vmul.f32 %v2574, %v2578
        %v2581 = vlaneseq
        %v2582 = vshrl.u32 %v2581, 7
        %v2583 = vsub.s32 1, %v2582
        %v2584 = vrot.slane %v2546, %v2583
        %v2585 = vadd.f32 %v2579, %v2584
        %v2586 = vadd.f32 %v2580, %v2584
        %v2587 = vpack.c.bf16 %v2585, %v2585
        %v2588 = vpack.c.bf16 %v2586, %v2586
        %2589 = vst [vmem:[%s750] sm:$0xf] %v2587
        %2590 = vst [vmem:[%s750 + $0x4] sm:$0xf] %v2588
      $region88: #{detr_forward.6} parent=79 // pred_fallthru
        _
      %s2591 = smul.u32 2, %s30
      %p2592 = scmp.lt.s32.totalorder %s2591, 1
      %s2593 = scalar_select %p2592, %s2591, 1
      %s2594 = smul.addr %s2593, 4
      %s2595 = scalar_lea.vmem %s15, %s2594
      // Predicated region
      $region89: #{detr_forward.6} parent=79 // pred_check
        %p2596 = pneg %p436
      $region90: #{detr_forward.6} parent=79 // pred_check_branch
        %2598 = sbr.rel (%p2596) target = $region92
      $region91: #{detr_forward.6} parent=79 // pred_region
        %s2599 = smul.u32 2, %s30
      $region92: #{detr_forward.6} parent=79 // pred_fallthru
        _
      // Predicated region
      $region93: #{detr_forward.6} parent=79 // pred_check
        %p2600 = pneg %p436
      $region94: #{detr_forward.6} parent=79 // pred_check_branch
        %2602 = sbr.rel (%p2600) target = $region96
      $region95: #{detr_forward.6} parent=79 // pred_region
        %s2603 = smul.u32 2, %s30
        %p2604 = scmp.lt.s32.totalorder %s2603, 1
        %s2605 = scalar_select %p2604, %s2603, 1
        %s2606 = smul.addr %s2605, 4
        %s2607 = scalar_lea.vmem %s15, %s2606
      $region96: #{detr_forward.6} parent=79 // pred_fallthru
        _
    $region80: #{detr_forward.6} parent=5 // pred_fallthru
      _
    %p2608 = scmp.le.s32.totalorder 2, %s21
    // Predicated region
    $region97: #{detr_forward.6} parent=5 // pred_check
      %p2609 = pneg %p2608
    $region98: #{detr_forward.6} parent=5 // pred_check_branch
      %2611 = sbr.rel (%p2609) target = $region100
    $region99: #{detr_forward.6} parent=5 // pred_region
      %s2612 = ssub.s32 %s21, 2
    $region100: #{detr_forward.6} parent=5 // pred_fallthru
      _
  $region6: #{detr_forward.6} parent=0 // loop_footer
    %s25 = sadd.s32 1, %s21
  $region7: #{detr_forward.6} parent=0 // loop_footer_branch
    %20 = sbr.rel target = $region3
  $region8: #{detr_forward.6} parent=0 // loop_exit
    _

// kernel: squeeze.1
$region0: #{squeeze.1}
  %s0 = inlined_call_operand.vmem [shape: f32[16], index: 0, kind: input, shape index: {}]
  %s1 = inlined_call_operand.hbm [shape: f32[2,8], index: 1, kind: output, shape index: {}]
  $region1: #{squeeze.1} parent=0
    #allocation0 [shape = 'u8[1024]{0}', space=vmem, size = 0x400, scoped, tag = 'operand span for operand 1']
    #allocation1 [shape = 's32[1]{0}', space=sflag, size = 0x4, scoped, tag = 'scoped memory for squeeze.1']
    #allocation2 [shape = 'u8[4096]{0}', space=vmem, size = 0x1000, scoped, tag = 'scoped mem for output reshape']
    #allocation3 [shape = 'u8[4096]{0}', space=vmem, size = 0x1000, scoped, tag = 'scoped mem for input reshape']
    %2 = vsyncpa [#allocation1], 0
    %s4 = sshllo.u32 0, 1
    %v5 = vld [vmem:[%s0] sm:%s4]
    %6 = vst [vmem:[#allocation3] sm:%s4] %v5
    %v7 = vld [vmem:[#allocation3] sm:$0x1]
    %vm8 = vcmask 64512
    %9 = vst.msk [vmem:[#allocation2] sm:$0x1] %vm8, %v7
    %v10 = vld [vmem:[#allocation3] sm:$0x1]
    %11 = vrot.lane.b32.xlu0 %v10, 120
    %v12 = vpop.permute.xlu0 %11
    %vm13 = vcmask 64512
    %s14 = scalar_lea.vmem [#allocation2], 1
    %15 = vst.msk [vmem:[%s14] sm:$0x1] %vm13, %v12
    %s17 = sshllo.u32 0, 2
    %v19 = vld [vmem:[#allocation2] sm:%s17]
    %s20 = sshllo.u32 0, 2
    %21 = vst [vmem:[#allocation0] sm:%s20] %v19
    %s23 = ssub.s32 32, 32
    %24 = vsyncadd [#allocation1], %s23
    %s26 = sshll.u32 [#allocation0], 4
    %s27 = int_to_ptr.vmem [resolvable:$true] %s26
    %29 = dma.vmem_to_hbm [thread:$0]  %s27, 32, %s1, [#allocation1]
    %30 = dma.done [#allocation1], 32
    %31 = vsyncpa [#allocation1], 1

// kernel: detr_forward.7
$region0: #{detr_forward.7}
  #allocation0 [shape = 'u32[]', space=smem, size = 0x4, offset = 0x4, fixed_abs, tag = 'smem constant byte address 0x4 - core index']
  #allocation1 [shape = 'u32[144,128]{1,0:T(1,128)}', space=vmem, size = 0x12000, scoped, tag = 'internal scratch']
  %s0 = inlined_call_operand.vmem [shape: bf16[16,128], index: 0, kind: input, shape index: {}]
  %s1 = inlined_call_operand.vmem [shape: bf16[128,128], index: 1, kind: input, shape index: {}]
  %s2 = inlined_call_operand.vmem [shape: bf16[128,128], index: 2, kind: input, shape index: {}]
  %s3 = inlined_call_operand.vmem [shape: bf16[128,128], index: 3, kind: input, shape index: {}]
  %s4 = inlined_call_operand.vmem [shape: bf16[128,128], index: 4, kind: input, shape index: {}]
  %s5 = inlined_call_operand.vmem [shape: f32[1,128], index: 5, kind: input, shape index: {}]
  %s6 = inlined_call_operand.vmem [shape: f32[2,128], index: 6, kind: input, shape index: {}]
  %s7 = inlined_call_operand.vmem [shape: f32[16,128], index: 7, kind: output, shape index: {}]
  %s8 = sld [smem:[#allocation0]]
  $region38: #{detr_forward.7} parent=0
    _
  %s10 = ssub.s32 1, %s8
  %s11 = scalar_select 0, %s10, %s8
  // Predicated region
  $region2: #{detr_forward.7} parent=0 // pred_check
    _
  $region3: #{detr_forward.7} parent=0 // pred_check_branch
    %13 = sbr.rel (0) target = $region5
  $region4: #{detr_forward.7} parent=0 // pred_region
    _
  $region5: #{detr_forward.7} parent=0 // pred_fallthru
    _
  // Predicated region
  $region6: #{detr_forward.7} parent=0 // pred_check
    _
  $region7: #{detr_forward.7} parent=0 // pred_check_branch
    %15 = sbr.rel (0) target = $region9
  $region8: #{detr_forward.7} parent=0 // pred_region
    _
  $region9: #{detr_forward.7} parent=0 // pred_fallthru
    _
  // Predicated region
  $region10: #{detr_forward.7} parent=0 // pred_check
    _
  $region11: #{detr_forward.7} parent=0 // pred_check_branch
    %17 = sbr.rel (0) target = $region13
  $region12: #{detr_forward.7} parent=0 // pred_region
    _
  $region13: #{detr_forward.7} parent=0 // pred_fallthru
    _
  // Predicated region
  $region14: #{detr_forward.7} parent=0 // pred_check
    _
  $region15: #{detr_forward.7} parent=0 // pred_check_branch
    %19 = sbr.rel (0) target = $region17
  $region16: #{detr_forward.7} parent=0 // pred_region
    _
  $region17: #{detr_forward.7} parent=0 // pred_fallthru
    _
  // Predicated region
  $region18: #{detr_forward.7} parent=0 // pred_check
    _
  $region19: #{detr_forward.7} parent=0 // pred_check_branch
    %21 = sbr.rel (0) target = $region21
  $region20: #{detr_forward.7} parent=0 // pred_region
    _
  $region21: #{detr_forward.7} parent=0 // pred_fallthru
    _
  // Predicated region
  $region22: #{detr_forward.7} parent=0 // pred_check
    _
  $region23: #{detr_forward.7} parent=0 // pred_check_branch
    %23 = sbr.rel (0) target = $region25
  $region24: #{detr_forward.7} parent=0 // pred_region
    _
  $region25: #{detr_forward.7} parent=0 // pred_fallthru
    _
  // Predicated region
  $region26: #{detr_forward.7} parent=0 // pred_check
    _
  $region27: #{detr_forward.7} parent=0 // pred_check_branch
    %25 = sbr.rel (0) target = $region29
  $region28: #{detr_forward.7} parent=0 // pred_region
    _
  $region29: #{detr_forward.7} parent=0 // pred_fallthru
    _
  %v27 = vld [vmem:[%s0] sm:$0xf]
  %v28 = vld [vmem:[%s0 + $0x4] sm:$0xf]
  %v29 = vld [vmem:[%s6] sm:$0x3]
  %v30 = vld [vmem:[%s1] sm:$0xf]
  %v31 = vld [vmem:[%s1 + $0x4] sm:$0xf]
  %v32 = vld [vmem:[%s1 + $0x8] sm:$0xf]
  %v33 = vld [vmem:[%s1 + $0xc] sm:$0xf]
  %v34 = vld [vmem:[%s1 + $0x10] sm:$0xf]
  %v35 = vld [vmem:[%s1 + $0x14] sm:$0xf]
  %v36 = vld [vmem:[%s1 + $0x18] sm:$0xf]
  %v37 = vld [vmem:[%s1 + $0x1c] sm:$0xf]
  %v38 = vld [vmem:[%s1 + $0x20] sm:$0xf]
  %v39 = vld [vmem:[%s1 + $0x24] sm:$0xf]
  %v40 = vld [vmem:[%s1 + $0x28] sm:$0xf]
  %v41 = vld [vmem:[%s1 + $0x2c] sm:$0xf]
  %v42 = vld [vmem:[%s1 + $0x30] sm:$0xf]
  %v43 = vld [vmem:[%s1 + $0x34] sm:$0xf]
  %v44 = vld [vmem:[%s1 + $0x38] sm:$0xf]
  %v45 = vld [vmem:[%s1 + $0x3c] sm:$0xf]
  %v46 = vld [vmem:[%s2] sm:$0xf]
  %v47 = vld [vmem:[%s2 + $0x4] sm:$0xf]
  %v48 = vld [vmem:[%s2 + $0x8] sm:$0xf]
  %v49 = vld [vmem:[%s2 + $0xc] sm:$0xf]
  %v50 = vld [vmem:[%s2 + $0x10] sm:$0xf]
  %v51 = vld [vmem:[%s2 + $0x14] sm:$0xf]
  %v52 = vld [vmem:[%s2 + $0x18] sm:$0xf]
  %v53 = vld [vmem:[%s2 + $0x1c] sm:$0xf]
  %v54 = vld [vmem:[%s2 + $0x20] sm:$0xf]
  %v55 = vld [vmem:[%s2 + $0x24] sm:$0xf]
  %v56 = vld [vmem:[%s2 + $0x28] sm:$0xf]
  %v57 = vld [vmem:[%s2 + $0x2c] sm:$0xf]
  %v58 = vld [vmem:[%s2 + $0x30] sm:$0xf]
  %v59 = vld [vmem:[%s2 + $0x34] sm:$0xf]
  %v60 = vld [vmem:[%s2 + $0x38] sm:$0xf]
  %v61 = vld [vmem:[%s2 + $0x3c] sm:$0xf]
  %v62 = vlaneseq
  %v63 = vshrl.u32 %v62, 7
  %v64 = vsub.s32 0, %v63
  %v65 = vrot.slane %v29, %v64
  %v68 = vunpack.c.l.b16 %v27
  %v69 = vunpack.c.l.b16 %v28
  %v70 = vpack.c.b16 %v69, %v68
  %v88 = vunpack.c.l.b16 %v46
  %v89 = vunpack.c.l.b16 %v47
  %v90 = vunpack.c.l.b16 %v48
  %v91 = vunpack.c.l.b16 %v49
  %v92 = vunpack.c.l.b16 %v50
  %v93 = vunpack.c.l.b16 %v51
  %v94 = vunpack.c.l.b16 %v52
  %v95 = vunpack.c.l.b16 %v53
  %v96 = vunpack.c.l.b16 %v54
  %v97 = vunpack.c.l.b16 %v55
  %v98 = vunpack.c.l.b16 %v56
  %v99 = vunpack.c.l.b16 %v57
  %v100 = vunpack.c.l.b16 %v58
  %v101 = vunpack.c.l.b16 %v59
  %v102 = vunpack.c.l.b16 %v60
  %v103 = vunpack.c.l.b16 %v61
  %v104 = vpack.c.b16 %v89, %v88
  %v105 = vpack.c.b16 %v91, %v90
  %v106 = vpack.c.b16 %v93, %v92
  %v107 = vpack.c.b16 %v95, %v94
  %v108 = vpack.c.b16 %v97, %v96
  %v109 = vpack.c.b16 %v99, %v98
  %v110 = vpack.c.b16 %v101, %v100
  %v111 = vpack.c.b16 %v103, %v102
  %120 = vmatprep.subr.bf16.mxu0 0
  %121 = vmatpush1.bf16.msra.mxu0 %v104
  %122 = vmatprep.subr.bf16.mxu0 0
  %123 = vmatpush1.bf16.msra.mxu0 %v105
  %124 = vmatprep.subr.bf16.mxu0 0
  %125 = vmatpush1.bf16.msra.mxu0 %v106
  %126 = vmatprep.subr.bf16.mxu0 0
  %127 = vmatpush1.bf16.msra.mxu0 %v107
  %128 = vmatprep.subr.bf16.mxu0 0
  %129 = vmatpush1.bf16.msra.mxu0 %v108
  %130 = vmatprep.subr.bf16.mxu0 0
  %131 = vmatpush1.bf16.msra.mxu0 %v109
  %132 = vmatprep.subr.bf16.mxu0 0
  %133 = vmatpush1.bf16.msra.mxu0 %v110
  %134 = vmatprep.subr.bf16.mxu0 0
  %135 = vmatpush1.bf16.msra.mxu0 %v111
  %136 = vmatprep.subr.bf16.mxu0 0
  %137 = vmatpush1.bf16.msra.mxu0 0
  %138 = vmatprep.subr.bf16.mxu0 0
  %139 = vmatpush1.bf16.msra.mxu0 0
  %140 = vmatprep.subr.bf16.mxu0 0
  %141 = vmatpush1.bf16.msra.mxu0 0
  %142 = vmatprep.subr.bf16.mxu0 0
  %143 = vmatpush1.bf16.msra.mxu0 0
  %144 = vmatprep.subr.bf16.mxu0 0
  %145 = vmatpush1.bf16.msra.mxu0 0
  %146 = vmatprep.subr.bf16.mxu0 0
  %147 = vmatpush1.bf16.msra.mxu0 0
  %148 = vmatprep.subr.bf16.mxu0 0
  %149 = vmatpush1.bf16.msra.mxu0 0
  %150 = vmatprep.subr.bf16.mxu0 0
  %151 = vmatpush1.bf16.msra.mxu0 0
  %152 = vmatprep.mubr.bf16.mxu0 0
  %153 = vmatmul.mubr.bf16.gmra.mrb[0].mxu0 %v70
  %v154 = vpop.f32.mrb[0].mxu0
  %v155 = vadd.f32 %v65, %v154
  %v156 = vpop.f32.mrb[0].mxu0
  %v157 = vpop.f32.mrb[0].mxu0
  %v158 = vadd.f32 %v65, %v157
  %v159 = vpop.f32.mrb[0].mxu0
  %160 = vdwg.mxu0
  %v161 = vmax.f32 %v155, 0.0
  %v162 = vmax.f32 %v158, 0.0
  %v163 = vpack.c.bf16 %v162, %v161
  %v164 = vld [vmem:[%s3] sm:$0xf]
  %v165 = vld [vmem:[%s3 + $0x4] sm:$0xf]
  %v166 = vld [vmem:[%s3 + $0x8] sm:$0xf]
  %v167 = vld [vmem:[%s3 + $0xc] sm:$0xf]
  %v168 = vld [vmem:[%s3 + $0x10] sm:$0xf]
  %v169 = vld [vmem:[%s3 + $0x14] sm:$0xf]
  %v170 = vld [vmem:[%s3 + $0x18] sm:$0xf]
  %v171 = vld [vmem:[%s3 + $0x1c] sm:$0xf]
  %v172 = vld [vmem:[%s3 + $0x20] sm:$0xf]
  %v173 = vld [vmem:[%s3 + $0x24] sm:$0xf]
  %v174 = vld [vmem:[%s3 + $0x28] sm:$0xf]
  %v175 = vld [vmem:[%s3 + $0x2c] sm:$0xf]
  %v176 = vld [vmem:[%s3 + $0x30] sm:$0xf]
  %v177 = vld [vmem:[%s3 + $0x34] sm:$0xf]
  %v178 = vld [vmem:[%s3 + $0x38] sm:$0xf]
  %v179 = vld [vmem:[%s3 + $0x3c] sm:$0xf]
  %v180 = vlaneseq
  %v181 = vshrl.u32 %v180, 7
  %v182 = vsub.s32 1, %v181
  %v183 = vrot.slane %v29, %v182
  %v200 = vunpack.c.l.b16 %v164
  %v201 = vunpack.c.l.b16 %v165
  %v202 = vunpack.c.l.b16 %v166
  %v203 = vunpack.c.l.b16 %v167
  %v204 = vunpack.c.l.b16 %v168
  %v205 = vunpack.c.l.b16 %v169
  %v206 = vunpack.c.l.b16 %v170
  %v207 = vunpack.c.l.b16 %v171
  %v208 = vunpack.c.l.b16 %v172
  %v209 = vunpack.c.l.b16 %v173
  %v210 = vunpack.c.l.b16 %v174
  %v211 = vunpack.c.l.b16 %v175
  %v212 = vunpack.c.l.b16 %v176
  %v213 = vunpack.c.l.b16 %v177
  %v214 = vunpack.c.l.b16 %v178
  %v215 = vunpack.c.l.b16 %v179
  %v216 = vpack.c.b16 %v201, %v200
  %v217 = vpack.c.b16 %v203, %v202
  %v218 = vpack.c.b16 %v205, %v204
  %v219 = vpack.c.b16 %v207, %v206
  %v220 = vpack.c.b16 %v209, %v208
  %v221 = vpack.c.b16 %v211, %v210
  %v222 = vpack.c.b16 %v213, %v212
  %v223 = vpack.c.b16 %v215, %v214
  %232 = vmatprep.subr.bf16.mxu0 0
  %233 = vmatpush1.bf16.msra.mxu0 %v216
  %234 = vmatprep.subr.bf16.mxu0 0
  %235 = vmatpush1.bf16.msra.mxu0 %v217
  %236 = vmatprep.subr.bf16.mxu0 0
  %237 = vmatpush1.bf16.msra.mxu0 %v218
  %238 = vmatprep.subr.bf16.mxu0 0
  %239 = vmatpush1.bf16.msra.mxu0 %v219
  %240 = vmatprep.subr.bf16.mxu0 0
  %241 = vmatpush1.bf16.msra.mxu0 %v220
  %242 = vmatprep.subr.bf16.mxu0 0
  %243 = vmatpush1.bf16.msra.mxu0 %v221
  %244 = vmatprep.subr.bf16.mxu0 0
  %245 = vmatpush1.bf16.msra.mxu0 %v222
  %246 = vmatprep.subr.bf16.mxu0 0
  %247 = vmatpush1.bf16.msra.mxu0 %v223
  %248 = vmatprep.subr.bf16.mxu0 0
  %249 = vmatpush1.bf16.msra.mxu0 0
  %250 = vmatprep.subr.bf16.mxu0 0
  %251 = vmatpush1.bf16.msra.mxu0 0
  %252 = vmatprep.subr.bf16.mxu0 0
  %253 = vmatpush1.bf16.msra.mxu0 0
  %254 = vmatprep.subr.bf16.mxu0 0
  %255 = vmatpush1.bf16.msra.mxu0 0
  %256 = vmatprep.subr.bf16.mxu0 0
  %257 = vmatpush1.bf16.msra.mxu0 0
  %258 = vmatprep.subr.bf16.mxu0 0
  %259 = vmatpush1.bf16.msra.mxu0 0
  %260 = vmatprep.subr.bf16.mxu0 0
  %261 = vmatpush1.bf16.msra.mxu0 0
  %262 = vmatprep.subr.bf16.mxu0 0
  %263 = vmatpush1.bf16.msra.mxu0 0
  %264 = vmatprep.mubr.bf16.mxu0 0
  %265 = vmatmul.mubr.bf16.gmra.mrb[0].mxu0 %v163
  %v266 = vpop.f32.mrb[0].mxu0
  %v267 = vadd.f32 %v183, %v266
  %v268 = vpop.f32.mrb[0].mxu0
  %v269 = vpop.f32.mrb[0].mxu0
  %v270 = vadd.f32 %v183, %v269
  %v271 = vpop.f32.mrb[0].mxu0
  %272 = vdwg.mxu0
  %v273 = vmax.f32 %v267, 0.0
  %v274 = vmax.f32 %v270, 0.0
  %v275 = vpack.c.bf16 %v274, %v273
  %v276 = vld [vmem:[%s4] sm:$0xf]
  %v277 = vld [vmem:[%s4 + $0x4] sm:$0xf]
  %v278 = vld [vmem:[%s4 + $0x8] sm:$0xf]
  %v279 = vld [vmem:[%s4 + $0xc] sm:$0xf]
  %v280 = vld [vmem:[%s4 + $0x10] sm:$0xf]
  %v281 = vld [vmem:[%s4 + $0x14] sm:$0xf]
  %v282 = vld [vmem:[%s4 + $0x18] sm:$0xf]
  %v283 = vld [vmem:[%s4 + $0x1c] sm:$0xf]
  %v284 = vld [vmem:[%s4 + $0x20] sm:$0xf]
  %v285 = vld [vmem:[%s4 + $0x24] sm:$0xf]
  %v286 = vld [vmem:[%s4 + $0x28] sm:$0xf]
  %v287 = vld [vmem:[%s4 + $0x2c] sm:$0xf]
  %v288 = vld [vmem:[%s4 + $0x30] sm:$0xf]
  %v289 = vld [vmem:[%s4 + $0x34] sm:$0xf]
  %v290 = vld [vmem:[%s4 + $0x38] sm:$0xf]
  %v291 = vld [vmem:[%s4 + $0x3c] sm:$0xf]
  %v308 = vunpack.c.l.b16 %v276
  %v309 = vunpack.c.l.b16 %v277
  %v310 = vunpack.c.l.b16 %v278
  %v311 = vunpack.c.l.b16 %v279
  %v312 = vunpack.c.l.b16 %v280
  %v313 = vunpack.c.l.b16 %v281
  %v314 = vunpack.c.l.b16 %v282
  %v315 = vunpack.c.l.b16 %v283
  %v316 = vunpack.c.l.b16 %v284
  %v317 = vunpack.c.l.b16 %v285
  %v318 = vunpack.c.l.b16 %v286
  %v319 = vunpack.c.l.b16 %v287
  %v320 = vunpack.c.l.b16 %v288
  %v321 = vunpack.c.l.b16 %v289
  %v322 = vunpack.c.l.b16 %v290
  %v323 = vunpack.c.l.b16 %v291
  %v324 = vpack.c.b16 %v309, %v308
  %v325 = vpack.c.b16 %v311, %v310
  %v326 = vpack.c.b16 %v313, %v312
  %v327 = vpack.c.b16 %v315, %v314
  %v328 = vpack.c.b16 %v317, %v316
  %v329 = vpack.c.b16 %v319, %v318
  %v330 = vpack.c.b16 %v321, %v320
  %v331 = vpack.c.b16 %v323, %v322
  %340 = vmatprep.subr.bf16.mxu0 0
  %341 = vmatpush1.bf16.msra.mxu0 %v324
  %342 = vmatprep.subr.bf16.mxu0 0
  %343 = vmatpush1.bf16.msra.mxu0 %v325
  %344 = vmatprep.subr.bf16.mxu0 0
  %345 = vmatpush1.bf16.msra.mxu0 %v326
  %346 = vmatprep.subr.bf16.mxu0 0
  %347 = vmatpush1.bf16.msra.mxu0 %v327
  %348 = vmatprep.subr.bf16.mxu0 0
  %349 = vmatpush1.bf16.msra.mxu0 %v328
  %350 = vmatprep.subr.bf16.mxu0 0
  %351 = vmatpush1.bf16.msra.mxu0 %v329
  %352 = vmatprep.subr.bf16.mxu0 0
  %353 = vmatpush1.bf16.msra.mxu0 %v330
  %354 = vmatprep.subr.bf16.mxu0 0
  %355 = vmatpush1.bf16.msra.mxu0 %v331
  %356 = vmatprep.subr.bf16.mxu0 0
  %357 = vmatpush1.bf16.msra.mxu0 0
  %358 = vmatprep.subr.bf16.mxu0 0
  %359 = vmatpush1.bf16.msra.mxu0 0
  %360 = vmatprep.subr.bf16.mxu0 0
  %361 = vmatpush1.bf16.msra.mxu0 0
  %362 = vmatprep.subr.bf16.mxu0 0
  %363 = vmatpush1.bf16.msra.mxu0 0
  %364 = vmatprep.subr.bf16.mxu0 0
  %365 = vmatpush1.bf16.msra.mxu0 0
  %366 = vmatprep.subr.bf16.mxu0 0
  %367 = vmatpush1.bf16.msra.mxu0 0
  %368 = vmatprep.subr.bf16.mxu0 0
  %369 = vmatpush1.bf16.msra.mxu0 0
  %370 = vmatprep.subr.bf16.mxu0 0
  %371 = vmatpush1.bf16.msra.mxu0 0
  %372 = vmatprep.mubr.bf16.mxu0 0
  %373 = vmatmul.mubr.bf16.gmra.mrb[0].mxu0 %v275
  %v374 = vpop.f32.mrb[0].mxu0
  %v375 = vadd.f32 0.0, %v374
  %v376 = vpop.f32.mrb[0].mxu0
  %v377 = vpop.f32.mrb[0].mxu0
  %v378 = vadd.f32 0.0, %v377
  %v379 = vpop.f32.mrb[0].mxu0
  %380 = vdwg.mxu0
  %v397 = vunpack.c.l.b16 %v30
  %v398 = vunpack.c.l.b16 %v31
  %v399 = vunpack.c.l.b16 %v32
  %v400 = vunpack.c.l.b16 %v33
  %v401 = vunpack.c.l.b16 %v34
  %v402 = vunpack.c.l.b16 %v35
  %v403 = vunpack.c.l.b16 %v36
  %v404 = vunpack.c.l.b16 %v37
  %v405 = vunpack.c.l.b16 %v38
  %v406 = vunpack.c.l.b16 %v39
  %v407 = vunpack.c.l.b16 %v40
  %v408 = vunpack.c.l.b16 %v41
  %v409 = vunpack.c.l.b16 %v42
  %v410 = vunpack.c.l.b16 %v43
  %v411 = vunpack.c.l.b16 %v44
  %v412 = vunpack.c.l.b16 %v45
  %v413 = vpack.c.b16 %v398, %v397
  %v414 = vpack.c.b16 %v400, %v399
  %v415 = vpack.c.b16 %v402, %v401
  %v416 = vpack.c.b16 %v404, %v403
  %v417 = vpack.c.b16 %v406, %v405
  %v418 = vpack.c.b16 %v408, %v407
  %v419 = vpack.c.b16 %v410, %v409
  %v420 = vpack.c.b16 %v412, %v411
  %429 = vmatprep.subr.bf16.mxu0 0
  %430 = vmatpush1.bf16.msra.mxu0 %v413
  %431 = vmatprep.subr.bf16.mxu0 0
  %432 = vmatpush1.bf16.msra.mxu0 %v414
  %433 = vmatprep.subr.bf16.mxu0 0
  %434 = vmatpush1.bf16.msra.mxu0 %v415
  %435 = vmatprep.subr.bf16.mxu0 0
  %436 = vmatpush1.bf16.msra.mxu0 %v416
  %437 = vmatprep.subr.bf16.mxu0 0
  %438 = vmatpush1.bf16.msra.mxu0 %v417
  %439 = vmatprep.subr.bf16.mxu0 0
  %440 = vmatpush1.bf16.msra.mxu0 %v418
  %441 = vmatprep.subr.bf16.mxu0 0
  %442 = vmatpush1.bf16.msra.mxu0 %v419
  %443 = vmatprep.subr.bf16.mxu0 0
  %444 = vmatpush1.bf16.msra.mxu0 %v420
  %445 = vmatprep.subr.bf16.mxu0 0
  %446 = vmatpush1.bf16.msra.mxu0 0
  %447 = vmatprep.subr.bf16.mxu0 0
  %448 = vmatpush1.bf16.msra.mxu0 0
  %449 = vmatprep.subr.bf16.mxu0 0
  %450 = vmatpush1.bf16.msra.mxu0 0
  %451 = vmatprep.subr.bf16.mxu0 0
  %452 = vmatpush1.bf16.msra.mxu0 0
  %453 = vmatprep.subr.bf16.mxu0 0
  %454 = vmatpush1.bf16.msra.mxu0 0
  %455 = vmatprep.subr.bf16.mxu0 0
  %456 = vmatpush1.bf16.msra.mxu0 0
  %457 = vmatprep.subr.bf16.mxu0 0
  %458 = vmatpush1.bf16.msra.mxu0 0
  %459 = vmatprep.subr.bf16.mxu0 0
  %460 = vmatpush1.bf16.msra.mxu0 0
  %461 = vmatprep.mubr.bf16.mxu0 0
  %462 = vmatmul.mubr.bf16.gmra.mrb[0].mxu0 %v70
  %v463 = vpop.f32.mrb[0].mxu0
  %v464 = vadd.f32 %v375, %v463
  %v465 = vpop.f32.mrb[0].mxu0
  %v466 = vpop.f32.mrb[0].mxu0
  %v467 = vadd.f32 %v378, %v466
  %v468 = vpop.f32.mrb[0].mxu0
  %469 = vdwg.mxu0
  %v470 = vld [vmem:[%s5] sm:$0x1]
  %v472 = vlaneseq
  %v473 = vshrl.u32 %v472, 7
  %v474 = vsub.s32 0, %v473
  %v475 = vrot.slane %v470, %v474
  %v477 = vadd.f32 %v464, %v475
  %v478 = vadd.f32 %v467, %v475
  %v479 = vxor.u32 %v477, 2147483648
  %v480 = vxor.u32 %v478, 2147483648
  %v481 = vmul.f32 %v479, 1.442695
  %v482 = vpow.pop %v481
  %v483 = vmul.f32 %v480, 1.442695
  %v484 = vpow.pop %v483
  %v485 = vadd.f32 %v482, 1.0
  %v486 = vadd.f32 %v484, 1.0
  %v487 = vrcp.pop %v485
  %v488 = vmul.f32 1.0, %v487
  %v489 = vrcp.pop %v486
  %v490 = vmul.f32 1.0, %v489
  %491 = vst [vmem:[%s7] sm:$0xff] %v488
  %492 = vst [vmem:[%s7 + $0x8] sm:$0xff] %v490
  // Predicated region
  $region30: #{detr_forward.7} parent=0 // pred_check
    _
  $region31: #{detr_forward.7} parent=0 // pred_check_branch
    %494 = sbr.rel (0) target = $region33
  $region32: #{detr_forward.7} parent=0 // pred_region
    _
  $region33: #{detr_forward.7} parent=0 // pred_fallthru
    _
  // Predicated region
  $region34: #{detr_forward.7} parent=0 // pred_check
    _
  $region35: #{detr_forward.7} parent=0 // pred_check_branch
    %496 = sbr.rel (0) target = $region37
  $region36: #{detr_forward.7} parent=0 // pred_region
    _
  $region37: #{detr_forward.7} parent=0 // pred_fallthru
    _

</llo_original>
